<compile_context>
chip_gen: v7x
topology: tpu7x:2x2x1
jax: 0.10.0
libtpu: 0.0.40
codegen_flags: <defaults>
</compile_context>

<pallas_src>
import functools
import math

import numpy as np

import jax
import jax.numpy as jnp
from jax.experimental import pallas as pl
from jax.experimental.pallas import tpu as pltpu

_BN_EPS = 1e-5
KERNEL_SIZE = 2
NR_BLOCKS = 6
_SQRT_2_OVER_PI = math.sqrt(2.0 / math.pi)


# ---------------------------------------------------------------------------
# Helpers
# ---------------------------------------------------------------------------
def _gelu(y):
    # tanh-approx GELU (EUP path); <~1e-3 from torch's erf default (accepted).
    return 0.5 * y * (1.0 + jnp.tanh(_SQRT_2_OVER_PI * (y + 0.044715 * y * y * y)))


def _sigmoid_approx(y):
    # sigmoid via EUP exp + approximate reciprocal (avoids the VALU divide).
    return pl.reciprocal(1.0 + jnp.exp(-y), approx=True)


def _pad_geometry(d, L):
    """'same' padding split for kernel_size=2 / dilation d, plus the
    8-row-aligned offset of the data region inside the tap scratch."""
    left = d // 2
    right = d - left
    a = ((left + 7) // 8) * 8          # aligned start row of the data region
    return left, right, a, a + L + right


# ---------------------------------------------------------------------------
# Fully fused kernel: whole TBDMNet forward for one batch group.
# ---------------------------------------------------------------------------
def _fused_kernel(*refs, nblocks):
    n_w = 6 * nblocks
    x_ref = refs[0]                      # (Bg, L, 2F) f32 combined fwd/bkwd
    wrefs = refs[1:1 + n_w]              # per block: w1, sh1, w2, sh2, wd, shd
    wh_ref = refs[1 + n_w]               # folded WeightLayer*fc: (6F, classes)
    fcb_ref = refs[2 + n_w]              # fc bias (1, classes)
    o_ref = refs[3 + n_w]                # (1, Bg, classes)
    pad_refs = refs[4 + n_w:]            # per-block bf16 tap scratch buffers

    Bg, L, _ = x_ref.shape
    state = x_ref[...]                   # (Bg, L, 2F) f32
    pooled = []

    for i in range(nblocks):
        w1_ref, sh1_ref, w2_ref, sh2_ref, wd_ref, shd_ref = wrefs[6 * i:6 * i + 6]
        pad = pad_refs[i]
        d = 1 << i
        left, right, a, _ = _pad_geometry(d, L)
        C2 = state.shape[-1]
        m_rows = Bg * L

        # Zero only the padding rows once (data rows are fully overwritten),
        # so both dilation taps below are pure static slices of `pad`.
        if a:
            pad[:, 0:a, :] = jnp.zeros((Bg, a, C2), jnp.bfloat16)
        pad[:, a + L:, :] = jnp.zeros((Bg, right, C2), jnp.bfloat16)

        def conv_same(v3, w_ref, shift):
            # 'same'-padded dilated conv (k=2): one bf16 cast at the aligned
            # scratch write, batch folded into M, f32 accumulation on the MXU.
            pad[:, a:a + L, :] = v3.astype(jnp.bfloat16)
            t0 = pad[:, a - left:a - left + L, :].reshape(m_rows, C2)
            t1 = pad[:, a + right:a + right + L, :].reshape(m_rows, C2)
            acc = jnp.dot(t0, w_ref[0], preferred_element_type=jnp.float32)
            acc = acc + jnp.dot(t1, w_ref[1], preferred_element_type=jnp.float32)
            return acc + shift

        # conv_1_1 + BN + GELU (BN scale folded into w; shift is the BN shift)
        h = _gelu(conv_same(state, w1_ref, sh1_ref[...]))             # (M, C2)
        # conv_2_1 + BN + GELU + sigmoid -> gate
        g = _sigmoid_approx(
            _gelu(conv_same(h.reshape(Bg, L, C2), w2_ref, sh2_ref[...])))
        orig = state.reshape(m_rows, C2)
        gated = orig * g                                              # F_x
        skip = jnp.concatenate([gated, orig], axis=-1)                # (M, 2*C2)

        # Dimension_Change(skip_f + skip_b) + BN + ReLU + AvgPool1d(L).
        # The fwd/bkwd add is folded into wd (rows replicated at init).
        y = jnp.dot(skip.astype(jnp.bfloat16), wd_ref[...],
                    preferred_element_type=jnp.float32) + shd_ref[...]
        y = jnp.maximum(y, 0.0)
        pooled.append(jnp.mean(y.reshape(Bg, L, y.shape[-1]), axis=1))  # (Bg,F)

        state = skip.reshape(Bg, L, 2 * C2)

    # Head: WeightLayer + fc folded (linearity) into one (6F, classes) matmul.
    feat = jnp.concatenate(pooled, axis=-1)                           # (Bg, 6F)
    out = jnp.dot(feat, wh_ref[...],
                  preferred_element_type=jnp.float32) + fcb_ref[...]
    o_ref[0] = out.astype(o_ref.dtype)


def _const_spec(shape):
    nd = len(shape)
    return pl.BlockSpec(shape, lambda g, _nd=nd: (0,) * _nd)


# ---------------------------------------------------------------------------
# Model forward (thin glue: layout transposes + the single pallas_call)
# ---------------------------------------------------------------------------
def tbdm_forward(params, x_ncl):
    """x_ncl: (B, nb_features, L), same NCL layout as the PyTorch module."""
    B, F, L = x_ncl.shape
    nblocks = len(params["blocks"])
    classes = params["fc_b"].shape[-1]

    # Combined bidirectional state: fwd / bkwd lanes alternate in F-sized
    # groups at every depth (weights are built in that same order at init).
    fwd = jnp.transpose(x_ncl, (0, 2, 1))
    bwd = jnp.transpose(jnp.flip(x_ncl, axis=2), (0, 2, 1))
    state = jnp.concatenate([fwd, bwd], axis=-1)                     # (B, L, 2F)

    # One fused kernel.  Grid = batch halves ("parallel") so both TensorCores
    # get work on v7x; within a step the group batch is folded into matmul M.
    groups = 2 if (B >= 2 and B % 2 == 0) else 1
    Bg = B // groups

    flat_w = []
    in_specs = [pl.BlockSpec((Bg, L, 2 * F), lambda g: (g, 0, 0))]
    for p in params["blocks"]:
        for name in ("w1", "sh1", "w2", "sh2", "wd", "shd"):
            flat_w.append(p[name])
            in_specs.append(_const_spec(p[name].shape))
    for name in ("w_head", "fc_b"):
        flat_w.append(params[name])
        in_specs.append(_const_spec(params[name].shape))

    out = pl.pallas_call(
        functools.partial(_fused_kernel, nblocks=nblocks),
        out_shape=jax.ShapeDtypeStruct((groups, Bg, classes), jnp.float32),
        grid=(groups,),
        in_specs=in_specs,
        out_specs=pl.BlockSpec((1, Bg, classes), lambda g: (g, 0, 0)),
        scratch_shapes=[
            pltpu.VMEM((Bg, _pad_geometry(1 << i, L)[3], 2 * F * (1 << i)),
                       jnp.bfloat16)
            for i in range(nblocks)
        ],
        compiler_params=pltpu.CompilerParams(
            dimension_semantics=("parallel",),      # megacore on v7x
            vmem_limit_bytes=32 * 1024 * 1024,      # safe on v5e/v6e/v7x
        ),
    )(state, *flat_w)
    return out.reshape(B, classes)


# ---------------------------------------------------------------------------
# Pure-jnp mirror of the kernel math (same folded weights / layout), used as
# an in-script tolerance check.
# ---------------------------------------------------------------------------
def reference_forward(params, x_ncl):
    B, F, L = x_ncl.shape
    fwd = jnp.transpose(x_ncl, (0, 2, 1))
    bwd = jnp.transpose(jnp.flip(x_ncl, axis=2), (0, 2, 1))
    state = jnp.concatenate([fwd, bwd], axis=-1)
    pooled = []
    for i, p in enumerate(params["blocks"]):
        d = 1 << i
        left, right = d // 2, d - d // 2

        def conv_same(v3, w, shift):
            vb = jnp.pad(v3.astype(jnp.bfloat16), ((0, 0), (left, right), (0, 0)))
            acc = jnp.dot(vb[:, 0:L], w[0], preferred_element_type=jnp.float32)
            acc = acc + jnp.dot(vb[:, d:d + L], w[1],
                                preferred_element_type=jnp.float32)
            return acc + shift

        h = _gelu(conv_same(state, p["w1"], p["sh1"]))
        g = jax.nn.sigmoid(_gelu(conv_same(h, p["w2"], p["sh2"])))
        skip = jnp.concatenate([state * g, state], axis=-1)
        y = jnp.maximum(
            jnp.dot(skip.astype(jnp.bfloat16), p["wd"],
                    preferred_element_type=jnp.float32) + p["shd"], 0.0)
        pooled.append(jnp.mean(y, axis=1))
        state = skip
    feat = jnp.concatenate(pooled, axis=-1)
    return jnp.dot(feat, params["w_head"],
                   preferred_element_type=jnp.float32) + params["fc_b"]


# ---------------------------------------------------------------------------
# Deterministic parameter init (shapes follow the module's __init__), with
# BN scale folded into conv weights, fwd/bkwd block-diagonal conv weights,
# the skip_f + skip_b add folded into the Dimension_Change weight, and the
# WeightLayer kernel folded into the final Linear.
# ---------------------------------------------------------------------------
def init_params(key, nb_features, classes, ksize=KERNEL_SIZE,
                nr_blocks=NR_BLOCKS):
    bn_scale = 1.0 / math.sqrt(1.0 + _BN_EPS)   # BN eval with fresh stats
    F = nb_features
    blocks = []
    for i in range(nr_blocks):
        Cb = F * (2 ** i)           # per-branch channels of this block
        C2 = 2 * Cb                 # combined fwd+bkwd channels
        lanes = np.arange(C2)
        same_branch = (((lanes[:, None] // F) % 2) ==
                       ((lanes[None, :] // F) % 2)).astype(np.float32)
        std = 1.0 / math.sqrt(Cb * ksize)
        key, k1, k2, kd = jax.random.split(key, 4)
        # Block-diagonal (no fwd<->bkwd mixing) dilated-conv weights, stored
        # tap-major (K, Cin, Cout), BN scale folded in, cast to bf16.
        w1 = jax.random.normal(k1, (ksize, C2, C2), jnp.float32) * std
        w2 = jax.random.normal(k2, (ksize, C2, C2), jnp.float32) * std
        w1 = (w1 * same_branch[None] * bn_scale).astype(jnp.bfloat16)
        w2 = (w2 * same_branch[None] * bn_scale).astype(jnp.bfloat16)
        # Dimension_Change acts on (skip_f + skip_b); by linearity its (C2, F)
        # weight is replicated onto the matching fwd/bkwd lanes of the stored
        # 2*C2-channel combined skip, so the kernel needs no explicit add.
        wd = jax.random.normal(kd, (C2, F), jnp.float32) / math.sqrt(C2)
        p4 = np.arange(2 * C2)
        wchan = (p4 // (2 * F)) * F + (p4 % F)
        wd_exp = (wd[wchan] * bn_scale).astype(jnp.bfloat16)
        blocks.append(dict(
            w1=w1, sh1=jnp.zeros((1, C2), jnp.float32),
            w2=w2, sh2=jnp.zeros((1, C2), jnp.float32),
            wd=wd_exp, shd=jnp.zeros((1, F), jnp.float32),
        ))
    key, kw, kfw, kfb = jax.random.split(key, 4)
    # WeightLayer kernel: torch.Tensor(nr_blocks, 1).uniform_()
    wl = jax.random.uniform(kw, (nr_blocks,), jnp.float32)
    bound = 1.0 / math.sqrt(F)
    fc_w = jax.random.uniform(kfw, (F, classes), jnp.float32, -bound, bound)
    fc_b = jax.random.uniform(kfb, (1, classes), jnp.float32, -bound, bound)
    # Head fold (pure linearity): out = sum_i wl[i] * pooled_i @ fc_w + fc_b
    #                                 = concat_i(pooled_i) @ w_head + fc_b
    w_head = (wl[:, None, None] * fc_w[None, :, :]).reshape(nr_blocks * F,
                                                            classes)
    return dict(blocks=blocks, w_head=w_head, fc_b=fc_b)


if __name__ == "__main__":
    B, F, L, CLASSES = 2, 4, 64, 3      # batch, nb_features, seq_len, classes
    key = jax.random.PRNGKey(0)
    kx, kp = jax.random.split(key)
    x = jax.random.normal(kx, (B, F, L), jnp.float32)   # NCL like PyTorch
    params = init_params(kp, F, CLASSES)

    out = jax.jit(tbdm_forward)(params, x)
    jax.block_until_ready(out)

    assert out.shape == (B, CLASSES) and out.dtype == jnp.float32
    assert bool(jnp.all(jnp.isfinite(out)))
    ref = reference_forward(params, x)
    assert bool(jnp.allclose(out, ref, rtol=3e-2, atol=3e-2)), (
        "max abs diff vs reference: %f" % float(jnp.max(jnp.abs(out - ref))))
    print("KERNEL_OK")
</pallas_src>

<mosaic_0001>
module attributes {stable_mosaic.version = 11 : i64} {
  func.func @_fused_kernel(%arg0: i32, %arg1: memref<1x64x8xf32, #tpu.memory_space<vmem>>, %arg2: memref<2x8x8xbf16, #tpu.memory_space<vmem>>, %arg3: memref<1x8xf32, #tpu.memory_space<vmem>>, %arg4: memref<2x8x8xbf16, #tpu.memory_space<vmem>>, %arg5: memref<1x8xf32, #tpu.memory_space<vmem>>, %arg6: memref<16x4xbf16, #tpu.memory_space<vmem>>, %arg7: memref<1x4xf32, #tpu.memory_space<vmem>>, %arg8: memref<2x16x16xbf16, #tpu.memory_space<vmem>>, %arg9: memref<1x16xf32, #tpu.memory_space<vmem>>, %arg10: memref<2x16x16xbf16, #tpu.memory_space<vmem>>, %arg11: memref<1x16xf32, #tpu.memory_space<vmem>>, %arg12: memref<32x4xbf16, #tpu.memory_space<vmem>>, %arg13: memref<1x4xf32, #tpu.memory_space<vmem>>, %arg14: memref<2x32x32xbf16, #tpu.memory_space<vmem>>, %arg15: memref<1x32xf32, #tpu.memory_space<vmem>>, %arg16: memref<2x32x32xbf16, #tpu.memory_space<vmem>>, %arg17: memref<1x32xf32, #tpu.memory_space<vmem>>, %arg18: memref<64x4xbf16, #tpu.memory_space<vmem>>, %arg19: memref<1x4xf32, #tpu.memory_space<vmem>>, %arg20: memref<2x64x64xbf16, #tpu.memory_space<vmem>>, %arg21: memref<1x64xf32, #tpu.memory_space<vmem>>, %arg22: memref<2x64x64xbf16, #tpu.memory_space<vmem>>, %arg23: memref<1x64xf32, #tpu.memory_space<vmem>>, %arg24: memref<128x4xbf16, #tpu.memory_space<vmem>>, %arg25: memref<1x4xf32, #tpu.memory_space<vmem>>, %arg26: memref<2x128x128xbf16, #tpu.memory_space<vmem>>, %arg27: memref<1x128xf32, #tpu.memory_space<vmem>>, %arg28: memref<2x128x128xbf16, #tpu.memory_space<vmem>>, %arg29: memref<1x128xf32, #tpu.memory_space<vmem>>, %arg30: memref<256x4xbf16, #tpu.memory_space<vmem>>, %arg31: memref<1x4xf32, #tpu.memory_space<vmem>>, %arg32: memref<2x256x256xbf16, #tpu.memory_space<vmem>>, %arg33: memref<1x256xf32, #tpu.memory_space<vmem>>, %arg34: memref<2x256x256xbf16, #tpu.memory_space<vmem>>, %arg35: memref<1x256xf32, #tpu.memory_space<vmem>>, %arg36: memref<512x4xbf16, #tpu.memory_space<vmem>>, %arg37: memref<1x4xf32, #tpu.memory_space<vmem>>, %arg38: memref<24x3xf32, #tpu.memory_space<vmem>>, %arg39: memref<1x3xf32, #tpu.memory_space<vmem>>, %arg40: memref<1x1x3xf32, #tpu.memory_space<vmem>>, %arg41: memref<1x65x8xbf16, #tpu.memory_space<vmem>>, %arg42: memref<1x73x16xbf16, #tpu.memory_space<vmem>>, %arg43: memref<1x74x32xbf16, #tpu.memory_space<vmem>>, %arg44: memref<1x76x64xbf16, #tpu.memory_space<vmem>>, %arg45: memref<1x80x128xbf16, #tpu.memory_space<vmem>>, %arg46: memref<1x96x256xbf16, #tpu.memory_space<vmem>>) attributes {dimension_semantics = [#tpu.dimension_semantics<parallel>], iteration_bounds = array<i64: 2>, scalar_prefetch = 0 : i64, scratch_operands = 6 : i64, tpu.core_type = #tpu.core_type<tc>, window_params = [{transform_indices = @transform_0, window_bounds = array<i64: 1, 64, 8>}, {pipeline_mode = #tpu.pipeline_mode<synchronous>, transform_indices = @transform_1, window_bounds = array<i64: 2, 8, 8>}, {pipeline_mode = #tpu.pipeline_mode<synchronous>, transform_indices = @transform_2, window_bounds = array<i64: 1, 8>}, {pipeline_mode = #tpu.pipeline_mode<synchronous>, transform_indices = @transform_3, window_bounds = array<i64: 2, 8, 8>}, {pipeline_mode = #tpu.pipeline_mode<synchronous>, transform_indices = @transform_4, window_bounds = array<i64: 1, 8>}, {pipeline_mode = #tpu.pipeline_mode<synchronous>, transform_indices = @transform_5, window_bounds = array<i64: 16, 4>}, {pipeline_mode = #tpu.pipeline_mode<synchronous>, transform_indices = @transform_6, window_bounds = array<i64: 1, 4>}, {pipeline_mode = #tpu.pipeline_mode<synchronous>, transform_indices = @transform_7, window_bounds = array<i64: 2, 16, 16>}, {pipeline_mode = #tpu.pipeline_mode<synchronous>, transform_indices = @transform_8, window_bounds = array<i64: 1, 16>}, {pipeline_mode = #tpu.pipeline_mode<synchronous>, transform_indices = @transform_9, window_bounds = array<i64: 2, 16, 16>}, {pipeline_mode = #tpu.pipeline_mode<synchronous>, transform_indices = @transform_10, window_bounds = array<i64: 1, 16>}, {pipeline_mode = #tpu.pipeline_mode<synchronous>, transform_indices = @transform_11, window_bounds = array<i64: 32, 4>}, {pipeline_mode = #tpu.pipeline_mode<synchronous>, transform_indices = @transform_12, window_bounds = array<i64: 1, 4>}, {pipeline_mode = #tpu.pipeline_mode<synchronous>, transform_indices = @transform_13, window_bounds = array<i64: 2, 32, 32>}, {pipeline_mode = #tpu.pipeline_mode<synchronous>, transform_indices = @transform_14, window_bounds = array<i64: 1, 32>}, {pipeline_mode = #tpu.pipeline_mode<synchronous>, transform_indices = @transform_15, window_bounds = array<i64: 2, 32, 32>}, {pipeline_mode = #tpu.pipeline_mode<synchronous>, transform_indices = @transform_16, window_bounds = array<i64: 1, 32>}, {pipeline_mode = #tpu.pipeline_mode<synchronous>, transform_indices = @transform_17, window_bounds = array<i64: 64, 4>}, {pipeline_mode = #tpu.pipeline_mode<synchronous>, transform_indices = @transform_18, window_bounds = array<i64: 1, 4>}, {pipeline_mode = #tpu.pipeline_mode<synchronous>, transform_indices = @transform_19, window_bounds = array<i64: 2, 64, 64>}, {pipeline_mode = #tpu.pipeline_mode<synchronous>, transform_indices = @transform_20, window_bounds = array<i64: 1, 64>}, {pipeline_mode = #tpu.pipeline_mode<synchronous>, transform_indices = @transform_21, window_bounds = array<i64: 2, 64, 64>}, {pipeline_mode = #tpu.pipeline_mode<synchronous>, transform_indices = @transform_22, window_bounds = array<i64: 1, 64>}, {pipeline_mode = #tpu.pipeline_mode<synchronous>, transform_indices = @transform_23, window_bounds = array<i64: 128, 4>}, {pipeline_mode = #tpu.pipeline_mode<synchronous>, transform_indices = @transform_24, window_bounds = array<i64: 1, 4>}, {pipeline_mode = #tpu.pipeline_mode<synchronous>, transform_indices = @transform_25, window_bounds = array<i64: 2, 128, 128>}, {pipeline_mode = #tpu.pipeline_mode<synchronous>, transform_indices = @transform_26, window_bounds = array<i64: 1, 128>}, {pipeline_mode = #tpu.pipeline_mode<synchronous>, transform_indices = @transform_27, window_bounds = array<i64: 2, 128, 128>}, {pipeline_mode = #tpu.pipeline_mode<synchronous>, transform_indices = @transform_28, window_bounds = array<i64: 1, 128>}, {pipeline_mode = #tpu.pipeline_mode<synchronous>, transform_indices = @transform_29, window_bounds = array<i64: 256, 4>}, {pipeline_mode = #tpu.pipeline_mode<synchronous>, transform_indices = @transform_30, window_bounds = array<i64: 1, 4>}, {pipeline_mode = #tpu.pipeline_mode<synchronous>, transform_indices = @transform_31, window_bounds = array<i64: 2, 256, 256>}, {pipeline_mode = #tpu.pipeline_mode<synchronous>, transform_indices = @transform_32, window_bounds = array<i64: 1, 256>}, {pipeline_mode = #tpu.pipeline_mode<synchronous>, transform_indices = @transform_33, window_bounds = array<i64: 2, 256, 256>}, {pipeline_mode = #tpu.pipeline_mode<synchronous>, transform_indices = @transform_34, window_bounds = array<i64: 1, 256>}, {pipeline_mode = #tpu.pipeline_mode<synchronous>, transform_indices = @transform_35, window_bounds = array<i64: 512, 4>}, {pipeline_mode = #tpu.pipeline_mode<synchronous>, transform_indices = @transform_36, window_bounds = array<i64: 1, 4>}, {pipeline_mode = #tpu.pipeline_mode<synchronous>, transform_indices = @transform_37, window_bounds = array<i64: 24, 3>}, {pipeline_mode = #tpu.pipeline_mode<synchronous>, transform_indices = @transform_38, window_bounds = array<i64: 1, 3>}, {transform_indices = @transform_39, window_bounds = array<i64: 1, 1, 3>}]} {
    %c0 = arith.constant 0 : index
    %c0_0 = arith.constant 0 : index
    %c0_1 = arith.constant 0 : index
    %0 = vector.load %arg1[%c0, %c0_0, %c0_1] : memref<1x64x8xf32, #tpu.memory_space<vmem>>, vector<1x64x8xf32>
    %cst = arith.constant 0.000000e+00 : bf16
    %1 = vector.broadcast %cst : bf16 to vector<1x1x8xbf16>
    %c0_2 = arith.constant 0 : index
    %c64 = arith.constant 64 : index
    %c0_3 = arith.constant 0 : index
    %2 = vector.load %arg41[%c0_2, %c64, %c0_3] : memref<1x65x8xbf16, #tpu.memory_space<vmem>>, vector<1x1x8xbf16>
    tpu.vector_store %arg41[%c0_2, %c64, %c0_3], %1 {strides = array<i32>} : memref<1x65x8xbf16, #tpu.memory_space<vmem>>, vector<1x1x8xbf16>,
    %c0_4 = arith.constant 0 : index
    %c0_5 = arith.constant 0 : index
    %3 = vector.load %arg3[%c0_4, %c0_5] : memref<1x8xf32, #tpu.memory_space<vmem>>, vector<1x8xf32>
    %4 = arith.truncf %0 : vector<1x64x8xf32> to vector<1x64x8xbf16>
    %c0_6 = arith.constant 0 : index
    %c0_7 = arith.constant 0 : index
    %c0_8 = arith.constant 0 : index
    %5 = vector.load %arg41[%c0_6, %c0_7, %c0_8] : memref<1x65x8xbf16, #tpu.memory_space<vmem>>, vector<1x64x8xbf16>
    tpu.vector_store %arg41[%c0_6, %c0_7, %c0_8], %4 {strides = array<i32>} : memref<1x65x8xbf16, #tpu.memory_space<vmem>>, vector<1x64x8xbf16>,
    %c0_9 = arith.constant 0 : index
    %c0_10 = arith.constant 0 : index
    %c0_11 = arith.constant 0 : index
    %6 = vector.load %arg41[%c0_9, %c0_10, %c0_11] : memref<1x65x8xbf16, #tpu.memory_space<vmem>>, vector<1x64x8xbf16>
    %7 = vector.shape_cast %6 : vector<1x64x8xbf16> to vector<64x8xbf16>
    %c0_12 = arith.constant 0 : index
    %c1 = arith.constant 1 : index
    %c0_13 = arith.constant 0 : index
    %8 = vector.load %arg41[%c0_12, %c1, %c0_13] : memref<1x65x8xbf16, #tpu.memory_space<vmem>>, vector<1x64x8xbf16>
    %9 = vector.shape_cast %8 : vector<1x64x8xbf16> to vector<64x8xbf16>
    %c0_14 = arith.constant 0 : index
    %c0_15 = arith.constant 0 : index
    %c0_16 = arith.constant 0 : index
    %10 = vector.load %arg2[%c0_14, %c0_15, %c0_16] : memref<2x8x8xbf16, #tpu.memory_space<vmem>>, vector<1x8x8xbf16>
    %11 = vector.shape_cast %10 : vector<1x8x8xbf16> to vector<8x8xbf16>
    %cst_17 = arith.constant dense<0.000000e+00> : vector<64x8xf32>
    %12 = tpu.matmul %7, %11, %cst_17 {dimension_numbers = #tpu.dot_dimension_numbers<[1], [0], [0], [1], [0, 0, 1, 1], [], []>} : vector<64x8xbf16>, vector<8x8xbf16>, vector<64x8xf32> -> vector<64x8xf32>
    %c1_18 = arith.constant 1 : index
    %c0_19 = arith.constant 0 : index
    %c0_20 = arith.constant 0 : index
    %13 = vector.load %arg2[%c1_18, %c0_19, %c0_20] : memref<2x8x8xbf16, #tpu.memory_space<vmem>>, vector<1x8x8xbf16>
    %14 = vector.shape_cast %13 : vector<1x8x8xbf16> to vector<8x8xbf16>
    %cst_21 = arith.constant dense<0.000000e+00> : vector<64x8xf32>
    %15 = tpu.matmul %9, %14, %cst_21 {dimension_numbers = #tpu.dot_dimension_numbers<[1], [0], [0], [1], [0, 0, 1, 1], [], []>} : vector<64x8xbf16>, vector<8x8xbf16>, vector<64x8xf32> -> vector<64x8xf32>
    %16 = arith.addf %12, %15 : vector<64x8xf32>
    %17 = vector.broadcast %3 : vector<1x8xf32> to vector<64x8xf32>
    %18 = arith.addf %16, %17 : vector<64x8xf32>
    %cst_22 = arith.constant 5.000000e-01 : f32
    %19 = vector.broadcast %cst_22 : f32 to vector<64x8xf32>
    %20 = arith.mulf %19, %18 : vector<64x8xf32>
    %cst_23 = arith.constant 4.471500e-02 : f32
    %21 = vector.broadcast %cst_23 : f32 to vector<64x8xf32>
    %22 = arith.mulf %21, %18 : vector<64x8xf32>
    %23 = arith.mulf %22, %18 : vector<64x8xf32>
    %24 = arith.mulf %23, %18 : vector<64x8xf32>
    %25 = arith.addf %18, %24 : vector<64x8xf32>
    %cst_24 = arith.constant 0.797884583 : f32
    %26 = vector.broadcast %cst_24 : f32 to vector<64x8xf32>
    %27 = arith.mulf %26, %25 : vector<64x8xf32>
    %28 = math.tanh %27 : vector<64x8xf32>
    %cst_25 = arith.constant 1.000000e+00 : f32
    %29 = vector.broadcast %cst_25 : f32 to vector<64x8xf32>
    %30 = arith.addf %29, %28 : vector<64x8xf32>
    %31 = arith.mulf %20, %30 : vector<64x8xf32>
    %32 = vector.shape_cast %31 : vector<64x8xf32> to vector<1x64x8xf32>
    %c0_26 = arith.constant 0 : index
    %c0_27 = arith.constant 0 : index
    %33 = vector.load %arg5[%c0_26, %c0_27] : memref<1x8xf32, #tpu.memory_space<vmem>>, vector<1x8xf32>
    %34 = arith.truncf %32 : vector<1x64x8xf32> to vector<1x64x8xbf16>
    %c0_28 = arith.constant 0 : index
    %c0_29 = arith.constant 0 : index
    %c0_30 = arith.constant 0 : index
    %35 = vector.load %arg41[%c0_28, %c0_29, %c0_30] : memref<1x65x8xbf16, #tpu.memory_space<vmem>>, vector<1x64x8xbf16>
    tpu.vector_store %arg41[%c0_28, %c0_29, %c0_30], %34 {strides = array<i32>} : memref<1x65x8xbf16, #tpu.memory_space<vmem>>, vector<1x64x8xbf16>,
    %c0_31 = arith.constant 0 : index
    %c0_32 = arith.constant 0 : index
    %c0_33 = arith.constant 0 : index
    %36 = vector.load %arg41[%c0_31, %c0_32, %c0_33] : memref<1x65x8xbf16, #tpu.memory_space<vmem>>, vector<1x64x8xbf16>
    %37 = vector.shape_cast %36 : vector<1x64x8xbf16> to vector<64x8xbf16>
    %c0_34 = arith.constant 0 : index
    %c1_35 = arith.constant 1 : index
    %c0_36 = arith.constant 0 : index
    %38 = vector.load %arg41[%c0_34, %c1_35, %c0_36] : memref<1x65x8xbf16, #tpu.memory_space<vmem>>, vector<1x64x8xbf16>
    %39 = vector.shape_cast %38 : vector<1x64x8xbf16> to vector<64x8xbf16>
    %c0_37 = arith.constant 0 : index
    %c0_38 = arith.constant 0 : index
    %c0_39 = arith.constant 0 : index
    %40 = vector.load %arg4[%c0_37, %c0_38, %c0_39] : memref<2x8x8xbf16, #tpu.memory_space<vmem>>, vector<1x8x8xbf16>
    %41 = vector.shape_cast %40 : vector<1x8x8xbf16> to vector<8x8xbf16>
    %cst_40 = arith.constant dense<0.000000e+00> : vector<64x8xf32>
    %42 = tpu.matmul %37, %41, %cst_40 {dimension_numbers = #tpu.dot_dimension_numbers<[1], [0], [0], [1], [0, 0, 1, 1], [], []>} : vector<64x8xbf16>, vector<8x8xbf16>, vector<64x8xf32> -> vector<64x8xf32>
    %c1_41 = arith.constant 1 : index
    %c0_42 = arith.constant 0 : index
    %c0_43 = arith.constant 0 : index
    %43 = vector.load %arg4[%c1_41, %c0_42, %c0_43] : memref<2x8x8xbf16, #tpu.memory_space<vmem>>, vector<1x8x8xbf16>
    %44 = vector.shape_cast %43 : vector<1x8x8xbf16> to vector<8x8xbf16>
    %cst_44 = arith.constant dense<0.000000e+00> : vector<64x8xf32>
    %45 = tpu.matmul %39, %44, %cst_44 {dimension_numbers = #tpu.dot_dimension_numbers<[1], [0], [0], [1], [0, 0, 1, 1], [], []>} : vector<64x8xbf16>, vector<8x8xbf16>, vector<64x8xf32> -> vector<64x8xf32>
    %46 = arith.addf %42, %45 : vector<64x8xf32>
    %47 = vector.broadcast %33 : vector<1x8xf32> to vector<64x8xf32>
    %48 = arith.addf %46, %47 : vector<64x8xf32>
    %cst_45 = arith.constant 5.000000e-01 : f32
    %49 = vector.broadcast %cst_45 : f32 to vector<64x8xf32>
    %50 = arith.mulf %49, %48 : vector<64x8xf32>
    %cst_46 = arith.constant 4.471500e-02 : f32
    %51 = vector.broadcast %cst_46 : f32 to vector<64x8xf32>
    %52 = arith.mulf %51, %48 : vector<64x8xf32>
    %53 = arith.mulf %52, %48 : vector<64x8xf32>
    %54 = arith.mulf %53, %48 : vector<64x8xf32>
    %55 = arith.addf %48, %54 : vector<64x8xf32>
    %cst_47 = arith.constant 0.797884583 : f32
    %56 = vector.broadcast %cst_47 : f32 to vector<64x8xf32>
    %57 = arith.mulf %56, %55 : vector<64x8xf32>
    %58 = math.tanh %57 : vector<64x8xf32>
    %cst_48 = arith.constant 1.000000e+00 : f32
    %59 = vector.broadcast %cst_48 : f32 to vector<64x8xf32>
    %60 = arith.addf %59, %58 : vector<64x8xf32>
    %61 = arith.mulf %50, %60 : vector<64x8xf32>
    %cst_49 = arith.constant 0.000000e+00 : f32
    %62 = vector.broadcast %cst_49 : f32 to vector<64x8xf32>
    %63 = arith.subf %62, %61 : vector<64x8xf32>
    %64 = math.exp %63 : vector<64x8xf32>
    %cst_50 = arith.constant 1.000000e+00 : f32
    %65 = vector.broadcast %cst_50 : f32 to vector<64x8xf32>
    %66 = arith.addf %65, %64 : vector<64x8xf32>
    %67 = tpu.reciprocal %66 {approx = true} : vector<64x8xf32> -> vector<64x8xf32>
    %68 = vector.shape_cast %0 : vector<1x64x8xf32> to vector<64x8xf32>
    %69 = arith.mulf %68, %67 : vector<64x8xf32>
    %70 = tpu.concatenate %69, %68 in 1 : vector<64x8xf32>, vector<64x8xf32> -> vector<64x16xf32>
    %71 = arith.truncf %70 : vector<64x16xf32> to vector<64x16xbf16>
    %c0_51 = arith.constant 0 : index
    %c0_52 = arith.constant 0 : index
    %72 = vector.load %arg6[%c0_51, %c0_52] : memref<16x4xbf16, #tpu.memory_space<vmem>>, vector<16x4xbf16>
    %cst_53 = arith.constant dense<0.000000e+00> : vector<64x4xf32>
    %73 = tpu.matmul %71, %72, %cst_53 {dimension_numbers = #tpu.dot_dimension_numbers<[1], [0], [0], [1], [0, 0, 1, 1], [], []>} : vector<64x16xbf16>, vector<16x4xbf16>, vector<64x4xf32> -> vector<64x4xf32>
    %c0_54 = arith.constant 0 : index
    %c0_55 = arith.constant 0 : index
    %74 = vector.load %arg7[%c0_54, %c0_55] : memref<1x4xf32, #tpu.memory_space<vmem>>, vector<1x4xf32>
    %75 = vector.broadcast %74 : vector<1x4xf32> to vector<64x4xf32>
    %76 = arith.addf %73, %75 : vector<64x4xf32>
    %cst_56 = arith.constant 0.000000e+00 : f32
    %77 = vector.broadcast %cst_56 : f32 to vector<64x4xf32>
    %78 = arith.maximumf %76, %77 : vector<64x4xf32>
    %79 = vector.shape_cast %78 : vector<64x4xf32> to vector<1x64x4xf32>
    %cst_57 = arith.constant dense<0.000000e+00> : vector<1x4xf32>
    %80 = vector.multi_reduction <add>, %79, %cst_57 [1] : vector<1x64x4xf32> to vector<1x4xf32>
    %cst_58 = arith.constant 6.400000e+01 : f32
    %81 = vector.broadcast %cst_58 : f32 to vector<1x4xf32>
    %82 = arith.divf %80, %81 : vector<1x4xf32>
    %83 = vector.shape_cast %70 : vector<64x16xf32> to vector<1x64x16xf32>
    %cst_59 = arith.constant 0.000000e+00 : bf16
    %84 = vector.broadcast %cst_59 : bf16 to vector<1x8x16xbf16>
    %c0_60 = arith.constant 0 : index
    %c0_61 = arith.constant 0 : index
    %c0_62 = arith.constant 0 : index
    %85 = vector.load %arg42[%c0_60, %c0_61, %c0_62] : memref<1x73x16xbf16, #tpu.memory_space<vmem>>, vector<1x8x16xbf16>
    tpu.vector_store %arg42[%c0_60, %c0_61, %c0_62], %84 {strides = array<i32>} : memref<1x73x16xbf16, #tpu.memory_space<vmem>>, vector<1x8x16xbf16>,
    %cst_63 = arith.constant 0.000000e+00 : bf16
    %86 = vector.broadcast %cst_63 : bf16 to vector<1x1x16xbf16>
    %c0_64 = arith.constant 0 : index
    %c72 = arith.constant 72 : index
    %c0_65 = arith.constant 0 : index
    %87 = vector.load %arg42[%c0_64, %c72, %c0_65] : memref<1x73x16xbf16, #tpu.memory_space<vmem>>, vector<1x1x16xbf16>
    tpu.vector_store %arg42[%c0_64, %c72, %c0_65], %86 {strides = array<i32>} : memref<1x73x16xbf16, #tpu.memory_space<vmem>>, vector<1x1x16xbf16>,
    %c0_66 = arith.constant 0 : index
    %c0_67 = arith.constant 0 : index
    %88 = vector.load %arg9[%c0_66, %c0_67] : memref<1x16xf32, #tpu.memory_space<vmem>>, vector<1x16xf32>
    %89 = arith.truncf %83 : vector<1x64x16xf32> to vector<1x64x16xbf16>
    %c0_68 = arith.constant 0 : index
    %c8 = arith.constant 8 : index
    %c0_69 = arith.constant 0 : index
    %90 = vector.load %arg42[%c0_68, %c8, %c0_69] : memref<1x73x16xbf16, #tpu.memory_space<vmem>>, vector<1x64x16xbf16>
    tpu.vector_store %arg42[%c0_68, %c8, %c0_69], %89 {strides = array<i32>} : memref<1x73x16xbf16, #tpu.memory_space<vmem>>, vector<1x64x16xbf16>,
    %c0_70 = arith.constant 0 : index
    %c7 = arith.constant 7 : index
    %c0_71 = arith.constant 0 : index
    %91 = vector.load %arg42[%c0_70, %c7, %c0_71] : memref<1x73x16xbf16, #tpu.memory_space<vmem>>, vector<1x64x16xbf16>
    %92 = vector.shape_cast %91 : vector<1x64x16xbf16> to vector<64x16xbf16>
    %c0_72 = arith.constant 0 : index
    %c9 = arith.constant 9 : index
    %c0_73 = arith.constant 0 : index
    %93 = vector.load %arg42[%c0_72, %c9, %c0_73] : memref<1x73x16xbf16, #tpu.memory_space<vmem>>, vector<1x64x16xbf16>
    %94 = vector.shape_cast %93 : vector<1x64x16xbf16> to vector<64x16xbf16>
    %c0_74 = arith.constant 0 : index
    %c0_75 = arith.constant 0 : index
    %c0_76 = arith.constant 0 : index
    %95 = vector.load %arg8[%c0_74, %c0_75, %c0_76] : memref<2x16x16xbf16, #tpu.memory_space<vmem>>, vector<1x16x16xbf16>
    %96 = vector.shape_cast %95 : vector<1x16x16xbf16> to vector<16x16xbf16>
    %cst_77 = arith.constant dense<0.000000e+00> : vector<64x16xf32>
    %97 = tpu.matmul %92, %96, %cst_77 {dimension_numbers = #tpu.dot_dimension_numbers<[1], [0], [0], [1], [0, 0, 1, 1], [], []>} : vector<64x16xbf16>, vector<16x16xbf16>, vector<64x16xf32> -> vector<64x16xf32>
    %c1_78 = arith.constant 1 : index
    %c0_79 = arith.constant 0 : index
    %c0_80 = arith.constant 0 : index
    %98 = vector.load %arg8[%c1_78, %c0_79, %c0_80] : memref<2x16x16xbf16, #tpu.memory_space<vmem>>, vector<1x16x16xbf16>
    %99 = vector.shape_cast %98 : vector<1x16x16xbf16> to vector<16x16xbf16>
    %cst_81 = arith.constant dense<0.000000e+00> : vector<64x16xf32>
    %100 = tpu.matmul %94, %99, %cst_81 {dimension_numbers = #tpu.dot_dimension_numbers<[1], [0], [0], [1], [0, 0, 1, 1], [], []>} : vector<64x16xbf16>, vector<16x16xbf16>, vector<64x16xf32> -> vector<64x16xf32>
    %101 = arith.addf %97, %100 : vector<64x16xf32>
    %102 = vector.broadcast %88 : vector<1x16xf32> to vector<64x16xf32>
    %103 = arith.addf %101, %102 : vector<64x16xf32>
    %cst_82 = arith.constant 5.000000e-01 : f32
    %104 = vector.broadcast %cst_82 : f32 to vector<64x16xf32>
    %105 = arith.mulf %104, %103 : vector<64x16xf32>
    %cst_83 = arith.constant 4.471500e-02 : f32
    %106 = vector.broadcast %cst_83 : f32 to vector<64x16xf32>
    %107 = arith.mulf %106, %103 : vector<64x16xf32>
    %108 = arith.mulf %107, %103 : vector<64x16xf32>
    %109 = arith.mulf %108, %103 : vector<64x16xf32>
    %110 = arith.addf %103, %109 : vector<64x16xf32>
    %cst_84 = arith.constant 0.797884583 : f32
    %111 = vector.broadcast %cst_84 : f32 to vector<64x16xf32>
    %112 = arith.mulf %111, %110 : vector<64x16xf32>
    %113 = math.tanh %112 : vector<64x16xf32>
    %cst_85 = arith.constant 1.000000e+00 : f32
    %114 = vector.broadcast %cst_85 : f32 to vector<64x16xf32>
    %115 = arith.addf %114, %113 : vector<64x16xf32>
    %116 = arith.mulf %105, %115 : vector<64x16xf32>
    %117 = vector.shape_cast %116 : vector<64x16xf32> to vector<1x64x16xf32>
    %c0_86 = arith.constant 0 : index
    %c0_87 = arith.constant 0 : index
    %118 = vector.load %arg11[%c0_86, %c0_87] : memref<1x16xf32, #tpu.memory_space<vmem>>, vector<1x16xf32>
    %119 = arith.truncf %117 : vector<1x64x16xf32> to vector<1x64x16xbf16>
    %c0_88 = arith.constant 0 : index
    %c8_89 = arith.constant 8 : index
    %c0_90 = arith.constant 0 : index
    %120 = vector.load %arg42[%c0_88, %c8_89, %c0_90] : memref<1x73x16xbf16, #tpu.memory_space<vmem>>, vector<1x64x16xbf16>
    tpu.vector_store %arg42[%c0_88, %c8_89, %c0_90], %119 {strides = array<i32>} : memref<1x73x16xbf16, #tpu.memory_space<vmem>>, vector<1x64x16xbf16>,
    %c0_91 = arith.constant 0 : index
    %c7_92 = arith.constant 7 : index
    %c0_93 = arith.constant 0 : index
    %121 = vector.load %arg42[%c0_91, %c7_92, %c0_93] : memref<1x73x16xbf16, #tpu.memory_space<vmem>>, vector<1x64x16xbf16>
    %122 = vector.shape_cast %121 : vector<1x64x16xbf16> to vector<64x16xbf16>
    %c0_94 = arith.constant 0 : index
    %c9_95 = arith.constant 9 : index
    %c0_96 = arith.constant 0 : index
    %123 = vector.load %arg42[%c0_94, %c9_95, %c0_96] : memref<1x73x16xbf16, #tpu.memory_space<vmem>>, vector<1x64x16xbf16>
    %124 = vector.shape_cast %123 : vector<1x64x16xbf16> to vector<64x16xbf16>
    %c0_97 = arith.constant 0 : index
    %c0_98 = arith.constant 0 : index
    %c0_99 = arith.constant 0 : index
    %125 = vector.load %arg10[%c0_97, %c0_98, %c0_99] : memref<2x16x16xbf16, #tpu.memory_space<vmem>>, vector<1x16x16xbf16>
    %126 = vector.shape_cast %125 : vector<1x16x16xbf16> to vector<16x16xbf16>
    %cst_100 = arith.constant dense<0.000000e+00> : vector<64x16xf32>
    %127 = tpu.matmul %122, %126, %cst_100 {dimension_numbers = #tpu.dot_dimension_numbers<[1], [0], [0], [1], [0, 0, 1, 1], [], []>} : vector<64x16xbf16>, vector<16x16xbf16>, vector<64x16xf32> -> vector<64x16xf32>
    %c1_101 = arith.constant 1 : index
    %c0_102 = arith.constant 0 : index
    %c0_103 = arith.constant 0 : index
    %128 = vector.load %arg10[%c1_101, %c0_102, %c0_103] : memref<2x16x16xbf16, #tpu.memory_space<vmem>>, vector<1x16x16xbf16>
    %129 = vector.shape_cast %128 : vector<1x16x16xbf16> to vector<16x16xbf16>
    %cst_104 = arith.constant dense<0.000000e+00> : vector<64x16xf32>
    %130 = tpu.matmul %124, %129, %cst_104 {dimension_numbers = #tpu.dot_dimension_numbers<[1], [0], [0], [1], [0, 0, 1, 1], [], []>} : vector<64x16xbf16>, vector<16x16xbf16>, vector<64x16xf32> -> vector<64x16xf32>
    %131 = arith.addf %127, %130 : vector<64x16xf32>
    %132 = vector.broadcast %118 : vector<1x16xf32> to vector<64x16xf32>
    %133 = arith.addf %131, %132 : vector<64x16xf32>
    %cst_105 = arith.constant 5.000000e-01 : f32
    %134 = vector.broadcast %cst_105 : f32 to vector<64x16xf32>
    %135 = arith.mulf %134, %133 : vector<64x16xf32>
    %cst_106 = arith.constant 4.471500e-02 : f32
    %136 = vector.broadcast %cst_106 : f32 to vector<64x16xf32>
    %137 = arith.mulf %136, %133 : vector<64x16xf32>
    %138 = arith.mulf %137, %133 : vector<64x16xf32>
    %139 = arith.mulf %138, %133 : vector<64x16xf32>
    %140 = arith.addf %133, %139 : vector<64x16xf32>
    %cst_107 = arith.constant 0.797884583 : f32
    %141 = vector.broadcast %cst_107 : f32 to vector<64x16xf32>
    %142 = arith.mulf %141, %140 : vector<64x16xf32>
    %143 = math.tanh %142 : vector<64x16xf32>
    %cst_108 = arith.constant 1.000000e+00 : f32
    %144 = vector.broadcast %cst_108 : f32 to vector<64x16xf32>
    %145 = arith.addf %144, %143 : vector<64x16xf32>
    %146 = arith.mulf %135, %145 : vector<64x16xf32>
    %cst_109 = arith.constant 0.000000e+00 : f32
    %147 = vector.broadcast %cst_109 : f32 to vector<64x16xf32>
    %148 = arith.subf %147, %146 : vector<64x16xf32>
    %149 = math.exp %148 : vector<64x16xf32>
    %cst_110 = arith.constant 1.000000e+00 : f32
    %150 = vector.broadcast %cst_110 : f32 to vector<64x16xf32>
    %151 = arith.addf %150, %149 : vector<64x16xf32>
    %152 = tpu.reciprocal %151 {approx = true} : vector<64x16xf32> -> vector<64x16xf32>
    %153 = vector.shape_cast %83 : vector<1x64x16xf32> to vector<64x16xf32>
    %154 = arith.mulf %153, %152 : vector<64x16xf32>
    %155 = tpu.concatenate %154, %153 in 1 : vector<64x16xf32>, vector<64x16xf32> -> vector<64x32xf32>
    %156 = arith.truncf %155 : vector<64x32xf32> to vector<64x32xbf16>
    %c0_111 = arith.constant 0 : index
    %c0_112 = arith.constant 0 : index
    %157 = vector.load %arg12[%c0_111, %c0_112] : memref<32x4xbf16, #tpu.memory_space<vmem>>, vector<32x4xbf16>
    %cst_113 = arith.constant dense<0.000000e+00> : vector<64x4xf32>
    %158 = tpu.matmul %156, %157, %cst_113 {dimension_numbers = #tpu.dot_dimension_numbers<[1], [0], [0], [1], [0, 0, 1, 1], [], []>} : vector<64x32xbf16>, vector<32x4xbf16>, vector<64x4xf32> -> vector<64x4xf32>
    %c0_114 = arith.constant 0 : index
    %c0_115 = arith.constant 0 : index
    %159 = vector.load %arg13[%c0_114, %c0_115] : memref<1x4xf32, #tpu.memory_space<vmem>>, vector<1x4xf32>
    %160 = vector.broadcast %159 : vector<1x4xf32> to vector<64x4xf32>
    %161 = arith.addf %158, %160 : vector<64x4xf32>
    %cst_116 = arith.constant 0.000000e+00 : f32
    %162 = vector.broadcast %cst_116 : f32 to vector<64x4xf32>
    %163 = arith.maximumf %161, %162 : vector<64x4xf32>
    %164 = vector.shape_cast %163 : vector<64x4xf32> to vector<1x64x4xf32>
    %cst_117 = arith.constant dense<0.000000e+00> : vector<1x4xf32>
    %165 = vector.multi_reduction <add>, %164, %cst_117 [1] : vector<1x64x4xf32> to vector<1x4xf32>
    %cst_118 = arith.constant 6.400000e+01 : f32
    %166 = vector.broadcast %cst_118 : f32 to vector<1x4xf32>
    %167 = arith.divf %165, %166 : vector<1x4xf32>
    %168 = vector.shape_cast %155 : vector<64x32xf32> to vector<1x64x32xf32>
    %cst_119 = arith.constant 0.000000e+00 : bf16
    %169 = vector.broadcast %cst_119 : bf16 to vector<1x8x32xbf16>
    %c0_120 = arith.constant 0 : index
    %c0_121 = arith.constant 0 : index
    %c0_122 = arith.constant 0 : index
    %170 = vector.load %arg43[%c0_120, %c0_121, %c0_122] : memref<1x74x32xbf16, #tpu.memory_space<vmem>>, vector<1x8x32xbf16>
    tpu.vector_store %arg43[%c0_120, %c0_121, %c0_122], %169 {strides = array<i32>} : memref<1x74x32xbf16, #tpu.memory_space<vmem>>, vector<1x8x32xbf16>,
    %cst_123 = arith.constant 0.000000e+00 : bf16
    %171 = vector.broadcast %cst_123 : bf16 to vector<1x2x32xbf16>
    %c0_124 = arith.constant 0 : index
    %c72_125 = arith.constant 72 : index
    %c0_126 = arith.constant 0 : index
    %172 = vector.load %arg43[%c0_124, %c72_125, %c0_126] : memref<1x74x32xbf16, #tpu.memory_space<vmem>>, vector<1x2x32xbf16>
    tpu.vector_store %arg43[%c0_124, %c72_125, %c0_126], %171 {strides = array<i32>} : memref<1x74x32xbf16, #tpu.memory_space<vmem>>, vector<1x2x32xbf16>,
    %c0_127 = arith.constant 0 : index
    %c0_128 = arith.constant 0 : index
    %173 = vector.load %arg15[%c0_127, %c0_128] : memref<1x32xf32, #tpu.memory_space<vmem>>, vector<1x32xf32>
    %174 = arith.truncf %168 : vector<1x64x32xf32> to vector<1x64x32xbf16>
    %c0_129 = arith.constant 0 : index
    %c8_130 = arith.constant 8 : index
    %c0_131 = arith.constant 0 : index
    %175 = vector.load %arg43[%c0_129, %c8_130, %c0_131] : memref<1x74x32xbf16, #tpu.memory_space<vmem>>, vector<1x64x32xbf16>
    tpu.vector_store %arg43[%c0_129, %c8_130, %c0_131], %174 {strides = array<i32>} : memref<1x74x32xbf16, #tpu.memory_space<vmem>>, vector<1x64x32xbf16>,
    %c0_132 = arith.constant 0 : index
    %c6 = arith.constant 6 : index
    %c0_133 = arith.constant 0 : index
    %176 = vector.load %arg43[%c0_132, %c6, %c0_133] : memref<1x74x32xbf16, #tpu.memory_space<vmem>>, vector<1x64x32xbf16>
    %177 = vector.shape_cast %176 : vector<1x64x32xbf16> to vector<64x32xbf16>
    %c0_134 = arith.constant 0 : index
    %c10 = arith.constant 10 : index
    %c0_135 = arith.constant 0 : index
    %178 = vector.load %arg43[%c0_134, %c10, %c0_135] : memref<1x74x32xbf16, #tpu.memory_space<vmem>>, vector<1x64x32xbf16>
    %179 = vector.shape_cast %178 : vector<1x64x32xbf16> to vector<64x32xbf16>
    %c0_136 = arith.constant 0 : index
    %c0_137 = arith.constant 0 : index
    %c0_138 = arith.constant 0 : index
    %180 = vector.load %arg14[%c0_136, %c0_137, %c0_138] : memref<2x32x32xbf16, #tpu.memory_space<vmem>>, vector<1x32x32xbf16>
    %181 = vector.shape_cast %180 : vector<1x32x32xbf16> to vector<32x32xbf16>
    %cst_139 = arith.constant dense<0.000000e+00> : vector<64x32xf32>
    %182 = tpu.matmul %177, %181, %cst_139 {dimension_numbers = #tpu.dot_dimension_numbers<[1], [0], [0], [1], [0, 0, 1, 1], [], []>} : vector<64x32xbf16>, vector<32x32xbf16>, vector<64x32xf32> -> vector<64x32xf32>
    %c1_140 = arith.constant 1 : index
    %c0_141 = arith.constant 0 : index
    %c0_142 = arith.constant 0 : index
    %183 = vector.load %arg14[%c1_140, %c0_141, %c0_142] : memref<2x32x32xbf16, #tpu.memory_space<vmem>>, vector<1x32x32xbf16>
    %184 = vector.shape_cast %183 : vector<1x32x32xbf16> to vector<32x32xbf16>
    %cst_143 = arith.constant dense<0.000000e+00> : vector<64x32xf32>
    %185 = tpu.matmul %179, %184, %cst_143 {dimension_numbers = #tpu.dot_dimension_numbers<[1], [0], [0], [1], [0, 0, 1, 1], [], []>} : vector<64x32xbf16>, vector<32x32xbf16>, vector<64x32xf32> -> vector<64x32xf32>
    %186 = arith.addf %182, %185 : vector<64x32xf32>
    %187 = vector.broadcast %173 : vector<1x32xf32> to vector<64x32xf32>
    %188 = arith.addf %186, %187 : vector<64x32xf32>
    %cst_144 = arith.constant 5.000000e-01 : f32
    %189 = vector.broadcast %cst_144 : f32 to vector<64x32xf32>
    %190 = arith.mulf %189, %188 : vector<64x32xf32>
    %cst_145 = arith.constant 4.471500e-02 : f32
    %191 = vector.broadcast %cst_145 : f32 to vector<64x32xf32>
    %192 = arith.mulf %191, %188 : vector<64x32xf32>
    %193 = arith.mulf %192, %188 : vector<64x32xf32>
    %194 = arith.mulf %193, %188 : vector<64x32xf32>
    %195 = arith.addf %188, %194 : vector<64x32xf32>
    %cst_146 = arith.constant 0.797884583 : f32
    %196 = vector.broadcast %cst_146 : f32 to vector<64x32xf32>
    %197 = arith.mulf %196, %195 : vector<64x32xf32>
    %198 = math.tanh %197 : vector<64x32xf32>
    %cst_147 = arith.constant 1.000000e+00 : f32
    %199 = vector.broadcast %cst_147 : f32 to vector<64x32xf32>
    %200 = arith.addf %199, %198 : vector<64x32xf32>
    %201 = arith.mulf %190, %200 : vector<64x32xf32>
    %202 = vector.shape_cast %201 : vector<64x32xf32> to vector<1x64x32xf32>
    %c0_148 = arith.constant 0 : index
    %c0_149 = arith.constant 0 : index
    %203 = vector.load %arg17[%c0_148, %c0_149] : memref<1x32xf32, #tpu.memory_space<vmem>>, vector<1x32xf32>
    %204 = arith.truncf %202 : vector<1x64x32xf32> to vector<1x64x32xbf16>
    %c0_150 = arith.constant 0 : index
    %c8_151 = arith.constant 8 : index
    %c0_152 = arith.constant 0 : index
    %205 = vector.load %arg43[%c0_150, %c8_151, %c0_152] : memref<1x74x32xbf16, #tpu.memory_space<vmem>>, vector<1x64x32xbf16>
    tpu.vector_store %arg43[%c0_150, %c8_151, %c0_152], %204 {strides = array<i32>} : memref<1x74x32xbf16, #tpu.memory_space<vmem>>, vector<1x64x32xbf16>,
    %c0_153 = arith.constant 0 : index
    %c6_154 = arith.constant 6 : index
    %c0_155 = arith.constant 0 : index
    %206 = vector.load %arg43[%c0_153, %c6_154, %c0_155] : memref<1x74x32xbf16, #tpu.memory_space<vmem>>, vector<1x64x32xbf16>
    %207 = vector.shape_cast %206 : vector<1x64x32xbf16> to vector<64x32xbf16>
    %c0_156 = arith.constant 0 : index
    %c10_157 = arith.constant 10 : index
    %c0_158 = arith.constant 0 : index
    %208 = vector.load %arg43[%c0_156, %c10_157, %c0_158] : memref<1x74x32xbf16, #tpu.memory_space<vmem>>, vector<1x64x32xbf16>
    %209 = vector.shape_cast %208 : vector<1x64x32xbf16> to vector<64x32xbf16>
    %c0_159 = arith.constant 0 : index
    %c0_160 = arith.constant 0 : index
    %c0_161 = arith.constant 0 : index
    %210 = vector.load %arg16[%c0_159, %c0_160, %c0_161] : memref<2x32x32xbf16, #tpu.memory_space<vmem>>, vector<1x32x32xbf16>
    %211 = vector.shape_cast %210 : vector<1x32x32xbf16> to vector<32x32xbf16>
    %cst_162 = arith.constant dense<0.000000e+00> : vector<64x32xf32>
    %212 = tpu.matmul %207, %211, %cst_162 {dimension_numbers = #tpu.dot_dimension_numbers<[1], [0], [0], [1], [0, 0, 1, 1], [], []>} : vector<64x32xbf16>, vector<32x32xbf16>, vector<64x32xf32> -> vector<64x32xf32>
    %c1_163 = arith.constant 1 : index
    %c0_164 = arith.constant 0 : index
    %c0_165 = arith.constant 0 : index
    %213 = vector.load %arg16[%c1_163, %c0_164, %c0_165] : memref<2x32x32xbf16, #tpu.memory_space<vmem>>, vector<1x32x32xbf16>
    %214 = vector.shape_cast %213 : vector<1x32x32xbf16> to vector<32x32xbf16>
    %cst_166 = arith.constant dense<0.000000e+00> : vector<64x32xf32>
    %215 = tpu.matmul %209, %214, %cst_166 {dimension_numbers = #tpu.dot_dimension_numbers<[1], [0], [0], [1], [0, 0, 1, 1], [], []>} : vector<64x32xbf16>, vector<32x32xbf16>, vector<64x32xf32> -> vector<64x32xf32>
    %216 = arith.addf %212, %215 : vector<64x32xf32>
    %217 = vector.broadcast %203 : vector<1x32xf32> to vector<64x32xf32>
    %218 = arith.addf %216, %217 : vector<64x32xf32>
    %cst_167 = arith.constant 5.000000e-01 : f32
    %219 = vector.broadcast %cst_167 : f32 to vector<64x32xf32>
    %220 = arith.mulf %219, %218 : vector<64x32xf32>
    %cst_168 = arith.constant 4.471500e-02 : f32
    %221 = vector.broadcast %cst_168 : f32 to vector<64x32xf32>
    %222 = arith.mulf %221, %218 : vector<64x32xf32>
    %223 = arith.mulf %222, %218 : vector<64x32xf32>
    %224 = arith.mulf %223, %218 : vector<64x32xf32>
    %225 = arith.addf %218, %224 : vector<64x32xf32>
    %cst_169 = arith.constant 0.797884583 : f32
    %226 = vector.broadcast %cst_169 : f32 to vector<64x32xf32>
    %227 = arith.mulf %226, %225 : vector<64x32xf32>
    %228 = math.tanh %227 : vector<64x32xf32>
    %cst_170 = arith.constant 1.000000e+00 : f32
    %229 = vector.broadcast %cst_170 : f32 to vector<64x32xf32>
    %230 = arith.addf %229, %228 : vector<64x32xf32>
    %231 = arith.mulf %220, %230 : vector<64x32xf32>
    %cst_171 = arith.constant 0.000000e+00 : f32
    %232 = vector.broadcast %cst_171 : f32 to vector<64x32xf32>
    %233 = arith.subf %232, %231 : vector<64x32xf32>
    %234 = math.exp %233 : vector<64x32xf32>
    %cst_172 = arith.constant 1.000000e+00 : f32
    %235 = vector.broadcast %cst_172 : f32 to vector<64x32xf32>
    %236 = arith.addf %235, %234 : vector<64x32xf32>
    %237 = tpu.reciprocal %236 {approx = true} : vector<64x32xf32> -> vector<64x32xf32>
    %238 = vector.shape_cast %168 : vector<1x64x32xf32> to vector<64x32xf32>
    %239 = arith.mulf %238, %237 : vector<64x32xf32>
    %240 = tpu.concatenate %239, %238 in 1 : vector<64x32xf32>, vector<64x32xf32> -> vector<64x64xf32>
    %241 = arith.truncf %240 : vector<64x64xf32> to vector<64x64xbf16>
    %c0_173 = arith.constant 0 : index
    %c0_174 = arith.constant 0 : index
    %242 = vector.load %arg18[%c0_173, %c0_174] : memref<64x4xbf16, #tpu.memory_space<vmem>>, vector<64x4xbf16>
    %cst_175 = arith.constant dense<0.000000e+00> : vector<64x4xf32>
    %243 = tpu.matmul %241, %242, %cst_175 {dimension_numbers = #tpu.dot_dimension_numbers<[1], [0], [0], [1], [0, 0, 1, 1], [], []>} : vector<64x64xbf16>, vector<64x4xbf16>, vector<64x4xf32> -> vector<64x4xf32>
    %c0_176 = arith.constant 0 : index
    %c0_177 = arith.constant 0 : index
    %244 = vector.load %arg19[%c0_176, %c0_177] : memref<1x4xf32, #tpu.memory_space<vmem>>, vector<1x4xf32>
    %245 = vector.broadcast %244 : vector<1x4xf32> to vector<64x4xf32>
    %246 = arith.addf %243, %245 : vector<64x4xf32>
    %cst_178 = arith.constant 0.000000e+00 : f32
    %247 = vector.broadcast %cst_178 : f32 to vector<64x4xf32>
    %248 = arith.maximumf %246, %247 : vector<64x4xf32>
    %249 = vector.shape_cast %248 : vector<64x4xf32> to vector<1x64x4xf32>
    %cst_179 = arith.constant dense<0.000000e+00> : vector<1x4xf32>
    %250 = vector.multi_reduction <add>, %249, %cst_179 [1] : vector<1x64x4xf32> to vector<1x4xf32>
    %cst_180 = arith.constant 6.400000e+01 : f32
    %251 = vector.broadcast %cst_180 : f32 to vector<1x4xf32>
    %252 = arith.divf %250, %251 : vector<1x4xf32>
    %253 = vector.shape_cast %240 : vector<64x64xf32> to vector<1x64x64xf32>
    %cst_181 = arith.constant 0.000000e+00 : bf16
    %254 = vector.broadcast %cst_181 : bf16 to vector<1x8x64xbf16>
    %c0_182 = arith.constant 0 : index
    %c0_183 = arith.constant 0 : index
    %c0_184 = arith.constant 0 : index
    %255 = vector.load %arg44[%c0_182, %c0_183, %c0_184] : memref<1x76x64xbf16, #tpu.memory_space<vmem>>, vector<1x8x64xbf16>
    tpu.vector_store %arg44[%c0_182, %c0_183, %c0_184], %254 {strides = array<i32>} : memref<1x76x64xbf16, #tpu.memory_space<vmem>>, vector<1x8x64xbf16>,
    %cst_185 = arith.constant 0.000000e+00 : bf16
    %256 = vector.broadcast %cst_185 : bf16 to vector<1x4x64xbf16>
    %c0_186 = arith.constant 0 : index
    %c72_187 = arith.constant 72 : index
    %c0_188 = arith.constant 0 : index
    %257 = vector.load %arg44[%c0_186, %c72_187, %c0_188] : memref<1x76x64xbf16, #tpu.memory_space<vmem>>, vector<1x4x64xbf16>
    tpu.vector_store %arg44[%c0_186, %c72_187, %c0_188], %256 {strides = array<i32>} : memref<1x76x64xbf16, #tpu.memory_space<vmem>>, vector<1x4x64xbf16>,
    %c0_189 = arith.constant 0 : index
    %c0_190 = arith.constant 0 : index
    %258 = vector.load %arg21[%c0_189, %c0_190] : memref<1x64xf32, #tpu.memory_space<vmem>>, vector<1x64xf32>
    %259 = arith.truncf %253 : vector<1x64x64xf32> to vector<1x64x64xbf16>
    %c0_191 = arith.constant 0 : index
    %c8_192 = arith.constant 8 : index
    %c0_193 = arith.constant 0 : index
    %260 = vector.load %arg44[%c0_191, %c8_192, %c0_193] : memref<1x76x64xbf16, #tpu.memory_space<vmem>>, vector<1x64x64xbf16>
    tpu.vector_store %arg44[%c0_191, %c8_192, %c0_193], %259 {strides = array<i32>} : memref<1x76x64xbf16, #tpu.memory_space<vmem>>, vector<1x64x64xbf16>,
    %c0_194 = arith.constant 0 : index
    %c4 = arith.constant 4 : index
    %c0_195 = arith.constant 0 : index
    %261 = vector.load %arg44[%c0_194, %c4, %c0_195] : memref<1x76x64xbf16, #tpu.memory_space<vmem>>, vector<1x64x64xbf16>
    %262 = vector.shape_cast %261 : vector<1x64x64xbf16> to vector<64x64xbf16>
    %c0_196 = arith.constant 0 : index
    %c12 = arith.constant 12 : index
    %c0_197 = arith.constant 0 : index
    %263 = vector.load %arg44[%c0_196, %c12, %c0_197] : memref<1x76x64xbf16, #tpu.memory_space<vmem>>, vector<1x64x64xbf16>
    %264 = vector.shape_cast %263 : vector<1x64x64xbf16> to vector<64x64xbf16>
    %c0_198 = arith.constant 0 : index
    %c0_199 = arith.constant 0 : index
    %c0_200 = arith.constant 0 : index
    %265 = vector.load %arg20[%c0_198, %c0_199, %c0_200] : memref<2x64x64xbf16, #tpu.memory_space<vmem>>, vector<1x64x64xbf16>
    %266 = vector.shape_cast %265 : vector<1x64x64xbf16> to vector<64x64xbf16>
    %cst_201 = arith.constant dense<0.000000e+00> : vector<64x64xf32>
    %267 = tpu.matmul %262, %266, %cst_201 {dimension_numbers = #tpu.dot_dimension_numbers<[1], [0], [0], [1], [0, 0, 1, 1], [], []>} : vector<64x64xbf16>, vector<64x64xbf16>, vector<64x64xf32> -> vector<64x64xf32>
    %c1_202 = arith.constant 1 : index
    %c0_203 = arith.constant 0 : index
    %c0_204 = arith.constant 0 : index
    %268 = vector.load %arg20[%c1_202, %c0_203, %c0_204] : memref<2x64x64xbf16, #tpu.memory_space<vmem>>, vector<1x64x64xbf16>
    %269 = vector.shape_cast %268 : vector<1x64x64xbf16> to vector<64x64xbf16>
    %cst_205 = arith.constant dense<0.000000e+00> : vector<64x64xf32>
    %270 = tpu.matmul %264, %269, %cst_205 {dimension_numbers = #tpu.dot_dimension_numbers<[1], [0], [0], [1], [0, 0, 1, 1], [], []>} : vector<64x64xbf16>, vector<64x64xbf16>, vector<64x64xf32> -> vector<64x64xf32>
    %271 = arith.addf %267, %270 : vector<64x64xf32>
    %272 = vector.broadcast %258 : vector<1x64xf32> to vector<64x64xf32>
    %273 = arith.addf %271, %272 : vector<64x64xf32>
    %cst_206 = arith.constant 5.000000e-01 : f32
    %274 = vector.broadcast %cst_206 : f32 to vector<64x64xf32>
    %275 = arith.mulf %274, %273 : vector<64x64xf32>
    %cst_207 = arith.constant 4.471500e-02 : f32
    %276 = vector.broadcast %cst_207 : f32 to vector<64x64xf32>
    %277 = arith.mulf %276, %273 : vector<64x64xf32>
    %278 = arith.mulf %277, %273 : vector<64x64xf32>
    %279 = arith.mulf %278, %273 : vector<64x64xf32>
    %280 = arith.addf %273, %279 : vector<64x64xf32>
    %cst_208 = arith.constant 0.797884583 : f32
    %281 = vector.broadcast %cst_208 : f32 to vector<64x64xf32>
    %282 = arith.mulf %281, %280 : vector<64x64xf32>
    %283 = math.tanh %282 : vector<64x64xf32>
    %cst_209 = arith.constant 1.000000e+00 : f32
    %284 = vector.broadcast %cst_209 : f32 to vector<64x64xf32>
    %285 = arith.addf %284, %283 : vector<64x64xf32>
    %286 = arith.mulf %275, %285 : vector<64x64xf32>
    %287 = vector.shape_cast %286 : vector<64x64xf32> to vector<1x64x64xf32>
    %c0_210 = arith.constant 0 : index
    %c0_211 = arith.constant 0 : index
    %288 = vector.load %arg23[%c0_210, %c0_211] : memref<1x64xf32, #tpu.memory_space<vmem>>, vector<1x64xf32>
    %289 = arith.truncf %287 : vector<1x64x64xf32> to vector<1x64x64xbf16>
    %c0_212 = arith.constant 0 : index
    %c8_213 = arith.constant 8 : index
    %c0_214 = arith.constant 0 : index
    %290 = vector.load %arg44[%c0_212, %c8_213, %c0_214] : memref<1x76x64xbf16, #tpu.memory_space<vmem>>, vector<1x64x64xbf16>
    tpu.vector_store %arg44[%c0_212, %c8_213, %c0_214], %289 {strides = array<i32>} : memref<1x76x64xbf16, #tpu.memory_space<vmem>>, vector<1x64x64xbf16>,
    %c0_215 = arith.constant 0 : index
    %c4_216 = arith.constant 4 : index
    %c0_217 = arith.constant 0 : index
    %291 = vector.load %arg44[%c0_215, %c4_216, %c0_217] : memref<1x76x64xbf16, #tpu.memory_space<vmem>>, vector<1x64x64xbf16>
    %292 = vector.shape_cast %291 : vector<1x64x64xbf16> to vector<64x64xbf16>
    %c0_218 = arith.constant 0 : index
    %c12_219 = arith.constant 12 : index
    %c0_220 = arith.constant 0 : index
    %293 = vector.load %arg44[%c0_218, %c12_219, %c0_220] : memref<1x76x64xbf16, #tpu.memory_space<vmem>>, vector<1x64x64xbf16>
    %294 = vector.shape_cast %293 : vector<1x64x64xbf16> to vector<64x64xbf16>
    %c0_221 = arith.constant 0 : index
    %c0_222 = arith.constant 0 : index
    %c0_223 = arith.constant 0 : index
    %295 = vector.load %arg22[%c0_221, %c0_222, %c0_223] : memref<2x64x64xbf16, #tpu.memory_space<vmem>>, vector<1x64x64xbf16>
    %296 = vector.shape_cast %295 : vector<1x64x64xbf16> to vector<64x64xbf16>
    %cst_224 = arith.constant dense<0.000000e+00> : vector<64x64xf32>
    %297 = tpu.matmul %292, %296, %cst_224 {dimension_numbers = #tpu.dot_dimension_numbers<[1], [0], [0], [1], [0, 0, 1, 1], [], []>} : vector<64x64xbf16>, vector<64x64xbf16>, vector<64x64xf32> -> vector<64x64xf32>
    %c1_225 = arith.constant 1 : index
    %c0_226 = arith.constant 0 : index
    %c0_227 = arith.constant 0 : index
    %298 = vector.load %arg22[%c1_225, %c0_226, %c0_227] : memref<2x64x64xbf16, #tpu.memory_space<vmem>>, vector<1x64x64xbf16>
    %299 = vector.shape_cast %298 : vector<1x64x64xbf16> to vector<64x64xbf16>
    %cst_228 = arith.constant dense<0.000000e+00> : vector<64x64xf32>
    %300 = tpu.matmul %294, %299, %cst_228 {dimension_numbers = #tpu.dot_dimension_numbers<[1], [0], [0], [1], [0, 0, 1, 1], [], []>} : vector<64x64xbf16>, vector<64x64xbf16>, vector<64x64xf32> -> vector<64x64xf32>
    %301 = arith.addf %297, %300 : vector<64x64xf32>
    %302 = vector.broadcast %288 : vector<1x64xf32> to vector<64x64xf32>
    %303 = arith.addf %301, %302 : vector<64x64xf32>
    %cst_229 = arith.constant 5.000000e-01 : f32
    %304 = vector.broadcast %cst_229 : f32 to vector<64x64xf32>
    %305 = arith.mulf %304, %303 : vector<64x64xf32>
    %cst_230 = arith.constant 4.471500e-02 : f32
    %306 = vector.broadcast %cst_230 : f32 to vector<64x64xf32>
    %307 = arith.mulf %306, %303 : vector<64x64xf32>
    %308 = arith.mulf %307, %303 : vector<64x64xf32>
    %309 = arith.mulf %308, %303 : vector<64x64xf32>
    %310 = arith.addf %303, %309 : vector<64x64xf32>
    %cst_231 = arith.constant 0.797884583 : f32
    %311 = vector.broadcast %cst_231 : f32 to vector<64x64xf32>
    %312 = arith.mulf %311, %310 : vector<64x64xf32>
    %313 = math.tanh %312 : vector<64x64xf32>
    %cst_232 = arith.constant 1.000000e+00 : f32
    %314 = vector.broadcast %cst_232 : f32 to vector<64x64xf32>
    %315 = arith.addf %314, %313 : vector<64x64xf32>
    %316 = arith.mulf %305, %315 : vector<64x64xf32>
    %cst_233 = arith.constant 0.000000e+00 : f32
    %317 = vector.broadcast %cst_233 : f32 to vector<64x64xf32>
    %318 = arith.subf %317, %316 : vector<64x64xf32>
    %319 = math.exp %318 : vector<64x64xf32>
    %cst_234 = arith.constant 1.000000e+00 : f32
    %320 = vector.broadcast %cst_234 : f32 to vector<64x64xf32>
    %321 = arith.addf %320, %319 : vector<64x64xf32>
    %322 = tpu.reciprocal %321 {approx = true} : vector<64x64xf32> -> vector<64x64xf32>
    %323 = vector.shape_cast %253 : vector<1x64x64xf32> to vector<64x64xf32>
    %324 = arith.mulf %323, %322 : vector<64x64xf32>
    %325 = tpu.concatenate %324, %323 in 1 : vector<64x64xf32>, vector<64x64xf32> -> vector<64x128xf32>
    %326 = arith.truncf %325 : vector<64x128xf32> to vector<64x128xbf16>
    %c0_235 = arith.constant 0 : index
    %c0_236 = arith.constant 0 : index
    %327 = vector.load %arg24[%c0_235, %c0_236] : memref<128x4xbf16, #tpu.memory_space<vmem>>, vector<128x4xbf16>
    %cst_237 = arith.constant dense<0.000000e+00> : vector<64x4xf32>
    %328 = tpu.matmul %326, %327, %cst_237 {dimension_numbers = #tpu.dot_dimension_numbers<[1], [0], [0], [1], [0, 0, 1, 1], [], []>} : vector<64x128xbf16>, vector<128x4xbf16>, vector<64x4xf32> -> vector<64x4xf32>
    %c0_238 = arith.constant 0 : index
    %c0_239 = arith.constant 0 : index
    %329 = vector.load %arg25[%c0_238, %c0_239] : memref<1x4xf32, #tpu.memory_space<vmem>>, vector<1x4xf32>
    %330 = vector.broadcast %329 : vector<1x4xf32> to vector<64x4xf32>
    %331 = arith.addf %328, %330 : vector<64x4xf32>
    %cst_240 = arith.constant 0.000000e+00 : f32
    %332 = vector.broadcast %cst_240 : f32 to vector<64x4xf32>
    %333 = arith.maximumf %331, %332 : vector<64x4xf32>
    %334 = vector.shape_cast %333 : vector<64x4xf32> to vector<1x64x4xf32>
    %cst_241 = arith.constant dense<0.000000e+00> : vector<1x4xf32>
    %335 = vector.multi_reduction <add>, %334, %cst_241 [1] : vector<1x64x4xf32> to vector<1x4xf32>
    %cst_242 = arith.constant 6.400000e+01 : f32
    %336 = vector.broadcast %cst_242 : f32 to vector<1x4xf32>
    %337 = arith.divf %335, %336 : vector<1x4xf32>
    %338 = vector.shape_cast %325 : vector<64x128xf32> to vector<1x64x128xf32>
    %cst_243 = arith.constant 0.000000e+00 : bf16
    %339 = vector.broadcast %cst_243 : bf16 to vector<1x8x128xbf16>
    %c0_244 = arith.constant 0 : index
    %c0_245 = arith.constant 0 : index
    %c0_246 = arith.constant 0 : index
    %340 = vector.load %arg45[%c0_244, %c0_245, %c0_246] : memref<1x80x128xbf16, #tpu.memory_space<vmem>>, vector<1x8x128xbf16>
    tpu.vector_store %arg45[%c0_244, %c0_245, %c0_246], %339 {strides = array<i32>} : memref<1x80x128xbf16, #tpu.memory_space<vmem>>, vector<1x8x128xbf16>,
    %cst_247 = arith.constant 0.000000e+00 : bf16
    %341 = vector.broadcast %cst_247 : bf16 to vector<1x8x128xbf16>
    %c0_248 = arith.constant 0 : index
    %c72_249 = arith.constant 72 : index
    %c0_250 = arith.constant 0 : index
    %342 = vector.load %arg45[%c0_248, %c72_249, %c0_250] : memref<1x80x128xbf16, #tpu.memory_space<vmem>>, vector<1x8x128xbf16>
    tpu.vector_store %arg45[%c0_248, %c72_249, %c0_250], %341 {strides = array<i32>} : memref<1x80x128xbf16, #tpu.memory_space<vmem>>, vector<1x8x128xbf16>,
    %c0_251 = arith.constant 0 : index
    %c0_252 = arith.constant 0 : index
    %343 = vector.load %arg27[%c0_251, %c0_252] : memref<1x128xf32, #tpu.memory_space<vmem>>, vector<1x128xf32>
    %344 = arith.truncf %338 : vector<1x64x128xf32> to vector<1x64x128xbf16>
    %c0_253 = arith.constant 0 : index
    %c8_254 = arith.constant 8 : index
    %c0_255 = arith.constant 0 : index
    %345 = vector.load %arg45[%c0_253, %c8_254, %c0_255] : memref<1x80x128xbf16, #tpu.memory_space<vmem>>, vector<1x64x128xbf16>
    tpu.vector_store %arg45[%c0_253, %c8_254, %c0_255], %344 {strides = array<i32>} : memref<1x80x128xbf16, #tpu.memory_space<vmem>>, vector<1x64x128xbf16>,
    %c0_256 = arith.constant 0 : index
    %c0_257 = arith.constant 0 : index
    %c0_258 = arith.constant 0 : index
    %346 = vector.load %arg45[%c0_256, %c0_257, %c0_258] : memref<1x80x128xbf16, #tpu.memory_space<vmem>>, vector<1x64x128xbf16>
    %347 = vector.shape_cast %346 : vector<1x64x128xbf16> to vector<64x128xbf16>
    %c0_259 = arith.constant 0 : index
    %c16 = arith.constant 16 : index
    %c0_260 = arith.constant 0 : index
    %348 = vector.load %arg45[%c0_259, %c16, %c0_260] : memref<1x80x128xbf16, #tpu.memory_space<vmem>>, vector<1x64x128xbf16>
    %349 = vector.shape_cast %348 : vector<1x64x128xbf16> to vector<64x128xbf16>
    %c0_261 = arith.constant 0 : index
    %c0_262 = arith.constant 0 : index
    %c0_263 = arith.constant 0 : index
    %350 = vector.load %arg26[%c0_261, %c0_262, %c0_263] : memref<2x128x128xbf16, #tpu.memory_space<vmem>>, vector<1x128x128xbf16>
    %351 = vector.shape_cast %350 : vector<1x128x128xbf16> to vector<128x128xbf16>
    %cst_264 = arith.constant dense<0.000000e+00> : vector<64x128xf32>
    %352 = tpu.matmul %347, %351, %cst_264 {dimension_numbers = #tpu.dot_dimension_numbers<[1], [0], [0], [1], [0, 0, 1, 1], [], []>} : vector<64x128xbf16>, vector<128x128xbf16>, vector<64x128xf32> -> vector<64x128xf32>
    %c1_265 = arith.constant 1 : index
    %c0_266 = arith.constant 0 : index
    %c0_267 = arith.constant 0 : index
    %353 = vector.load %arg26[%c1_265, %c0_266, %c0_267] : memref<2x128x128xbf16, #tpu.memory_space<vmem>>, vector<1x128x128xbf16>
    %354 = vector.shape_cast %353 : vector<1x128x128xbf16> to vector<128x128xbf16>
    %cst_268 = arith.constant dense<0.000000e+00> : vector<64x128xf32>
    %355 = tpu.matmul %349, %354, %cst_268 {dimension_numbers = #tpu.dot_dimension_numbers<[1], [0], [0], [1], [0, 0, 1, 1], [], []>} : vector<64x128xbf16>, vector<128x128xbf16>, vector<64x128xf32> -> vector<64x128xf32>
    %356 = arith.addf %352, %355 : vector<64x128xf32>
    %357 = vector.broadcast %343 : vector<1x128xf32> to vector<64x128xf32>
    %358 = arith.addf %356, %357 : vector<64x128xf32>
    %cst_269 = arith.constant 5.000000e-01 : f32
    %359 = vector.broadcast %cst_269 : f32 to vector<64x128xf32>
    %360 = arith.mulf %359, %358 : vector<64x128xf32>
    %cst_270 = arith.constant 4.471500e-02 : f32
    %361 = vector.broadcast %cst_270 : f32 to vector<64x128xf32>
    %362 = arith.mulf %361, %358 : vector<64x128xf32>
    %363 = arith.mulf %362, %358 : vector<64x128xf32>
    %364 = arith.mulf %363, %358 : vector<64x128xf32>
    %365 = arith.addf %358, %364 : vector<64x128xf32>
    %cst_271 = arith.constant 0.797884583 : f32
    %366 = vector.broadcast %cst_271 : f32 to vector<64x128xf32>
    %367 = arith.mulf %366, %365 : vector<64x128xf32>
    %368 = math.tanh %367 : vector<64x128xf32>
    %cst_272 = arith.constant 1.000000e+00 : f32
    %369 = vector.broadcast %cst_272 : f32 to vector<64x128xf32>
    %370 = arith.addf %369, %368 : vector<64x128xf32>
    %371 = arith.mulf %360, %370 : vector<64x128xf32>
    %372 = vector.shape_cast %371 : vector<64x128xf32> to vector<1x64x128xf32>
    %c0_273 = arith.constant 0 : index
    %c0_274 = arith.constant 0 : index
    %373 = vector.load %arg29[%c0_273, %c0_274] : memref<1x128xf32, #tpu.memory_space<vmem>>, vector<1x128xf32>
    %374 = arith.truncf %372 : vector<1x64x128xf32> to vector<1x64x128xbf16>
    %c0_275 = arith.constant 0 : index
    %c8_276 = arith.constant 8 : index
    %c0_277 = arith.constant 0 : index
    %375 = vector.load %arg45[%c0_275, %c8_276, %c0_277] : memref<1x80x128xbf16, #tpu.memory_space<vmem>>, vector<1x64x128xbf16>
    tpu.vector_store %arg45[%c0_275, %c8_276, %c0_277], %374 {strides = array<i32>} : memref<1x80x128xbf16, #tpu.memory_space<vmem>>, vector<1x64x128xbf16>,
    %c0_278 = arith.constant 0 : index
    %c0_279 = arith.constant 0 : index
    %c0_280 = arith.constant 0 : index
    %376 = vector.load %arg45[%c0_278, %c0_279, %c0_280] : memref<1x80x128xbf16, #tpu.memory_space<vmem>>, vector<1x64x128xbf16>
    %377 = vector.shape_cast %376 : vector<1x64x128xbf16> to vector<64x128xbf16>
    %c0_281 = arith.constant 0 : index
    %c16_282 = arith.constant 16 : index
    %c0_283 = arith.constant 0 : index
    %378 = vector.load %arg45[%c0_281, %c16_282, %c0_283] : memref<1x80x128xbf16, #tpu.memory_space<vmem>>, vector<1x64x128xbf16>
    %379 = vector.shape_cast %378 : vector<1x64x128xbf16> to vector<64x128xbf16>
    %c0_284 = arith.constant 0 : index
    %c0_285 = arith.constant 0 : index
    %c0_286 = arith.constant 0 : index
    %380 = vector.load %arg28[%c0_284, %c0_285, %c0_286] : memref<2x128x128xbf16, #tpu.memory_space<vmem>>, vector<1x128x128xbf16>
    %381 = vector.shape_cast %380 : vector<1x128x128xbf16> to vector<128x128xbf16>
    %cst_287 = arith.constant dense<0.000000e+00> : vector<64x128xf32>
    %382 = tpu.matmul %377, %381, %cst_287 {dimension_numbers = #tpu.dot_dimension_numbers<[1], [0], [0], [1], [0, 0, 1, 1], [], []>} : vector<64x128xbf16>, vector<128x128xbf16>, vector<64x128xf32> -> vector<64x128xf32>
    %c1_288 = arith.constant 1 : index
    %c0_289 = arith.constant 0 : index
    %c0_290 = arith.constant 0 : index
    %383 = vector.load %arg28[%c1_288, %c0_289, %c0_290] : memref<2x128x128xbf16, #tpu.memory_space<vmem>>, vector<1x128x128xbf16>
    %384 = vector.shape_cast %383 : vector<1x128x128xbf16> to vector<128x128xbf16>
    %cst_291 = arith.constant dense<0.000000e+00> : vector<64x128xf32>
    %385 = tpu.matmul %379, %384, %cst_291 {dimension_numbers = #tpu.dot_dimension_numbers<[1], [0], [0], [1], [0, 0, 1, 1], [], []>} : vector<64x128xbf16>, vector<128x128xbf16>, vector<64x128xf32> -> vector<64x128xf32>
    %386 = arith.addf %382, %385 : vector<64x128xf32>
    %387 = vector.broadcast %373 : vector<1x128xf32> to vector<64x128xf32>
    %388 = arith.addf %386, %387 : vector<64x128xf32>
    %cst_292 = arith.constant 5.000000e-01 : f32
    %389 = vector.broadcast %cst_292 : f32 to vector<64x128xf32>
    %390 = arith.mulf %389, %388 : vector<64x128xf32>
    %cst_293 = arith.constant 4.471500e-02 : f32
    %391 = vector.broadcast %cst_293 : f32 to vector<64x128xf32>
    %392 = arith.mulf %391, %388 : vector<64x128xf32>
    %393 = arith.mulf %392, %388 : vector<64x128xf32>
    %394 = arith.mulf %393, %388 : vector<64x128xf32>
    %395 = arith.addf %388, %394 : vector<64x128xf32>
    %cst_294 = arith.constant 0.797884583 : f32
    %396 = vector.broadcast %cst_294 : f32 to vector<64x128xf32>
    %397 = arith.mulf %396, %395 : vector<64x128xf32>
    %398 = math.tanh %397 : vector<64x128xf32>
    %cst_295 = arith.constant 1.000000e+00 : f32
    %399 = vector.broadcast %cst_295 : f32 to vector<64x128xf32>
    %400 = arith.addf %399, %398 : vector<64x128xf32>
    %401 = arith.mulf %390, %400 : vector<64x128xf32>
    %cst_296 = arith.constant 0.000000e+00 : f32
    %402 = vector.broadcast %cst_296 : f32 to vector<64x128xf32>
    %403 = arith.subf %402, %401 : vector<64x128xf32>
    %404 = math.exp %403 : vector<64x128xf32>
    %cst_297 = arith.constant 1.000000e+00 : f32
    %405 = vector.broadcast %cst_297 : f32 to vector<64x128xf32>
    %406 = arith.addf %405, %404 : vector<64x128xf32>
    %407 = tpu.reciprocal %406 {approx = true} : vector<64x128xf32> -> vector<64x128xf32>
    %408 = vector.shape_cast %338 : vector<1x64x128xf32> to vector<64x128xf32>
    %409 = arith.mulf %408, %407 : vector<64x128xf32>
    %410 = tpu.concatenate %409, %408 in 1 : vector<64x128xf32>, vector<64x128xf32> -> vector<64x256xf32>
    %411 = arith.truncf %410 : vector<64x256xf32> to vector<64x256xbf16>
    %c0_298 = arith.constant 0 : index
    %c0_299 = arith.constant 0 : index
    %412 = vector.load %arg30[%c0_298, %c0_299] : memref<256x4xbf16, #tpu.memory_space<vmem>>, vector<256x4xbf16>
    %cst_300 = arith.constant dense<0.000000e+00> : vector<64x4xf32>
    %413 = tpu.matmul %411, %412, %cst_300 {dimension_numbers = #tpu.dot_dimension_numbers<[1], [0], [0], [1], [0, 0, 1, 1], [], []>} : vector<64x256xbf16>, vector<256x4xbf16>, vector<64x4xf32> -> vector<64x4xf32>
    %c0_301 = arith.constant 0 : index
    %c0_302 = arith.constant 0 : index
    %414 = vector.load %arg31[%c0_301, %c0_302] : memref<1x4xf32, #tpu.memory_space<vmem>>, vector<1x4xf32>
    %415 = vector.broadcast %414 : vector<1x4xf32> to vector<64x4xf32>
    %416 = arith.addf %413, %415 : vector<64x4xf32>
    %cst_303 = arith.constant 0.000000e+00 : f32
    %417 = vector.broadcast %cst_303 : f32 to vector<64x4xf32>
    %418 = arith.maximumf %416, %417 : vector<64x4xf32>
    %419 = vector.shape_cast %418 : vector<64x4xf32> to vector<1x64x4xf32>
    %cst_304 = arith.constant dense<0.000000e+00> : vector<1x4xf32>
    %420 = vector.multi_reduction <add>, %419, %cst_304 [1] : vector<1x64x4xf32> to vector<1x4xf32>
    %cst_305 = arith.constant 6.400000e+01 : f32
    %421 = vector.broadcast %cst_305 : f32 to vector<1x4xf32>
    %422 = arith.divf %420, %421 : vector<1x4xf32>
    %423 = vector.shape_cast %410 : vector<64x256xf32> to vector<1x64x256xf32>
    %cst_306 = arith.constant 0.000000e+00 : bf16
    %424 = vector.broadcast %cst_306 : bf16 to vector<1x16x256xbf16>
    %c0_307 = arith.constant 0 : index
    %c0_308 = arith.constant 0 : index
    %c0_309 = arith.constant 0 : index
    %425 = vector.load %arg46[%c0_307, %c0_308, %c0_309] : memref<1x96x256xbf16, #tpu.memory_space<vmem>>, vector<1x16x256xbf16>
    tpu.vector_store %arg46[%c0_307, %c0_308, %c0_309], %424 {strides = array<i32>} : memref<1x96x256xbf16, #tpu.memory_space<vmem>>, vector<1x16x256xbf16>,
    %cst_310 = arith.constant 0.000000e+00 : bf16
    %426 = vector.broadcast %cst_310 : bf16 to vector<1x16x256xbf16>
    %c0_311 = arith.constant 0 : index
    %c80 = arith.constant 80 : index
    %c0_312 = arith.constant 0 : index
    %427 = vector.load %arg46[%c0_311, %c80, %c0_312] : memref<1x96x256xbf16, #tpu.memory_space<vmem>>, vector<1x16x256xbf16>
    tpu.vector_store %arg46[%c0_311, %c80, %c0_312], %426 {strides = array<i32>} : memref<1x96x256xbf16, #tpu.memory_space<vmem>>, vector<1x16x256xbf16>,
    %c0_313 = arith.constant 0 : index
    %c0_314 = arith.constant 0 : index
    %428 = vector.load %arg33[%c0_313, %c0_314] : memref<1x256xf32, #tpu.memory_space<vmem>>, vector<1x256xf32>
    %429 = arith.truncf %423 : vector<1x64x256xf32> to vector<1x64x256xbf16>
    %c0_315 = arith.constant 0 : index
    %c16_316 = arith.constant 16 : index
    %c0_317 = arith.constant 0 : index
    %430 = vector.load %arg46[%c0_315, %c16_316, %c0_317] : memref<1x96x256xbf16, #tpu.memory_space<vmem>>, vector<1x64x256xbf16>
    tpu.vector_store %arg46[%c0_315, %c16_316, %c0_317], %429 {strides = array<i32>} : memref<1x96x256xbf16, #tpu.memory_space<vmem>>, vector<1x64x256xbf16>,
    %c0_318 = arith.constant 0 : index
    %c0_319 = arith.constant 0 : index
    %c0_320 = arith.constant 0 : index
    %431 = vector.load %arg46[%c0_318, %c0_319, %c0_320] : memref<1x96x256xbf16, #tpu.memory_space<vmem>>, vector<1x64x256xbf16>
    %432 = vector.shape_cast %431 : vector<1x64x256xbf16> to vector<64x256xbf16>
    %c0_321 = arith.constant 0 : index
    %c32 = arith.constant 32 : index
    %c0_322 = arith.constant 0 : index
    %433 = vector.load %arg46[%c0_321, %c32, %c0_322] : memref<1x96x256xbf16, #tpu.memory_space<vmem>>, vector<1x64x256xbf16>
    %434 = vector.shape_cast %433 : vector<1x64x256xbf16> to vector<64x256xbf16>
    %c0_323 = arith.constant 0 : index
    %c0_324 = arith.constant 0 : index
    %c0_325 = arith.constant 0 : index
    %435 = vector.load %arg32[%c0_323, %c0_324, %c0_325] : memref<2x256x256xbf16, #tpu.memory_space<vmem>>, vector<1x256x256xbf16>
    %436 = vector.shape_cast %435 : vector<1x256x256xbf16> to vector<256x256xbf16>
    %cst_326 = arith.constant dense<0.000000e+00> : vector<64x256xf32>
    %437 = tpu.matmul %432, %436, %cst_326 {dimension_numbers = #tpu.dot_dimension_numbers<[1], [0], [0], [1], [0, 0, 1, 1], [], []>} : vector<64x256xbf16>, vector<256x256xbf16>, vector<64x256xf32> -> vector<64x256xf32>
    %c1_327 = arith.constant 1 : index
    %c0_328 = arith.constant 0 : index
    %c0_329 = arith.constant 0 : index
    %438 = vector.load %arg32[%c1_327, %c0_328, %c0_329] : memref<2x256x256xbf16, #tpu.memory_space<vmem>>, vector<1x256x256xbf16>
    %439 = vector.shape_cast %438 : vector<1x256x256xbf16> to vector<256x256xbf16>
    %cst_330 = arith.constant dense<0.000000e+00> : vector<64x256xf32>
    %440 = tpu.matmul %434, %439, %cst_330 {dimension_numbers = #tpu.dot_dimension_numbers<[1], [0], [0], [1], [0, 0, 1, 1], [], []>} : vector<64x256xbf16>, vector<256x256xbf16>, vector<64x256xf32> -> vector<64x256xf32>
    %441 = arith.addf %437, %440 : vector<64x256xf32>
    %442 = vector.broadcast %428 : vector<1x256xf32> to vector<64x256xf32>
    %443 = arith.addf %441, %442 : vector<64x256xf32>
    %cst_331 = arith.constant 5.000000e-01 : f32
    %444 = vector.broadcast %cst_331 : f32 to vector<64x256xf32>
    %445 = arith.mulf %444, %443 : vector<64x256xf32>
    %cst_332 = arith.constant 4.471500e-02 : f32
    %446 = vector.broadcast %cst_332 : f32 to vector<64x256xf32>
    %447 = arith.mulf %446, %443 : vector<64x256xf32>
    %448 = arith.mulf %447, %443 : vector<64x256xf32>
    %449 = arith.mulf %448, %443 : vector<64x256xf32>
    %450 = arith.addf %443, %449 : vector<64x256xf32>
    %cst_333 = arith.constant 0.797884583 : f32
    %451 = vector.broadcast %cst_333 : f32 to vector<64x256xf32>
    %452 = arith.mulf %451, %450 : vector<64x256xf32>
    %453 = math.tanh %452 : vector<64x256xf32>
    %cst_334 = arith.constant 1.000000e+00 : f32
    %454 = vector.broadcast %cst_334 : f32 to vector<64x256xf32>
    %455 = arith.addf %454, %453 : vector<64x256xf32>
    %456 = arith.mulf %445, %455 : vector<64x256xf32>
    %457 = vector.shape_cast %456 : vector<64x256xf32> to vector<1x64x256xf32>
    %c0_335 = arith.constant 0 : index
    %c0_336 = arith.constant 0 : index
    %458 = vector.load %arg35[%c0_335, %c0_336] : memref<1x256xf32, #tpu.memory_space<vmem>>, vector<1x256xf32>
    %459 = arith.truncf %457 : vector<1x64x256xf32> to vector<1x64x256xbf16>
    %c0_337 = arith.constant 0 : index
    %c16_338 = arith.constant 16 : index
    %c0_339 = arith.constant 0 : index
    %460 = vector.load %arg46[%c0_337, %c16_338, %c0_339] : memref<1x96x256xbf16, #tpu.memory_space<vmem>>, vector<1x64x256xbf16>
    tpu.vector_store %arg46[%c0_337, %c16_338, %c0_339], %459 {strides = array<i32>} : memref<1x96x256xbf16, #tpu.memory_space<vmem>>, vector<1x64x256xbf16>,
    %c0_340 = arith.constant 0 : index
    %c0_341 = arith.constant 0 : index
    %c0_342 = arith.constant 0 : index
    %461 = vector.load %arg46[%c0_340, %c0_341, %c0_342] : memref<1x96x256xbf16, #tpu.memory_space<vmem>>, vector<1x64x256xbf16>
    %462 = vector.shape_cast %461 : vector<1x64x256xbf16> to vector<64x256xbf16>
    %c0_343 = arith.constant 0 : index
    %c32_344 = arith.constant 32 : index
    %c0_345 = arith.constant 0 : index
    %463 = vector.load %arg46[%c0_343, %c32_344, %c0_345] : memref<1x96x256xbf16, #tpu.memory_space<vmem>>, vector<1x64x256xbf16>
    %464 = vector.shape_cast %463 : vector<1x64x256xbf16> to vector<64x256xbf16>
    %c0_346 = arith.constant 0 : index
    %c0_347 = arith.constant 0 : index
    %c0_348 = arith.constant 0 : index
    %465 = vector.load %arg34[%c0_346, %c0_347, %c0_348] : memref<2x256x256xbf16, #tpu.memory_space<vmem>>, vector<1x256x256xbf16>
    %466 = vector.shape_cast %465 : vector<1x256x256xbf16> to vector<256x256xbf16>
    %cst_349 = arith.constant dense<0.000000e+00> : vector<64x256xf32>
    %467 = tpu.matmul %462, %466, %cst_349 {dimension_numbers = #tpu.dot_dimension_numbers<[1], [0], [0], [1], [0, 0, 1, 1], [], []>} : vector<64x256xbf16>, vector<256x256xbf16>, vector<64x256xf32> -> vector<64x256xf32>
    %c1_350 = arith.constant 1 : index
    %c0_351 = arith.constant 0 : index
    %c0_352 = arith.constant 0 : index
    %468 = vector.load %arg34[%c1_350, %c0_351, %c0_352] : memref<2x256x256xbf16, #tpu.memory_space<vmem>>, vector<1x256x256xbf16>
    %469 = vector.shape_cast %468 : vector<1x256x256xbf16> to vector<256x256xbf16>
    %cst_353 = arith.constant dense<0.000000e+00> : vector<64x256xf32>
    %470 = tpu.matmul %464, %469, %cst_353 {dimension_numbers = #tpu.dot_dimension_numbers<[1], [0], [0], [1], [0, 0, 1, 1], [], []>} : vector<64x256xbf16>, vector<256x256xbf16>, vector<64x256xf32> -> vector<64x256xf32>
    %471 = arith.addf %467, %470 : vector<64x256xf32>
    %472 = vector.broadcast %458 : vector<1x256xf32> to vector<64x256xf32>
    %473 = arith.addf %471, %472 : vector<64x256xf32>
    %cst_354 = arith.constant 5.000000e-01 : f32
    %474 = vector.broadcast %cst_354 : f32 to vector<64x256xf32>
    %475 = arith.mulf %474, %473 : vector<64x256xf32>
    %cst_355 = arith.constant 4.471500e-02 : f32
    %476 = vector.broadcast %cst_355 : f32 to vector<64x256xf32>
    %477 = arith.mulf %476, %473 : vector<64x256xf32>
    %478 = arith.mulf %477, %473 : vector<64x256xf32>
    %479 = arith.mulf %478, %473 : vector<64x256xf32>
    %480 = arith.addf %473, %479 : vector<64x256xf32>
    %cst_356 = arith.constant 0.797884583 : f32
    %481 = vector.broadcast %cst_356 : f32 to vector<64x256xf32>
    %482 = arith.mulf %481, %480 : vector<64x256xf32>
    %483 = math.tanh %482 : vector<64x256xf32>
    %cst_357 = arith.constant 1.000000e+00 : f32
    %484 = vector.broadcast %cst_357 : f32 to vector<64x256xf32>
    %485 = arith.addf %484, %483 : vector<64x256xf32>
    %486 = arith.mulf %475, %485 : vector<64x256xf32>
    %cst_358 = arith.constant 0.000000e+00 : f32
    %487 = vector.broadcast %cst_358 : f32 to vector<64x256xf32>
    %488 = arith.subf %487, %486 : vector<64x256xf32>
    %489 = math.exp %488 : vector<64x256xf32>
    %cst_359 = arith.constant 1.000000e+00 : f32
    %490 = vector.broadcast %cst_359 : f32 to vector<64x256xf32>
    %491 = arith.addf %490, %489 : vector<64x256xf32>
    %492 = tpu.reciprocal %491 {approx = true} : vector<64x256xf32> -> vector<64x256xf32>
    %493 = vector.shape_cast %423 : vector<1x64x256xf32> to vector<64x256xf32>
    %494 = arith.mulf %493, %492 : vector<64x256xf32>
    %495 = tpu.concatenate %494, %493 in 1 : vector<64x256xf32>, vector<64x256xf32> -> vector<64x512xf32>
    %496 = arith.truncf %495 : vector<64x512xf32> to vector<64x512xbf16>
    %c0_360 = arith.constant 0 : index
    %c0_361 = arith.constant 0 : index
    %497 = vector.load %arg36[%c0_360, %c0_361] : memref<512x4xbf16, #tpu.memory_space<vmem>>, vector<512x4xbf16>
    %cst_362 = arith.constant dense<0.000000e+00> : vector<64x4xf32>
    %498 = tpu.matmul %496, %497, %cst_362 {dimension_numbers = #tpu.dot_dimension_numbers<[1], [0], [0], [1], [0, 0, 1, 1], [], []>} : vector<64x512xbf16>, vector<512x4xbf16>, vector<64x4xf32> -> vector<64x4xf32>
    %c0_363 = arith.constant 0 : index
    %c0_364 = arith.constant 0 : index
    %499 = vector.load %arg37[%c0_363, %c0_364] : memref<1x4xf32, #tpu.memory_space<vmem>>, vector<1x4xf32>
    %500 = vector.broadcast %499 : vector<1x4xf32> to vector<64x4xf32>
    %501 = arith.addf %498, %500 : vector<64x4xf32>
    %cst_365 = arith.constant 0.000000e+00 : f32
    %502 = vector.broadcast %cst_365 : f32 to vector<64x4xf32>
    %503 = arith.maximumf %501, %502 : vector<64x4xf32>
    %504 = vector.shape_cast %503 : vector<64x4xf32> to vector<1x64x4xf32>
    %cst_366 = arith.constant dense<0.000000e+00> : vector<1x4xf32>
    %505 = vector.multi_reduction <add>, %504, %cst_366 [1] : vector<1x64x4xf32> to vector<1x4xf32>
    %cst_367 = arith.constant 6.400000e+01 : f32
    %506 = vector.broadcast %cst_367 : f32 to vector<1x4xf32>
    %507 = arith.divf %505, %506 : vector<1x4xf32>
    %508 = tpu.concatenate %82, %167, %252, %337, %422, %507 in 1 : vector<1x4xf32>, vector<1x4xf32>, vector<1x4xf32>, vector<1x4xf32>, vector<1x4xf32>, vector<1x4xf32> -> vector<1x24xf32>
    %c0_368 = arith.constant 0 : index
    %c0_369 = arith.constant 0 : index
    %509 = vector.load %arg38[%c0_368, %c0_369] : memref<24x3xf32, #tpu.memory_space<vmem>>, vector<24x3xf32>
    %cst_370 = arith.constant dense<0.000000e+00> : vector<1x3xf32>
    %510 = tpu.matmul %508, %509, %cst_370 {dimension_numbers = #tpu.dot_dimension_numbers<[1], [0], [0], [1], [0, 0, 1, 1], [], []>} : vector<1x24xf32>, vector<24x3xf32>, vector<1x3xf32> -> vector<1x3xf32>
    %c0_371 = arith.constant 0 : index
    %c0_372 = arith.constant 0 : index
    %511 = vector.load %arg39[%c0_371, %c0_372] : memref<1x3xf32, #tpu.memory_space<vmem>>, vector<1x3xf32>
    %512 = arith.addf %510, %511 : vector<1x3xf32>
    %c0_373 = arith.constant 0 : index
    %c0_374 = arith.constant 0 : index
    %c0_375 = arith.constant 0 : index
    %513 = vector.load %arg40[%c0_373, %c0_374, %c0_375] : memref<1x1x3xf32, #tpu.memory_space<vmem>>, vector<1x1x3xf32>
    %514 = vector.shape_cast %513 : vector<1x1x3xf32> to vector<1x3xf32>
    %515 = vector.shape_cast %512 : vector<1x3xf32> to vector<1x1x3xf32>
    tpu.vector_store %arg40[%c0_373, %c0_374, %c0_375], %515 {strides = array<i32>} : memref<1x1x3xf32, #tpu.memory_space<vmem>>, vector<1x1x3xf32>,
    return
  }
  func.func @transform_0(%arg0: i32) -> (i32, i32, i32) {
    %c0_i32 = arith.constant 0 : i32
    %c0_i32_0 = arith.constant 0 : i32
    %c0_i32_1 = arith.constant 0 : i32
    return %arg0, %c0_i32, %c0_i32_0 : i32, i32, i32
  }
  func.func @transform_1(%arg0: i32) -> (i32, i32, i32) {
    %c0_i32 = arith.constant 0 : i32
    %c0_i32_0 = arith.constant 0 : i32
    %c0_i32_1 = arith.constant 0 : i32
    %c0_i32_2 = arith.constant 0 : i32
    return %c0_i32, %c0_i32_0, %c0_i32_1 : i32, i32, i32
  }
  func.func @transform_2(%arg0: i32) -> (i32, i32) {
    %c0_i32 = arith.constant 0 : i32
    %c0_i32_0 = arith.constant 0 : i32
    %c0_i32_1 = arith.constant 0 : i32
    return %c0_i32, %c0_i32_0 : i32, i32
  }
  func.func @transform_3(%arg0: i32) -> (i32, i32, i32) {
    %c0_i32 = arith.constant 0 : i32
    %c0_i32_0 = arith.constant 0 : i32
    %c0_i32_1 = arith.constant 0 : i32
    %c0_i32_2 = arith.constant 0 : i32
    return %c0_i32, %c0_i32_0, %c0_i32_1 : i32, i32, i32
  }
  func.func @transform_4(%arg0: i32) -> (i32, i32) {
    %c0_i32 = arith.constant 0 : i32
    %c0_i32_0 = arith.constant 0 : i32
    %c0_i32_1 = arith.constant 0 : i32
    return %c0_i32, %c0_i32_0 : i32, i32
  }
  func.func @transform_5(%arg0: i32) -> (i32, i32) {
    %c0_i32 = arith.constant 0 : i32
    %c0_i32_0 = arith.constant 0 : i32
    %c0_i32_1 = arith.constant 0 : i32
    return %c0_i32, %c0_i32_0 : i32, i32
  }
  func.func @transform_6(%arg0: i32) -> (i32, i32) {
    %c0_i32 = arith.constant 0 : i32
    %c0_i32_0 = arith.constant 0 : i32
    %c0_i32_1 = arith.constant 0 : i32
    return %c0_i32, %c0_i32_0 : i32, i32
  }
  func.func @transform_7(%arg0: i32) -> (i32, i32, i32) {
    %c0_i32 = arith.constant 0 : i32
    %c0_i32_0 = arith.constant 0 : i32
    %c0_i32_1 = arith.constant 0 : i32
    %c0_i32_2 = arith.constant 0 : i32
    return %c0_i32, %c0_i32_0, %c0_i32_1 : i32, i32, i32
  }
  func.func @transform_8(%arg0: i32) -> (i32, i32) {
    %c0_i32 = arith.constant 0 : i32
    %c0_i32_0 = arith.constant 0 : i32
    %c0_i32_1 = arith.constant 0 : i32
    return %c0_i32, %c0_i32_0 : i32, i32
  }
  func.func @transform_9(%arg0: i32) -> (i32, i32, i32) {
    %c0_i32 = arith.constant 0 : i32
    %c0_i32_0 = arith.constant 0 : i32
    %c0_i32_1 = arith.constant 0 : i32
    %c0_i32_2 = arith.constant 0 : i32
    return %c0_i32, %c0_i32_0, %c0_i32_1 : i32, i32, i32
  }
  func.func @transform_10(%arg0: i32) -> (i32, i32) {
    %c0_i32 = arith.constant 0 : i32
    %c0_i32_0 = arith.constant 0 : i32
    %c0_i32_1 = arith.constant 0 : i32
    return %c0_i32, %c0_i32_0 : i32, i32
  }
  func.func @transform_11(%arg0: i32) -> (i32, i32) {
    %c0_i32 = arith.constant 0 : i32
    %c0_i32_0 = arith.constant 0 : i32
    %c0_i32_1 = arith.constant 0 : i32
    return %c0_i32, %c0_i32_0 : i32, i32
  }
  func.func @transform_12(%arg0: i32) -> (i32, i32) {
    %c0_i32 = arith.constant 0 : i32
    %c0_i32_0 = arith.constant 0 : i32
    %c0_i32_1 = arith.constant 0 : i32
    return %c0_i32, %c0_i32_0 : i32, i32
  }
  func.func @transform_13(%arg0: i32) -> (i32, i32, i32) {
    %c0_i32 = arith.constant 0 : i32
    %c0_i32_0 = arith.constant 0 : i32
    %c0_i32_1 = arith.constant 0 : i32
    %c0_i32_2 = arith.constant 0 : i32
    return %c0_i32, %c0_i32_0, %c0_i32_1 : i32, i32, i32
  }
  func.func @transform_14(%arg0: i32) -> (i32, i32) {
    %c0_i32 = arith.constant 0 : i32
    %c0_i32_0 = arith.constant 0 : i32
    %c0_i32_1 = arith.constant 0 : i32
    return %c0_i32, %c0_i32_0 : i32, i32
  }
  func.func @transform_15(%arg0: i32) -> (i32, i32, i32) {
    %c0_i32 = arith.constant 0 : i32
    %c0_i32_0 = arith.constant 0 : i32
    %c0_i32_1 = arith.constant 0 : i32
    %c0_i32_2 = arith.constant 0 : i32
    return %c0_i32, %c0_i32_0, %c0_i32_1 : i32, i32, i32
  }
  func.func @transform_16(%arg0: i32) -> (i32, i32) {
    %c0_i32 = arith.constant 0 : i32
    %c0_i32_0 = arith.constant 0 : i32
    %c0_i32_1 = arith.constant 0 : i32
    return %c0_i32, %c0_i32_0 : i32, i32
  }
  func.func @transform_17(%arg0: i32) -> (i32, i32) {
    %c0_i32 = arith.constant 0 : i32
    %c0_i32_0 = arith.constant 0 : i32
    %c0_i32_1 = arith.constant 0 : i32
    return %c0_i32, %c0_i32_0 : i32, i32
  }
  func.func @transform_18(%arg0: i32) -> (i32, i32) {
    %c0_i32 = arith.constant 0 : i32
    %c0_i32_0 = arith.constant 0 : i32
    %c0_i32_1 = arith.constant 0 : i32
    return %c0_i32, %c0_i32_0 : i32, i32
  }
  func.func @transform_19(%arg0: i32) -> (i32, i32, i32) {
    %c0_i32 = arith.constant 0 : i32
    %c0_i32_0 = arith.constant 0 : i32
    %c0_i32_1 = arith.constant 0 : i32
    %c0_i32_2 = arith.constant 0 : i32
    return %c0_i32, %c0_i32_0, %c0_i32_1 : i32, i32, i32
  }
  func.func @transform_20(%arg0: i32) -> (i32, i32) {
    %c0_i32 = arith.constant 0 : i32
    %c0_i32_0 = arith.constant 0 : i32
    %c0_i32_1 = arith.constant 0 : i32
    return %c0_i32, %c0_i32_0 : i32, i32
  }
  func.func @transform_21(%arg0: i32) -> (i32, i32, i32) {
    %c0_i32 = arith.constant 0 : i32
    %c0_i32_0 = arith.constant 0 : i32
    %c0_i32_1 = arith.constant 0 : i32
    %c0_i32_2 = arith.constant 0 : i32
    return %c0_i32, %c0_i32_0, %c0_i32_1 : i32, i32, i32
  }
  func.func @transform_22(%arg0: i32) -> (i32, i32) {
    %c0_i32 = arith.constant 0 : i32
    %c0_i32_0 = arith.constant 0 : i32
    %c0_i32_1 = arith.constant 0 : i32
    return %c0_i32, %c0_i32_0 : i32, i32
  }
  func.func @transform_23(%arg0: i32) -> (i32, i32) {
    %c0_i32 = arith.constant 0 : i32
    %c0_i32_0 = arith.constant 0 : i32
    %c0_i32_1 = arith.constant 0 : i32
    return %c0_i32, %c0_i32_0 : i32, i32
  }
  func.func @transform_24(%arg0: i32) -> (i32, i32) {
    %c0_i32 = arith.constant 0 : i32
    %c0_i32_0 = arith.constant 0 : i32
    %c0_i32_1 = arith.constant 0 : i32
    return %c0_i32, %c0_i32_0 : i32, i32
  }
  func.func @transform_25(%arg0: i32) -> (i32, i32, i32) {
    %c0_i32 = arith.constant 0 : i32
    %c0_i32_0 = arith.constant 0 : i32
    %c0_i32_1 = arith.constant 0 : i32
    %c0_i32_2 = arith.constant 0 : i32
    return %c0_i32, %c0_i32_0, %c0_i32_1 : i32, i32, i32
  }
  func.func @transform_26(%arg0: i32) -> (i32, i32) {
    %c0_i32 = arith.constant 0 : i32
    %c0_i32_0 = arith.constant 0 : i32
    %c0_i32_1 = arith.constant 0 : i32
    return %c0_i32, %c0_i32_0 : i32, i32
  }
  func.func @transform_27(%arg0: i32) -> (i32, i32, i32) {
    %c0_i32 = arith.constant 0 : i32
    %c0_i32_0 = arith.constant 0 : i32
    %c0_i32_1 = arith.constant 0 : i32
    %c0_i32_2 = arith.constant 0 : i32
    return %c0_i32, %c0_i32_0, %c0_i32_1 : i32, i32, i32
  }
  func.func @transform_28(%arg0: i32) -> (i32, i32) {
    %c0_i32 = arith.constant 0 : i32
    %c0_i32_0 = arith.constant 0 : i32
    %c0_i32_1 = arith.constant 0 : i32
    return %c0_i32, %c0_i32_0 : i32, i32
  }
  func.func @transform_29(%arg0: i32) -> (i32, i32) {
    %c0_i32 = arith.constant 0 : i32
    %c0_i32_0 = arith.constant 0 : i32
    %c0_i32_1 = arith.constant 0 : i32
    return %c0_i32, %c0_i32_0 : i32, i32
  }
  func.func @transform_30(%arg0: i32) -> (i32, i32) {
    %c0_i32 = arith.constant 0 : i32
    %c0_i32_0 = arith.constant 0 : i32
    %c0_i32_1 = arith.constant 0 : i32
    return %c0_i32, %c0_i32_0 : i32, i32
  }
  func.func @transform_31(%arg0: i32) -> (i32, i32, i32) {
    %c0_i32 = arith.constant 0 : i32
    %c0_i32_0 = arith.constant 0 : i32
    %c0_i32_1 = arith.constant 0 : i32
    %c0_i32_2 = arith.constant 0 : i32
    return %c0_i32, %c0_i32_0, %c0_i32_1 : i32, i32, i32
  }
  func.func @transform_32(%arg0: i32) -> (i32, i32) {
    %c0_i32 = arith.constant 0 : i32
    %c0_i32_0 = arith.constant 0 : i32
    %c0_i32_1 = arith.constant 0 : i32
    return %c0_i32, %c0_i32_0 : i32, i32
  }
  func.func @transform_33(%arg0: i32) -> (i32, i32, i32) {
    %c0_i32 = arith.constant 0 : i32
    %c0_i32_0 = arith.constant 0 : i32
    %c0_i32_1 = arith.constant 0 : i32
    %c0_i32_2 = arith.constant 0 : i32
    return %c0_i32, %c0_i32_0, %c0_i32_1 : i32, i32, i32
  }
  func.func @transform_34(%arg0: i32) -> (i32, i32) {
    %c0_i32 = arith.constant 0 : i32
    %c0_i32_0 = arith.constant 0 : i32
    %c0_i32_1 = arith.constant 0 : i32
    return %c0_i32, %c0_i32_0 : i32, i32
  }
  func.func @transform_35(%arg0: i32) -> (i32, i32) {
    %c0_i32 = arith.constant 0 : i32
    %c0_i32_0 = arith.constant 0 : i32
    %c0_i32_1 = arith.constant 0 : i32
    return %c0_i32, %c0_i32_0 : i32, i32
  }
  func.func @transform_36(%arg0: i32) -> (i32, i32) {
    %c0_i32 = arith.constant 0 : i32
    %c0_i32_0 = arith.constant 0 : i32
    %c0_i32_1 = arith.constant 0 : i32
    return %c0_i32, %c0_i32_0 : i32, i32
  }
  func.func @transform_37(%arg0: i32) -> (i32, i32) {
    %c0_i32 = arith.constant 0 : i32
    %c0_i32_0 = arith.constant 0 : i32
    %c0_i32_1 = arith.constant 0 : i32
    return %c0_i32, %c0_i32_0 : i32, i32
  }
  func.func @transform_38(%arg0: i32) -> (i32, i32) {
    %c0_i32 = arith.constant 0 : i32
    %c0_i32_0 = arith.constant 0 : i32
    %c0_i32_1 = arith.constant 0 : i32
    return %c0_i32, %c0_i32_0 : i32, i32
  }
  func.func @transform_39(%arg0: i32) -> (i32, i32, i32) {
    %c0_i32 = arith.constant 0 : i32
    %c0_i32_0 = arith.constant 0 : i32
    %c0_i32_1 = arith.constant 0 : i32
    return %arg0, %c0_i32, %c0_i32_0 : i32, i32, i32
  }
}

</mosaic_0001>

<llo_original>
// kernel: tbdm_forward.1
$region0: #{tbdm_forward.1}
  #allocation0 [shape = 'u32[]', space=smem, size = 0x4, offset = 0x4, fixed_abs, tag = 'smem constant byte address 0x4 - core index']
  #allocation1 [shape = 'u32[144,128]{1,0:T(1,128)}', space=vmem, size = 0x12000, scoped, tag = 'internal scratch']
  #allocation2 [shape = 'bf16[1,65,8]{2,1,0:T(8,128)(2,1)}', space=vmem, size = 0x4800, scoped, tag = 'scratch operand']
  #allocation3 [shape = 'bf16[1,73,16]{2,1,0:T(8,128)(2,1)}', space=vmem, size = 0x5000, scoped, tag = 'scratch operand']
  #allocation4 [shape = 'bf16[1,74,32]{2,1,0:T(8,128)(2,1)}', space=vmem, size = 0x5000, scoped, tag = 'scratch operand']
  #allocation5 [shape = 'bf16[1,76,64]{2,1,0:T(8,128)(2,1)}', space=vmem, size = 0x5000, scoped, tag = 'scratch operand']
  #allocation6 [shape = 'bf16[1,80,128]{2,1,0:T(16,128)(2,1)}', space=vmem, size = 0x5000, scoped, tag = 'scratch operand']
  #allocation7 [shape = 'bf16[1,96,256]{2,1,0:T(16,128)(2,1)}', space=vmem, size = 0xc000, scoped, tag = 'scratch operand']
  %s0 = inlined_call_operand.smem [shape: u32[40], index: -1, kind: input, shape index: {}]
  %s1 = sld [smem:[%s0]]
  %s2 = scalar_lea.smem %s0, 1
  %s3 = sld [smem:[%s2]]
  %s4 = scalar_lea.smem %s0, 2
  %s5 = sld [smem:[%s4]]
  %s6 = scalar_lea.smem %s0, 3
  %s7 = sld [smem:[%s6]]
  %s8 = scalar_lea.smem %s0, 4
  %s9 = sld [smem:[%s8]]
  %s10 = scalar_lea.smem %s0, 5
  %s11 = sld [smem:[%s10]]
  %s12 = scalar_lea.smem %s0, 6
  %s13 = sld [smem:[%s12]]
  %s14 = scalar_lea.smem %s0, 7
  %s15 = sld [smem:[%s14]]
  %s16 = scalar_lea.smem %s0, 8
  %s17 = sld [smem:[%s16]]
  %s18 = scalar_lea.smem %s0, 9
  %s19 = sld [smem:[%s18]]
  %s20 = scalar_lea.smem %s0, 10
  %s21 = sld [smem:[%s20]]
  %s22 = scalar_lea.smem %s0, 11
  %s23 = sld [smem:[%s22]]
  %s24 = scalar_lea.smem %s0, 12
  %s25 = sld [smem:[%s24]]
  %s26 = scalar_lea.smem %s0, 13
  %s27 = sld [smem:[%s26]]
  %s28 = scalar_lea.smem %s0, 14
  %s29 = sld [smem:[%s28]]
  %s30 = scalar_lea.smem %s0, 15
  %s31 = sld [smem:[%s30]]
  %s32 = scalar_lea.smem %s0, 16
  %s33 = sld [smem:[%s32]]
  %s34 = scalar_lea.smem %s0, 17
  %s35 = sld [smem:[%s34]]
  %s36 = scalar_lea.smem %s0, 18
  %s37 = sld [smem:[%s36]]
  %s38 = scalar_lea.smem %s0, 19
  %s39 = sld [smem:[%s38]]
  %s40 = scalar_lea.smem %s0, 20
  %s41 = sld [smem:[%s40]]
  %s42 = scalar_lea.smem %s0, 21
  %s43 = sld [smem:[%s42]]
  %s44 = scalar_lea.smem %s0, 22
  %s45 = sld [smem:[%s44]]
  %s46 = scalar_lea.smem %s0, 23
  %s47 = sld [smem:[%s46]]
  %s48 = scalar_lea.smem %s0, 24
  %s49 = sld [smem:[%s48]]
  %s50 = scalar_lea.smem %s0, 25
  %s51 = sld [smem:[%s50]]
  %s52 = scalar_lea.smem %s0, 26
  %s53 = sld [smem:[%s52]]
  %s54 = scalar_lea.smem %s0, 27
  %s55 = sld [smem:[%s54]]
  %s56 = scalar_lea.smem %s0, 28
  %s57 = sld [smem:[%s56]]
  %s58 = scalar_lea.smem %s0, 29
  %s59 = sld [smem:[%s58]]
  %s60 = scalar_lea.smem %s0, 30
  %s61 = sld [smem:[%s60]]
  %s62 = scalar_lea.smem %s0, 31
  %s63 = sld [smem:[%s62]]
  %s64 = scalar_lea.smem %s0, 32
  %s65 = sld [smem:[%s64]]
  %s66 = scalar_lea.smem %s0, 33
  %s67 = sld [smem:[%s66]]
  %s68 = scalar_lea.smem %s0, 34
  %s69 = sld [smem:[%s68]]
  %s70 = scalar_lea.smem %s0, 35
  %s71 = sld [smem:[%s70]]
  %s72 = scalar_lea.smem %s0, 36
  %s73 = sld [smem:[%s72]]
  %s74 = scalar_lea.smem %s0, 37
  %s75 = sld [smem:[%s74]]
  %s76 = scalar_lea.smem %s0, 38
  %s77 = sld [smem:[%s76]]
  %s78 = scalar_lea.smem %s0, 39
  %s79 = sld [smem:[%s78]]
  %s80 = sld [smem:[#allocation0]]
  $region289: #{tbdm_forward.1} parent=0
    _
  %s82 = ssub.s32 1, %s80
  %s83 = scalar_select 0, %s82, %s80
  $region1: #{tbdm_forward.1} parent=0
    #allocation8 [shape = 'u8[512]{0}', space=vmem, size = 0x400, scoped, tag = 'input window, operand 2, single buffered']
    #allocation9 [shape = 's32[2]{0}', space=sflag, size = 0x8, scoped, tag = 'scoped memory for tbdm_forward.1']
    #allocation10 [shape = 's32[2]{0}', space=sflag, size = 0x8, scoped, tag = 'scoped memory for tbdm_forward.1']
    #allocation11 [shape = 'u8[4096]{0}', space=vmem, size = 0x1000, scoped, tag = 'input window, operand 3, single buffered']
    #allocation12 [shape = 's32[1]{0}', space=sflag, size = 0x4, scoped, tag = 'scoped memory for tbdm_forward.1']
    #allocation13 [shape = 'u8[512]{0}', space=vmem, size = 0x400, scoped, tag = 'input window, operand 4, single buffered']
    #allocation14 [shape = 'u8[512]{0}', space=vmem, size = 0x400, scoped, tag = 'input window, operand 6, single buffered']
    #allocation15 [shape = 's32[1]{0}', space=sflag, size = 0x4, scoped, tag = 'scoped memory for tbdm_forward.1']
    #allocation16 [shape = 'u8[8192]{0}', space=vmem, size = 0x2000, scoped, tag = 'input window, operand 7, single buffered']
    #allocation17 [shape = 'u8[512]{0}', space=vmem, size = 0x400, scoped, tag = 'input window, operand 8, single buffered']
    #allocation18 [shape = 's32[1]{0}', space=sflag, size = 0x4, scoped, tag = 'scoped memory for tbdm_forward.1']
    #allocation19 [shape = 'u8[8192]{0}', space=vmem, size = 0x2000, scoped, tag = 'input window, operand 9, single buffered']
    #allocation20 [shape = 'u8[512]{0}', space=vmem, size = 0x400, scoped, tag = 'input window, operand 10, single buffered']
    #allocation21 [shape = 's32[1]{0}', space=sflag, size = 0x4, scoped, tag = 'scoped memory for tbdm_forward.1']
    #allocation22 [shape = 'u8[512]{0}', space=vmem, size = 0x400, scoped, tag = 'input window, operand 12, single buffered']
    #allocation23 [shape = 'u8[512]{0}', space=vmem, size = 0x400, scoped, tag = 'input window, operand 14, single buffered']
    #allocation24 [shape = 's32[1]{0}', space=sflag, size = 0x4, scoped, tag = 'scoped memory for tbdm_forward.1']
    #allocation25 [shape = 'u8[16384]{0}', space=vmem, size = 0x4000, scoped, tag = 'input window, operand 15, single buffered']
    #allocation26 [shape = 'u8[512]{0}', space=vmem, size = 0x400, scoped, tag = 'input window, operand 16, single buffered']
    #allocation27 [shape = 's32[1]{0}', space=sflag, size = 0x4, scoped, tag = 'scoped memory for tbdm_forward.1']
    #allocation28 [shape = 'u8[512]{0}', space=vmem, size = 0x400, scoped, tag = 'input window, operand 18, single buffered']
    #allocation29 [shape = 'u8[512]{0}', space=vmem, size = 0x400, scoped, tag = 'input window, operand 20, single buffered']
    #allocation30 [shape = 's32[1]{0}', space=sflag, size = 0x4, scoped, tag = 'scoped memory for tbdm_forward.1']
    #allocation31 [shape = 'u8[32768]{0}', space=vmem, size = 0x8000, scoped, tag = 'input window, operand 21, single buffered']
    #allocation32 [shape = 'u8[512]{0}', space=vmem, size = 0x400, scoped, tag = 'input window, operand 22, single buffered']
    #allocation33 [shape = 's32[1]{0}', space=sflag, size = 0x4, scoped, tag = 'scoped memory for tbdm_forward.1']
    #allocation34 [shape = 'u8[512]{0}', space=vmem, size = 0x400, scoped, tag = 'input window, operand 24, single buffered']
    #allocation35 [shape = 'u8[512]{0}', space=vmem, size = 0x400, scoped, tag = 'input window, operand 26, single buffered']
    #allocation36 [shape = 's32[1]{0}', space=sflag, size = 0x4, scoped, tag = 'scoped memory for tbdm_forward.1']
    #allocation37 [shape = 'u8[512]{0}', space=vmem, size = 0x400, scoped, tag = 'input window, operand 28, single buffered']
    #allocation38 [shape = 'u8[512]{0}', space=vmem, size = 0x400, scoped, tag = 'input window, operand 30, single buffered']
    #allocation39 [shape = 's32[1]{0}', space=sflag, size = 0x4, scoped, tag = 'scoped memory for tbdm_forward.1']
    #allocation40 [shape = 'u8[1024]{0}', space=vmem, size = 0x400, scoped, tag = 'input window, operand 32, single buffered']
    #allocation41 [shape = 'u8[262144]{0}', space=vmem, size = 0x40000, scoped, tag = 'input window, operand 33, single buffered']
    #allocation42 [shape = 's32[1]{0}', space=sflag, size = 0x4, scoped, tag = 'scoped memory for tbdm_forward.1']
    #allocation43 [shape = 'u8[1024]{0}', space=vmem, size = 0x400, scoped, tag = 'input window, operand 34, single buffered']
    #allocation44 [shape = 'u8[512]{0}', space=vmem, size = 0x400, scoped, tag = 'input window, operand 36, single buffered']
    #allocation45 [shape = 's32[1]{0}', space=sflag, size = 0x4, scoped, tag = 'scoped memory for tbdm_forward.1']
    #allocation46 [shape = 'u8[512]{0}', space=vmem, size = 0x400, scoped, tag = 'input window, operand 38, single buffered']
    #allocation47 [shape = 'u8[1024]{0}', space=vmem, size = 0x400, scoped, tag = 'output window, operand 0']
    %84 = vsyncpa [#allocation9], 0
    %85 = vsyncpa [#allocation12], 0
    %86 = vsyncpa [#allocation15], 0
    %87 = vsyncpa [#allocation18], 0
    %88 = vsyncpa [#allocation21], 0
    %89 = vsyncpa [#allocation24], 0
    %90 = vsyncpa [#allocation27], 0
    %91 = vsyncpa [#allocation30], 0
    %92 = vsyncpa [#allocation33], 0
    %93 = vsyncpa [#allocation36], 0
    %94 = vsyncpa [#allocation39], 0
    %95 = vsyncpa [#allocation42], 0
    %96 = vsyncpa [#allocation45], 0
    %97 = vsyncpa [#allocation10], 0
    %s98 = scalar_lea.sflag [#allocation10], 1
    %99 = vsyncpa %s98, 0
    loop: start=0, step=1, limit=4
    $region2: #{tbdm_forward.1} parent=1 // loop_pre_header
      _
    $region3: #{tbdm_forward.1} parent=1 // loop_header
      %s101 = sphi 0, %s105
      %p102 = scmp.ge.s32.totalorder %s101, 4
      %s111 = sphi 0, %s113
      %s114 = sphi 0, %s111
      %s115 = sphi 0, %s114
      %s131 = sphi 0, %s115
      %s135 = sphi 0, %s135
      %s137 = sphi 0, %s135
      %s138 = sphi 0, %s137
      %s152 = sphi 0, %s138
      %s156 = sphi 0, %s156
      %s158 = sphi 0, %s156
      %s159 = sphi 0, %s158
      %s173 = sphi 0, %s159
      %s177 = sphi 0, %s177
      %s179 = sphi 0, %s177
      %s180 = sphi 0, %s179
      %s194 = sphi 0, %s180
      %s198 = sphi 0, %s198
      %s200 = sphi 0, %s198
      %s201 = sphi 0, %s200
      %s215 = sphi 0, %s201
      %s219 = sphi 0, %s219
      %s221 = sphi 0, %s219
      %s222 = sphi 0, %s221
      %s236 = sphi 0, %s222
      %s240 = sphi 0, %s240
      %s242 = sphi 0, %s240
      %s243 = sphi 0, %s242
      %s257 = sphi 0, %s243
      %s261 = sphi 0, %s261
      %s263 = sphi 0, %s261
      %s264 = sphi 0, %s263
      %s278 = sphi 0, %s264
      %s282 = sphi 0, %s282
      %s284 = sphi 0, %s282
      %s285 = sphi 0, %s284
      %s299 = sphi 0, %s285
      %s303 = sphi 0, %s303
      %s305 = sphi 0, %s303
      %s306 = sphi 0, %s305
      %s320 = sphi 0, %s306
      %s324 = sphi 0, %s324
      %s326 = sphi 0, %s324
      %s327 = sphi 0, %s326
      %s341 = sphi 0, %s327
      %s345 = sphi 0, %s345
      %s347 = sphi 0, %s345
      %s348 = sphi 0, %s347
      %s362 = sphi 0, %s348
      %s366 = sphi 0, %s366
      %s368 = sphi 0, %s366
      %s369 = sphi 0, %s368
      %s383 = sphi 0, %s369
      %s387 = sphi 0, %s387
      %s389 = sphi 0, %s387
      %s390 = sphi 0, %s389
      %s404 = sphi 0, %s390
      %s408 = sphi 0, %s408
      %s410 = sphi 0, %s408
      %s411 = sphi 0, %s410
      %s425 = sphi 0, %s411
      %s429 = sphi 0, %s429
      %s431 = sphi 0, %s429
      %s432 = sphi 0, %s431
      %s446 = sphi 0, %s432
      %s450 = sphi 0, %s450
      %s452 = sphi 0, %s450
      %s453 = sphi 0, %s452
      %s467 = sphi 0, %s453
      %s471 = sphi 0, %s471
      %s473 = sphi 0, %s471
      %s474 = sphi 0, %s473
      %s488 = sphi 0, %s474
      %s492 = sphi 0, %s492
      %s494 = sphi 0, %s492
      %s495 = sphi 0, %s494
      %s509 = sphi 0, %s495
      %s513 = sphi 0, %s513
      %s515 = sphi 0, %s513
      %s516 = sphi 0, %s515
      %s530 = sphi 0, %s516
      %s534 = sphi 0, %s534
      %s536 = sphi 0, %s534
      %s537 = sphi 0, %s536
      %s551 = sphi 0, %s537
      %s555 = sphi 0, %s555
      %s557 = sphi 0, %s555
      %s558 = sphi 0, %s557
      %s572 = sphi 0, %s558
      %s576 = sphi 0, %s576
      %s578 = sphi 0, %s576
      %s579 = sphi 0, %s578
      %s593 = sphi 0, %s579
      %s597 = sphi 0, %s597
      %s599 = sphi 0, %s597
      %s600 = sphi 0, %s599
      %s614 = sphi 0, %s600
      %s618 = sphi 0, %s618
      %s620 = sphi 0, %s618
      %s621 = sphi 0, %s620
      %s635 = sphi 0, %s621
      %s639 = sphi 0, %s639
      %s641 = sphi 0, %s639
      %s642 = sphi 0, %s641
      %s656 = sphi 0, %s642
      %s660 = sphi 0, %s660
      %s662 = sphi 0, %s660
      %s663 = sphi 0, %s662
      %s677 = sphi 0, %s663
      %s681 = sphi 0, %s681
      %s683 = sphi 0, %s681
      %s684 = sphi 0, %s683
      %s698 = sphi 0, %s684
      %s702 = sphi 0, %s702
      %s704 = sphi 0, %s702
      %s705 = sphi 0, %s704
      %s719 = sphi 0, %s705
      %s723 = sphi 0, %s723
      %s725 = sphi 0, %s723
      %s726 = sphi 0, %s725
      %s740 = sphi 0, %s726
      %s744 = sphi 0, %s744
      %s746 = sphi 0, %s744
      %s747 = sphi 0, %s746
      %s761 = sphi 0, %s747
      %s765 = sphi 0, %s765
      %s767 = sphi 0, %s765
      %s768 = sphi 0, %s767
      %s782 = sphi 0, %s768
      %s786 = sphi 0, %s786
      %s788 = sphi 0, %s786
      %s789 = sphi 0, %s788
      %s803 = sphi 0, %s789
      %s807 = sphi 0, %s807
      %s809 = sphi 0, %s807
      %s810 = sphi 0, %s809
      %s824 = sphi 0, %s810
      %s828 = sphi 0, %s828
      %s830 = sphi 0, %s828
      %s831 = sphi 0, %s830
      %s845 = sphi 0, %s831
      %s849 = sphi 0, %s849
      %s851 = sphi 0, %s849
      %s852 = sphi 0, %s851
      %s866 = sphi 0, %s852
      %s870 = sphi 0, %s870
      %s872 = sphi 0, %s870
      %s873 = sphi 0, %s872
      %s887 = sphi 0, %s873
      %s891 = sphi 0, %s891
      %s893 = sphi 0, %s891
      %s894 = sphi 0, %s893
      %s908 = sphi 0, %s894
      %s912 = sphi 0, %s912
      %s914 = sphi 0, %s912
      %s915 = sphi 0, %s914
      %s929 = sphi 0, %s915
      %s935 = sphi 0, %s937
      %s938 = sphi 0, %s935
      %s939 = sphi 0, %s938
      %s955 = sphi 0, %s939
    $region4: #{tbdm_forward.1} parent=1 // loop_header_branch
      %104 = sbr.rel (%p102) target = $region8
    $region5: #{tbdm_forward.1} parent=1 // loop_body
      %s106 = ssub.s32 %s101, 1
      %s107 = ssub.s32 %s101, 2
      %s108 = sadd.s32 %s101, 1
      %s109 = ssub.s32 %s101, %s108
      %p110 = scmp.eq.s32.totalorder %s109, 0
      %s112 = sadd.s32 %s111, 1
      %s113 = scalar_select %p110, %s111, %s112
      %p116 = pneg %p110
      %p117 = scmp.eq.s32.totalorder %s101, 1
      %p118 = por %p116, %p117
      %p119 = scmp.ne.s32.totalorder %s111, %s114
      %p120 = scmp.eq.s32.totalorder %s101, 0
      %p121 = por %p119, %p120
      %p122 = scmp.ne.s32.totalorder %s111, %s114
      %p123 = scmp.eq.s32.totalorder %s106, 1
      %p124 = por %p122, %p123
      %p125 = scmp.ne.s32.totalorder %s114, %s115
      %p126 = scmp.eq.s32.totalorder %s106, 0
      %p127 = por %p125, %p126
      %p128 = scmp.ne.s32.totalorder %s114, %s115
      %p129 = scmp.eq.s32.totalorder %s107, 1
      %p130 = por %p128, %p129
      %p132 = scmp.ne.s32.totalorder %s115, %s131
      %p133 = scmp.eq.s32.totalorder %s107, 0
      %p134 = por %p132, %p133
      %s136 = sadd.s32 %s135, 1
      %p139 = scmp.eq.s32.totalorder %s101, 1
      %p140 = scmp.ne.s32.totalorder %s135, %s137
      %p141 = scmp.eq.s32.totalorder %s101, 0
      %p142 = por %p140, %p141
      %p143 = scmp.ne.s32.totalorder %s135, %s137
      %p144 = scmp.eq.s32.totalorder %s106, 1
      %p145 = por %p143, %p144
      %p146 = scmp.ne.s32.totalorder %s137, %s138
      %p147 = scmp.eq.s32.totalorder %s106, 0
      %p148 = por %p146, %p147
      %p149 = scmp.ne.s32.totalorder %s137, %s138
      %p150 = scmp.eq.s32.totalorder %s107, 1
      %p151 = por %p149, %p150
      %p153 = scmp.ne.s32.totalorder %s138, %s152
      %p154 = scmp.eq.s32.totalorder %s107, 0
      %p155 = por %p153, %p154
      %s157 = sadd.s32 %s156, 1
      %p160 = scmp.eq.s32.totalorder %s101, 1
      %p161 = scmp.ne.s32.totalorder %s156, %s158
      %p162 = scmp.eq.s32.totalorder %s101, 0
      %p163 = por %p161, %p162
      %p164 = scmp.ne.s32.totalorder %s156, %s158
      %p165 = scmp.eq.s32.totalorder %s106, 1
      %p166 = por %p164, %p165
      %p167 = scmp.ne.s32.totalorder %s158, %s159
      %p168 = scmp.eq.s32.totalorder %s106, 0
      %p169 = por %p167, %p168
      %p170 = scmp.ne.s32.totalorder %s158, %s159
      %p171 = scmp.eq.s32.totalorder %s107, 1
      %p172 = por %p170, %p171
      %p174 = scmp.ne.s32.totalorder %s159, %s173
      %p175 = scmp.eq.s32.totalorder %s107, 0
      %p176 = por %p174, %p175
      %s178 = sadd.s32 %s177, 1
      %p181 = scmp.eq.s32.totalorder %s101, 1
      %p182 = scmp.ne.s32.totalorder %s177, %s179
      %p183 = scmp.eq.s32.totalorder %s101, 0
      %p184 = por %p182, %p183
      %p185 = scmp.ne.s32.totalorder %s177, %s179
      %p186 = scmp.eq.s32.totalorder %s106, 1
      %p187 = por %p185, %p186
      %p188 = scmp.ne.s32.totalorder %s179, %s180
      %p189 = scmp.eq.s32.totalorder %s106, 0
      %p190 = por %p188, %p189
      %p191 = scmp.ne.s32.totalorder %s179, %s180
      %p192 = scmp.eq.s32.totalorder %s107, 1
      %p193 = por %p191, %p192
      %p195 = scmp.ne.s32.totalorder %s180, %s194
      %p196 = scmp.eq.s32.totalorder %s107, 0
      %p197 = por %p195, %p196
      %s199 = sadd.s32 %s198, 1
      %p202 = scmp.eq.s32.totalorder %s101, 1
      %p203 = scmp.ne.s32.totalorder %s198, %s200
      %p204 = scmp.eq.s32.totalorder %s101, 0
      %p205 = por %p203, %p204
      %p206 = scmp.ne.s32.totalorder %s198, %s200
      %p207 = scmp.eq.s32.totalorder %s106, 1
      %p208 = por %p206, %p207
      %p209 = scmp.ne.s32.totalorder %s200, %s201
      %p210 = scmp.eq.s32.totalorder %s106, 0
      %p211 = por %p209, %p210
      %p212 = scmp.ne.s32.totalorder %s200, %s201
      %p213 = scmp.eq.s32.totalorder %s107, 1
      %p214 = por %p212, %p213
      %p216 = scmp.ne.s32.totalorder %s201, %s215
      %p217 = scmp.eq.s32.totalorder %s107, 0
      %p218 = por %p216, %p217
      %s220 = sadd.s32 %s219, 1
      %p223 = scmp.eq.s32.totalorder %s101, 1
      %p224 = scmp.ne.s32.totalorder %s219, %s221
      %p225 = scmp.eq.s32.totalorder %s101, 0
      %p226 = por %p224, %p225
      %p227 = scmp.ne.s32.totalorder %s219, %s221
      %p228 = scmp.eq.s32.totalorder %s106, 1
      %p229 = por %p227, %p228
      %p230 = scmp.ne.s32.totalorder %s221, %s222
      %p231 = scmp.eq.s32.totalorder %s106, 0
      %p232 = por %p230, %p231
      %p233 = scmp.ne.s32.totalorder %s221, %s222
      %p234 = scmp.eq.s32.totalorder %s107, 1
      %p235 = por %p233, %p234
      %p237 = scmp.ne.s32.totalorder %s222, %s236
      %p238 = scmp.eq.s32.totalorder %s107, 0
      %p239 = por %p237, %p238
      %s241 = sadd.s32 %s240, 1
      %p244 = scmp.eq.s32.totalorder %s101, 1
      %p245 = scmp.ne.s32.totalorder %s240, %s242
      %p246 = scmp.eq.s32.totalorder %s101, 0
      %p247 = por %p245, %p246
      %p248 = scmp.ne.s32.totalorder %s240, %s242
      %p249 = scmp.eq.s32.totalorder %s106, 1
      %p250 = por %p248, %p249
      %p251 = scmp.ne.s32.totalorder %s242, %s243
      %p252 = scmp.eq.s32.totalorder %s106, 0
      %p253 = por %p251, %p252
      %p254 = scmp.ne.s32.totalorder %s242, %s243
      %p255 = scmp.eq.s32.totalorder %s107, 1
      %p256 = por %p254, %p255
      %p258 = scmp.ne.s32.totalorder %s243, %s257
      %p259 = scmp.eq.s32.totalorder %s107, 0
      %p260 = por %p258, %p259
      %s262 = sadd.s32 %s261, 1
      %p265 = scmp.eq.s32.totalorder %s101, 1
      %p266 = scmp.ne.s32.totalorder %s261, %s263
      %p267 = scmp.eq.s32.totalorder %s101, 0
      %p268 = por %p266, %p267
      %p269 = scmp.ne.s32.totalorder %s261, %s263
      %p270 = scmp.eq.s32.totalorder %s106, 1
      %p271 = por %p269, %p270
      %p272 = scmp.ne.s32.totalorder %s263, %s264
      %p273 = scmp.eq.s32.totalorder %s106, 0
      %p274 = por %p272, %p273
      %p275 = scmp.ne.s32.totalorder %s263, %s264
      %p276 = scmp.eq.s32.totalorder %s107, 1
      %p277 = por %p275, %p276
      %p279 = scmp.ne.s32.totalorder %s264, %s278
      %p280 = scmp.eq.s32.totalorder %s107, 0
      %p281 = por %p279, %p280
      %s283 = sadd.s32 %s282, 1
      %p286 = scmp.eq.s32.totalorder %s101, 1
      %p287 = scmp.ne.s32.totalorder %s282, %s284
      %p288 = scmp.eq.s32.totalorder %s101, 0
      %p289 = por %p287, %p288
      %p290 = scmp.ne.s32.totalorder %s282, %s284
      %p291 = scmp.eq.s32.totalorder %s106, 1
      %p292 = por %p290, %p291
      %p293 = scmp.ne.s32.totalorder %s284, %s285
      %p294 = scmp.eq.s32.totalorder %s106, 0
      %p295 = por %p293, %p294
      %p296 = scmp.ne.s32.totalorder %s284, %s285
      %p297 = scmp.eq.s32.totalorder %s107, 1
      %p298 = por %p296, %p297
      %p300 = scmp.ne.s32.totalorder %s285, %s299
      %p301 = scmp.eq.s32.totalorder %s107, 0
      %p302 = por %p300, %p301
      %s304 = sadd.s32 %s303, 1
      %p307 = scmp.eq.s32.totalorder %s101, 1
      %p308 = scmp.ne.s32.totalorder %s303, %s305
      %p309 = scmp.eq.s32.totalorder %s101, 0
      %p310 = por %p308, %p309
      %p311 = scmp.ne.s32.totalorder %s303, %s305
      %p312 = scmp.eq.s32.totalorder %s106, 1
      %p313 = por %p311, %p312
      %p314 = scmp.ne.s32.totalorder %s305, %s306
      %p315 = scmp.eq.s32.totalorder %s106, 0
      %p316 = por %p314, %p315
      %p317 = scmp.ne.s32.totalorder %s305, %s306
      %p318 = scmp.eq.s32.totalorder %s107, 1
      %p319 = por %p317, %p318
      %p321 = scmp.ne.s32.totalorder %s306, %s320
      %p322 = scmp.eq.s32.totalorder %s107, 0
      %p323 = por %p321, %p322
      %s325 = sadd.s32 %s324, 1
      %p328 = scmp.eq.s32.totalorder %s101, 1
      %p329 = scmp.ne.s32.totalorder %s324, %s326
      %p330 = scmp.eq.s32.totalorder %s101, 0
      %p331 = por %p329, %p330
      %p332 = scmp.ne.s32.totalorder %s324, %s326
      %p333 = scmp.eq.s32.totalorder %s106, 1
      %p334 = por %p332, %p333
      %p335 = scmp.ne.s32.totalorder %s326, %s327
      %p336 = scmp.eq.s32.totalorder %s106, 0
      %p337 = por %p335, %p336
      %p338 = scmp.ne.s32.totalorder %s326, %s327
      %p339 = scmp.eq.s32.totalorder %s107, 1
      %p340 = por %p338, %p339
      %p342 = scmp.ne.s32.totalorder %s327, %s341
      %p343 = scmp.eq.s32.totalorder %s107, 0
      %p344 = por %p342, %p343
      %s346 = sadd.s32 %s345, 1
      %p349 = scmp.eq.s32.totalorder %s101, 1
      %p350 = scmp.ne.s32.totalorder %s345, %s347
      %p351 = scmp.eq.s32.totalorder %s101, 0
      %p352 = por %p350, %p351
      %p353 = scmp.ne.s32.totalorder %s345, %s347
      %p354 = scmp.eq.s32.totalorder %s106, 1
      %p355 = por %p353, %p354
      %p356 = scmp.ne.s32.totalorder %s347, %s348
      %p357 = scmp.eq.s32.totalorder %s106, 0
      %p358 = por %p356, %p357
      %p359 = scmp.ne.s32.totalorder %s347, %s348
      %p360 = scmp.eq.s32.totalorder %s107, 1
      %p361 = por %p359, %p360
      %p363 = scmp.ne.s32.totalorder %s348, %s362
      %p364 = scmp.eq.s32.totalorder %s107, 0
      %p365 = por %p363, %p364
      %s367 = sadd.s32 %s366, 1
      %p370 = scmp.eq.s32.totalorder %s101, 1
      %p371 = scmp.ne.s32.totalorder %s366, %s368
      %p372 = scmp.eq.s32.totalorder %s101, 0
      %p373 = por %p371, %p372
      %p374 = scmp.ne.s32.totalorder %s366, %s368
      %p375 = scmp.eq.s32.totalorder %s106, 1
      %p376 = por %p374, %p375
      %p377 = scmp.ne.s32.totalorder %s368, %s369
      %p378 = scmp.eq.s32.totalorder %s106, 0
      %p379 = por %p377, %p378
      %p380 = scmp.ne.s32.totalorder %s368, %s369
      %p381 = scmp.eq.s32.totalorder %s107, 1
      %p382 = por %p380, %p381
      %p384 = scmp.ne.s32.totalorder %s369, %s383
      %p385 = scmp.eq.s32.totalorder %s107, 0
      %p386 = por %p384, %p385
      %s388 = sadd.s32 %s387, 1
      %p391 = scmp.eq.s32.totalorder %s101, 1
      %p392 = scmp.ne.s32.totalorder %s387, %s389
      %p393 = scmp.eq.s32.totalorder %s101, 0
      %p394 = por %p392, %p393
      %p395 = scmp.ne.s32.totalorder %s387, %s389
      %p396 = scmp.eq.s32.totalorder %s106, 1
      %p397 = por %p395, %p396
      %p398 = scmp.ne.s32.totalorder %s389, %s390
      %p399 = scmp.eq.s32.totalorder %s106, 0
      %p400 = por %p398, %p399
      %p401 = scmp.ne.s32.totalorder %s389, %s390
      %p402 = scmp.eq.s32.totalorder %s107, 1
      %p403 = por %p401, %p402
      %p405 = scmp.ne.s32.totalorder %s390, %s404
      %p406 = scmp.eq.s32.totalorder %s107, 0
      %p407 = por %p405, %p406
      %s409 = sadd.s32 %s408, 1
      %p412 = scmp.eq.s32.totalorder %s101, 1
      %p413 = scmp.ne.s32.totalorder %s408, %s410
      %p414 = scmp.eq.s32.totalorder %s101, 0
      %p415 = por %p413, %p414
      %p416 = scmp.ne.s32.totalorder %s408, %s410
      %p417 = scmp.eq.s32.totalorder %s106, 1
      %p418 = por %p416, %p417
      %p419 = scmp.ne.s32.totalorder %s410, %s411
      %p420 = scmp.eq.s32.totalorder %s106, 0
      %p421 = por %p419, %p420
      %p422 = scmp.ne.s32.totalorder %s410, %s411
      %p423 = scmp.eq.s32.totalorder %s107, 1
      %p424 = por %p422, %p423
      %p426 = scmp.ne.s32.totalorder %s411, %s425
      %p427 = scmp.eq.s32.totalorder %s107, 0
      %p428 = por %p426, %p427
      %s430 = sadd.s32 %s429, 1
      %p433 = scmp.eq.s32.totalorder %s101, 1
      %p434 = scmp.ne.s32.totalorder %s429, %s431
      %p435 = scmp.eq.s32.totalorder %s101, 0
      %p436 = por %p434, %p435
      %p437 = scmp.ne.s32.totalorder %s429, %s431
      %p438 = scmp.eq.s32.totalorder %s106, 1
      %p439 = por %p437, %p438
      %p440 = scmp.ne.s32.totalorder %s431, %s432
      %p441 = scmp.eq.s32.totalorder %s106, 0
      %p442 = por %p440, %p441
      %p443 = scmp.ne.s32.totalorder %s431, %s432
      %p444 = scmp.eq.s32.totalorder %s107, 1
      %p445 = por %p443, %p444
      %p447 = scmp.ne.s32.totalorder %s432, %s446
      %p448 = scmp.eq.s32.totalorder %s107, 0
      %p449 = por %p447, %p448
      %s451 = sadd.s32 %s450, 1
      %p454 = scmp.eq.s32.totalorder %s101, 1
      %p455 = scmp.ne.s32.totalorder %s450, %s452
      %p456 = scmp.eq.s32.totalorder %s101, 0
      %p457 = por %p455, %p456
      %p458 = scmp.ne.s32.totalorder %s450, %s452
      %p459 = scmp.eq.s32.totalorder %s106, 1
      %p460 = por %p458, %p459
      %p461 = scmp.ne.s32.totalorder %s452, %s453
      %p462 = scmp.eq.s32.totalorder %s106, 0
      %p463 = por %p461, %p462
      %p464 = scmp.ne.s32.totalorder %s452, %s453
      %p465 = scmp.eq.s32.totalorder %s107, 1
      %p466 = por %p464, %p465
      %p468 = scmp.ne.s32.totalorder %s453, %s467
      %p469 = scmp.eq.s32.totalorder %s107, 0
      %p470 = por %p468, %p469
      %s472 = sadd.s32 %s471, 1
      %p475 = scmp.eq.s32.totalorder %s101, 1
      %p476 = scmp.ne.s32.totalorder %s471, %s473
      %p477 = scmp.eq.s32.totalorder %s101, 0
      %p478 = por %p476, %p477
      %p479 = scmp.ne.s32.totalorder %s471, %s473
      %p480 = scmp.eq.s32.totalorder %s106, 1
      %p481 = por %p479, %p480
      %p482 = scmp.ne.s32.totalorder %s473, %s474
      %p483 = scmp.eq.s32.totalorder %s106, 0
      %p484 = por %p482, %p483
      %p485 = scmp.ne.s32.totalorder %s473, %s474
      %p486 = scmp.eq.s32.totalorder %s107, 1
      %p487 = por %p485, %p486
      %p489 = scmp.ne.s32.totalorder %s474, %s488
      %p490 = scmp.eq.s32.totalorder %s107, 0
      %p491 = por %p489, %p490
      %s493 = sadd.s32 %s492, 1
      %p496 = scmp.eq.s32.totalorder %s101, 1
      %p497 = scmp.ne.s32.totalorder %s492, %s494
      %p498 = scmp.eq.s32.totalorder %s101, 0
      %p499 = por %p497, %p498
      %p500 = scmp.ne.s32.totalorder %s492, %s494
      %p501 = scmp.eq.s32.totalorder %s106, 1
      %p502 = por %p500, %p501
      %p503 = scmp.ne.s32.totalorder %s494, %s495
      %p504 = scmp.eq.s32.totalorder %s106, 0
      %p505 = por %p503, %p504
      %p506 = scmp.ne.s32.totalorder %s494, %s495
      %p507 = scmp.eq.s32.totalorder %s107, 1
      %p508 = por %p506, %p507
      %p510 = scmp.ne.s32.totalorder %s495, %s509
      %p511 = scmp.eq.s32.totalorder %s107, 0
      %p512 = por %p510, %p511
      %s514 = sadd.s32 %s513, 1
      %p517 = scmp.eq.s32.totalorder %s101, 1
      %p518 = scmp.ne.s32.totalorder %s513, %s515
      %p519 = scmp.eq.s32.totalorder %s101, 0
      %p520 = por %p518, %p519
      %p521 = scmp.ne.s32.totalorder %s513, %s515
      %p522 = scmp.eq.s32.totalorder %s106, 1
      %p523 = por %p521, %p522
      %p524 = scmp.ne.s32.totalorder %s515, %s516
      %p525 = scmp.eq.s32.totalorder %s106, 0
      %p526 = por %p524, %p525
      %p527 = scmp.ne.s32.totalorder %s515, %s516
      %p528 = scmp.eq.s32.totalorder %s107, 1
      %p529 = por %p527, %p528
      %p531 = scmp.ne.s32.totalorder %s516, %s530
      %p532 = scmp.eq.s32.totalorder %s107, 0
      %p533 = por %p531, %p532
      %s535 = sadd.s32 %s534, 1
      %p538 = scmp.eq.s32.totalorder %s101, 1
      %p539 = scmp.ne.s32.totalorder %s534, %s536
      %p540 = scmp.eq.s32.totalorder %s101, 0
      %p541 = por %p539, %p540
      %p542 = scmp.ne.s32.totalorder %s534, %s536
      %p543 = scmp.eq.s32.totalorder %s106, 1
      %p544 = por %p542, %p543
      %p545 = scmp.ne.s32.totalorder %s536, %s537
      %p546 = scmp.eq.s32.totalorder %s106, 0
      %p547 = por %p545, %p546
      %p548 = scmp.ne.s32.totalorder %s536, %s537
      %p549 = scmp.eq.s32.totalorder %s107, 1
      %p550 = por %p548, %p549
      %p552 = scmp.ne.s32.totalorder %s537, %s551
      %p553 = scmp.eq.s32.totalorder %s107, 0
      %p554 = por %p552, %p553
      %s556 = sadd.s32 %s555, 1
      %p559 = scmp.eq.s32.totalorder %s101, 1
      %p560 = scmp.ne.s32.totalorder %s555, %s557
      %p561 = scmp.eq.s32.totalorder %s101, 0
      %p562 = por %p560, %p561
      %p563 = scmp.ne.s32.totalorder %s555, %s557
      %p564 = scmp.eq.s32.totalorder %s106, 1
      %p565 = por %p563, %p564
      %p566 = scmp.ne.s32.totalorder %s557, %s558
      %p567 = scmp.eq.s32.totalorder %s106, 0
      %p568 = por %p566, %p567
      %p569 = scmp.ne.s32.totalorder %s557, %s558
      %p570 = scmp.eq.s32.totalorder %s107, 1
      %p571 = por %p569, %p570
      %p573 = scmp.ne.s32.totalorder %s558, %s572
      %p574 = scmp.eq.s32.totalorder %s107, 0
      %p575 = por %p573, %p574
      %s577 = sadd.s32 %s576, 1
      %p580 = scmp.eq.s32.totalorder %s101, 1
      %p581 = scmp.ne.s32.totalorder %s576, %s578
      %p582 = scmp.eq.s32.totalorder %s101, 0
      %p583 = por %p581, %p582
      %p584 = scmp.ne.s32.totalorder %s576, %s578
      %p585 = scmp.eq.s32.totalorder %s106, 1
      %p586 = por %p584, %p585
      %p587 = scmp.ne.s32.totalorder %s578, %s579
      %p588 = scmp.eq.s32.totalorder %s106, 0
      %p589 = por %p587, %p588
      %p590 = scmp.ne.s32.totalorder %s578, %s579
      %p591 = scmp.eq.s32.totalorder %s107, 1
      %p592 = por %p590, %p591
      %p594 = scmp.ne.s32.totalorder %s579, %s593
      %p595 = scmp.eq.s32.totalorder %s107, 0
      %p596 = por %p594, %p595
      %s598 = sadd.s32 %s597, 1
      %p601 = scmp.eq.s32.totalorder %s101, 1
      %p602 = scmp.ne.s32.totalorder %s597, %s599
      %p603 = scmp.eq.s32.totalorder %s101, 0
      %p604 = por %p602, %p603
      %p605 = scmp.ne.s32.totalorder %s597, %s599
      %p606 = scmp.eq.s32.totalorder %s106, 1
      %p607 = por %p605, %p606
      %p608 = scmp.ne.s32.totalorder %s599, %s600
      %p609 = scmp.eq.s32.totalorder %s106, 0
      %p610 = por %p608, %p609
      %p611 = scmp.ne.s32.totalorder %s599, %s600
      %p612 = scmp.eq.s32.totalorder %s107, 1
      %p613 = por %p611, %p612
      %p615 = scmp.ne.s32.totalorder %s600, %s614
      %p616 = scmp.eq.s32.totalorder %s107, 0
      %p617 = por %p615, %p616
      %s619 = sadd.s32 %s618, 1
      %p622 = scmp.eq.s32.totalorder %s101, 1
      %p623 = scmp.ne.s32.totalorder %s618, %s620
      %p624 = scmp.eq.s32.totalorder %s101, 0
      %p625 = por %p623, %p624
      %p626 = scmp.ne.s32.totalorder %s618, %s620
      %p627 = scmp.eq.s32.totalorder %s106, 1
      %p628 = por %p626, %p627
      %p629 = scmp.ne.s32.totalorder %s620, %s621
      %p630 = scmp.eq.s32.totalorder %s106, 0
      %p631 = por %p629, %p630
      %p632 = scmp.ne.s32.totalorder %s620, %s621
      %p633 = scmp.eq.s32.totalorder %s107, 1
      %p634 = por %p632, %p633
      %p636 = scmp.ne.s32.totalorder %s621, %s635
      %p637 = scmp.eq.s32.totalorder %s107, 0
      %p638 = por %p636, %p637
      %s640 = sadd.s32 %s639, 1
      %p643 = scmp.eq.s32.totalorder %s101, 1
      %p644 = scmp.ne.s32.totalorder %s639, %s641
      %p645 = scmp.eq.s32.totalorder %s101, 0
      %p646 = por %p644, %p645
      %p647 = scmp.ne.s32.totalorder %s639, %s641
      %p648 = scmp.eq.s32.totalorder %s106, 1
      %p649 = por %p647, %p648
      %p650 = scmp.ne.s32.totalorder %s641, %s642
      %p651 = scmp.eq.s32.totalorder %s106, 0
      %p652 = por %p650, %p651
      %p653 = scmp.ne.s32.totalorder %s641, %s642
      %p654 = scmp.eq.s32.totalorder %s107, 1
      %p655 = por %p653, %p654
      %p657 = scmp.ne.s32.totalorder %s642, %s656
      %p658 = scmp.eq.s32.totalorder %s107, 0
      %p659 = por %p657, %p658
      %s661 = sadd.s32 %s660, 1
      %p664 = scmp.eq.s32.totalorder %s101, 1
      %p665 = scmp.ne.s32.totalorder %s660, %s662
      %p666 = scmp.eq.s32.totalorder %s101, 0
      %p667 = por %p665, %p666
      %p668 = scmp.ne.s32.totalorder %s660, %s662
      %p669 = scmp.eq.s32.totalorder %s106, 1
      %p670 = por %p668, %p669
      %p671 = scmp.ne.s32.totalorder %s662, %s663
      %p672 = scmp.eq.s32.totalorder %s106, 0
      %p673 = por %p671, %p672
      %p674 = scmp.ne.s32.totalorder %s662, %s663
      %p675 = scmp.eq.s32.totalorder %s107, 1
      %p676 = por %p674, %p675
      %p678 = scmp.ne.s32.totalorder %s663, %s677
      %p679 = scmp.eq.s32.totalorder %s107, 0
      %p680 = por %p678, %p679
      %s682 = sadd.s32 %s681, 1
      %p685 = scmp.eq.s32.totalorder %s101, 1
      %p686 = scmp.ne.s32.totalorder %s681, %s683
      %p687 = scmp.eq.s32.totalorder %s101, 0
      %p688 = por %p686, %p687
      %p689 = scmp.ne.s32.totalorder %s681, %s683
      %p690 = scmp.eq.s32.totalorder %s106, 1
      %p691 = por %p689, %p690
      %p692 = scmp.ne.s32.totalorder %s683, %s684
      %p693 = scmp.eq.s32.totalorder %s106, 0
      %p694 = por %p692, %p693
      %p695 = scmp.ne.s32.totalorder %s683, %s684
      %p696 = scmp.eq.s32.totalorder %s107, 1
      %p697 = por %p695, %p696
      %p699 = scmp.ne.s32.totalorder %s684, %s698
      %p700 = scmp.eq.s32.totalorder %s107, 0
      %p701 = por %p699, %p700
      %s703 = sadd.s32 %s702, 1
      %p706 = scmp.eq.s32.totalorder %s101, 1
      %p707 = scmp.ne.s32.totalorder %s702, %s704
      %p708 = scmp.eq.s32.totalorder %s101, 0
      %p709 = por %p707, %p708
      %p710 = scmp.ne.s32.totalorder %s702, %s704
      %p711 = scmp.eq.s32.totalorder %s106, 1
      %p712 = por %p710, %p711
      %p713 = scmp.ne.s32.totalorder %s704, %s705
      %p714 = scmp.eq.s32.totalorder %s106, 0
      %p715 = por %p713, %p714
      %p716 = scmp.ne.s32.totalorder %s704, %s705
      %p717 = scmp.eq.s32.totalorder %s107, 1
      %p718 = por %p716, %p717
      %p720 = scmp.ne.s32.totalorder %s705, %s719
      %p721 = scmp.eq.s32.totalorder %s107, 0
      %p722 = por %p720, %p721
      %s724 = sadd.s32 %s723, 1
      %p727 = scmp.eq.s32.totalorder %s101, 1
      %p728 = scmp.ne.s32.totalorder %s723, %s725
      %p729 = scmp.eq.s32.totalorder %s101, 0
      %p730 = por %p728, %p729
      %p731 = scmp.ne.s32.totalorder %s723, %s725
      %p732 = scmp.eq.s32.totalorder %s106, 1
      %p733 = por %p731, %p732
      %p734 = scmp.ne.s32.totalorder %s725, %s726
      %p735 = scmp.eq.s32.totalorder %s106, 0
      %p736 = por %p734, %p735
      %p737 = scmp.ne.s32.totalorder %s725, %s726
      %p738 = scmp.eq.s32.totalorder %s107, 1
      %p739 = por %p737, %p738
      %p741 = scmp.ne.s32.totalorder %s726, %s740
      %p742 = scmp.eq.s32.totalorder %s107, 0
      %p743 = por %p741, %p742
      %s745 = sadd.s32 %s744, 1
      %p748 = scmp.eq.s32.totalorder %s101, 1
      %p749 = scmp.ne.s32.totalorder %s744, %s746
      %p750 = scmp.eq.s32.totalorder %s101, 0
      %p751 = por %p749, %p750
      %p752 = scmp.ne.s32.totalorder %s744, %s746
      %p753 = scmp.eq.s32.totalorder %s106, 1
      %p754 = por %p752, %p753
      %p755 = scmp.ne.s32.totalorder %s746, %s747
      %p756 = scmp.eq.s32.totalorder %s106, 0
      %p757 = por %p755, %p756
      %p758 = scmp.ne.s32.totalorder %s746, %s747
      %p759 = scmp.eq.s32.totalorder %s107, 1
      %p760 = por %p758, %p759
      %p762 = scmp.ne.s32.totalorder %s747, %s761
      %p763 = scmp.eq.s32.totalorder %s107, 0
      %p764 = por %p762, %p763
      %s766 = sadd.s32 %s765, 1
      %p769 = scmp.eq.s32.totalorder %s101, 1
      %p770 = scmp.ne.s32.totalorder %s765, %s767
      %p771 = scmp.eq.s32.totalorder %s101, 0
      %p772 = por %p770, %p771
      %p773 = scmp.ne.s32.totalorder %s765, %s767
      %p774 = scmp.eq.s32.totalorder %s106, 1
      %p775 = por %p773, %p774
      %p776 = scmp.ne.s32.totalorder %s767, %s768
      %p777 = scmp.eq.s32.totalorder %s106, 0
      %p778 = por %p776, %p777
      %p779 = scmp.ne.s32.totalorder %s767, %s768
      %p780 = scmp.eq.s32.totalorder %s107, 1
      %p781 = por %p779, %p780
      %p783 = scmp.ne.s32.totalorder %s768, %s782
      %p784 = scmp.eq.s32.totalorder %s107, 0
      %p785 = por %p783, %p784
      %s787 = sadd.s32 %s786, 1
      %p790 = scmp.eq.s32.totalorder %s101, 1
      %p791 = scmp.ne.s32.totalorder %s786, %s788
      %p792 = scmp.eq.s32.totalorder %s101, 0
      %p793 = por %p791, %p792
      %p794 = scmp.ne.s32.totalorder %s786, %s788
      %p795 = scmp.eq.s32.totalorder %s106, 1
      %p796 = por %p794, %p795
      %p797 = scmp.ne.s32.totalorder %s788, %s789
      %p798 = scmp.eq.s32.totalorder %s106, 0
      %p799 = por %p797, %p798
      %p800 = scmp.ne.s32.totalorder %s788, %s789
      %p801 = scmp.eq.s32.totalorder %s107, 1
      %p802 = por %p800, %p801
      %p804 = scmp.ne.s32.totalorder %s789, %s803
      %p805 = scmp.eq.s32.totalorder %s107, 0
      %p806 = por %p804, %p805
      %s808 = sadd.s32 %s807, 1
      %p811 = scmp.eq.s32.totalorder %s101, 1
      %p812 = scmp.ne.s32.totalorder %s807, %s809
      %p813 = scmp.eq.s32.totalorder %s101, 0
      %p814 = por %p812, %p813
      %p815 = scmp.ne.s32.totalorder %s807, %s809
      %p816 = scmp.eq.s32.totalorder %s106, 1
      %p817 = por %p815, %p816
      %p818 = scmp.ne.s32.totalorder %s809, %s810
      %p819 = scmp.eq.s32.totalorder %s106, 0
      %p820 = por %p818, %p819
      %p821 = scmp.ne.s32.totalorder %s809, %s810
      %p822 = scmp.eq.s32.totalorder %s107, 1
      %p823 = por %p821, %p822
      %p825 = scmp.ne.s32.totalorder %s810, %s824
      %p826 = scmp.eq.s32.totalorder %s107, 0
      %p827 = por %p825, %p826
      %s829 = sadd.s32 %s828, 1
      %p832 = scmp.eq.s32.totalorder %s101, 1
      %p833 = scmp.ne.s32.totalorder %s828, %s830
      %p834 = scmp.eq.s32.totalorder %s101, 0
      %p835 = por %p833, %p834
      %p836 = scmp.ne.s32.totalorder %s828, %s830
      %p837 = scmp.eq.s32.totalorder %s106, 1
      %p838 = por %p836, %p837
      %p839 = scmp.ne.s32.totalorder %s830, %s831
      %p840 = scmp.eq.s32.totalorder %s106, 0
      %p841 = por %p839, %p840
      %p842 = scmp.ne.s32.totalorder %s830, %s831
      %p843 = scmp.eq.s32.totalorder %s107, 1
      %p844 = por %p842, %p843
      %p846 = scmp.ne.s32.totalorder %s831, %s845
      %p847 = scmp.eq.s32.totalorder %s107, 0
      %p848 = por %p846, %p847
      %s850 = sadd.s32 %s849, 1
      %p853 = scmp.eq.s32.totalorder %s101, 1
      %p854 = scmp.ne.s32.totalorder %s849, %s851
      %p855 = scmp.eq.s32.totalorder %s101, 0
      %p856 = por %p854, %p855
      %p857 = scmp.ne.s32.totalorder %s849, %s851
      %p858 = scmp.eq.s32.totalorder %s106, 1
      %p859 = por %p857, %p858
      %p860 = scmp.ne.s32.totalorder %s851, %s852
      %p861 = scmp.eq.s32.totalorder %s106, 0
      %p862 = por %p860, %p861
      %p863 = scmp.ne.s32.totalorder %s851, %s852
      %p864 = scmp.eq.s32.totalorder %s107, 1
      %p865 = por %p863, %p864
      %p867 = scmp.ne.s32.totalorder %s852, %s866
      %p868 = scmp.eq.s32.totalorder %s107, 0
      %p869 = por %p867, %p868
      %s871 = sadd.s32 %s870, 1
      %p874 = scmp.eq.s32.totalorder %s101, 1
      %p875 = scmp.ne.s32.totalorder %s870, %s872
      %p876 = scmp.eq.s32.totalorder %s101, 0
      %p877 = por %p875, %p876
      %p878 = scmp.ne.s32.totalorder %s870, %s872
      %p879 = scmp.eq.s32.totalorder %s106, 1
      %p880 = por %p878, %p879
      %p881 = scmp.ne.s32.totalorder %s872, %s873
      %p882 = scmp.eq.s32.totalorder %s106, 0
      %p883 = por %p881, %p882
      %p884 = scmp.ne.s32.totalorder %s872, %s873
      %p885 = scmp.eq.s32.totalorder %s107, 1
      %p886 = por %p884, %p885
      %p888 = scmp.ne.s32.totalorder %s873, %s887
      %p889 = scmp.eq.s32.totalorder %s107, 0
      %p890 = por %p888, %p889
      %s892 = sadd.s32 %s891, 1
      %p895 = scmp.eq.s32.totalorder %s101, 1
      %p896 = scmp.ne.s32.totalorder %s891, %s893
      %p897 = scmp.eq.s32.totalorder %s101, 0
      %p898 = por %p896, %p897
      %p899 = scmp.ne.s32.totalorder %s891, %s893
      %p900 = scmp.eq.s32.totalorder %s106, 1
      %p901 = por %p899, %p900
      %p902 = scmp.ne.s32.totalorder %s893, %s894
      %p903 = scmp.eq.s32.totalorder %s106, 0
      %p904 = por %p902, %p903
      %p905 = scmp.ne.s32.totalorder %s893, %s894
      %p906 = scmp.eq.s32.totalorder %s107, 1
      %p907 = por %p905, %p906
      %p909 = scmp.ne.s32.totalorder %s894, %s908
      %p910 = scmp.eq.s32.totalorder %s107, 0
      %p911 = por %p909, %p910
      %s913 = sadd.s32 %s912, 1
      %p916 = scmp.eq.s32.totalorder %s101, 1
      %p917 = scmp.ne.s32.totalorder %s912, %s914
      %p918 = scmp.eq.s32.totalorder %s101, 0
      %p919 = por %p917, %p918
      %p920 = scmp.ne.s32.totalorder %s912, %s914
      %p921 = scmp.eq.s32.totalorder %s106, 1
      %p922 = por %p920, %p921
      %p923 = scmp.ne.s32.totalorder %s914, %s915
      %p924 = scmp.eq.s32.totalorder %s106, 0
      %p925 = por %p923, %p924
      %p926 = scmp.ne.s32.totalorder %s914, %s915
      %p927 = scmp.eq.s32.totalorder %s107, 1
      %p928 = por %p926, %p927
      %p930 = scmp.ne.s32.totalorder %s915, %s929
      %p931 = scmp.eq.s32.totalorder %s107, 0
      %p932 = por %p930, %p931
      %s933 = ssub.s32 %s101, %s108
      %p934 = scmp.eq.s32.totalorder %s933, 0
      %s936 = sadd.s32 %s935, 1
      %s937 = scalar_select %p934, %s935, %s936
      %p940 = pneg %p934
      %p941 = scmp.eq.s32.totalorder %s101, 1
      %p942 = por %p940, %p941
      %p943 = scmp.ne.s32.totalorder %s935, %s938
      %p944 = scmp.eq.s32.totalorder %s101, 0
      %p945 = por %p943, %p944
      %p946 = scmp.ne.s32.totalorder %s935, %s938
      %p947 = scmp.eq.s32.totalorder %s106, 1
      %p948 = por %p946, %p947
      %p949 = scmp.ne.s32.totalorder %s938, %s939
      %p950 = scmp.eq.s32.totalorder %s106, 0
      %p951 = por %p949, %p950
      %p952 = scmp.ne.s32.totalorder %s938, %s939
      %p953 = scmp.eq.s32.totalorder %s107, 1
      %p954 = por %p952, %p953
      %p956 = scmp.ne.s32.totalorder %s939, %s955
      %p957 = scmp.eq.s32.totalorder %s107, 0
      %p958 = por %p956, %p957
      %p959 = scmp.le.s32.totalorder 1, %s101
      %p960 = scmp.lt.s32.totalorder %s101, 3
      %p961 = pnand %p959, %p960
      %p962 = pneg %p961
      // Predicated region
      $region9: #{tbdm_forward.1} parent=5 // pred_check
        _
      $region10: #{tbdm_forward.1} parent=5 // pred_check_branch
        %964 = sbr.rel (%p961) target = $region12
      $region11: #{tbdm_forward.1} parent=5 // pred_region
        %s965 = ssub.s32 %s101, 1
        // Predicated region
        $region13: #{tbdm_forward.1} parent=11 // pred_check
          %p966 = pneg %p148
        $region14: #{tbdm_forward.1} parent=11 // pred_check_branch
          %968 = sbr.rel (%p966) target = $region16
        $region15: #{tbdm_forward.1} parent=11 // pred_region
          _
        $region16: #{tbdm_forward.1} parent=11 // pred_fallthru
          _
        // Predicated region
        $region17: #{tbdm_forward.1} parent=11 // pred_check
          %p969 = pneg %p169
        $region18: #{tbdm_forward.1} parent=11 // pred_check_branch
          %971 = sbr.rel (%p969) target = $region20
        $region19: #{tbdm_forward.1} parent=11 // pred_region
          %s973 = ssub.s32 16, 16
          %974 = vsyncadd [#allocation9], %s973
          %s976 = sshll.u32 [#allocation8], 4
          %s977 = int_to_ptr.vmem [resolvable:$true] %s976
          %979 = dma.hbm_to_vmem [thread:$0]  %s5, 16, %s977, [#allocation9]
        $region20: #{tbdm_forward.1} parent=11 // pred_fallthru
          _
        // Predicated region
        $region21: #{tbdm_forward.1} parent=11 // pred_check
          %p980 = pneg %p190
        $region22: #{tbdm_forward.1} parent=11 // pred_check_branch
          %982 = sbr.rel (%p980) target = $region24
        $region23: #{tbdm_forward.1} parent=11 // pred_region
          %s984 = ssub.s32 128, 128
          %985 = vsyncadd [#allocation12], %s984
          %s986 = sshll.u32 [#allocation11], 4
          %s987 = int_to_ptr.vmem [resolvable:$true] %s986
          %992 = dma.hbm_to_vmem [thread:$0]  %s7, 128, %s987, [#allocation12], 64, 64, 4
        $region24: #{tbdm_forward.1} parent=11 // pred_fallthru
          _
        // Predicated region
        $region25: #{tbdm_forward.1} parent=11 // pred_check
          %p993 = pneg %p211
        $region26: #{tbdm_forward.1} parent=11 // pred_check_branch
          %995 = sbr.rel (%p993) target = $region28
        $region27: #{tbdm_forward.1} parent=11 // pred_region
          %s997 = ssub.s32 16, 16
          %998 = vsyncadd [#allocation12], %s997
          %s1000 = sshll.u32 [#allocation13], 4
          %s1001 = int_to_ptr.vmem [resolvable:$true] %s1000
          %1003 = dma.hbm_to_vmem [thread:$0]  %s9, 16, %s1001, [#allocation12]
        $region28: #{tbdm_forward.1} parent=11 // pred_fallthru
          _
        // Predicated region
        $region29: #{tbdm_forward.1} parent=11 // pred_check
          %p1004 = pneg %p232
        $region30: #{tbdm_forward.1} parent=11 // pred_check_branch
          %1006 = sbr.rel (%p1004) target = $region32
        $region31: #{tbdm_forward.1} parent=11 // pred_region
          _
        $region32: #{tbdm_forward.1} parent=11 // pred_fallthru
          _
        // Predicated region
        $region33: #{tbdm_forward.1} parent=11 // pred_check
          %p1007 = pneg %p253
        $region34: #{tbdm_forward.1} parent=11 // pred_check_branch
          %1009 = sbr.rel (%p1007) target = $region36
        $region35: #{tbdm_forward.1} parent=11 // pred_region
          %s1011 = ssub.s32 16, 16
          %1012 = vsyncadd [#allocation15], %s1011
          %s1014 = sshll.u32 [#allocation14], 4
          %s1015 = int_to_ptr.vmem [resolvable:$true] %s1014
          %1017 = dma.hbm_to_vmem [thread:$0]  %s13, 16, %s1015, [#allocation15]
        $region36: #{tbdm_forward.1} parent=11 // pred_fallthru
          _
        // Predicated region
        $region37: #{tbdm_forward.1} parent=11 // pred_check
          %p1018 = pneg %p274
        $region38: #{tbdm_forward.1} parent=11 // pred_check_branch
          %1020 = sbr.rel (%p1018) target = $region40
        $region39: #{tbdm_forward.1} parent=11 // pred_region
          %s1022 = ssub.s32 256, 256
          %1023 = vsyncadd [#allocation15], %s1022
          %s1024 = sshll.u32 [#allocation16], 4
          %s1025 = int_to_ptr.vmem [resolvable:$true] %s1024
          %1030 = dma.hbm_to_vmem [thread:$0]  %s15, 256, %s1025, [#allocation15], 64, 64, 4
        $region40: #{tbdm_forward.1} parent=11 // pred_fallthru
          _
        // Predicated region
        $region41: #{tbdm_forward.1} parent=11 // pred_check
          %p1031 = pneg %p295
        $region42: #{tbdm_forward.1} parent=11 // pred_check_branch
          %1033 = sbr.rel (%p1031) target = $region44
        $region43: #{tbdm_forward.1} parent=11 // pred_region
          %s1035 = ssub.s32 16, 16
          %1036 = vsyncadd [#allocation18], %s1035
          %s1038 = sshll.u32 [#allocation17], 4
          %s1039 = int_to_ptr.vmem [resolvable:$true] %s1038
          %1041 = dma.hbm_to_vmem [thread:$0]  %s17, 16, %s1039, [#allocation18]
        $region44: #{tbdm_forward.1} parent=11 // pred_fallthru
          _
        // Predicated region
        $region45: #{tbdm_forward.1} parent=11 // pred_check
          %p1042 = pneg %p316
        $region46: #{tbdm_forward.1} parent=11 // pred_check_branch
          %1044 = sbr.rel (%p1042) target = $region48
        $region47: #{tbdm_forward.1} parent=11 // pred_region
          %s1046 = ssub.s32 256, 256
          %1047 = vsyncadd [#allocation18], %s1046
          %s1048 = sshll.u32 [#allocation19], 4
          %s1049 = int_to_ptr.vmem [resolvable:$true] %s1048
          %1054 = dma.hbm_to_vmem [thread:$0]  %s19, 256, %s1049, [#allocation18], 64, 64, 4
        $region48: #{tbdm_forward.1} parent=11 // pred_fallthru
          _
        // Predicated region
        $region49: #{tbdm_forward.1} parent=11 // pred_check
          %p1055 = pneg %p337
        $region50: #{tbdm_forward.1} parent=11 // pred_check_branch
          %1057 = sbr.rel (%p1055) target = $region52
        $region51: #{tbdm_forward.1} parent=11 // pred_region
          %s1059 = ssub.s32 16, 16
          %1060 = vsyncadd [#allocation21], %s1059
          %s1062 = sshll.u32 [#allocation20], 4
          %s1063 = int_to_ptr.vmem [resolvable:$true] %s1062
          %1065 = dma.hbm_to_vmem [thread:$0]  %s21, 16, %s1063, [#allocation21]
        $region52: #{tbdm_forward.1} parent=11 // pred_fallthru
          _
        // Predicated region
        $region53: #{tbdm_forward.1} parent=11 // pred_check
          %p1066 = pneg %p358
        $region54: #{tbdm_forward.1} parent=11 // pred_check_branch
          %1068 = sbr.rel (%p1066) target = $region56
        $region55: #{tbdm_forward.1} parent=11 // pred_region
          _
        $region56: #{tbdm_forward.1} parent=11 // pred_fallthru
          _
        // Predicated region
        $region57: #{tbdm_forward.1} parent=11 // pred_check
          %p1069 = pneg %p379
        $region58: #{tbdm_forward.1} parent=11 // pred_check_branch
          %1071 = sbr.rel (%p1069) target = $region60
        $region59: #{tbdm_forward.1} parent=11 // pred_region
          %s1073 = ssub.s32 16, 16
          %1074 = vsyncadd [#allocation21], %s1073
          %s1076 = sshll.u32 [#allocation22], 4
          %s1077 = int_to_ptr.vmem [resolvable:$true] %s1076
          %1079 = dma.hbm_to_vmem [thread:$0]  %s25, 16, %s1077, [#allocation21]
        $region60: #{tbdm_forward.1} parent=11 // pred_fallthru
          _
        // Predicated region
        $region61: #{tbdm_forward.1} parent=11 // pred_check
          %p1080 = pneg %p400
        $region62: #{tbdm_forward.1} parent=11 // pred_check_branch
          %1082 = sbr.rel (%p1080) target = $region64
        $region63: #{tbdm_forward.1} parent=11 // pred_region
          _
        $region64: #{tbdm_forward.1} parent=11 // pred_fallthru
          _
        // Predicated region
        $region65: #{tbdm_forward.1} parent=11 // pred_check
          %p1083 = pneg %p421
        $region66: #{tbdm_forward.1} parent=11 // pred_check_branch
          %1085 = sbr.rel (%p1083) target = $region68
        $region67: #{tbdm_forward.1} parent=11 // pred_region
          %s1087 = ssub.s32 16, 16
          %1088 = vsyncadd [#allocation24], %s1087
          %s1090 = sshll.u32 [#allocation23], 4
          %s1091 = int_to_ptr.vmem [resolvable:$true] %s1090
          %1093 = dma.hbm_to_vmem [thread:$0]  %s29, 16, %s1091, [#allocation24]
        $region68: #{tbdm_forward.1} parent=11 // pred_fallthru
          _
        // Predicated region
        $region69: #{tbdm_forward.1} parent=11 // pred_check
          %p1094 = pneg %p442
        $region70: #{tbdm_forward.1} parent=11 // pred_check_branch
          %1096 = sbr.rel (%p1094) target = $region72
        $region71: #{tbdm_forward.1} parent=11 // pred_region
          %s1098 = ssub.s32 512, 512
          %1099 = vsyncadd [#allocation24], %s1098
          %s1100 = sshll.u32 [#allocation25], 4
          %s1101 = int_to_ptr.vmem [resolvable:$true] %s1100
          %1106 = dma.hbm_to_vmem [thread:$0]  %s31, 512, %s1101, [#allocation24], 64, 64, 4
        $region72: #{tbdm_forward.1} parent=11 // pred_fallthru
          _
        // Predicated region
        $region73: #{tbdm_forward.1} parent=11 // pred_check
          %p1107 = pneg %p463
        $region74: #{tbdm_forward.1} parent=11 // pred_check_branch
          %1109 = sbr.rel (%p1107) target = $region76
        $region75: #{tbdm_forward.1} parent=11 // pred_region
          %s1111 = ssub.s32 16, 16
          %1112 = vsyncadd [#allocation27], %s1111
          %s1114 = sshll.u32 [#allocation26], 4
          %s1115 = int_to_ptr.vmem [resolvable:$true] %s1114
          %1117 = dma.hbm_to_vmem [thread:$0]  %s33, 16, %s1115, [#allocation27]
        $region76: #{tbdm_forward.1} parent=11 // pred_fallthru
          _
        // Predicated region
        $region77: #{tbdm_forward.1} parent=11 // pred_check
          %p1118 = pneg %p484
        $region78: #{tbdm_forward.1} parent=11 // pred_check_branch
          %1120 = sbr.rel (%p1118) target = $region80
        $region79: #{tbdm_forward.1} parent=11 // pred_region
          _
        $region80: #{tbdm_forward.1} parent=11 // pred_fallthru
          _
        // Predicated region
        $region81: #{tbdm_forward.1} parent=11 // pred_check
          %p1121 = pneg %p505
        $region82: #{tbdm_forward.1} parent=11 // pred_check_branch
          %1123 = sbr.rel (%p1121) target = $region84
        $region83: #{tbdm_forward.1} parent=11 // pred_region
          %s1125 = ssub.s32 16, 16
          %1126 = vsyncadd [#allocation27], %s1125
          %s1128 = sshll.u32 [#allocation28], 4
          %s1129 = int_to_ptr.vmem [resolvable:$true] %s1128
          %1131 = dma.hbm_to_vmem [thread:$0]  %s37, 16, %s1129, [#allocation27]
        $region84: #{tbdm_forward.1} parent=11 // pred_fallthru
          _
        // Predicated region
        $region85: #{tbdm_forward.1} parent=11 // pred_check
          %p1132 = pneg %p526
        $region86: #{tbdm_forward.1} parent=11 // pred_check_branch
          %1134 = sbr.rel (%p1132) target = $region88
        $region87: #{tbdm_forward.1} parent=11 // pred_region
          _
        $region88: #{tbdm_forward.1} parent=11 // pred_fallthru
          _
        // Predicated region
        $region89: #{tbdm_forward.1} parent=11 // pred_check
          %p1135 = pneg %p547
        $region90: #{tbdm_forward.1} parent=11 // pred_check_branch
          %1137 = sbr.rel (%p1135) target = $region92
        $region91: #{tbdm_forward.1} parent=11 // pred_region
          %s1139 = ssub.s32 16, 16
          %1140 = vsyncadd [#allocation30], %s1139
          %s1142 = sshll.u32 [#allocation29], 4
          %s1143 = int_to_ptr.vmem [resolvable:$true] %s1142
          %1145 = dma.hbm_to_vmem [thread:$0]  %s41, 16, %s1143, [#allocation30]
        $region92: #{tbdm_forward.1} parent=11 // pred_fallthru
          _
        // Predicated region
        $region93: #{tbdm_forward.1} parent=11 // pred_check
          %p1146 = pneg %p568
        $region94: #{tbdm_forward.1} parent=11 // pred_check_branch
          %1148 = sbr.rel (%p1146) target = $region96
        $region95: #{tbdm_forward.1} parent=11 // pred_region
          %s1150 = ssub.s32 1024, 1024
          %1151 = vsyncadd [#allocation30], %s1150
          %s1152 = sshll.u32 [#allocation31], 4
          %s1153 = int_to_ptr.vmem [resolvable:$true] %s1152
          %1158 = dma.hbm_to_vmem [thread:$0]  %s43, 1024, %s1153, [#allocation30], 64, 64, 4
        $region96: #{tbdm_forward.1} parent=11 // pred_fallthru
          _
        // Predicated region
        $region97: #{tbdm_forward.1} parent=11 // pred_check
          %p1159 = pneg %p589
        $region98: #{tbdm_forward.1} parent=11 // pred_check_branch
          %1161 = sbr.rel (%p1159) target = $region100
        $region99: #{tbdm_forward.1} parent=11 // pred_region
          %s1163 = ssub.s32 16, 16
          %1164 = vsyncadd [#allocation33], %s1163
          %s1166 = sshll.u32 [#allocation32], 4
          %s1167 = int_to_ptr.vmem [resolvable:$true] %s1166
          %1169 = dma.hbm_to_vmem [thread:$0]  %s45, 16, %s1167, [#allocation33]
        $region100: #{tbdm_forward.1} parent=11 // pred_fallthru
          _
        // Predicated region
        $region101: #{tbdm_forward.1} parent=11 // pred_check
          %p1170 = pneg %p610
        $region102: #{tbdm_forward.1} parent=11 // pred_check_branch
          %1172 = sbr.rel (%p1170) target = $region104
        $region103: #{tbdm_forward.1} parent=11 // pred_region
          _
        $region104: #{tbdm_forward.1} parent=11 // pred_fallthru
          _
        // Predicated region
        $region105: #{tbdm_forward.1} parent=11 // pred_check
          %p1173 = pneg %p631
        $region106: #{tbdm_forward.1} parent=11 // pred_check_branch
          %1175 = sbr.rel (%p1173) target = $region108
        $region107: #{tbdm_forward.1} parent=11 // pred_region
          %s1177 = ssub.s32 16, 16
          %1178 = vsyncadd [#allocation33], %s1177
          %s1180 = sshll.u32 [#allocation34], 4
          %s1181 = int_to_ptr.vmem [resolvable:$true] %s1180
          %1183 = dma.hbm_to_vmem [thread:$0]  %s49, 16, %s1181, [#allocation33]
        $region108: #{tbdm_forward.1} parent=11 // pred_fallthru
          _
        // Predicated region
        $region109: #{tbdm_forward.1} parent=11 // pred_check
          %p1184 = pneg %p652
        $region110: #{tbdm_forward.1} parent=11 // pred_check_branch
          %1186 = sbr.rel (%p1184) target = $region112
        $region111: #{tbdm_forward.1} parent=11 // pred_region
          _
        $region112: #{tbdm_forward.1} parent=11 // pred_fallthru
          _
        // Predicated region
        $region113: #{tbdm_forward.1} parent=11 // pred_check
          %p1187 = pneg %p673
        $region114: #{tbdm_forward.1} parent=11 // pred_check_branch
          %1189 = sbr.rel (%p1187) target = $region116
        $region115: #{tbdm_forward.1} parent=11 // pred_region
          %s1191 = ssub.s32 16, 16
          %1192 = vsyncadd [#allocation36], %s1191
          %s1194 = sshll.u32 [#allocation35], 4
          %s1195 = int_to_ptr.vmem [resolvable:$true] %s1194
          %1197 = dma.hbm_to_vmem [thread:$0]  %s53, 16, %s1195, [#allocation36]
        $region116: #{tbdm_forward.1} parent=11 // pred_fallthru
          _
        // Predicated region
        $region117: #{tbdm_forward.1} parent=11 // pred_check
          %p1198 = pneg %p694
        $region118: #{tbdm_forward.1} parent=11 // pred_check_branch
          %1200 = sbr.rel (%p1198) target = $region120
        $region119: #{tbdm_forward.1} parent=11 // pred_region
          _
        $region120: #{tbdm_forward.1} parent=11 // pred_fallthru
          _
        // Predicated region
        $region121: #{tbdm_forward.1} parent=11 // pred_check
          %p1201 = pneg %p715
        $region122: #{tbdm_forward.1} parent=11 // pred_check_branch
          %1203 = sbr.rel (%p1201) target = $region124
        $region123: #{tbdm_forward.1} parent=11 // pred_region
          %s1205 = ssub.s32 16, 16
          %1206 = vsyncadd [#allocation36], %s1205
          %s1208 = sshll.u32 [#allocation37], 4
          %s1209 = int_to_ptr.vmem [resolvable:$true] %s1208
          %1211 = dma.hbm_to_vmem [thread:$0]  %s57, 16, %s1209, [#allocation36]
        $region124: #{tbdm_forward.1} parent=11 // pred_fallthru
          _
        // Predicated region
        $region125: #{tbdm_forward.1} parent=11 // pred_check
          %p1212 = pneg %p736
        $region126: #{tbdm_forward.1} parent=11 // pred_check_branch
          %1214 = sbr.rel (%p1212) target = $region128
        $region127: #{tbdm_forward.1} parent=11 // pred_region
          _
        $region128: #{tbdm_forward.1} parent=11 // pred_fallthru
          _
        // Predicated region
        $region129: #{tbdm_forward.1} parent=11 // pred_check
          %p1215 = pneg %p757
        $region130: #{tbdm_forward.1} parent=11 // pred_check_branch
          %1217 = sbr.rel (%p1215) target = $region132
        $region131: #{tbdm_forward.1} parent=11 // pred_region
          %s1219 = ssub.s32 16, 16
          %1220 = vsyncadd [#allocation39], %s1219
          %s1222 = sshll.u32 [#allocation38], 4
          %s1223 = int_to_ptr.vmem [resolvable:$true] %s1222
          %1225 = dma.hbm_to_vmem [thread:$0]  %s61, 16, %s1223, [#allocation39]
        $region132: #{tbdm_forward.1} parent=11 // pred_fallthru
          _
        // Predicated region
        $region133: #{tbdm_forward.1} parent=11 // pred_check
          %p1226 = pneg %p778
        $region134: #{tbdm_forward.1} parent=11 // pred_check_branch
          %1228 = sbr.rel (%p1226) target = $region136
        $region135: #{tbdm_forward.1} parent=11 // pred_region
          _
        $region136: #{tbdm_forward.1} parent=11 // pred_fallthru
          _
        // Predicated region
        $region137: #{tbdm_forward.1} parent=11 // pred_check
          %p1229 = pneg %p799
        $region138: #{tbdm_forward.1} parent=11 // pred_check_branch
          %1231 = sbr.rel (%p1229) target = $region140
        $region139: #{tbdm_forward.1} parent=11 // pred_region
          %s1233 = ssub.s32 32, 32
          %1234 = vsyncadd [#allocation39], %s1233
          %s1236 = sshll.u32 [#allocation40], 4
          %s1237 = int_to_ptr.vmem [resolvable:$true] %s1236
          %1239 = dma.hbm_to_vmem [thread:$0]  %s65, 32, %s1237, [#allocation39]
        $region140: #{tbdm_forward.1} parent=11 // pred_fallthru
          _
        // Predicated region
        $region141: #{tbdm_forward.1} parent=11 // pred_check
          %p1240 = pneg %p820
        $region142: #{tbdm_forward.1} parent=11 // pred_check_branch
          %1242 = sbr.rel (%p1240) target = $region144
        $region143: #{tbdm_forward.1} parent=11 // pred_region
          %s1244 = ssub.s32 8192, 8192
          %1245 = vsyncadd [#allocation42], %s1244
          %s1246 = sshll.u32 [#allocation41], 4
          %s1247 = int_to_ptr.vmem [resolvable:$true] %s1246
          %1252 = dma.hbm_to_vmem [thread:$0]  %s67, 8192, %s1247, [#allocation42], 128, 128, 8
        $region144: #{tbdm_forward.1} parent=11 // pred_fallthru
          _
        // Predicated region
        $region145: #{tbdm_forward.1} parent=11 // pred_check
          %p1253 = pneg %p841
        $region146: #{tbdm_forward.1} parent=11 // pred_check_branch
          %1255 = sbr.rel (%p1253) target = $region148
        $region147: #{tbdm_forward.1} parent=11 // pred_region
          %s1257 = ssub.s32 32, 32
          %1258 = vsyncadd [#allocation42], %s1257
          %s1260 = sshll.u32 [#allocation43], 4
          %s1261 = int_to_ptr.vmem [resolvable:$true] %s1260
          %1263 = dma.hbm_to_vmem [thread:$0]  %s69, 32, %s1261, [#allocation42]
        $region148: #{tbdm_forward.1} parent=11 // pred_fallthru
          _
        // Predicated region
        $region149: #{tbdm_forward.1} parent=11 // pred_check
          %p1264 = pneg %p862
        $region150: #{tbdm_forward.1} parent=11 // pred_check_branch
          %1266 = sbr.rel (%p1264) target = $region152
        $region151: #{tbdm_forward.1} parent=11 // pred_region
          _
        $region152: #{tbdm_forward.1} parent=11 // pred_fallthru
          _
        // Predicated region
        $region153: #{tbdm_forward.1} parent=11 // pred_check
          %p1267 = pneg %p883
        $region154: #{tbdm_forward.1} parent=11 // pred_check_branch
          %1269 = sbr.rel (%p1267) target = $region156
        $region155: #{tbdm_forward.1} parent=11 // pred_region
          %s1271 = ssub.s32 16, 16
          %1272 = vsyncadd [#allocation45], %s1271
          %s1274 = sshll.u32 [#allocation44], 4
          %s1275 = int_to_ptr.vmem [resolvable:$true] %s1274
          %1277 = dma.hbm_to_vmem [thread:$0]  %s73, 16, %s1275, [#allocation45]
        $region156: #{tbdm_forward.1} parent=11 // pred_fallthru
          _
        // Predicated region
        $region157: #{tbdm_forward.1} parent=11 // pred_check
          %p1278 = pneg %p904
        $region158: #{tbdm_forward.1} parent=11 // pred_check_branch
          %1280 = sbr.rel (%p1278) target = $region160
        $region159: #{tbdm_forward.1} parent=11 // pred_region
          _
        $region160: #{tbdm_forward.1} parent=11 // pred_fallthru
          _
        // Predicated region
        $region161: #{tbdm_forward.1} parent=11 // pred_check
          %p1281 = pneg %p925
        $region162: #{tbdm_forward.1} parent=11 // pred_check_branch
          %1283 = sbr.rel (%p1281) target = $region164
        $region163: #{tbdm_forward.1} parent=11 // pred_region
          %s1285 = ssub.s32 16, 16
          %1286 = vsyncadd [#allocation45], %s1285
          %s1288 = sshll.u32 [#allocation46], 4
          %s1289 = int_to_ptr.vmem [resolvable:$true] %s1288
          %1291 = dma.hbm_to_vmem [thread:$0]  %s77, 16, %s1289, [#allocation45]
        $region164: #{tbdm_forward.1} parent=11 // pred_fallthru
          _
      $region12: #{tbdm_forward.1} parent=5 // pred_fallthru
        _
      %p1292 = scmp.lt.s32.totalorder %s101, 2
      // Predicated region
      $region165: #{tbdm_forward.1} parent=5 // pred_check
        %p1293 = pneg %p1292
      $region166: #{tbdm_forward.1} parent=5 // pred_check_branch
        %1295 = sbr.rel (%p1293) target = $region168
      $region167: #{tbdm_forward.1} parent=5 // pred_region
        // Predicated region
        $region169: #{tbdm_forward.1} parent=167 // pred_check
          %p1296 = pneg %p121
        $region170: #{tbdm_forward.1} parent=167 // pred_check_branch
          %1298 = sbr.rel (%p1296) target = $region172
        $region171: #{tbdm_forward.1} parent=167 // pred_region
          %p1299 = scmp.lt.s32.totalorder %s101, 1
          %s1300 = scalar_select %p1299, %s101, 1
          %s1301 = smul.addr %s1300, 8
          %s1302 = smul.addr %s1301, 8
          %s1303 = scalar_lea.vmem %s1, %s1302
        $region172: #{tbdm_forward.1} parent=167 // pred_fallthru
          _
      $region168: #{tbdm_forward.1} parent=5 // pred_fallthru
        _
      %p1304 = scmp.le.s32.totalorder 1, %s101
      %p1305 = scmp.lt.s32.totalorder %s101, 3
      %p1306 = pnand %p1304, %p1305
      %p1307 = pneg %p1306
      // Predicated region
      $region173: #{tbdm_forward.1} parent=5 // pred_check
        _
      $region174: #{tbdm_forward.1} parent=5 // pred_check_branch
        %1309 = sbr.rel (%p1306) target = $region176
      $region175: #{tbdm_forward.1} parent=5 // pred_region
        %s1310 = ssub.s32 %s101, 1
        // Predicated region
        $region177: #{tbdm_forward.1} parent=175 // pred_check
          %p1311 = pneg %p169
        $region178: #{tbdm_forward.1} parent=175 // pred_check_branch
          %1313 = sbr.rel (%p1311) target = $region180
        $region179: #{tbdm_forward.1} parent=175 // pred_region
          %1314 = dma.done [#allocation9], 16
        $region180: #{tbdm_forward.1} parent=175 // pred_fallthru
          _
        // Predicated region
        $region181: #{tbdm_forward.1} parent=175 // pred_check
          %p1315 = pneg %p190
        $region182: #{tbdm_forward.1} parent=175 // pred_check_branch
          %1317 = sbr.rel (%p1315) target = $region184
        $region183: #{tbdm_forward.1} parent=175 // pred_region
          %1318 = dma.done [#allocation12], 128
        $region184: #{tbdm_forward.1} parent=175 // pred_fallthru
          _
        // Predicated region
        $region185: #{tbdm_forward.1} parent=175 // pred_check
          %p1319 = pneg %p211
        $region186: #{tbdm_forward.1} parent=175 // pred_check_branch
          %1321 = sbr.rel (%p1319) target = $region188
        $region187: #{tbdm_forward.1} parent=175 // pred_region
          %1322 = dma.done [#allocation12], 16
        $region188: #{tbdm_forward.1} parent=175 // pred_fallthru
          _
        // Predicated region
        $region189: #{tbdm_forward.1} parent=175 // pred_check
          %p1323 = pneg %p253
        $region190: #{tbdm_forward.1} parent=175 // pred_check_branch
          %1325 = sbr.rel (%p1323) target = $region192
        $region191: #{tbdm_forward.1} parent=175 // pred_region
          %1326 = dma.done [#allocation15], 16
        $region192: #{tbdm_forward.1} parent=175 // pred_fallthru
          _
        // Predicated region
        $region193: #{tbdm_forward.1} parent=175 // pred_check
          %p1327 = pneg %p274
        $region194: #{tbdm_forward.1} parent=175 // pred_check_branch
          %1329 = sbr.rel (%p1327) target = $region196
        $region195: #{tbdm_forward.1} parent=175 // pred_region
          %1330 = dma.done [#allocation15], 256
        $region196: #{tbdm_forward.1} parent=175 // pred_fallthru
          _
        // Predicated region
        $region197: #{tbdm_forward.1} parent=175 // pred_check
          %p1331 = pneg %p295
        $region198: #{tbdm_forward.1} parent=175 // pred_check_branch
          %1333 = sbr.rel (%p1331) target = $region200
        $region199: #{tbdm_forward.1} parent=175 // pred_region
          %1334 = dma.done [#allocation18], 16
        $region200: #{tbdm_forward.1} parent=175 // pred_fallthru
          _
        // Predicated region
        $region201: #{tbdm_forward.1} parent=175 // pred_check
          %p1335 = pneg %p316
        $region202: #{tbdm_forward.1} parent=175 // pred_check_branch
          %1337 = sbr.rel (%p1335) target = $region204
        $region203: #{tbdm_forward.1} parent=175 // pred_region
          %1338 = dma.done [#allocation18], 256
        $region204: #{tbdm_forward.1} parent=175 // pred_fallthru
          _
        // Predicated region
        $region205: #{tbdm_forward.1} parent=175 // pred_check
          %p1339 = pneg %p337
        $region206: #{tbdm_forward.1} parent=175 // pred_check_branch
          %1341 = sbr.rel (%p1339) target = $region208
        $region207: #{tbdm_forward.1} parent=175 // pred_region
          %1342 = dma.done [#allocation21], 16
        $region208: #{tbdm_forward.1} parent=175 // pred_fallthru
          _
        // Predicated region
        $region209: #{tbdm_forward.1} parent=175 // pred_check
          %p1343 = pneg %p379
        $region210: #{tbdm_forward.1} parent=175 // pred_check_branch
          %1345 = sbr.rel (%p1343) target = $region212
        $region211: #{tbdm_forward.1} parent=175 // pred_region
          %1346 = dma.done [#allocation21], 16
        $region212: #{tbdm_forward.1} parent=175 // pred_fallthru
          _
        // Predicated region
        $region213: #{tbdm_forward.1} parent=175 // pred_check
          %p1347 = pneg %p421
        $region214: #{tbdm_forward.1} parent=175 // pred_check_branch
          %1349 = sbr.rel (%p1347) target = $region216
        $region215: #{tbdm_forward.1} parent=175 // pred_region
          %1350 = dma.done [#allocation24], 16
        $region216: #{tbdm_forward.1} parent=175 // pred_fallthru
          _
        // Predicated region
        $region217: #{tbdm_forward.1} parent=175 // pred_check
          %p1351 = pneg %p442
        $region218: #{tbdm_forward.1} parent=175 // pred_check_branch
          %1353 = sbr.rel (%p1351) target = $region220
        $region219: #{tbdm_forward.1} parent=175 // pred_region
          %1354 = dma.done [#allocation24], 512
        $region220: #{tbdm_forward.1} parent=175 // pred_fallthru
          _
        // Predicated region
        $region221: #{tbdm_forward.1} parent=175 // pred_check
          %p1355 = pneg %p463
        $region222: #{tbdm_forward.1} parent=175 // pred_check_branch
          %1357 = sbr.rel (%p1355) target = $region224
        $region223: #{tbdm_forward.1} parent=175 // pred_region
          %1358 = dma.done [#allocation27], 16
        $region224: #{tbdm_forward.1} parent=175 // pred_fallthru
          _
        // Predicated region
        $region225: #{tbdm_forward.1} parent=175 // pred_check
          %p1359 = pneg %p505
        $region226: #{tbdm_forward.1} parent=175 // pred_check_branch
          %1361 = sbr.rel (%p1359) target = $region228
        $region227: #{tbdm_forward.1} parent=175 // pred_region
          %1362 = dma.done [#allocation27], 16
        $region228: #{tbdm_forward.1} parent=175 // pred_fallthru
          _
        // Predicated region
        $region229: #{tbdm_forward.1} parent=175 // pred_check
          %p1363 = pneg %p547
        $region230: #{tbdm_forward.1} parent=175 // pred_check_branch
          %1365 = sbr.rel (%p1363) target = $region232
        $region231: #{tbdm_forward.1} parent=175 // pred_region
          %1366 = dma.done [#allocation30], 16
        $region232: #{tbdm_forward.1} parent=175 // pred_fallthru
          _
        // Predicated region
        $region233: #{tbdm_forward.1} parent=175 // pred_check
          %p1367 = pneg %p568
        $region234: #{tbdm_forward.1} parent=175 // pred_check_branch
          %1369 = sbr.rel (%p1367) target = $region236
        $region235: #{tbdm_forward.1} parent=175 // pred_region
          %1370 = dma.done [#allocation30], 1024
        $region236: #{tbdm_forward.1} parent=175 // pred_fallthru
          _
        // Predicated region
        $region237: #{tbdm_forward.1} parent=175 // pred_check
          %p1371 = pneg %p589
        $region238: #{tbdm_forward.1} parent=175 // pred_check_branch
          %1373 = sbr.rel (%p1371) target = $region240
        $region239: #{tbdm_forward.1} parent=175 // pred_region
          %1374 = dma.done [#allocation33], 16
        $region240: #{tbdm_forward.1} parent=175 // pred_fallthru
          _
        // Predicated region
        $region241: #{tbdm_forward.1} parent=175 // pred_check
          %p1375 = pneg %p631
        $region242: #{tbdm_forward.1} parent=175 // pred_check_branch
          %1377 = sbr.rel (%p1375) target = $region244
        $region243: #{tbdm_forward.1} parent=175 // pred_region
          %1378 = dma.done [#allocation33], 16
        $region244: #{tbdm_forward.1} parent=175 // pred_fallthru
          _
        // Predicated region
        $region245: #{tbdm_forward.1} parent=175 // pred_check
          %p1379 = pneg %p673
        $region246: #{tbdm_forward.1} parent=175 // pred_check_branch
          %1381 = sbr.rel (%p1379) target = $region248
        $region247: #{tbdm_forward.1} parent=175 // pred_region
          %1382 = dma.done [#allocation36], 16
        $region248: #{tbdm_forward.1} parent=175 // pred_fallthru
          _
        // Predicated region
        $region249: #{tbdm_forward.1} parent=175 // pred_check
          %p1383 = pneg %p715
        $region250: #{tbdm_forward.1} parent=175 // pred_check_branch
          %1385 = sbr.rel (%p1383) target = $region252
        $region251: #{tbdm_forward.1} parent=175 // pred_region
          %1386 = dma.done [#allocation36], 16
        $region252: #{tbdm_forward.1} parent=175 // pred_fallthru
          _
        // Predicated region
        $region253: #{tbdm_forward.1} parent=175 // pred_check
          %p1387 = pneg %p757
        $region254: #{tbdm_forward.1} parent=175 // pred_check_branch
          %1389 = sbr.rel (%p1387) target = $region256
        $region255: #{tbdm_forward.1} parent=175 // pred_region
          %1390 = dma.done [#allocation39], 16
        $region256: #{tbdm_forward.1} parent=175 // pred_fallthru
          _
        // Predicated region
        $region257: #{tbdm_forward.1} parent=175 // pred_check
          %p1391 = pneg %p799
        $region258: #{tbdm_forward.1} parent=175 // pred_check_branch
          %1393 = sbr.rel (%p1391) target = $region260
        $region259: #{tbdm_forward.1} parent=175 // pred_region
          %1394 = dma.done [#allocation39], 32
        $region260: #{tbdm_forward.1} parent=175 // pred_fallthru
          _
        // Predicated region
        $region261: #{tbdm_forward.1} parent=175 // pred_check
          %p1395 = pneg %p820
        $region262: #{tbdm_forward.1} parent=175 // pred_check_branch
          %1397 = sbr.rel (%p1395) target = $region264
        $region263: #{tbdm_forward.1} parent=175 // pred_region
          %1398 = dma.done [#allocation42], 8192
        $region264: #{tbdm_forward.1} parent=175 // pred_fallthru
          _
        // Predicated region
        $region265: #{tbdm_forward.1} parent=175 // pred_check
          %p1399 = pneg %p841
        $region266: #{tbdm_forward.1} parent=175 // pred_check_branch
          %1401 = sbr.rel (%p1399) target = $region268
        $region267: #{tbdm_forward.1} parent=175 // pred_region
          %1402 = dma.done [#allocation42], 32
        $region268: #{tbdm_forward.1} parent=175 // pred_fallthru
          _
        // Predicated region
        $region269: #{tbdm_forward.1} parent=175 // pred_check
          %p1403 = pneg %p883
        $region270: #{tbdm_forward.1} parent=175 // pred_check_branch
          %1405 = sbr.rel (%p1403) target = $region272
        $region271: #{tbdm_forward.1} parent=175 // pred_region
          %1406 = dma.done [#allocation45], 16
        $region272: #{tbdm_forward.1} parent=175 // pred_fallthru
          _
        // Predicated region
        $region273: #{tbdm_forward.1} parent=175 // pred_check
          %p1407 = pneg %p925
        $region274: #{tbdm_forward.1} parent=175 // pred_check_branch
          %1409 = sbr.rel (%p1407) target = $region276
        $region275: #{tbdm_forward.1} parent=175 // pred_region
          %1410 = dma.done [#allocation45], 16
        $region276: #{tbdm_forward.1} parent=175 // pred_fallthru
          _
        %p1411 = scmp.lt.s32.totalorder %s106, 1
        %s1412 = scalar_select %p1411, %s106, 1
        %s1413 = smul.addr %s1412, 8
        %s1414 = smul.addr %s1413, 8
        %s1415 = scalar_lea.vmem %s1, %s1414
        %p1416 = pneg %p127
        %p1417 = pneg %p124
        %p1418 = pneg %p148
        %p1419 = pneg %p145
        %p1420 = pneg %p169
        %p1421 = pneg %p166
        %p1422 = pneg %p190
        %p1423 = pneg %p187
        %p1424 = pneg %p211
        %p1425 = pneg %p208
        %p1426 = pneg %p232
        %p1427 = pneg %p229
        %p1428 = pneg %p253
        %p1429 = pneg %p250
        %p1430 = pneg %p274
        %p1431 = pneg %p271
        %p1432 = pneg %p295
        %p1433 = pneg %p292
        %p1434 = pneg %p316
        %p1435 = pneg %p313
        %p1436 = pneg %p337
        %p1437 = pneg %p334
        %p1438 = pneg %p358
        %p1439 = pneg %p355
        %p1440 = pneg %p379
        %p1441 = pneg %p376
        %p1442 = pneg %p400
        %p1443 = pneg %p397
        %p1444 = pneg %p421
        %p1445 = pneg %p418
        %p1446 = pneg %p442
        %p1447 = pneg %p439
        %p1448 = pneg %p463
        %p1449 = pneg %p460
        %p1450 = pneg %p484
        %p1451 = pneg %p481
        %p1452 = pneg %p505
        %p1453 = pneg %p502
        %p1454 = pneg %p526
        %p1455 = pneg %p523
        %p1456 = pneg %p547
        %p1457 = pneg %p544
        %p1458 = pneg %p568
        %p1459 = pneg %p565
        %p1460 = pneg %p589
        %p1461 = pneg %p586
        %p1462 = pneg %p610
        %p1463 = pneg %p607
        %p1464 = pneg %p631
        %p1465 = pneg %p628
        %p1466 = pneg %p652
        %p1467 = pneg %p649
        %p1468 = pneg %p673
        %p1469 = pneg %p670
        %p1470 = pneg %p694
        %p1471 = pneg %p691
        %p1472 = pneg %p715
        %p1473 = pneg %p712
        %p1474 = pneg %p736
        %p1475 = pneg %p733
        %p1476 = pneg %p757
        %p1477 = pneg %p754
        %p1478 = pneg %p778
        %p1479 = pneg %p775
        %p1480 = pneg %p799
        %p1481 = pneg %p796
        %p1482 = pneg %p820
        %p1483 = pneg %p817
        %p1484 = pneg %p841
        %p1485 = pneg %p838
        %p1486 = pneg %p862
        %p1487 = pneg %p859
        %p1488 = pneg %p883
        %p1489 = pneg %p880
        %p1490 = pneg %p904
        %p1491 = pneg %p901
        %p1492 = pneg %p925
        %p1493 = pneg %p922
        %p1494 = pneg %p951
        %p1495 = pneg %p948
        %s1496 = sand.u32 %s938, 1
        %s1497 = scalar_lea.sflag [#allocation10], %s1496
        %s1498 = sand.u32 %s938, 1
        %s1499 = scalar_lea.vmem [#allocation47], %s1498
        %p1500 = scmp.lt.s32.totalorder %s106, 1
        %s1501 = scalar_select %p1500, %s106, 1
        %s1502 = smul.addr %s1501, 8
        %s1503 = smul.addr %s1502, 8
        %s1504 = scalar_lea.vmem %s1, %s1503
        %v1506 = vld [vmem:[%s1504] sm:$0xff]
        %v1507 = vld [vmem:[%s1504 + $0x8] sm:$0xff]
        %v1508 = vld [vmem:[%s1504 + $0x10] sm:$0xff]
        %v1509 = vld [vmem:[%s1504 + $0x18] sm:$0xff]
        %v1510 = vld [vmem:[%s1504 + $0x20] sm:$0xff]
        %v1511 = vld [vmem:[%s1504 + $0x28] sm:$0xff]
        %v1512 = vld [vmem:[%s1504 + $0x30] sm:$0xff]
        %v1513 = vld [vmem:[%s1504 + $0x38] sm:$0xff]
        %vm1514 = vcmask 57344
        %vm1515 = vsmask.f32 256
        %vm1516 = vmand %vm1514, %vm1515
        %v1517 = vld [vmem:[#allocation2 + $0x20] sm:$0x1]
        %v1518 = vsel %vm1516, 0, %v1517
        %1519 = vst [vmem:[#allocation2 + $0x20] sm:$0x1] %v1518
        %v1520 = vld [vmem:[#allocation8] sm:$0x1]
        %v1521 = vpack.c.bf16 %v1507, %v1506
        %v1522 = vpack.c.bf16 %v1509, %v1508
        %v1523 = vpack.c.bf16 %v1511, %v1510
        %v1524 = vpack.c.bf16 %v1513, %v1512
        %v1529 = vunpack.c.l.b16 %v1521
        %v1530 = vunpack.c.h.b16 %v1521
        %v1531 = vunpack.c.l.b16 %v1522
        %v1532 = vunpack.c.h.b16 %v1522
        %v1533 = vunpack.c.l.b16 %v1523
        %v1534 = vunpack.c.h.b16 %v1523
        %v1535 = vunpack.c.l.b16 %v1524
        %v1536 = vunpack.c.h.b16 %v1524
        %v1537 = vpack.c.b16 %v1529, %v1529
        %v1538 = vpack.c.b16 %v1530, %v1530
        %v1539 = vpack.c.b16 %v1531, %v1531
        %v1540 = vpack.c.b16 %v1532, %v1532
        %v1541 = vpack.c.b16 %v1533, %v1533
        %v1542 = vpack.c.b16 %v1534, %v1534
        %v1543 = vpack.c.b16 %v1535, %v1535
        %v1544 = vpack.c.b16 %v1536, %v1536
        %vm1553 = vcmask 60416
        %1554 = vst.msk [vmem:[#allocation2] sm:$0xf] %vm1553, %v1537
        %1555 = vst.msk [vmem:[#allocation2 + $0x4] sm:$0xf] %vm1553, %v1538
        %1556 = vst.msk [vmem:[#allocation2 + $0x8] sm:$0xf] %vm1553, %v1539
        %1557 = vst.msk [vmem:[#allocation2 + $0xc] sm:$0xf] %vm1553, %v1540
        %1558 = vst.msk [vmem:[#allocation2 + $0x10] sm:$0xf] %vm1553, %v1541
        %1559 = vst.msk [vmem:[#allocation2 + $0x14] sm:$0xf] %vm1553, %v1542
        %1560 = vst.msk [vmem:[#allocation2 + $0x18] sm:$0xf] %vm1553, %v1543
        %1561 = vst.msk [vmem:[#allocation2 + $0x1c] sm:$0xf] %vm1553, %v1544
        %v1562 = vld [vmem:[#allocation2] sm:$0xf]
        %v1563 = vld [vmem:[#allocation2 + $0x4] sm:$0xf]
        %v1564 = vld [vmem:[#allocation2 + $0x8] sm:$0xf]
        %v1565 = vld [vmem:[#allocation2 + $0xc] sm:$0xf]
        %v1566 = vld [vmem:[#allocation2 + $0x10] sm:$0xf]
        %v1567 = vld [vmem:[#allocation2 + $0x14] sm:$0xf]
        %v1568 = vld [vmem:[#allocation2 + $0x18] sm:$0xf]
        %v1569 = vld [vmem:[#allocation2 + $0x1c] sm:$0xf]
        %v1570 = vld [vmem:[#allocation2 + $0x20] sm:$0x1]
        %v1571 = vld [vmem:[%s3] sm:$0xf]
        %s1572 = scalar_lea.vmem %s3, 4
        %v1573 = vld [vmem:[%s1572] sm:$0xf]
        %v1583 = vunpack.c.l.b16 %v1562
        %v1584 = vunpack.c.l.b16 %v1563
        %v1585 = vunpack.c.l.b16 %v1564
        %v1586 = vunpack.c.l.b16 %v1565
        %v1587 = vunpack.c.l.b16 %v1566
        %v1588 = vunpack.c.l.b16 %v1567
        %v1589 = vunpack.c.l.b16 %v1568
        %v1590 = vunpack.c.l.b16 %v1569
        %v1591 = vunpack.c.l.b16 %v1570
        %v1592 = vpack.c.b16 %v1584, %v1583
        %v1593 = vpack.c.b16 %v1586, %v1585
        %v1594 = vpack.c.b16 %v1588, %v1587
        %v1595 = vpack.c.b16 %v1590, %v1589
        %v1596 = vpack.c.b16 %v1591, %v1591
        %vm1597 = vsmask.f32 7424
        %v1599 = vshrl.u32 %v1592, 16
        %v1601 = vshll.u32 %v1592, 16
        %v1603 = vrot.slane %v1601, 1
        %v1604 = vor.u32 %v1599, %v1603
        %v1606 = vshll.u32 %v1593, 16
        %v1608 = vrot.slane %v1606, 1
        %v1609 = vsel %vm1597, %v1604, %v1608
        %v1610 = vshrl.u32 %v1593, 16
        %v1612 = vor.u32 %v1610, %v1608
        %v1614 = vshll.u32 %v1594, 16
        %v1616 = vrot.slane %v1614, 1
        %v1617 = vsel %vm1597, %v1612, %v1616
        %v1618 = vshrl.u32 %v1594, 16
        %v1620 = vor.u32 %v1618, %v1616
        %v1622 = vshll.u32 %v1595, 16
        %v1624 = vrot.slane %v1622, 1
        %v1625 = vsel %vm1597, %v1620, %v1624
        %v1626 = vshrl.u32 %v1595, 16
        %v1628 = vor.u32 %v1626, %v1624
        %v1630 = vshll.u32 %v1596, 16
        %v1632 = vrot.slane %v1630, 1
        %v1633 = vsel %vm1597, %v1628, %v1632
        %vm1634 = vcmask 64512
        %v1636 = vsel %vm1634, %v1609, 0
        %v1639 = vsel %vm1634, %v1617, 0
        %v1642 = vsel %vm1634, %v1625, 0
        %v1645 = vsel %vm1634, %v1633, 0
        %vm1647 = vcmask 1043456
        %v1649 = vsel %vm1647, %v1573, 0
        %1651 = vmatprep.subr.bf16.mxu0 0
        %1652 = vmatpush1.bf16.msra.mxu0 %v1649
        %1653 = vmatprep.subr.bf16.mxu0 0
        %1654 = vmatpush1.bf16.msra.mxu0 0
        %1655 = vmatprep.subr.bf16.mxu0 0
        %1656 = vmatpush1.bf16.msra.mxu0 0
        %1657 = vmatprep.subr.bf16.mxu0 0
        %1658 = vmatpush1.bf16.msra.mxu0 0
        %1659 = vmatprep.subr.bf16.mxu0 0
        %1660 = vmatpush1.bf16.msra.mxu0 0
        %1661 = vmatprep.subr.bf16.mxu0 0
        %1662 = vmatpush1.bf16.msra.mxu0 0
        %1663 = vmatprep.subr.bf16.mxu0 0
        %1664 = vmatpush1.bf16.msra.mxu0 0
        %1665 = vmatprep.subr.bf16.mxu0 0
        %1666 = vmatpush1.bf16.msra.mxu0 0
        %1667 = vmatprep.subr.bf16.mxu0 0
        %1668 = vmatpush1.bf16.msra.mxu0 0
        %1669 = vmatprep.subr.bf16.mxu0 0
        %1670 = vmatpush1.bf16.msra.mxu0 0
        %1671 = vmatprep.subr.bf16.mxu0 0
        %1672 = vmatpush1.bf16.msra.mxu0 0
        %1673 = vmatprep.subr.bf16.mxu0 0
        %1674 = vmatpush1.bf16.msra.mxu0 0
        %1675 = vmatprep.subr.bf16.mxu0 0
        %1676 = vmatpush1.bf16.msra.mxu0 0
        %1677 = vmatprep.subr.bf16.mxu0 0
        %1678 = vmatpush1.bf16.msra.mxu0 0
        %1679 = vmatprep.subr.bf16.mxu0 0
        %1680 = vmatpush1.bf16.msra.mxu0 0
        %1681 = vmatprep.subr.bf16.mxu0 0
        %1682 = vmatpush1.bf16.msra.mxu0 0
        %1683 = vmatprep.mubr.bf16.mxu0 0
        %1684 = vmatmul.mubr.bf16.gmra.mrb[0].mxu0 %v1636
        %v1685 = vpop.f32.mrb[0].mxu0
        %v1686 = vadd.f32 0.0, %v1685
        %v1687 = vpop.f32.mrb[0].mxu0
        %v1688 = vpop.f32.mrb[0].mxu0
        %v1689 = vadd.f32 0.0, %v1688
        %v1690 = vpop.f32.mrb[0].mxu0
        %1691 = vmatprep.mubr.bf16.mxu0 0
        %1692 = vmatmul.mubr.bf16.gmra.mrb[0].mxu0 %v1639
        %v1693 = vpop.f32.mrb[0].mxu0
        %v1694 = vadd.f32 0.0, %v1693
        %v1695 = vpop.f32.mrb[0].mxu0
        %v1696 = vpop.f32.mrb[0].mxu0
        %v1697 = vadd.f32 0.0, %v1696
        %v1698 = vpop.f32.mrb[0].mxu0
        %1699 = vmatprep.mubr.bf16.mxu0 0
        %1700 = vmatmul.mubr.bf16.gmra.mrb[0].mxu0 %v1642
        %v1701 = vpop.f32.mrb[0].mxu0
        %v1702 = vadd.f32 0.0, %v1701
        %v1703 = vpop.f32.mrb[0].mxu0
        %v1704 = vpop.f32.mrb[0].mxu0
        %v1705 = vadd.f32 0.0, %v1704
        %v1706 = vpop.f32.mrb[0].mxu0
        %1707 = vmatprep.mubr.bf16.mxu0 0
        %1708 = vmatmul.mubr.bf16.gmra.mrb[0].mxu0 %v1645
        %v1709 = vpop.f32.mrb[0].mxu0
        %v1710 = vadd.f32 0.0, %v1709
        %v1711 = vpop.f32.mrb[0].mxu0
        %v1712 = vpop.f32.mrb[0].mxu0
        %v1713 = vadd.f32 0.0, %v1712
        %v1714 = vpop.f32.mrb[0].mxu0
        %1715 = vdwg.mxu0
        %v1716 = vsel %vm1634, %v1592, 0
        %v1718 = vsel %vm1634, %v1593, 0
        %v1720 = vsel %vm1634, %v1594, 0
        %v1722 = vsel %vm1634, %v1595, 0
        %v1725 = vsel %vm1647, %v1571, 0
        %1727 = vmatprep.subr.bf16.mxu0 0
        %1728 = vmatpush1.bf16.msra.mxu0 %v1725
        %1729 = vmatprep.subr.bf16.mxu0 0
        %1730 = vmatpush1.bf16.msra.mxu0 0
        %1731 = vmatprep.subr.bf16.mxu0 0
        %1732 = vmatpush1.bf16.msra.mxu0 0
        %1733 = vmatprep.subr.bf16.mxu0 0
        %1734 = vmatpush1.bf16.msra.mxu0 0
        %1735 = vmatprep.subr.bf16.mxu0 0
        %1736 = vmatpush1.bf16.msra.mxu0 0
        %1737 = vmatprep.subr.bf16.mxu0 0
        %1738 = vmatpush1.bf16.msra.mxu0 0
        %1739 = vmatprep.subr.bf16.mxu0 0
        %1740 = vmatpush1.bf16.msra.mxu0 0
        %1741 = vmatprep.subr.bf16.mxu0 0
        %1742 = vmatpush1.bf16.msra.mxu0 0
        %1743 = vmatprep.subr.bf16.mxu0 0
        %1744 = vmatpush1.bf16.msra.mxu0 0
        %1745 = vmatprep.subr.bf16.mxu0 0
        %1746 = vmatpush1.bf16.msra.mxu0 0
        %1747 = vmatprep.subr.bf16.mxu0 0
        %1748 = vmatpush1.bf16.msra.mxu0 0
        %1749 = vmatprep.subr.bf16.mxu0 0
        %1750 = vmatpush1.bf16.msra.mxu0 0
        %1751 = vmatprep.subr.bf16.mxu0 0
        %1752 = vmatpush1.bf16.msra.mxu0 0
        %1753 = vmatprep.subr.bf16.mxu0 0
        %1754 = vmatpush1.bf16.msra.mxu0 0
        %1755 = vmatprep.subr.bf16.mxu0 0
        %1756 = vmatpush1.bf16.msra.mxu0 0
        %1757 = vmatprep.subr.bf16.mxu0 0
        %1758 = vmatpush1.bf16.msra.mxu0 0
        %1759 = vmatprep.mubr.bf16.mxu0 0
        %1760 = vmatmul.mubr.bf16.gmra.mrb[0].mxu0 %v1716
        %v1761 = vpop.f32.mrb[0].mxu0
        %v1762 = vadd.f32 %v1686, %v1761
        %v1763 = vpop.f32.mrb[0].mxu0
        %v1764 = vpop.f32.mrb[0].mxu0
        %v1765 = vadd.f32 %v1689, %v1764
        %v1766 = vpop.f32.mrb[0].mxu0
        %1767 = vmatprep.mubr.bf16.mxu0 0
        %1768 = vmatmul.mubr.bf16.gmra.mrb[0].mxu0 %v1718
        %v1769 = vpop.f32.mrb[0].mxu0
        %v1770 = vadd.f32 %v1694, %v1769
        %v1771 = vpop.f32.mrb[0].mxu0
        %v1772 = vpop.f32.mrb[0].mxu0
        %v1773 = vadd.f32 %v1697, %v1772
        %v1774 = vpop.f32.mrb[0].mxu0
        %1775 = vmatprep.mubr.bf16.mxu0 0
        %1776 = vmatmul.mubr.bf16.gmra.mrb[0].mxu0 %v1720
        %v1777 = vpop.f32.mrb[0].mxu0
        %v1778 = vadd.f32 %v1702, %v1777
        %v1779 = vpop.f32.mrb[0].mxu0
        %v1780 = vpop.f32.mrb[0].mxu0
        %v1781 = vadd.f32 %v1705, %v1780
        %v1782 = vpop.f32.mrb[0].mxu0
        %1783 = vmatprep.mubr.bf16.mxu0 0
        %1784 = vmatmul.mubr.bf16.gmra.mrb[0].mxu0 %v1722
        %v1785 = vpop.f32.mrb[0].mxu0
        %v1786 = vadd.f32 %v1710, %v1785
        %v1787 = vpop.f32.mrb[0].mxu0
        %v1788 = vpop.f32.mrb[0].mxu0
        %v1789 = vadd.f32 %v1713, %v1788
        %v1790 = vpop.f32.mrb[0].mxu0
        %1791 = vdwg.mxu0
        %v1793 = vlaneseq
        %v1794 = vshrl.u32 %v1793, 7
        %v1795 = vsub.s32 0, %v1794
        %v1796 = vrot.slane %v1520, %v1795
        %v1798 = vadd.f32 %v1762, %v1796
        %v1799 = vadd.f32 %v1765, %v1796
        %v1800 = vadd.f32 %v1770, %v1796
        %v1801 = vadd.f32 %v1773, %v1796
        %v1802 = vadd.f32 %v1778, %v1796
        %v1803 = vadd.f32 %v1781, %v1796
        %v1804 = vadd.f32 %v1786, %v1796
        %v1805 = vadd.f32 %v1789, %v1796
        %v1806 = vmul.f32 %v1798, 0.5
        %v1807 = vmul.f32 %v1799, 0.5
        %v1808 = vmul.f32 %v1800, 0.5
        %v1809 = vmul.f32 %v1801, 0.5
        %v1810 = vmul.f32 %v1802, 0.5
        %v1811 = vmul.f32 %v1803, 0.5
        %v1812 = vmul.f32 %v1804, 0.5
        %v1813 = vmul.f32 %v1805, 0.5
        %v1814 = vmul.f32 %v1798, 0.044715
        %v1815 = vmul.f32 %v1799, 0.044715
        %v1816 = vmul.f32 %v1800, 0.044715
        %v1817 = vmul.f32 %v1801, 0.044715
        %v1818 = vmul.f32 %v1802, 0.044715
        %v1819 = vmul.f32 %v1803, 0.044715
        %v1820 = vmul.f32 %v1804, 0.044715
        %v1821 = vmul.f32 %v1805, 0.044715
        %v1822 = vmul.f32 %v1814, %v1798
        %v1823 = vmul.f32 %v1815, %v1799
        %v1824 = vmul.f32 %v1816, %v1800
        %v1825 = vmul.f32 %v1817, %v1801
        %v1826 = vmul.f32 %v1818, %v1802
        %v1827 = vmul.f32 %v1819, %v1803
        %v1828 = vmul.f32 %v1820, %v1804
        %v1829 = vmul.f32 %v1821, %v1805
        %v1830 = vmul.f32 %v1822, %v1798
        %v1831 = vmul.f32 %v1823, %v1799
        %v1832 = vmul.f32 %v1824, %v1800
        %v1833 = vmul.f32 %v1825, %v1801
        %v1834 = vmul.f32 %v1826, %v1802
        %v1835 = vmul.f32 %v1827, %v1803
        %v1836 = vmul.f32 %v1828, %v1804
        %v1837 = vmul.f32 %v1829, %v1805
        %v1838 = vadd.f32 %v1798, %v1830
        %v1839 = vadd.f32 %v1799, %v1831
        %v1840 = vadd.f32 %v1800, %v1832
        %v1841 = vadd.f32 %v1801, %v1833
        %v1842 = vadd.f32 %v1802, %v1834
        %v1843 = vadd.f32 %v1803, %v1835
        %v1844 = vadd.f32 %v1804, %v1836
        %v1845 = vadd.f32 %v1805, %v1837
        %v1846 = vmul.f32 %v1838, 0.7978846
        %v1847 = vmul.f32 %v1839, 0.7978846
        %v1848 = vmul.f32 %v1840, 0.7978846
        %v1849 = vmul.f32 %v1841, 0.7978846
        %v1850 = vmul.f32 %v1842, 0.7978846
        %v1851 = vmul.f32 %v1843, 0.7978846
        %v1852 = vmul.f32 %v1844, 0.7978846
        %v1853 = vmul.f32 %v1845, 0.7978846
        %v1854 = vtanh.pop %v1846
        %v1855 = vtanh.pop %v1847
        %v1856 = vtanh.pop %v1848
        %v1857 = vtanh.pop %v1849
        %v1858 = vtanh.pop %v1850
        %v1859 = vtanh.pop %v1851
        %v1860 = vtanh.pop %v1852
        %v1861 = vtanh.pop %v1853
        %v1862 = vadd.f32 %v1854, 1.0
        %v1863 = vadd.f32 %v1855, 1.0
        %v1864 = vadd.f32 %v1856, 1.0
        %v1865 = vadd.f32 %v1857, 1.0
        %v1866 = vadd.f32 %v1858, 1.0
        %v1867 = vadd.f32 %v1859, 1.0
        %v1868 = vadd.f32 %v1860, 1.0
        %v1869 = vadd.f32 %v1861, 1.0
        %v1870 = vmul.f32 %v1806, %v1862
        %v1871 = vmul.f32 %v1807, %v1863
        %v1872 = vmul.f32 %v1808, %v1864
        %v1873 = vmul.f32 %v1809, %v1865
        %v1874 = vmul.f32 %v1810, %v1866
        %v1875 = vmul.f32 %v1811, %v1867
        %v1876 = vmul.f32 %v1812, %v1868
        %v1877 = vmul.f32 %v1813, %v1869
        %v1878 = vld [vmem:[#allocation13] sm:$0x1]
        %v1879 = vpack.c.bf16 %v1871, %v1870
        %v1880 = vpack.c.bf16 %v1873, %v1872
        %v1881 = vpack.c.bf16 %v1875, %v1874
        %v1882 = vpack.c.bf16 %v1877, %v1876
        %v1887 = vunpack.c.l.b16 %v1879
        %v1888 = vunpack.c.h.b16 %v1879
        %v1889 = vunpack.c.l.b16 %v1880
        %v1890 = vunpack.c.h.b16 %v1880
        %v1891 = vunpack.c.l.b16 %v1881
        %v1892 = vunpack.c.h.b16 %v1881
        %v1893 = vunpack.c.l.b16 %v1882
        %v1894 = vunpack.c.h.b16 %v1882
        %v1895 = vpack.c.b16 %v1887, %v1887
        %v1896 = vpack.c.b16 %v1888, %v1888
        %v1897 = vpack.c.b16 %v1889, %v1889
        %v1898 = vpack.c.b16 %v1890, %v1890
        %v1899 = vpack.c.b16 %v1891, %v1891
        %v1900 = vpack.c.b16 %v1892, %v1892
        %v1901 = vpack.c.b16 %v1893, %v1893
        %v1902 = vpack.c.b16 %v1894, %v1894
        %1911 = vst.msk [vmem:[#allocation2] sm:$0xf] %vm1553, %v1895
        %1912 = vst.msk [vmem:[#allocation2 + $0x4] sm:$0xf] %vm1553, %v1896
        %1913 = vst.msk [vmem:[#allocation2 + $0x8] sm:$0xf] %vm1553, %v1897
        %1914 = vst.msk [vmem:[#allocation2 + $0xc] sm:$0xf] %vm1553, %v1898
        %1915 = vst.msk [vmem:[#allocation2 + $0x10] sm:$0xf] %vm1553, %v1899
        %1916 = vst.msk [vmem:[#allocation2 + $0x14] sm:$0xf] %vm1553, %v1900
        %1917 = vst.msk [vmem:[#allocation2 + $0x18] sm:$0xf] %vm1553, %v1901
        %1918 = vst.msk [vmem:[#allocation2 + $0x1c] sm:$0xf] %vm1553, %v1902
        %v1919 = vld [vmem:[#allocation2] sm:$0xf]
        %v1920 = vld [vmem:[#allocation2 + $0x4] sm:$0xf]
        %v1921 = vld [vmem:[#allocation2 + $0x8] sm:$0xf]
        %v1922 = vld [vmem:[#allocation2 + $0xc] sm:$0xf]
        %v1923 = vld [vmem:[#allocation2 + $0x10] sm:$0xf]
        %v1924 = vld [vmem:[#allocation2 + $0x14] sm:$0xf]
        %v1925 = vld [vmem:[#allocation2 + $0x18] sm:$0xf]
        %v1926 = vld [vmem:[#allocation2 + $0x1c] sm:$0xf]
        %v1927 = vld [vmem:[#allocation2 + $0x20] sm:$0x1]
        %v1928 = vld [vmem:[#allocation11] sm:$0xf]
        %s1929 = scalar_lea.vmem [#allocation11], 4
        %v1930 = vld [vmem:[%s1929] sm:$0xf]
        %v1940 = vunpack.c.l.b16 %v1919
        %v1941 = vunpack.c.l.b16 %v1920
        %v1942 = vunpack.c.l.b16 %v1921
        %v1943 = vunpack.c.l.b16 %v1922
        %v1944 = vunpack.c.l.b16 %v1923
        %v1945 = vunpack.c.l.b16 %v1924
        %v1946 = vunpack.c.l.b16 %v1925
        %v1947 = vunpack.c.l.b16 %v1926
        %v1948 = vunpack.c.l.b16 %v1927
        %v1949 = vpack.c.b16 %v1941, %v1940
        %v1950 = vpack.c.b16 %v1943, %v1942
        %v1951 = vpack.c.b16 %v1945, %v1944
        %v1952 = vpack.c.b16 %v1947, %v1946
        %v1953 = vpack.c.b16 %v1948, %v1948
        %v1955 = vshrl.u32 %v1949, 16
        %v1957 = vshll.u32 %v1949, 16
        %v1959 = vrot.slane %v1957, 1
        %v1960 = vor.u32 %v1955, %v1959
        %v1962 = vshll.u32 %v1950, 16
        %v1964 = vrot.slane %v1962, 1
        %v1965 = vsel %vm1597, %v1960, %v1964
        %v1966 = vshrl.u32 %v1950, 16
        %v1968 = vor.u32 %v1966, %v1964
        %v1970 = vshll.u32 %v1951, 16
        %v1972 = vrot.slane %v1970, 1
        %v1973 = vsel %vm1597, %v1968, %v1972
        %v1974 = vshrl.u32 %v1951, 16
        %v1976 = vor.u32 %v1974, %v1972
        %v1978 = vshll.u32 %v1952, 16
        %v1980 = vrot.slane %v1978, 1
        %v1981 = vsel %vm1597, %v1976, %v1980
        %v1982 = vshrl.u32 %v1952, 16
        %v1984 = vor.u32 %v1982, %v1980
        %v1986 = vshll.u32 %v1953, 16
        %v1988 = vrot.slane %v1986, 1
        %v1989 = vsel %vm1597, %v1984, %v1988
        %v1991 = vsel %vm1634, %v1965, 0
        %v1994 = vsel %vm1634, %v1973, 0
        %v1997 = vsel %vm1634, %v1981, 0
        %v2000 = vsel %vm1634, %v1989, 0
        %v2003 = vsel %vm1647, %v1930, 0
        %2005 = vmatprep.subr.bf16.mxu0 0
        %2006 = vmatpush1.bf16.msra.mxu0 %v2003
        %2007 = vmatprep.subr.bf16.mxu0 0
        %2008 = vmatpush1.bf16.msra.mxu0 0
        %2009 = vmatprep.subr.bf16.mxu0 0
        %2010 = vmatpush1.bf16.msra.mxu0 0
        %2011 = vmatprep.subr.bf16.mxu0 0
        %2012 = vmatpush1.bf16.msra.mxu0 0
        %2013 = vmatprep.subr.bf16.mxu0 0
        %2014 = vmatpush1.bf16.msra.mxu0 0
        %2015 = vmatprep.subr.bf16.mxu0 0
        %2016 = vmatpush1.bf16.msra.mxu0 0
        %2017 = vmatprep.subr.bf16.mxu0 0
        %2018 = vmatpush1.bf16.msra.mxu0 0
        %2019 = vmatprep.subr.bf16.mxu0 0
        %2020 = vmatpush1.bf16.msra.mxu0 0
        %2021 = vmatprep.subr.bf16.mxu0 0
        %2022 = vmatpush1.bf16.msra.mxu0 0
        %2023 = vmatprep.subr.bf16.mxu0 0
        %2024 = vmatpush1.bf16.msra.mxu0 0
        %2025 = vmatprep.subr.bf16.mxu0 0
        %2026 = vmatpush1.bf16.msra.mxu0 0
        %2027 = vmatprep.subr.bf16.mxu0 0
        %2028 = vmatpush1.bf16.msra.mxu0 0
        %2029 = vmatprep.subr.bf16.mxu0 0
        %2030 = vmatpush1.bf16.msra.mxu0 0
        %2031 = vmatprep.subr.bf16.mxu0 0
        %2032 = vmatpush1.bf16.msra.mxu0 0
        %2033 = vmatprep.subr.bf16.mxu0 0
        %2034 = vmatpush1.bf16.msra.mxu0 0
        %2035 = vmatprep.subr.bf16.mxu0 0
        %2036 = vmatpush1.bf16.msra.mxu0 0
        %2037 = vmatprep.mubr.bf16.mxu0 0
        %2038 = vmatmul.mubr.bf16.gmra.mrb[0].mxu0 %v1991
        %v2039 = vpop.f32.mrb[0].mxu0
        %v2040 = vadd.f32 0.0, %v2039
        %v2041 = vpop.f32.mrb[0].mxu0
        %v2042 = vpop.f32.mrb[0].mxu0
        %v2043 = vadd.f32 0.0, %v2042
        %v2044 = vpop.f32.mrb[0].mxu0
        %2045 = vmatprep.mubr.bf16.mxu0 0
        %2046 = vmatmul.mubr.bf16.gmra.mrb[0].mxu0 %v1994
        %v2047 = vpop.f32.mrb[0].mxu0
        %v2048 = vadd.f32 0.0, %v2047
        %v2049 = vpop.f32.mrb[0].mxu0
        %v2050 = vpop.f32.mrb[0].mxu0
        %v2051 = vadd.f32 0.0, %v2050
        %v2052 = vpop.f32.mrb[0].mxu0
        %2053 = vmatprep.mubr.bf16.mxu0 0
        %2054 = vmatmul.mubr.bf16.gmra.mrb[0].mxu0 %v1997
        %v2055 = vpop.f32.mrb[0].mxu0
        %v2056 = vadd.f32 0.0, %v2055
        %v2057 = vpop.f32.mrb[0].mxu0
        %v2058 = vpop.f32.mrb[0].mxu0
        %v2059 = vadd.f32 0.0, %v2058
        %v2060 = vpop.f32.mrb[0].mxu0
        %2061 = vmatprep.mubr.bf16.mxu0 0
        %2062 = vmatmul.mubr.bf16.gmra.mrb[0].mxu0 %v2000
        %v2063 = vpop.f32.mrb[0].mxu0
        %v2064 = vadd.f32 0.0, %v2063
        %v2065 = vpop.f32.mrb[0].mxu0
        %v2066 = vpop.f32.mrb[0].mxu0
        %v2067 = vadd.f32 0.0, %v2066
        %v2068 = vpop.f32.mrb[0].mxu0
        %2069 = vdwg.mxu0
        %v2070 = vsel %vm1634, %v1949, 0
        %v2072 = vsel %vm1634, %v1950, 0
        %v2074 = vsel %vm1634, %v1951, 0
        %v2076 = vsel %vm1634, %v1952, 0
        %v2079 = vsel %vm1647, %v1928, 0
        %2081 = vmatprep.subr.bf16.mxu0 0
        %2082 = vmatpush1.bf16.msra.mxu0 %v2079
        %2083 = vmatprep.subr.bf16.mxu0 0
        %2084 = vmatpush1.bf16.msra.mxu0 0
        %2085 = vmatprep.subr.bf16.mxu0 0
        %2086 = vmatpush1.bf16.msra.mxu0 0
        %2087 = vmatprep.subr.bf16.mxu0 0
        %2088 = vmatpush1.bf16.msra.mxu0 0
        %2089 = vmatprep.subr.bf16.mxu0 0
        %2090 = vmatpush1.bf16.msra.mxu0 0
        %2091 = vmatprep.subr.bf16.mxu0 0
        %2092 = vmatpush1.bf16.msra.mxu0 0
        %2093 = vmatprep.subr.bf16.mxu0 0
        %2094 = vmatpush1.bf16.msra.mxu0 0
        %2095 = vmatprep.subr.bf16.mxu0 0
        %2096 = vmatpush1.bf16.msra.mxu0 0
        %2097 = vmatprep.subr.bf16.mxu0 0
        %2098 = vmatpush1.bf16.msra.mxu0 0
        %2099 = vmatprep.subr.bf16.mxu0 0
        %2100 = vmatpush1.bf16.msra.mxu0 0
        %2101 = vmatprep.subr.bf16.mxu0 0
        %2102 = vmatpush1.bf16.msra.mxu0 0
        %2103 = vmatprep.subr.bf16.mxu0 0
        %2104 = vmatpush1.bf16.msra.mxu0 0
        %2105 = vmatprep.subr.bf16.mxu0 0
        %2106 = vmatpush1.bf16.msra.mxu0 0
        %2107 = vmatprep.subr.bf16.mxu0 0
        %2108 = vmatpush1.bf16.msra.mxu0 0
        %2109 = vmatprep.subr.bf16.mxu0 0
        %2110 = vmatpush1.bf16.msra.mxu0 0
        %2111 = vmatprep.subr.bf16.mxu0 0
        %2112 = vmatpush1.bf16.msra.mxu0 0
        %2113 = vmatprep.mubr.bf16.mxu0 0
        %2114 = vmatmul.mubr.bf16.gmra.mrb[0].mxu0 %v2070
        %v2115 = vpop.f32.mrb[0].mxu0
        %v2116 = vadd.f32 %v2040, %v2115
        %v2117 = vpop.f32.mrb[0].mxu0
        %v2118 = vpop.f32.mrb[0].mxu0
        %v2119 = vadd.f32 %v2043, %v2118
        %v2120 = vpop.f32.mrb[0].mxu0
        %2121 = vmatprep.mubr.bf16.mxu0 0
        %2122 = vmatmul.mubr.bf16.gmra.mrb[0].mxu0 %v2072
        %v2123 = vpop.f32.mrb[0].mxu0
        %v2124 = vadd.f32 %v2048, %v2123
        %v2125 = vpop.f32.mrb[0].mxu0
        %v2126 = vpop.f32.mrb[0].mxu0
        %v2127 = vadd.f32 %v2051, %v2126
        %v2128 = vpop.f32.mrb[0].mxu0
        %2129 = vmatprep.mubr.bf16.mxu0 0
        %2130 = vmatmul.mubr.bf16.gmra.mrb[0].mxu0 %v2074
        %v2131 = vpop.f32.mrb[0].mxu0
        %v2132 = vadd.f32 %v2056, %v2131
        %v2133 = vpop.f32.mrb[0].mxu0
        %v2134 = vpop.f32.mrb[0].mxu0
        %v2135 = vadd.f32 %v2059, %v2134
        %v2136 = vpop.f32.mrb[0].mxu0
        %2137 = vmatprep.mubr.bf16.mxu0 0
        %2138 = vmatmul.mubr.bf16.gmra.mrb[0].mxu0 %v2076
        %v2139 = vpop.f32.mrb[0].mxu0
        %v2140 = vadd.f32 %v2064, %v2139
        %v2141 = vpop.f32.mrb[0].mxu0
        %v2142 = vpop.f32.mrb[0].mxu0
        %v2143 = vadd.f32 %v2067, %v2142
        %v2144 = vpop.f32.mrb[0].mxu0
        %2145 = vdwg.mxu0
        %v2147 = vlaneseq
        %v2148 = vshrl.u32 %v2147, 7
        %v2149 = vsub.s32 0, %v2148
        %v2150 = vrot.slane %v1878, %v2149
        %v2152 = vadd.f32 %v2116, %v2150
        %v2153 = vadd.f32 %v2119, %v2150
        %v2154 = vadd.f32 %v2124, %v2150
        %v2155 = vadd.f32 %v2127, %v2150
        %v2156 = vadd.f32 %v2132, %v2150
        %v2157 = vadd.f32 %v2135, %v2150
        %v2158 = vadd.f32 %v2140, %v2150
        %v2159 = vadd.f32 %v2143, %v2150
        %v2160 = vmul.f32 %v2152, 0.5
        %v2161 = vmul.f32 %v2153, 0.5
        %v2162 = vmul.f32 %v2154, 0.5
        %v2163 = vmul.f32 %v2155, 0.5
        %v2164 = vmul.f32 %v2156, 0.5
        %v2165 = vmul.f32 %v2157, 0.5
        %v2166 = vmul.f32 %v2158, 0.5
        %v2167 = vmul.f32 %v2159, 0.5
        %v2168 = vmul.f32 %v2152, 0.044715
        %v2169 = vmul.f32 %v2153, 0.044715
        %v2170 = vmul.f32 %v2154, 0.044715
        %v2171 = vmul.f32 %v2155, 0.044715
        %v2172 = vmul.f32 %v2156, 0.044715
        %v2173 = vmul.f32 %v2157, 0.044715
        %v2174 = vmul.f32 %v2158, 0.044715
        %v2175 = vmul.f32 %v2159, 0.044715
        %v2176 = vmul.f32 %v2168, %v2152
        %v2177 = vmul.f32 %v2169, %v2153
        %v2178 = vmul.f32 %v2170, %v2154
        %v2179 = vmul.f32 %v2171, %v2155
        %v2180 = vmul.f32 %v2172, %v2156
        %v2181 = vmul.f32 %v2173, %v2157
        %v2182 = vmul.f32 %v2174, %v2158
        %v2183 = vmul.f32 %v2175, %v2159
        %v2184 = vmul.f32 %v2176, %v2152
        %v2185 = vmul.f32 %v2177, %v2153
        %v2186 = vmul.f32 %v2178, %v2154
        %v2187 = vmul.f32 %v2179, %v2155
        %v2188 = vmul.f32 %v2180, %v2156
        %v2189 = vmul.f32 %v2181, %v2157
        %v2190 = vmul.f32 %v2182, %v2158
        %v2191 = vmul.f32 %v2183, %v2159
        %v2192 = vadd.f32 %v2152, %v2184
        %v2193 = vadd.f32 %v2153, %v2185
        %v2194 = vadd.f32 %v2154, %v2186
        %v2195 = vadd.f32 %v2155, %v2187
        %v2196 = vadd.f32 %v2156, %v2188
        %v2197 = vadd.f32 %v2157, %v2189
        %v2198 = vadd.f32 %v2158, %v2190
        %v2199 = vadd.f32 %v2159, %v2191
        %v2200 = vmul.f32 %v2192, 0.7978846
        %v2201 = vmul.f32 %v2193, 0.7978846
        %v2202 = vmul.f32 %v2194, 0.7978846
        %v2203 = vmul.f32 %v2195, 0.7978846
        %v2204 = vmul.f32 %v2196, 0.7978846
        %v2205 = vmul.f32 %v2197, 0.7978846
        %v2206 = vmul.f32 %v2198, 0.7978846
        %v2207 = vmul.f32 %v2199, 0.7978846
        %v2208 = vtanh.pop %v2200
        %v2209 = vtanh.pop %v2201
        %v2210 = vtanh.pop %v2202
        %v2211 = vtanh.pop %v2203
        %v2212 = vtanh.pop %v2204
        %v2213 = vtanh.pop %v2205
        %v2214 = vtanh.pop %v2206
        %v2215 = vtanh.pop %v2207
        %v2216 = vadd.f32 %v2208, 1.0
        %v2217 = vadd.f32 %v2209, 1.0
        %v2218 = vadd.f32 %v2210, 1.0
        %v2219 = vadd.f32 %v2211, 1.0
        %v2220 = vadd.f32 %v2212, 1.0
        %v2221 = vadd.f32 %v2213, 1.0
        %v2222 = vadd.f32 %v2214, 1.0
        %v2223 = vadd.f32 %v2215, 1.0
        %v2224 = vmul.f32 %v2160, %v2216
        %v2225 = vmul.f32 %v2161, %v2217
        %v2226 = vmul.f32 %v2162, %v2218
        %v2227 = vmul.f32 %v2163, %v2219
        %v2228 = vmul.f32 %v2164, %v2220
        %v2229 = vmul.f32 %v2165, %v2221
        %v2230 = vmul.f32 %v2166, %v2222
        %v2231 = vmul.f32 %v2167, %v2223
        %v2232 = vsub.f32 0.0, %v2224
        %v2233 = vsub.f32 0.0, %v2225
        %v2234 = vsub.f32 0.0, %v2226
        %v2235 = vsub.f32 0.0, %v2227
        %v2236 = vsub.f32 0.0, %v2228
        %v2237 = vsub.f32 0.0, %v2229
        %v2238 = vsub.f32 0.0, %v2230
        %v2239 = vsub.f32 0.0, %v2231
        %v2240 = vmul.f32 %v2232, 1.442695
        %v2241 = vpow.pop %v2240
        %v2242 = vmul.f32 %v2233, 1.442695
        %v2243 = vpow.pop %v2242
        %v2244 = vmul.f32 %v2234, 1.442695
        %v2245 = vpow.pop %v2244
        %v2246 = vmul.f32 %v2235, 1.442695
        %v2247 = vpow.pop %v2246
        %v2248 = vmul.f32 %v2236, 1.442695
        %v2249 = vpow.pop %v2248
        %v2250 = vmul.f32 %v2237, 1.442695
        %v2251 = vpow.pop %v2250
        %v2252 = vmul.f32 %v2238, 1.442695
        %v2253 = vpow.pop %v2252
        %v2254 = vmul.f32 %v2239, 1.442695
        %v2255 = vpow.pop %v2254
        %v2256 = vadd.f32 %v2241, 1.0
        %v2257 = vadd.f32 %v2243, 1.0
        %v2258 = vadd.f32 %v2245, 1.0
        %v2259 = vadd.f32 %v2247, 1.0
        %v2260 = vadd.f32 %v2249, 1.0
        %v2261 = vadd.f32 %v2251, 1.0
        %v2262 = vadd.f32 %v2253, 1.0
        %v2263 = vadd.f32 %v2255, 1.0
        %v2264 = vrcp.pop %v2256
        %v2265 = vrcp.pop %v2257
        %v2266 = vrcp.pop %v2258
        %v2267 = vrcp.pop %v2259
        %v2268 = vrcp.pop %v2260
        %v2269 = vrcp.pop %v2261
        %v2270 = vrcp.pop %v2262
        %v2271 = vrcp.pop %v2263
        %v2272 = vmul.f32 %v1506, %v2264
        %v2273 = vmul.f32 %v1507, %v2265
        %v2274 = vmul.f32 %v1508, %v2266
        %v2275 = vmul.f32 %v1509, %v2267
        %v2276 = vmul.f32 %v1510, %v2268
        %v2277 = vmul.f32 %v1511, %v2269
        %v2278 = vmul.f32 %v1512, %v2270
        %v2279 = vmul.f32 %v1513, %v2271
        %2288 = vrot.lane.b32.xlu0 %v1506, 8
        %v2289 = vpop.permute.xlu0 %2288
        %2290 = vrot.lane.b32.xlu0 %v1507, 8
        %v2291 = vpop.permute.xlu0 %2290
        %2292 = vrot.lane.b32.xlu0 %v1508, 8
        %v2293 = vpop.permute.xlu0 %2292
        %2294 = vrot.lane.b32.xlu0 %v1509, 8
        %v2295 = vpop.permute.xlu0 %2294
        %2296 = vrot.lane.b32.xlu0 %v1510, 8
        %v2297 = vpop.permute.xlu0 %2296
        %2298 = vrot.lane.b32.xlu0 %v1511, 8
        %v2299 = vpop.permute.xlu0 %2298
        %2300 = vrot.lane.b32.xlu0 %v1512, 8
        %v2301 = vpop.permute.xlu0 %2300
        %2302 = vrot.lane.b32.xlu0 %v1513, 8
        %v2303 = vpop.permute.xlu0 %2302
        %v2312 = vsel %vm1634, %v2272, %v2289
        %v2313 = vsel %vm1634, %v2273, %v2291
        %v2314 = vsel %vm1634, %v2274, %v2293
        %v2315 = vsel %vm1634, %v2275, %v2295
        %v2316 = vsel %vm1634, %v2276, %v2297
        %v2317 = vsel %vm1634, %v2277, %v2299
        %v2318 = vsel %vm1634, %v2278, %v2301
        %v2319 = vsel %vm1634, %v2279, %v2303
        %v2320 = vpack.c.bf16 %v2313, %v2312
        %v2321 = vpack.c.bf16 %v2315, %v2314
        %v2322 = vpack.c.bf16 %v2317, %v2316
        %v2323 = vpack.c.bf16 %v2319, %v2318
        %v2324 = vld [vmem:[%s11] sm:$0xf]
        %v2325 = vld [vmem:[%s11 + $0x4] sm:$0xf]
        %v2326 = vld [vmem:[#allocation14] sm:$0x1]
        %v2328 = vlaneseq
        %v2329 = vshrl.u32 %v2328, 7
        %v2330 = vsub.s32 0, %v2329
        %v2331 = vrot.slane %v2326, %v2330
        %v2335 = vunpack.c.l.b16 %v2324
        %v2336 = vunpack.c.l.b16 %v2325
        %v2337 = vpack.c.b16 %v2336, %v2335
        %vm2339 = vcmask 130048
        %v2341 = vsel %vm2339, %v2320, 0
        %v2344 = vsel %vm2339, %v2321, 0
        %v2347 = vsel %vm2339, %v2322, 0
        %v2350 = vsel %vm2339, %v2323, 0
        %2352 = vmatprep.subr.bf16.mxu0 0
        %2353 = vmatpush1.bf16.msra.mxu0 %v2337
        %2354 = vmatprep.subr.bf16.mxu0 0
        %2355 = vmatpush1.bf16.msra.mxu0 0
        %2356 = vmatprep.subr.bf16.mxu0 0
        %2357 = vmatpush1.bf16.msra.mxu0 0
        %2358 = vmatprep.subr.bf16.mxu0 0
        %2359 = vmatpush1.bf16.msra.mxu0 0
        %2360 = vmatprep.subr.bf16.mxu0 0
        %2361 = vmatpush1.bf16.msra.mxu0 0
        %2362 = vmatprep.subr.bf16.mxu0 0
        %2363 = vmatpush1.bf16.msra.mxu0 0
        %2364 = vmatprep.subr.bf16.mxu0 0
        %2365 = vmatpush1.bf16.msra.mxu0 0
        %2366 = vmatprep.subr.bf16.mxu0 0
        %2367 = vmatpush1.bf16.msra.mxu0 0
        %2368 = vmatprep.subr.bf16.mxu0 0
        %2369 = vmatpush1.bf16.msra.mxu0 0
        %2370 = vmatprep.subr.bf16.mxu0 0
        %2371 = vmatpush1.bf16.msra.mxu0 0
        %2372 = vmatprep.subr.bf16.mxu0 0
        %2373 = vmatpush1.bf16.msra.mxu0 0
        %2374 = vmatprep.subr.bf16.mxu0 0
        %2375 = vmatpush1.bf16.msra.mxu0 0
        %2376 = vmatprep.subr.bf16.mxu0 0
        %2377 = vmatpush1.bf16.msra.mxu0 0
        %2378 = vmatprep.subr.bf16.mxu0 0
        %2379 = vmatpush1.bf16.msra.mxu0 0
        %2380 = vmatprep.subr.bf16.mxu0 0
        %2381 = vmatpush1.bf16.msra.mxu0 0
        %2382 = vmatprep.subr.bf16.mxu0 0
        %2383 = vmatpush1.bf16.msra.mxu0 0
        %2384 = vmatprep.mubr.bf16.mxu0 0
        %2385 = vmatmul.mubr.bf16.gmra.mrb[0].mxu0 %v2341
        %v2386 = vpop.f32.mrb[0].mxu0
        %v2387 = vadd.f32 %v2331, %v2386
        %v2388 = vpop.f32.mrb[0].mxu0
        %v2389 = vpop.f32.mrb[0].mxu0
        %v2390 = vadd.f32 %v2331, %v2389
        %v2391 = vpop.f32.mrb[0].mxu0
        %2392 = vmatprep.mubr.bf16.mxu0 0
        %2393 = vmatmul.mubr.bf16.gmra.mrb[0].mxu0 %v2344
        %v2394 = vpop.f32.mrb[0].mxu0
        %v2395 = vadd.f32 %v2331, %v2394
        %v2396 = vpop.f32.mrb[0].mxu0
        %v2397 = vpop.f32.mrb[0].mxu0
        %v2398 = vadd.f32 %v2331, %v2397
        %v2399 = vpop.f32.mrb[0].mxu0
        %2400 = vmatprep.mubr.bf16.mxu0 0
        %2401 = vmatmul.mubr.bf16.gmra.mrb[0].mxu0 %v2347
        %v2402 = vpop.f32.mrb[0].mxu0
        %v2403 = vadd.f32 %v2331, %v2402
        %v2404 = vpop.f32.mrb[0].mxu0
        %v2405 = vpop.f32.mrb[0].mxu0
        %v2406 = vadd.f32 %v2331, %v2405
        %v2407 = vpop.f32.mrb[0].mxu0
        %2408 = vmatprep.mubr.bf16.mxu0 0
        %2409 = vmatmul.mubr.bf16.gmra.mrb[0].mxu0 %v2350
        %v2410 = vpop.f32.mrb[0].mxu0
        %v2411 = vadd.f32 %v2331, %v2410
        %v2412 = vpop.f32.mrb[0].mxu0
        %v2413 = vpop.f32.mrb[0].mxu0
        %v2414 = vadd.f32 %v2331, %v2413
        %v2415 = vpop.f32.mrb[0].mxu0
        %2416 = vdwg.mxu0
        %v2417 = vmax.f32 %v2387, 0.0
        %v2418 = vmax.f32 %v2390, 0.0
        %v2419 = vmax.f32 %v2395, 0.0
        %v2420 = vmax.f32 %v2398, 0.0
        %v2421 = vmax.f32 %v2403, 0.0
        %v2422 = vmax.f32 %v2406, 0.0
        %v2423 = vmax.f32 %v2411, 0.0
        %v2424 = vmax.f32 %v2414, 0.0
        %vm2425 = vcmask 31744
        %v2426 = vsel %vm2425, %v2417, 0.0
        %v2427 = vsel %vm2425, %v2418, 0.0
        %v2428 = vadd.f32 %v2426, %v2427
        %v2429 = vsel %vm2425, %v2419, 0.0
        %v2430 = vadd.f32 %v2428, %v2429
        %v2431 = vsel %vm2425, %v2420, 0.0
        %v2432 = vadd.f32 %v2430, %v2431
        %v2433 = vsel %vm2425, %v2421, 0.0
        %v2434 = vadd.f32 %v2432, %v2433
        %v2435 = vsel %vm2425, %v2422, 0.0
        %v2436 = vadd.f32 %v2434, %v2435
        %v2437 = vsel %vm2425, %v2423, 0.0
        %v2438 = vadd.f32 %v2436, %v2437
        %v2439 = vsel %vm2425, %v2424, 0.0
        %v2440 = vadd.f32 %v2438, %v2439
        %v2441 = vrot.slane %v2440, 4
        %v2442 = vadd.f32 %v2440, %v2441
        %v2443 = vrot.slane %v2442, 2
        %v2444 = vadd.f32 %v2442, %v2443
        %v2445 = vrot.slane %v2444, 1
        %v2446 = vadd.f32 %v2444, %v2445
        %v2447 = vrcp.pop 64.0
        %v2448 = vmul.f32 %v2446, %v2447
        %vm2449 = vcmask 125952
        %2450 = vst.msk [vmem:[#allocation3] sm:$0xf] %vm2449, 0
        %vm2451 = vcmask 122880
        %vm2452 = vmand %vm2451, %vm1515
        %v2453 = vld [vmem:[#allocation3 + $0x24] sm:$0x1]
        %v2454 = vsel %vm2452, 0, %v2453
        %2455 = vst [vmem:[#allocation3 + $0x24] sm:$0x1] %v2454
        %v2456 = vld [vmem:[#allocation17] sm:$0x1]
        %v2461 = vunpack.c.l.b16 %v2320
        %v2462 = vunpack.c.h.b16 %v2320
        %v2463 = vunpack.c.l.b16 %v2321
        %v2464 = vunpack.c.h.b16 %v2321
        %v2465 = vunpack.c.l.b16 %v2322
        %v2466 = vunpack.c.h.b16 %v2322
        %v2467 = vunpack.c.l.b16 %v2323
        %v2468 = vunpack.c.h.b16 %v2323
        %v2469 = vpack.c.b16 %v2461, %v2461
        %v2470 = vpack.c.b16 %v2462, %v2462
        %v2471 = vpack.c.b16 %v2463, %v2463
        %v2472 = vpack.c.b16 %v2464, %v2464
        %v2473 = vpack.c.b16 %v2465, %v2465
        %v2474 = vpack.c.b16 %v2466, %v2466
        %v2475 = vpack.c.b16 %v2467, %v2467
        %v2476 = vpack.c.b16 %v2468, %v2468
        %2485 = vst.msk [vmem:[#allocation3 + $0x4] sm:$0xf] %vm2449, %v2469
        %2486 = vst.msk [vmem:[#allocation3 + $0x8] sm:$0xf] %vm2449, %v2470
        %2487 = vst.msk [vmem:[#allocation3 + $0xc] sm:$0xf] %vm2449, %v2471
        %2488 = vst.msk [vmem:[#allocation3 + $0x10] sm:$0xf] %vm2449, %v2472
        %2489 = vst.msk [vmem:[#allocation3 + $0x14] sm:$0xf] %vm2449, %v2473
        %2490 = vst.msk [vmem:[#allocation3 + $0x18] sm:$0xf] %vm2449, %v2474
        %2491 = vst.msk [vmem:[#allocation3 + $0x1c] sm:$0xf] %vm2449, %v2475
        %2492 = vst.msk [vmem:[#allocation3 + $0x20] sm:$0xf] %vm2449, %v2476
        %v2493 = vld [vmem:[#allocation3] sm:$0x8]
        %v2494 = vld [vmem:[#allocation3 + $0x4] sm:$0xf]
        %v2495 = vld [vmem:[#allocation3 + $0x8] sm:$0xf]
        %v2496 = vld [vmem:[#allocation3 + $0xc] sm:$0xf]
        %v2497 = vld [vmem:[#allocation3 + $0x10] sm:$0xf]
        %v2498 = vld [vmem:[#allocation3 + $0x14] sm:$0xf]
        %v2499 = vld [vmem:[#allocation3 + $0x18] sm:$0xf]
        %v2500 = vld [vmem:[#allocation3 + $0x1c] sm:$0xf]
        %v2501 = vld [vmem:[#allocation3 + $0x20] sm:$0xf]
        %v2502 = vld [vmem:[#allocation3 + $0x24] sm:$0x1]
        %v2503 = vld [vmem:[#allocation16] sm:$0xf]
        %v2504 = vld [vmem:[#allocation16 + $0x4] sm:$0xf]
        %s2505 = scalar_lea.vmem [#allocation16], 8
        %v2506 = vld [vmem:[%s2505] sm:$0xf]
        %v2507 = vld [vmem:[%s2505 + $0x4] sm:$0xf]
        %v2517 = vunpack.c.l.b16 %v2494
        %v2518 = vunpack.c.l.b16 %v2495
        %v2519 = vunpack.c.l.b16 %v2496
        %v2520 = vunpack.c.l.b16 %v2497
        %v2521 = vunpack.c.l.b16 %v2498
        %v2522 = vunpack.c.l.b16 %v2499
        %v2523 = vunpack.c.l.b16 %v2500
        %v2524 = vunpack.c.l.b16 %v2501
        %v2525 = vunpack.c.l.b16 %v2502
        %v2526 = vpack.c.b16 %v2518, %v2517
        %v2527 = vpack.c.b16 %v2520, %v2519
        %v2528 = vpack.c.b16 %v2522, %v2521
        %v2529 = vpack.c.b16 %v2524, %v2523
        %v2530 = vpack.c.b16 %v2525, %v2525
        %v2532 = vshrl.u32 %v2526, 16
        %v2534 = vshll.u32 %v2526, 16
        %v2536 = vrot.slane %v2534, 1
        %v2537 = vor.u32 %v2532, %v2536
        %v2539 = vshll.u32 %v2527, 16
        %v2541 = vrot.slane %v2539, 1
        %v2542 = vsel %vm1597, %v2537, %v2541
        %v2543 = vshrl.u32 %v2527, 16
        %v2545 = vor.u32 %v2543, %v2541
        %v2547 = vshll.u32 %v2528, 16
        %v2549 = vrot.slane %v2547, 1
        %v2550 = vsel %vm1597, %v2545, %v2549
        %v2551 = vshrl.u32 %v2528, 16
        %v2553 = vor.u32 %v2551, %v2549
        %v2555 = vshll.u32 %v2529, 16
        %v2557 = vrot.slane %v2555, 1
        %v2558 = vsel %vm1597, %v2553, %v2557
        %v2559 = vshrl.u32 %v2529, 16
        %v2561 = vor.u32 %v2559, %v2557
        %v2563 = vshll.u32 %v2530, 16
        %v2565 = vrot.slane %v2563, 1
        %v2566 = vsel %vm1597, %v2561, %v2565
        %v2569 = vunpack.c.l.b16 %v2506
        %v2570 = vunpack.c.l.b16 %v2507
        %v2571 = vpack.c.b16 %v2570, %v2569
        %v2574 = vsel %vm2339, %v2542, 0
        %v2577 = vsel %vm2339, %v2550, 0
        %v2580 = vsel %vm2339, %v2558, 0
        %v2583 = vsel %vm2339, %v2566, 0
        %2585 = vmatprep.subr.bf16.mxu0 0
        %2586 = vmatpush1.bf16.msra.mxu0 %v2571
        %2587 = vmatprep.subr.bf16.mxu0 0
        %2588 = vmatpush1.bf16.msra.mxu0 0
        %2589 = vmatprep.subr.bf16.mxu0 0
        %2590 = vmatpush1.bf16.msra.mxu0 0
        %2591 = vmatprep.subr.bf16.mxu0 0
        %2592 = vmatpush1.bf16.msra.mxu0 0
        %2593 = vmatprep.subr.bf16.mxu0 0
        %2594 = vmatpush1.bf16.msra.mxu0 0
        %2595 = vmatprep.subr.bf16.mxu0 0
        %2596 = vmatpush1.bf16.msra.mxu0 0
        %2597 = vmatprep.subr.bf16.mxu0 0
        %2598 = vmatpush1.bf16.msra.mxu0 0
        %2599 = vmatprep.subr.bf16.mxu0 0
        %2600 = vmatpush1.bf16.msra.mxu0 0
        %2601 = vmatprep.subr.bf16.mxu0 0
        %2602 = vmatpush1.bf16.msra.mxu0 0
        %2603 = vmatprep.subr.bf16.mxu0 0
        %2604 = vmatpush1.bf16.msra.mxu0 0
        %2605 = vmatprep.subr.bf16.mxu0 0
        %2606 = vmatpush1.bf16.msra.mxu0 0
        %2607 = vmatprep.subr.bf16.mxu0 0
        %2608 = vmatpush1.bf16.msra.mxu0 0
        %2609 = vmatprep.subr.bf16.mxu0 0
        %2610 = vmatpush1.bf16.msra.mxu0 0
        %2611 = vmatprep.subr.bf16.mxu0 0
        %2612 = vmatpush1.bf16.msra.mxu0 0
        %2613 = vmatprep.subr.bf16.mxu0 0
        %2614 = vmatpush1.bf16.msra.mxu0 0
        %2615 = vmatprep.subr.bf16.mxu0 0
        %2616 = vmatpush1.bf16.msra.mxu0 0
        %2617 = vmatprep.mubr.bf16.mxu0 0
        %2618 = vmatmul.mubr.bf16.gmra.mrb[0].mxu0 %v2574
        %v2619 = vpop.f32.mrb[0].mxu0
        %v2620 = vadd.f32 0.0, %v2619
        %v2621 = vpop.f32.mrb[0].mxu0
        %v2622 = vpop.f32.mrb[0].mxu0
        %v2623 = vadd.f32 0.0, %v2622
        %v2624 = vpop.f32.mrb[0].mxu0
        %2625 = vmatprep.mubr.bf16.mxu0 0
        %2626 = vmatmul.mubr.bf16.gmra.mrb[0].mxu0 %v2577
        %v2627 = vpop.f32.mrb[0].mxu0
        %v2628 = vadd.f32 0.0, %v2627
        %v2629 = vpop.f32.mrb[0].mxu0
        %v2630 = vpop.f32.mrb[0].mxu0
        %v2631 = vadd.f32 0.0, %v2630
        %v2632 = vpop.f32.mrb[0].mxu0
        %2633 = vmatprep.mubr.bf16.mxu0 0
        %2634 = vmatmul.mubr.bf16.gmra.mrb[0].mxu0 %v2580
        %v2635 = vpop.f32.mrb[0].mxu0
        %v2636 = vadd.f32 0.0, %v2635
        %v2637 = vpop.f32.mrb[0].mxu0
        %v2638 = vpop.f32.mrb[0].mxu0
        %v2639 = vadd.f32 0.0, %v2638
        %v2640 = vpop.f32.mrb[0].mxu0
        %2641 = vmatprep.mubr.bf16.mxu0 0
        %2642 = vmatmul.mubr.bf16.gmra.mrb[0].mxu0 %v2583
        %v2643 = vpop.f32.mrb[0].mxu0
        %v2644 = vadd.f32 0.0, %v2643
        %v2645 = vpop.f32.mrb[0].mxu0
        %v2646 = vpop.f32.mrb[0].mxu0
        %v2647 = vadd.f32 0.0, %v2646
        %v2648 = vpop.f32.mrb[0].mxu0
        %2649 = vdwg.mxu0
        %v2651 = vunpack.c.l.b16 %v2493
        %v2652 = vpack.c.b16 %v2517, %v2651
        %v2653 = vpack.c.b16 %v2519, %v2518
        %v2654 = vpack.c.b16 %v2521, %v2520
        %v2655 = vpack.c.b16 %v2523, %v2522
        %v2656 = vpack.c.b16 %v2524, %v2524
        %vm2657 = vsmask.f32 4352
        %v2659 = vshrl.u32 %v2652, 16
        %v2661 = vrot.slane %v2659, 3
        %v2662 = vshll.u32 %v2652, 16
        %v2664 = vrot.slane %v2662, 4
        %v2665 = vor.u32 %v2661, %v2664
        %v2667 = vshrl.u32 %v2653, 16
        %v2669 = vrot.slane %v2667, 3
        %v2670 = vshll.u32 %v2653, 16
        %v2672 = vrot.slane %v2670, 4
        %v2673 = vor.u32 %v2669, %v2672
        %v2674 = vsel %vm2657, %v2665, %v2673
        %v2676 = vshrl.u32 %v2654, 16
        %v2678 = vrot.slane %v2676, 3
        %v2679 = vshll.u32 %v2654, 16
        %v2681 = vrot.slane %v2679, 4
        %v2682 = vor.u32 %v2678, %v2681
        %v2683 = vsel %vm2657, %v2673, %v2682
        %v2685 = vshrl.u32 %v2655, 16
        %v2687 = vrot.slane %v2685, 3
        %v2688 = vshll.u32 %v2655, 16
        %v2690 = vrot.slane %v2688, 4
        %v2691 = vor.u32 %v2687, %v2690
        %v2692 = vsel %vm2657, %v2682, %v2691
        %v2694 = vshrl.u32 %v2656, 16
        %v2696 = vrot.slane %v2694, 3
        %v2697 = vshll.u32 %v2656, 16
        %v2699 = vrot.slane %v2697, 4
        %v2700 = vor.u32 %v2696, %v2699
        %v2701 = vsel %vm2657, %v2691, %v2700
        %v2704 = vunpack.c.l.b16 %v2503
        %v2705 = vunpack.c.l.b16 %v2504
        %v2706 = vpack.c.b16 %v2705, %v2704
        %v2709 = vsel %vm2339, %v2674, 0
        %v2712 = vsel %vm2339, %v2683, 0
        %v2715 = vsel %vm2339, %v2692, 0
        %v2718 = vsel %vm2339, %v2701, 0
        %2720 = vmatprep.subr.bf16.mxu0 0
        %2721 = vmatpush1.bf16.msra.mxu0 %v2706
        %2722 = vmatprep.subr.bf16.mxu0 0
        %2723 = vmatpush1.bf16.msra.mxu0 0
        %2724 = vmatprep.subr.bf16.mxu0 0
        %2725 = vmatpush1.bf16.msra.mxu0 0
        %2726 = vmatprep.subr.bf16.mxu0 0
        %2727 = vmatpush1.bf16.msra.mxu0 0
        %2728 = vmatprep.subr.bf16.mxu0 0
        %2729 = vmatpush1.bf16.msra.mxu0 0
        %2730 = vmatprep.subr.bf16.mxu0 0
        %2731 = vmatpush1.bf16.msra.mxu0 0
        %2732 = vmatprep.subr.bf16.mxu0 0
        %2733 = vmatpush1.bf16.msra.mxu0 0
        %2734 = vmatprep.subr.bf16.mxu0 0
        %2735 = vmatpush1.bf16.msra.mxu0 0
        %2736 = vmatprep.subr.bf16.mxu0 0
        %2737 = vmatpush1.bf16.msra.mxu0 0
        %2738 = vmatprep.subr.bf16.mxu0 0
        %2739 = vmatpush1.bf16.msra.mxu0 0
        %2740 = vmatprep.subr.bf16.mxu0 0
        %2741 = vmatpush1.bf16.msra.mxu0 0
        %2742 = vmatprep.subr.bf16.mxu0 0
        %2743 = vmatpush1.bf16.msra.mxu0 0
        %2744 = vmatprep.subr.bf16.mxu0 0
        %2745 = vmatpush1.bf16.msra.mxu0 0
        %2746 = vmatprep.subr.bf16.mxu0 0
        %2747 = vmatpush1.bf16.msra.mxu0 0
        %2748 = vmatprep.subr.bf16.mxu0 0
        %2749 = vmatpush1.bf16.msra.mxu0 0
        %2750 = vmatprep.subr.bf16.mxu0 0
        %2751 = vmatpush1.bf16.msra.mxu0 0
        %2752 = vmatprep.mubr.bf16.mxu0 0
        %2753 = vmatmul.mubr.bf16.gmra.mrb[0].mxu0 %v2709
        %v2754 = vpop.f32.mrb[0].mxu0
        %v2755 = vadd.f32 %v2620, %v2754
        %v2756 = vpop.f32.mrb[0].mxu0
        %v2757 = vpop.f32.mrb[0].mxu0
        %v2758 = vadd.f32 %v2623, %v2757
        %v2759 = vpop.f32.mrb[0].mxu0
        %2760 = vmatprep.mubr.bf16.mxu0 0
        %2761 = vmatmul.mubr.bf16.gmra.mrb[0].mxu0 %v2712
        %v2762 = vpop.f32.mrb[0].mxu0
        %v2763 = vadd.f32 %v2628, %v2762
        %v2764 = vpop.f32.mrb[0].mxu0
        %v2765 = vpop.f32.mrb[0].mxu0
        %v2766 = vadd.f32 %v2631, %v2765
        %v2767 = vpop.f32.mrb[0].mxu0
        %2768 = vmatprep.mubr.bf16.mxu0 0
        %2769 = vmatmul.mubr.bf16.gmra.mrb[0].mxu0 %v2715
        %v2770 = vpop.f32.mrb[0].mxu0
        %v2771 = vadd.f32 %v2636, %v2770
        %v2772 = vpop.f32.mrb[0].mxu0
        %v2773 = vpop.f32.mrb[0].mxu0
        %v2774 = vadd.f32 %v2639, %v2773
        %v2775 = vpop.f32.mrb[0].mxu0
        %2776 = vmatprep.mubr.bf16.mxu0 0
        %2777 = vmatmul.mubr.bf16.gmra.mrb[0].mxu0 %v2718
        %v2778 = vpop.f32.mrb[0].mxu0
        %v2779 = vadd.f32 %v2644, %v2778
        %v2780 = vpop.f32.mrb[0].mxu0
        %v2781 = vpop.f32.mrb[0].mxu0
        %v2782 = vadd.f32 %v2647, %v2781
        %v2783 = vpop.f32.mrb[0].mxu0
        %2784 = vdwg.mxu0
        %v2786 = vlaneseq
        %v2787 = vshrl.u32 %v2786, 7
        %v2788 = vsub.s32 0, %v2787
        %v2789 = vrot.slane %v2456, %v2788
        %v2791 = vadd.f32 %v2755, %v2789
        %v2792 = vadd.f32 %v2758, %v2789
        %v2793 = vadd.f32 %v2763, %v2789
        %v2794 = vadd.f32 %v2766, %v2789
        %v2795 = vadd.f32 %v2771, %v2789
        %v2796 = vadd.f32 %v2774, %v2789
        %v2797 = vadd.f32 %v2779, %v2789
        %v2798 = vadd.f32 %v2782, %v2789
        %v2799 = vmul.f32 %v2791, 0.5
        %v2800 = vmul.f32 %v2792, 0.5
        %v2801 = vmul.f32 %v2793, 0.5
        %v2802 = vmul.f32 %v2794, 0.5
        %v2803 = vmul.f32 %v2795, 0.5
        %v2804 = vmul.f32 %v2796, 0.5
        %v2805 = vmul.f32 %v2797, 0.5
        %v2806 = vmul.f32 %v2798, 0.5
        %v2807 = vmul.f32 %v2791, 0.044715
        %v2808 = vmul.f32 %v2792, 0.044715
        %v2809 = vmul.f32 %v2793, 0.044715
        %v2810 = vmul.f32 %v2794, 0.044715
        %v2811 = vmul.f32 %v2795, 0.044715
        %v2812 = vmul.f32 %v2796, 0.044715
        %v2813 = vmul.f32 %v2797, 0.044715
        %v2814 = vmul.f32 %v2798, 0.044715
        %v2815 = vmul.f32 %v2807, %v2791
        %v2816 = vmul.f32 %v2808, %v2792
        %v2817 = vmul.f32 %v2809, %v2793
        %v2818 = vmul.f32 %v2810, %v2794
        %v2819 = vmul.f32 %v2811, %v2795
        %v2820 = vmul.f32 %v2812, %v2796
        %v2821 = vmul.f32 %v2813, %v2797
        %v2822 = vmul.f32 %v2814, %v2798
        %v2823 = vmul.f32 %v2815, %v2791
        %v2824 = vmul.f32 %v2816, %v2792
        %v2825 = vmul.f32 %v2817, %v2793
        %v2826 = vmul.f32 %v2818, %v2794
        %v2827 = vmul.f32 %v2819, %v2795
        %v2828 = vmul.f32 %v2820, %v2796
        %v2829 = vmul.f32 %v2821, %v2797
        %v2830 = vmul.f32 %v2822, %v2798
        %v2831 = vadd.f32 %v2791, %v2823
        %v2832 = vadd.f32 %v2792, %v2824
        %v2833 = vadd.f32 %v2793, %v2825
        %v2834 = vadd.f32 %v2794, %v2826
        %v2835 = vadd.f32 %v2795, %v2827
        %v2836 = vadd.f32 %v2796, %v2828
        %v2837 = vadd.f32 %v2797, %v2829
        %v2838 = vadd.f32 %v2798, %v2830
        %v2839 = vmul.f32 %v2831, 0.7978846
        %v2840 = vmul.f32 %v2832, 0.7978846
        %v2841 = vmul.f32 %v2833, 0.7978846
        %v2842 = vmul.f32 %v2834, 0.7978846
        %v2843 = vmul.f32 %v2835, 0.7978846
        %v2844 = vmul.f32 %v2836, 0.7978846
        %v2845 = vmul.f32 %v2837, 0.7978846
        %v2846 = vmul.f32 %v2838, 0.7978846
        %v2847 = vtanh.pop %v2839
        %v2848 = vtanh.pop %v2840
        %v2849 = vtanh.pop %v2841
        %v2850 = vtanh.pop %v2842
        %v2851 = vtanh.pop %v2843
        %v2852 = vtanh.pop %v2844
        %v2853 = vtanh.pop %v2845
        %v2854 = vtanh.pop %v2846
        %v2855 = vadd.f32 %v2847, 1.0
        %v2856 = vadd.f32 %v2848, 1.0
        %v2857 = vadd.f32 %v2849, 1.0
        %v2858 = vadd.f32 %v2850, 1.0
        %v2859 = vadd.f32 %v2851, 1.0
        %v2860 = vadd.f32 %v2852, 1.0
        %v2861 = vadd.f32 %v2853, 1.0
        %v2862 = vadd.f32 %v2854, 1.0
        %v2863 = vmul.f32 %v2799, %v2855
        %v2864 = vmul.f32 %v2800, %v2856
        %v2865 = vmul.f32 %v2801, %v2857
        %v2866 = vmul.f32 %v2802, %v2858
        %v2867 = vmul.f32 %v2803, %v2859
        %v2868 = vmul.f32 %v2804, %v2860
        %v2869 = vmul.f32 %v2805, %v2861
        %v2870 = vmul.f32 %v2806, %v2862
        %v2871 = vld [vmem:[#allocation20] sm:$0x1]
        %v2872 = vpack.c.bf16 %v2864, %v2863
        %v2873 = vpack.c.bf16 %v2866, %v2865
        %v2874 = vpack.c.bf16 %v2868, %v2867
        %v2875 = vpack.c.bf16 %v2870, %v2869
        %v2880 = vunpack.c.l.b16 %v2872
        %v2881 = vunpack.c.h.b16 %v2872
        %v2882 = vunpack.c.l.b16 %v2873
        %v2883 = vunpack.c.h.b16 %v2873
        %v2884 = vunpack.c.l.b16 %v2874
        %v2885 = vunpack.c.h.b16 %v2874
        %v2886 = vunpack.c.l.b16 %v2875
        %v2887 = vunpack.c.h.b16 %v2875
        %v2888 = vpack.c.b16 %v2880, %v2880
        %v2889 = vpack.c.b16 %v2881, %v2881
        %v2890 = vpack.c.b16 %v2882, %v2882
        %v2891 = vpack.c.b16 %v2883, %v2883
        %v2892 = vpack.c.b16 %v2884, %v2884
        %v2893 = vpack.c.b16 %v2885, %v2885
        %v2894 = vpack.c.b16 %v2886, %v2886
        %v2895 = vpack.c.b16 %v2887, %v2887
        %2904 = vst.msk [vmem:[#allocation3 + $0x4] sm:$0xf] %vm2449, %v2888
        %2905 = vst.msk [vmem:[#allocation3 + $0x8] sm:$0xf] %vm2449, %v2889
        %2906 = vst.msk [vmem:[#allocation3 + $0xc] sm:$0xf] %vm2449, %v2890
        %2907 = vst.msk [vmem:[#allocation3 + $0x10] sm:$0xf] %vm2449, %v2891
        %2908 = vst.msk [vmem:[#allocation3 + $0x14] sm:$0xf] %vm2449, %v2892
        %2909 = vst.msk [vmem:[#allocation3 + $0x18] sm:$0xf] %vm2449, %v2893
        %2910 = vst.msk [vmem:[#allocation3 + $0x1c] sm:$0xf] %vm2449, %v2894
        %2911 = vst.msk [vmem:[#allocation3 + $0x20] sm:$0xf] %vm2449, %v2895
        %v2912 = vld [vmem:[#allocation3] sm:$0x8]
        %v2913 = vld [vmem:[#allocation3 + $0x4] sm:$0xf]
        %v2914 = vld [vmem:[#allocation3 + $0x8] sm:$0xf]
        %v2915 = vld [vmem:[#allocation3 + $0xc] sm:$0xf]
        %v2916 = vld [vmem:[#allocation3 + $0x10] sm:$0xf]
        %v2917 = vld [vmem:[#allocation3 + $0x14] sm:$0xf]
        %v2918 = vld [vmem:[#allocation3 + $0x18] sm:$0xf]
        %v2919 = vld [vmem:[#allocation3 + $0x1c] sm:$0xf]
        %v2920 = vld [vmem:[#allocation3 + $0x20] sm:$0xf]
        %v2921 = vld [vmem:[#allocation3 + $0x24] sm:$0x1]
        %v2922 = vld [vmem:[#allocation19] sm:$0xf]
        %v2923 = vld [vmem:[#allocation19 + $0x4] sm:$0xf]
        %s2924 = scalar_lea.vmem [#allocation19], 8
        %v2925 = vld [vmem:[%s2924] sm:$0xf]
        %v2926 = vld [vmem:[%s2924 + $0x4] sm:$0xf]
        %v2936 = vunpack.c.l.b16 %v2913
        %v2937 = vunpack.c.l.b16 %v2914
        %v2938 = vunpack.c.l.b16 %v2915
        %v2939 = vunpack.c.l.b16 %v2916
        %v2940 = vunpack.c.l.b16 %v2917
        %v2941 = vunpack.c.l.b16 %v2918
        %v2942 = vunpack.c.l.b16 %v2919
        %v2943 = vunpack.c.l.b16 %v2920
        %v2944 = vunpack.c.l.b16 %v2921
        %v2945 = vpack.c.b16 %v2937, %v2936
        %v2946 = vpack.c.b16 %v2939, %v2938
        %v2947 = vpack.c.b16 %v2941, %v2940
        %v2948 = vpack.c.b16 %v2943, %v2942
        %v2949 = vpack.c.b16 %v2944, %v2944
        %v2951 = vshrl.u32 %v2945, 16
        %v2953 = vshll.u32 %v2945, 16
        %v2955 = vrot.slane %v2953, 1
        %v2956 = vor.u32 %v2951, %v2955
        %v2958 = vshll.u32 %v2946, 16
        %v2960 = vrot.slane %v2958, 1
        %v2961 = vsel %vm1597, %v2956, %v2960
        %v2962 = vshrl.u32 %v2946, 16
        %v2964 = vor.u32 %v2962, %v2960
        %v2966 = vshll.u32 %v2947, 16
        %v2968 = vrot.slane %v2966, 1
        %v2969 = vsel %vm1597, %v2964, %v2968
        %v2970 = vshrl.u32 %v2947, 16
        %v2972 = vor.u32 %v2970, %v2968
        %v2974 = vshll.u32 %v2948, 16
        %v2976 = vrot.slane %v2974, 1
        %v2977 = vsel %vm1597, %v2972, %v2976
        %v2978 = vshrl.u32 %v2948, 16
        %v2980 = vor.u32 %v2978, %v2976
        %v2982 = vshll.u32 %v2949, 16
        %v2984 = vrot.slane %v2982, 1
        %v2985 = vsel %vm1597, %v2980, %v2984
        %v2988 = vunpack.c.l.b16 %v2925
        %v2989 = vunpack.c.l.b16 %v2926
        %v2990 = vpack.c.b16 %v2989, %v2988
        %v2993 = vsel %vm2339, %v2961, 0
        %v2996 = vsel %vm2339, %v2969, 0
        %v2999 = vsel %vm2339, %v2977, 0
        %v3002 = vsel %vm2339, %v2985, 0
        %3004 = vmatprep.subr.bf16.mxu0 0
        %3005 = vmatpush1.bf16.msra.mxu0 %v2990
        %3006 = vmatprep.subr.bf16.mxu0 0
        %3007 = vmatpush1.bf16.msra.mxu0 0
        %3008 = vmatprep.subr.bf16.mxu0 0
        %3009 = vmatpush1.bf16.msra.mxu0 0
        %3010 = vmatprep.subr.bf16.mxu0 0
        %3011 = vmatpush1.bf16.msra.mxu0 0
        %3012 = vmatprep.subr.bf16.mxu0 0
        %3013 = vmatpush1.bf16.msra.mxu0 0
        %3014 = vmatprep.subr.bf16.mxu0 0
        %3015 = vmatpush1.bf16.msra.mxu0 0
        %3016 = vmatprep.subr.bf16.mxu0 0
        %3017 = vmatpush1.bf16.msra.mxu0 0
        %3018 = vmatprep.subr.bf16.mxu0 0
        %3019 = vmatpush1.bf16.msra.mxu0 0
        %3020 = vmatprep.subr.bf16.mxu0 0
        %3021 = vmatpush1.bf16.msra.mxu0 0
        %3022 = vmatprep.subr.bf16.mxu0 0
        %3023 = vmatpush1.bf16.msra.mxu0 0
        %3024 = vmatprep.subr.bf16.mxu0 0
        %3025 = vmatpush1.bf16.msra.mxu0 0
        %3026 = vmatprep.subr.bf16.mxu0 0
        %3027 = vmatpush1.bf16.msra.mxu0 0
        %3028 = vmatprep.subr.bf16.mxu0 0
        %3029 = vmatpush1.bf16.msra.mxu0 0
        %3030 = vmatprep.subr.bf16.mxu0 0
        %3031 = vmatpush1.bf16.msra.mxu0 0
        %3032 = vmatprep.subr.bf16.mxu0 0
        %3033 = vmatpush1.bf16.msra.mxu0 0
        %3034 = vmatprep.subr.bf16.mxu0 0
        %3035 = vmatpush1.bf16.msra.mxu0 0
        %3036 = vmatprep.mubr.bf16.mxu0 0
        %3037 = vmatmul.mubr.bf16.gmra.mrb[0].mxu0 %v2993
        %v3038 = vpop.f32.mrb[0].mxu0
        %v3039 = vadd.f32 0.0, %v3038
        %v3040 = vpop.f32.mrb[0].mxu0
        %v3041 = vpop.f32.mrb[0].mxu0
        %v3042 = vadd.f32 0.0, %v3041
        %v3043 = vpop.f32.mrb[0].mxu0
        %3044 = vmatprep.mubr.bf16.mxu0 0
        %3045 = vmatmul.mubr.bf16.gmra.mrb[0].mxu0 %v2996
        %v3046 = vpop.f32.mrb[0].mxu0
        %v3047 = vadd.f32 0.0, %v3046
        %v3048 = vpop.f32.mrb[0].mxu0
        %v3049 = vpop.f32.mrb[0].mxu0
        %v3050 = vadd.f32 0.0, %v3049
        %v3051 = vpop.f32.mrb[0].mxu0
        %3052 = vmatprep.mubr.bf16.mxu0 0
        %3053 = vmatmul.mubr.bf16.gmra.mrb[0].mxu0 %v2999
        %v3054 = vpop.f32.mrb[0].mxu0
        %v3055 = vadd.f32 0.0, %v3054
        %v3056 = vpop.f32.mrb[0].mxu0
        %v3057 = vpop.f32.mrb[0].mxu0
        %v3058 = vadd.f32 0.0, %v3057
        %v3059 = vpop.f32.mrb[0].mxu0
        %3060 = vmatprep.mubr.bf16.mxu0 0
        %3061 = vmatmul.mubr.bf16.gmra.mrb[0].mxu0 %v3002
        %v3062 = vpop.f32.mrb[0].mxu0
        %v3063 = vadd.f32 0.0, %v3062
        %v3064 = vpop.f32.mrb[0].mxu0
        %v3065 = vpop.f32.mrb[0].mxu0
        %v3066 = vadd.f32 0.0, %v3065
        %v3067 = vpop.f32.mrb[0].mxu0
        %3068 = vdwg.mxu0
        %v3070 = vunpack.c.l.b16 %v2912
        %v3071 = vpack.c.b16 %v2936, %v3070
        %v3072 = vpack.c.b16 %v2938, %v2937
        %v3073 = vpack.c.b16 %v2940, %v2939
        %v3074 = vpack.c.b16 %v2942, %v2941
        %v3075 = vpack.c.b16 %v2943, %v2943
        %v3077 = vshrl.u32 %v3071, 16
        %v3079 = vrot.slane %v3077, 3
        %v3080 = vshll.u32 %v3071, 16
        %v3082 = vrot.slane %v3080, 4
        %v3083 = vor.u32 %v3079, %v3082
        %v3085 = vshrl.u32 %v3072, 16
        %v3087 = vrot.slane %v3085, 3
        %v3088 = vshll.u32 %v3072, 16
        %v3090 = vrot.slane %v3088, 4
        %v3091 = vor.u32 %v3087, %v3090
        %v3092 = vsel %vm2657, %v3083, %v3091
        %v3094 = vshrl.u32 %v3073, 16
        %v3096 = vrot.slane %v3094, 3
        %v3097 = vshll.u32 %v3073, 16
        %v3099 = vrot.slane %v3097, 4
        %v3100 = vor.u32 %v3096, %v3099
        %v3101 = vsel %vm2657, %v3091, %v3100
        %v3103 = vshrl.u32 %v3074, 16
        %v3105 = vrot.slane %v3103, 3
        %v3106 = vshll.u32 %v3074, 16
        %v3108 = vrot.slane %v3106, 4
        %v3109 = vor.u32 %v3105, %v3108
        %v3110 = vsel %vm2657, %v3100, %v3109
        %v3112 = vshrl.u32 %v3075, 16
        %v3114 = vrot.slane %v3112, 3
        %v3115 = vshll.u32 %v3075, 16
        %v3117 = vrot.slane %v3115, 4
        %v3118 = vor.u32 %v3114, %v3117
        %v3119 = vsel %vm2657, %v3109, %v3118
        %v3122 = vunpack.c.l.b16 %v2922
        %v3123 = vunpack.c.l.b16 %v2923
        %v3124 = vpack.c.b16 %v3123, %v3122
        %v3127 = vsel %vm2339, %v3092, 0
        %v3130 = vsel %vm2339, %v3101, 0
        %v3133 = vsel %vm2339, %v3110, 0
        %v3136 = vsel %vm2339, %v3119, 0
        %3138 = vmatprep.subr.bf16.mxu0 0
        %3139 = vmatpush1.bf16.msra.mxu0 %v3124
        %3140 = vmatprep.subr.bf16.mxu0 0
        %3141 = vmatpush1.bf16.msra.mxu0 0
        %3142 = vmatprep.subr.bf16.mxu0 0
        %3143 = vmatpush1.bf16.msra.mxu0 0
        %3144 = vmatprep.subr.bf16.mxu0 0
        %3145 = vmatpush1.bf16.msra.mxu0 0
        %3146 = vmatprep.subr.bf16.mxu0 0
        %3147 = vmatpush1.bf16.msra.mxu0 0
        %3148 = vmatprep.subr.bf16.mxu0 0
        %3149 = vmatpush1.bf16.msra.mxu0 0
        %3150 = vmatprep.subr.bf16.mxu0 0
        %3151 = vmatpush1.bf16.msra.mxu0 0
        %3152 = vmatprep.subr.bf16.mxu0 0
        %3153 = vmatpush1.bf16.msra.mxu0 0
        %3154 = vmatprep.subr.bf16.mxu0 0
        %3155 = vmatpush1.bf16.msra.mxu0 0
        %3156 = vmatprep.subr.bf16.mxu0 0
        %3157 = vmatpush1.bf16.msra.mxu0 0
        %3158 = vmatprep.subr.bf16.mxu0 0
        %3159 = vmatpush1.bf16.msra.mxu0 0
        %3160 = vmatprep.subr.bf16.mxu0 0
        %3161 = vmatpush1.bf16.msra.mxu0 0
        %3162 = vmatprep.subr.bf16.mxu0 0
        %3163 = vmatpush1.bf16.msra.mxu0 0
        %3164 = vmatprep.subr.bf16.mxu0 0
        %3165 = vmatpush1.bf16.msra.mxu0 0
        %3166 = vmatprep.subr.bf16.mxu0 0
        %3167 = vmatpush1.bf16.msra.mxu0 0
        %3168 = vmatprep.subr.bf16.mxu0 0
        %3169 = vmatpush1.bf16.msra.mxu0 0
        %3170 = vmatprep.mubr.bf16.mxu0 0
        %3171 = vmatmul.mubr.bf16.gmra.mrb[0].mxu0 %v3127
        %v3172 = vpop.f32.mrb[0].mxu0
        %v3173 = vadd.f32 %v3039, %v3172
        %v3174 = vpop.f32.mrb[0].mxu0
        %v3175 = vpop.f32.mrb[0].mxu0
        %v3176 = vadd.f32 %v3042, %v3175
        %v3177 = vpop.f32.mrb[0].mxu0
        %3178 = vmatprep.mubr.bf16.mxu0 0
        %3179 = vmatmul.mubr.bf16.gmra.mrb[0].mxu0 %v3130
        %v3180 = vpop.f32.mrb[0].mxu0
        %v3181 = vadd.f32 %v3047, %v3180
        %v3182 = vpop.f32.mrb[0].mxu0
        %v3183 = vpop.f32.mrb[0].mxu0
        %v3184 = vadd.f32 %v3050, %v3183
        %v3185 = vpop.f32.mrb[0].mxu0
        %3186 = vmatprep.mubr.bf16.mxu0 0
        %3187 = vmatmul.mubr.bf16.gmra.mrb[0].mxu0 %v3133
        %v3188 = vpop.f32.mrb[0].mxu0
        %v3189 = vadd.f32 %v3055, %v3188
        %v3190 = vpop.f32.mrb[0].mxu0
        %v3191 = vpop.f32.mrb[0].mxu0
        %v3192 = vadd.f32 %v3058, %v3191
        %v3193 = vpop.f32.mrb[0].mxu0
        %3194 = vmatprep.mubr.bf16.mxu0 0
        %3195 = vmatmul.mubr.bf16.gmra.mrb[0].mxu0 %v3136
        %v3196 = vpop.f32.mrb[0].mxu0
        %v3197 = vadd.f32 %v3063, %v3196
        %v3198 = vpop.f32.mrb[0].mxu0
        %v3199 = vpop.f32.mrb[0].mxu0
        %v3200 = vadd.f32 %v3066, %v3199
        %v3201 = vpop.f32.mrb[0].mxu0
        %3202 = vdwg.mxu0
        %v3204 = vlaneseq
        %v3205 = vshrl.u32 %v3204, 7
        %v3206 = vsub.s32 0, %v3205
        %v3207 = vrot.slane %v2871, %v3206
        %v3209 = vadd.f32 %v3173, %v3207
        %v3210 = vadd.f32 %v3176, %v3207
        %v3211 = vadd.f32 %v3181, %v3207
        %v3212 = vadd.f32 %v3184, %v3207
        %v3213 = vadd.f32 %v3189, %v3207
        %v3214 = vadd.f32 %v3192, %v3207
        %v3215 = vadd.f32 %v3197, %v3207
        %v3216 = vadd.f32 %v3200, %v3207
        %v3217 = vmul.f32 %v3209, 0.5
        %v3218 = vmul.f32 %v3210, 0.5
        %v3219 = vmul.f32 %v3211, 0.5
        %v3220 = vmul.f32 %v3212, 0.5
        %v3221 = vmul.f32 %v3213, 0.5
        %v3222 = vmul.f32 %v3214, 0.5
        %v3223 = vmul.f32 %v3215, 0.5
        %v3224 = vmul.f32 %v3216, 0.5
        %v3225 = vmul.f32 %v3209, 0.044715
        %v3226 = vmul.f32 %v3210, 0.044715
        %v3227 = vmul.f32 %v3211, 0.044715
        %v3228 = vmul.f32 %v3212, 0.044715
        %v3229 = vmul.f32 %v3213, 0.044715
        %v3230 = vmul.f32 %v3214, 0.044715
        %v3231 = vmul.f32 %v3215, 0.044715
        %v3232 = vmul.f32 %v3216, 0.044715
        %v3233 = vmul.f32 %v3225, %v3209
        %v3234 = vmul.f32 %v3226, %v3210
        %v3235 = vmul.f32 %v3227, %v3211
        %v3236 = vmul.f32 %v3228, %v3212
        %v3237 = vmul.f32 %v3229, %v3213
        %v3238 = vmul.f32 %v3230, %v3214
        %v3239 = vmul.f32 %v3231, %v3215
        %v3240 = vmul.f32 %v3232, %v3216
        %v3241 = vmul.f32 %v3233, %v3209
        %v3242 = vmul.f32 %v3234, %v3210
        %v3243 = vmul.f32 %v3235, %v3211
        %v3244 = vmul.f32 %v3236, %v3212
        %v3245 = vmul.f32 %v3237, %v3213
        %v3246 = vmul.f32 %v3238, %v3214
        %v3247 = vmul.f32 %v3239, %v3215
        %v3248 = vmul.f32 %v3240, %v3216
        %v3249 = vadd.f32 %v3209, %v3241
        %v3250 = vadd.f32 %v3210, %v3242
        %v3251 = vadd.f32 %v3211, %v3243
        %v3252 = vadd.f32 %v3212, %v3244
        %v3253 = vadd.f32 %v3213, %v3245
        %v3254 = vadd.f32 %v3214, %v3246
        %v3255 = vadd.f32 %v3215, %v3247
        %v3256 = vadd.f32 %v3216, %v3248
        %v3257 = vmul.f32 %v3249, 0.7978846
        %v3258 = vmul.f32 %v3250, 0.7978846
        %v3259 = vmul.f32 %v3251, 0.7978846
        %v3260 = vmul.f32 %v3252, 0.7978846
        %v3261 = vmul.f32 %v3253, 0.7978846
        %v3262 = vmul.f32 %v3254, 0.7978846
        %v3263 = vmul.f32 %v3255, 0.7978846
        %v3264 = vmul.f32 %v3256, 0.7978846
        %v3265 = vtanh.pop %v3257
        %v3266 = vtanh.pop %v3258
        %v3267 = vtanh.pop %v3259
        %v3268 = vtanh.pop %v3260
        %v3269 = vtanh.pop %v3261
        %v3270 = vtanh.pop %v3262
        %v3271 = vtanh.pop %v3263
        %v3272 = vtanh.pop %v3264
        %v3273 = vadd.f32 %v3265, 1.0
        %v3274 = vadd.f32 %v3266, 1.0
        %v3275 = vadd.f32 %v3267, 1.0
        %v3276 = vadd.f32 %v3268, 1.0
        %v3277 = vadd.f32 %v3269, 1.0
        %v3278 = vadd.f32 %v3270, 1.0
        %v3279 = vadd.f32 %v3271, 1.0
        %v3280 = vadd.f32 %v3272, 1.0
        %v3281 = vmul.f32 %v3217, %v3273
        %v3282 = vmul.f32 %v3218, %v3274
        %v3283 = vmul.f32 %v3219, %v3275
        %v3284 = vmul.f32 %v3220, %v3276
        %v3285 = vmul.f32 %v3221, %v3277
        %v3286 = vmul.f32 %v3222, %v3278
        %v3287 = vmul.f32 %v3223, %v3279
        %v3288 = vmul.f32 %v3224, %v3280
        %v3289 = vsub.f32 0.0, %v3281
        %v3290 = vsub.f32 0.0, %v3282
        %v3291 = vsub.f32 0.0, %v3283
        %v3292 = vsub.f32 0.0, %v3284
        %v3293 = vsub.f32 0.0, %v3285
        %v3294 = vsub.f32 0.0, %v3286
        %v3295 = vsub.f32 0.0, %v3287
        %v3296 = vsub.f32 0.0, %v3288
        %v3297 = vmul.f32 %v3289, 1.442695
        %v3298 = vpow.pop %v3297
        %v3299 = vmul.f32 %v3290, 1.442695
        %v3300 = vpow.pop %v3299
        %v3301 = vmul.f32 %v3291, 1.442695
        %v3302 = vpow.pop %v3301
        %v3303 = vmul.f32 %v3292, 1.442695
        %v3304 = vpow.pop %v3303
        %v3305 = vmul.f32 %v3293, 1.442695
        %v3306 = vpow.pop %v3305
        %v3307 = vmul.f32 %v3294, 1.442695
        %v3308 = vpow.pop %v3307
        %v3309 = vmul.f32 %v3295, 1.442695
        %v3310 = vpow.pop %v3309
        %v3311 = vmul.f32 %v3296, 1.442695
        %v3312 = vpow.pop %v3311
        %v3313 = vadd.f32 %v3298, 1.0
        %v3314 = vadd.f32 %v3300, 1.0
        %v3315 = vadd.f32 %v3302, 1.0
        %v3316 = vadd.f32 %v3304, 1.0
        %v3317 = vadd.f32 %v3306, 1.0
        %v3318 = vadd.f32 %v3308, 1.0
        %v3319 = vadd.f32 %v3310, 1.0
        %v3320 = vadd.f32 %v3312, 1.0
        %v3321 = vrcp.pop %v3313
        %v3322 = vrcp.pop %v3314
        %v3323 = vrcp.pop %v3315
        %v3324 = vrcp.pop %v3316
        %v3325 = vrcp.pop %v3317
        %v3326 = vrcp.pop %v3318
        %v3327 = vrcp.pop %v3319
        %v3328 = vrcp.pop %v3320
        %v3329 = vmul.f32 %v2312, %v3321
        %v3330 = vmul.f32 %v2313, %v3322
        %v3331 = vmul.f32 %v2314, %v3323
        %v3332 = vmul.f32 %v2315, %v3324
        %v3333 = vmul.f32 %v2316, %v3325
        %v3334 = vmul.f32 %v2317, %v3326
        %v3335 = vmul.f32 %v2318, %v3327
        %v3336 = vmul.f32 %v2319, %v3328
        %3345 = vrot.lane.b32.xlu0 %v2312, 16
        %v3346 = vpop.permute.xlu0 %3345
        %3347 = vrot.lane.b32.xlu0 %v2313, 16
        %v3348 = vpop.permute.xlu0 %3347
        %3349 = vrot.lane.b32.xlu0 %v2314, 16
        %v3350 = vpop.permute.xlu0 %3349
        %3351 = vrot.lane.b32.xlu0 %v2315, 16
        %v3352 = vpop.permute.xlu0 %3351
        %3353 = vrot.lane.b32.xlu0 %v2316, 16
        %v3354 = vpop.permute.xlu0 %3353
        %3355 = vrot.lane.b32.xlu0 %v2317, 16
        %v3356 = vpop.permute.xlu0 %3355
        %3357 = vrot.lane.b32.xlu0 %v2318, 16
        %v3358 = vpop.permute.xlu0 %3357
        %3359 = vrot.lane.b32.xlu0 %v2319, 16
        %v3360 = vpop.permute.xlu0 %3359
        %v3369 = vsel %vm2339, %v3329, %v3346
        %v3370 = vsel %vm2339, %v3330, %v3348
        %v3371 = vsel %vm2339, %v3331, %v3350
        %v3372 = vsel %vm2339, %v3332, %v3352
        %v3373 = vsel %vm2339, %v3333, %v3354
        %v3374 = vsel %vm2339, %v3334, %v3356
        %v3375 = vsel %vm2339, %v3335, %v3358
        %v3376 = vsel %vm2339, %v3336, %v3360
        %v3377 = vpack.c.bf16 %v3370, %v3369
        %v3378 = vpack.c.bf16 %v3372, %v3371
        %v3379 = vpack.c.bf16 %v3374, %v3373
        %v3380 = vpack.c.bf16 %v3376, %v3375
        %v3381 = vld [vmem:[%s23] sm:$0xf]
        %v3382 = vld [vmem:[%s23 + $0x4] sm:$0xf]
        %v3383 = vld [vmem:[%s23 + $0x8] sm:$0xf]
        %v3384 = vld [vmem:[%s23 + $0xc] sm:$0xf]
        %v3385 = vld [vmem:[#allocation22] sm:$0x1]
        %v3387 = vlaneseq
        %v3388 = vshrl.u32 %v3387, 7
        %v3389 = vsub.s32 0, %v3388
        %v3390 = vrot.slane %v3385, %v3389
        %v3396 = vunpack.c.l.b16 %v3381
        %v3397 = vunpack.c.l.b16 %v3382
        %v3398 = vunpack.c.l.b16 %v3383
        %v3399 = vunpack.c.l.b16 %v3384
        %v3400 = vpack.c.b16 %v3397, %v3396
        %v3401 = vpack.c.b16 %v3399, %v3398
        %vm3404 = vcmask 261120
        %v3406 = vsel %vm3404, %v3377, 0
        %v3409 = vsel %vm3404, %v3378, 0
        %v3412 = vsel %vm3404, %v3379, 0
        %v3415 = vsel %vm3404, %v3380, 0
        %3417 = vmatprep.subr.bf16.mxu0 0
        %3418 = vmatpush1.bf16.msra.mxu0 %v3400
        %3419 = vmatprep.subr.bf16.mxu0 0
        %3420 = vmatpush1.bf16.msra.mxu0 %v3401
        %3421 = vmatprep.subr.bf16.mxu0 0
        %3422 = vmatpush1.bf16.msra.mxu0 0
        %3423 = vmatprep.subr.bf16.mxu0 0
        %3424 = vmatpush1.bf16.msra.mxu0 0
        %3425 = vmatprep.subr.bf16.mxu0 0
        %3426 = vmatpush1.bf16.msra.mxu0 0
        %3427 = vmatprep.subr.bf16.mxu0 0
        %3428 = vmatpush1.bf16.msra.mxu0 0
        %3429 = vmatprep.subr.bf16.mxu0 0
        %3430 = vmatpush1.bf16.msra.mxu0 0
        %3431 = vmatprep.subr.bf16.mxu0 0
        %3432 = vmatpush1.bf16.msra.mxu0 0
        %3433 = vmatprep.subr.bf16.mxu0 0
        %3434 = vmatpush1.bf16.msra.mxu0 0
        %3435 = vmatprep.subr.bf16.mxu0 0
        %3436 = vmatpush1.bf16.msra.mxu0 0
        %3437 = vmatprep.subr.bf16.mxu0 0
        %3438 = vmatpush1.bf16.msra.mxu0 0
        %3439 = vmatprep.subr.bf16.mxu0 0
        %3440 = vmatpush1.bf16.msra.mxu0 0
        %3441 = vmatprep.subr.bf16.mxu0 0
        %3442 = vmatpush1.bf16.msra.mxu0 0
        %3443 = vmatprep.subr.bf16.mxu0 0
        %3444 = vmatpush1.bf16.msra.mxu0 0
        %3445 = vmatprep.subr.bf16.mxu0 0
        %3446 = vmatpush1.bf16.msra.mxu0 0
        %3447 = vmatprep.subr.bf16.mxu0 0
        %3448 = vmatpush1.bf16.msra.mxu0 0
        %3449 = vmatprep.mubr.bf16.mxu0 0
        %3450 = vmatmul.mubr.bf16.gmra.mrb[0].mxu0 %v3406
        %v3451 = vpop.f32.mrb[0].mxu0
        %v3452 = vadd.f32 %v3390, %v3451
        %v3453 = vpop.f32.mrb[0].mxu0
        %v3454 = vpop.f32.mrb[0].mxu0
        %v3455 = vadd.f32 %v3390, %v3454
        %v3456 = vpop.f32.mrb[0].mxu0
        %3457 = vmatprep.mubr.bf16.mxu0 0
        %3458 = vmatmul.mubr.bf16.gmra.mrb[0].mxu0 %v3409
        %v3459 = vpop.f32.mrb[0].mxu0
        %v3460 = vadd.f32 %v3390, %v3459
        %v3461 = vpop.f32.mrb[0].mxu0
        %v3462 = vpop.f32.mrb[0].mxu0
        %v3463 = vadd.f32 %v3390, %v3462
        %v3464 = vpop.f32.mrb[0].mxu0
        %3465 = vmatprep.mubr.bf16.mxu0 0
        %3466 = vmatmul.mubr.bf16.gmra.mrb[0].mxu0 %v3412
        %v3467 = vpop.f32.mrb[0].mxu0
        %v3468 = vadd.f32 %v3390, %v3467
        %v3469 = vpop.f32.mrb[0].mxu0
        %v3470 = vpop.f32.mrb[0].mxu0
        %v3471 = vadd.f32 %v3390, %v3470
        %v3472 = vpop.f32.mrb[0].mxu0
        %3473 = vmatprep.mubr.bf16.mxu0 0
        %3474 = vmatmul.mubr.bf16.gmra.mrb[0].mxu0 %v3415
        %v3475 = vpop.f32.mrb[0].mxu0
        %v3476 = vadd.f32 %v3390, %v3475
        %v3477 = vpop.f32.mrb[0].mxu0
        %v3478 = vpop.f32.mrb[0].mxu0
        %v3479 = vadd.f32 %v3390, %v3478
        %v3480 = vpop.f32.mrb[0].mxu0
        %3481 = vdwg.mxu0
        %v3482 = vmax.f32 %v3452, 0.0
        %v3483 = vmax.f32 %v3455, 0.0
        %v3484 = vmax.f32 %v3460, 0.0
        %v3485 = vmax.f32 %v3463, 0.0
        %v3486 = vmax.f32 %v3468, 0.0
        %v3487 = vmax.f32 %v3471, 0.0
        %v3488 = vmax.f32 %v3476, 0.0
        %v3489 = vmax.f32 %v3479, 0.0
        %v3490 = vsel %vm2425, %v3482, 0.0
        %v3491 = vsel %vm2425, %v3483, 0.0
        %v3492 = vadd.f32 %v3490, %v3491
        %v3493 = vsel %vm2425, %v3484, 0.0
        %v3494 = vadd.f32 %v3492, %v3493
        %v3495 = vsel %vm2425, %v3485, 0.0
        %v3496 = vadd.f32 %v3494, %v3495
        %v3497 = vsel %vm2425, %v3486, 0.0
        %v3498 = vadd.f32 %v3496, %v3497
        %v3499 = vsel %vm2425, %v3487, 0.0
        %v3500 = vadd.f32 %v3498, %v3499
        %v3501 = vsel %vm2425, %v3488, 0.0
        %v3502 = vadd.f32 %v3500, %v3501
        %v3503 = vsel %vm2425, %v3489, 0.0
        %v3504 = vadd.f32 %v3502, %v3503
        %v3505 = vrot.slane %v3504, 4
        %v3506 = vadd.f32 %v3504, %v3505
        %v3507 = vrot.slane %v3506, 2
        %v3508 = vadd.f32 %v3506, %v3507
        %v3509 = vrot.slane %v3508, 1
        %v3510 = vadd.f32 %v3508, %v3509
        %v3511 = vmul.f32 %v3510, %v2447
        %vm3512 = vcmask 257024
        %3513 = vst.msk [vmem:[#allocation4] sm:$0xf] %vm3512, 0
        %vm3514 = vcmask 253952
        %3515 = vst.msk [vmem:[#allocation4 + $0x24] sm:$0x1] %vm3514, 0
        %v3516 = vld [vmem:[#allocation23] sm:$0x1]
        %v3521 = vunpack.c.l.b16 %v3377
        %v3522 = vunpack.c.h.b16 %v3377
        %v3523 = vunpack.c.l.b16 %v3378
        %v3524 = vunpack.c.h.b16 %v3378
        %v3525 = vunpack.c.l.b16 %v3379
        %v3526 = vunpack.c.h.b16 %v3379
        %v3527 = vunpack.c.l.b16 %v3380
        %v3528 = vunpack.c.h.b16 %v3380
        %v3529 = vpack.c.b16 %v3521, %v3521
        %v3530 = vpack.c.b16 %v3522, %v3522
        %v3531 = vpack.c.b16 %v3523, %v3523
        %v3532 = vpack.c.b16 %v3524, %v3524
        %v3533 = vpack.c.b16 %v3525, %v3525
        %v3534 = vpack.c.b16 %v3526, %v3526
        %v3535 = vpack.c.b16 %v3527, %v3527
        %v3536 = vpack.c.b16 %v3528, %v3528
        %3545 = vst.msk [vmem:[#allocation4 + $0x4] sm:$0xf] %vm3512, %v3529
        %3546 = vst.msk [vmem:[#allocation4 + $0x8] sm:$0xf] %vm3512, %v3530
        %3547 = vst.msk [vmem:[#allocation4 + $0xc] sm:$0xf] %vm3512, %v3531
        %3548 = vst.msk [vmem:[#allocation4 + $0x10] sm:$0xf] %vm3512, %v3532
        %3549 = vst.msk [vmem:[#allocation4 + $0x14] sm:$0xf] %vm3512, %v3533
        %3550 = vst.msk [vmem:[#allocation4 + $0x18] sm:$0xf] %vm3512, %v3534
        %3551 = vst.msk [vmem:[#allocation4 + $0x1c] sm:$0xf] %vm3512, %v3535
        %3552 = vst.msk [vmem:[#allocation4 + $0x20] sm:$0xf] %vm3512, %v3536
        %v3553 = vld [vmem:[#allocation4] sm:$0x8]
        %v3554 = vld [vmem:[#allocation4 + $0x4] sm:$0xf]
        %v3555 = vld [vmem:[#allocation4 + $0x8] sm:$0xf]
        %v3556 = vld [vmem:[#allocation4 + $0xc] sm:$0xf]
        %v3557 = vld [vmem:[#allocation4 + $0x10] sm:$0xf]
        %v3558 = vld [vmem:[#allocation4 + $0x14] sm:$0xf]
        %v3559 = vld [vmem:[#allocation4 + $0x18] sm:$0xf]
        %v3560 = vld [vmem:[#allocation4 + $0x1c] sm:$0xf]
        %v3561 = vld [vmem:[#allocation4 + $0x20] sm:$0x7]
        %v3562 = vld [vmem:[#allocation4 + $0x4] sm:$0xe]
        %v3563 = vld [vmem:[#allocation4 + $0x20] sm:$0xf]
        %v3564 = vld [vmem:[#allocation4 + $0x24] sm:$0x1]
        %v3565 = vld [vmem:[%s27] sm:$0xf]
        %v3566 = vld [vmem:[%s27 + $0x4] sm:$0xf]
        %v3567 = vld [vmem:[%s27 + $0x8] sm:$0xf]
        %v3568 = vld [vmem:[%s27 + $0xc] sm:$0xf]
        %s3569 = scalar_lea.vmem %s27, 16
        %v3570 = vld [vmem:[%s3569] sm:$0xf]
        %v3571 = vld [vmem:[%s3569 + $0x4] sm:$0xf]
        %v3572 = vld [vmem:[%s3569 + $0x8] sm:$0xf]
        %v3573 = vld [vmem:[%s3569 + $0xc] sm:$0xf]
        %v3583 = vunpack.c.l.b16 %v3562
        %v3584 = vunpack.c.l.b16 %v3555
        %v3585 = vunpack.c.l.b16 %v3556
        %v3586 = vunpack.c.l.b16 %v3557
        %v3587 = vunpack.c.l.b16 %v3558
        %v3588 = vunpack.c.l.b16 %v3559
        %v3589 = vunpack.c.l.b16 %v3560
        %v3590 = vunpack.c.l.b16 %v3563
        %v3591 = vunpack.c.l.b16 %v3564
        %v3592 = vpack.c.b16 %v3584, %v3583
        %v3593 = vpack.c.b16 %v3586, %v3585
        %v3594 = vpack.c.b16 %v3588, %v3587
        %v3595 = vpack.c.b16 %v3590, %v3589
        %v3596 = vpack.c.b16 %v3591, %v3591
        %vm3597 = vcmask 1046528
        %v3598 = vrot.slane %v3592, 1
        %v3599 = vrot.slane %v3593, 1
        %v3600 = vsel %vm3597, %v3598, %v3599
        %v3601 = vrot.slane %v3594, 1
        %v3602 = vsel %vm3597, %v3599, %v3601
        %v3603 = vrot.slane %v3595, 1
        %v3604 = vsel %vm3597, %v3601, %v3603
        %v3605 = vrot.slane %v3596, 1
        %v3606 = vsel %vm3597, %v3603, %v3605
        %v3611 = vunpack.c.l.b16 %v3570
        %v3612 = vunpack.c.l.b16 %v3571
        %v3613 = vunpack.c.l.b16 %v3572
        %v3614 = vunpack.c.l.b16 %v3573
        %v3615 = vpack.c.b16 %v3612, %v3611
        %v3616 = vpack.c.b16 %v3614, %v3613
        %v3620 = vsel %vm3404, %v3600, 0
        %v3623 = vsel %vm3404, %v3602, 0
        %v3626 = vsel %vm3404, %v3604, 0
        %v3629 = vsel %vm3404, %v3606, 0
        %3631 = vmatprep.subr.bf16.mxu0 0
        %3632 = vmatpush1.bf16.msra.mxu0 %v3615
        %3633 = vmatprep.subr.bf16.mxu0 0
        %3634 = vmatpush1.bf16.msra.mxu0 %v3616
        %3635 = vmatprep.subr.bf16.mxu0 0
        %3636 = vmatpush1.bf16.msra.mxu0 0
        %3637 = vmatprep.subr.bf16.mxu0 0
        %3638 = vmatpush1.bf16.msra.mxu0 0
        %3639 = vmatprep.subr.bf16.mxu0 0
        %3640 = vmatpush1.bf16.msra.mxu0 0
        %3641 = vmatprep.subr.bf16.mxu0 0
        %3642 = vmatpush1.bf16.msra.mxu0 0
        %3643 = vmatprep.subr.bf16.mxu0 0
        %3644 = vmatpush1.bf16.msra.mxu0 0
        %3645 = vmatprep.subr.bf16.mxu0 0
        %3646 = vmatpush1.bf16.msra.mxu0 0
        %3647 = vmatprep.subr.bf16.mxu0 0
        %3648 = vmatpush1.bf16.msra.mxu0 0
        %3649 = vmatprep.subr.bf16.mxu0 0
        %3650 = vmatpush1.bf16.msra.mxu0 0
        %3651 = vmatprep.subr.bf16.mxu0 0
        %3652 = vmatpush1.bf16.msra.mxu0 0
        %3653 = vmatprep.subr.bf16.mxu0 0
        %3654 = vmatpush1.bf16.msra.mxu0 0
        %3655 = vmatprep.subr.bf16.mxu0 0
        %3656 = vmatpush1.bf16.msra.mxu0 0
        %3657 = vmatprep.subr.bf16.mxu0 0
        %3658 = vmatpush1.bf16.msra.mxu0 0
        %3659 = vmatprep.subr.bf16.mxu0 0
        %3660 = vmatpush1.bf16.msra.mxu0 0
        %3661 = vmatprep.subr.bf16.mxu0 0
        %3662 = vmatpush1.bf16.msra.mxu0 0
        %3663 = vmatprep.mubr.bf16.mxu0 0
        %3664 = vmatmul.mubr.bf16.gmra.mrb[0].mxu0 %v3620
        %v3665 = vpop.f32.mrb[0].mxu0
        %v3666 = vadd.f32 0.0, %v3665
        %v3667 = vpop.f32.mrb[0].mxu0
        %v3668 = vpop.f32.mrb[0].mxu0
        %v3669 = vadd.f32 0.0, %v3668
        %v3670 = vpop.f32.mrb[0].mxu0
        %3671 = vmatprep.mubr.bf16.mxu0 0
        %3672 = vmatmul.mubr.bf16.gmra.mrb[0].mxu0 %v3623
        %v3673 = vpop.f32.mrb[0].mxu0
        %v3674 = vadd.f32 0.0, %v3673
        %v3675 = vpop.f32.mrb[0].mxu0
        %v3676 = vpop.f32.mrb[0].mxu0
        %v3677 = vadd.f32 0.0, %v3676
        %v3678 = vpop.f32.mrb[0].mxu0
        %3679 = vmatprep.mubr.bf16.mxu0 0
        %3680 = vmatmul.mubr.bf16.gmra.mrb[0].mxu0 %v3626
        %v3681 = vpop.f32.mrb[0].mxu0
        %v3682 = vadd.f32 0.0, %v3681
        %v3683 = vpop.f32.mrb[0].mxu0
        %v3684 = vpop.f32.mrb[0].mxu0
        %v3685 = vadd.f32 0.0, %v3684
        %v3686 = vpop.f32.mrb[0].mxu0
        %3687 = vmatprep.mubr.bf16.mxu0 0
        %3688 = vmatmul.mubr.bf16.gmra.mrb[0].mxu0 %v3629
        %v3689 = vpop.f32.mrb[0].mxu0
        %v3690 = vadd.f32 0.0, %v3689
        %v3691 = vpop.f32.mrb[0].mxu0
        %v3692 = vpop.f32.mrb[0].mxu0
        %v3693 = vadd.f32 0.0, %v3692
        %v3694 = vpop.f32.mrb[0].mxu0
        %3695 = vdwg.mxu0
        %v3699 = vunpack.c.l.b16 %v3553
        %v3700 = vunpack.c.l.b16 %v3554
        %v3701 = vunpack.c.l.b16 %v3561
        %v3702 = vpack.c.b16 %v3700, %v3699
        %v3703 = vpack.c.b16 %v3585, %v3584
        %v3704 = vpack.c.b16 %v3587, %v3586
        %v3705 = vpack.c.b16 %v3589, %v3588
        %v3706 = vpack.c.b16 %v3701, %v3701
        %vm3707 = vcmask 1044480
        %v3708 = vrot.slane %v3702, 3
        %v3709 = vrot.slane %v3703, 3
        %v3710 = vsel %vm3707, %v3708, %v3709
        %v3711 = vrot.slane %v3704, 3
        %v3712 = vsel %vm3707, %v3709, %v3711
        %v3713 = vrot.slane %v3705, 3
        %v3714 = vsel %vm3707, %v3711, %v3713
        %v3715 = vrot.slane %v3706, 3
        %v3716 = vsel %vm3707, %v3713, %v3715
        %v3721 = vunpack.c.l.b16 %v3565
        %v3722 = vunpack.c.l.b16 %v3566
        %v3723 = vunpack.c.l.b16 %v3567
        %v3724 = vunpack.c.l.b16 %v3568
        %v3725 = vpack.c.b16 %v3722, %v3721
        %v3726 = vpack.c.b16 %v3724, %v3723
        %v3730 = vsel %vm3404, %v3710, 0
        %v3733 = vsel %vm3404, %v3712, 0
        %v3736 = vsel %vm3404, %v3714, 0
        %v3739 = vsel %vm3404, %v3716, 0
        %3741 = vmatprep.subr.bf16.mxu0 0
        %3742 = vmatpush1.bf16.msra.mxu0 %v3725
        %3743 = vmatprep.subr.bf16.mxu0 0
        %3744 = vmatpush1.bf16.msra.mxu0 %v3726
        %3745 = vmatprep.subr.bf16.mxu0 0
        %3746 = vmatpush1.bf16.msra.mxu0 0
        %3747 = vmatprep.subr.bf16.mxu0 0
        %3748 = vmatpush1.bf16.msra.mxu0 0
        %3749 = vmatprep.subr.bf16.mxu0 0
        %3750 = vmatpush1.bf16.msra.mxu0 0
        %3751 = vmatprep.subr.bf16.mxu0 0
        %3752 = vmatpush1.bf16.msra.mxu0 0
        %3753 = vmatprep.subr.bf16.mxu0 0
        %3754 = vmatpush1.bf16.msra.mxu0 0
        %3755 = vmatprep.subr.bf16.mxu0 0
        %3756 = vmatpush1.bf16.msra.mxu0 0
        %3757 = vmatprep.subr.bf16.mxu0 0
        %3758 = vmatpush1.bf16.msra.mxu0 0
        %3759 = vmatprep.subr.bf16.mxu0 0
        %3760 = vmatpush1.bf16.msra.mxu0 0
        %3761 = vmatprep.subr.bf16.mxu0 0
        %3762 = vmatpush1.bf16.msra.mxu0 0
        %3763 = vmatprep.subr.bf16.mxu0 0
        %3764 = vmatpush1.bf16.msra.mxu0 0
        %3765 = vmatprep.subr.bf16.mxu0 0
        %3766 = vmatpush1.bf16.msra.mxu0 0
        %3767 = vmatprep.subr.bf16.mxu0 0
        %3768 = vmatpush1.bf16.msra.mxu0 0
        %3769 = vmatprep.subr.bf16.mxu0 0
        %3770 = vmatpush1.bf16.msra.mxu0 0
        %3771 = vmatprep.subr.bf16.mxu0 0
        %3772 = vmatpush1.bf16.msra.mxu0 0
        %3773 = vmatprep.mubr.bf16.mxu0 0
        %3774 = vmatmul.mubr.bf16.gmra.mrb[0].mxu0 %v3730
        %v3775 = vpop.f32.mrb[0].mxu0
        %v3776 = vadd.f32 %v3666, %v3775
        %v3777 = vpop.f32.mrb[0].mxu0
        %v3778 = vpop.f32.mrb[0].mxu0
        %v3779 = vadd.f32 %v3669, %v3778
        %v3780 = vpop.f32.mrb[0].mxu0
        %3781 = vmatprep.mubr.bf16.mxu0 0
        %3782 = vmatmul.mubr.bf16.gmra.mrb[0].mxu0 %v3733
        %v3783 = vpop.f32.mrb[0].mxu0
        %v3784 = vadd.f32 %v3674, %v3783
        %v3785 = vpop.f32.mrb[0].mxu0
        %v3786 = vpop.f32.mrb[0].mxu0
        %v3787 = vadd.f32 %v3677, %v3786
        %v3788 = vpop.f32.mrb[0].mxu0
        %3789 = vmatprep.mubr.bf16.mxu0 0
        %3790 = vmatmul.mubr.bf16.gmra.mrb[0].mxu0 %v3736
        %v3791 = vpop.f32.mrb[0].mxu0
        %v3792 = vadd.f32 %v3682, %v3791
        %v3793 = vpop.f32.mrb[0].mxu0
        %v3794 = vpop.f32.mrb[0].mxu0
        %v3795 = vadd.f32 %v3685, %v3794
        %v3796 = vpop.f32.mrb[0].mxu0
        %3797 = vmatprep.mubr.bf16.mxu0 0
        %3798 = vmatmul.mubr.bf16.gmra.mrb[0].mxu0 %v3739
        %v3799 = vpop.f32.mrb[0].mxu0
        %v3800 = vadd.f32 %v3690, %v3799
        %v3801 = vpop.f32.mrb[0].mxu0
        %v3802 = vpop.f32.mrb[0].mxu0
        %v3803 = vadd.f32 %v3693, %v3802
        %v3804 = vpop.f32.mrb[0].mxu0
        %3805 = vdwg.mxu0
        %v3807 = vlaneseq
        %v3808 = vshrl.u32 %v3807, 7
        %v3809 = vsub.s32 0, %v3808
        %v3810 = vrot.slane %v3516, %v3809
        %v3812 = vadd.f32 %v3776, %v3810
        %v3813 = vadd.f32 %v3779, %v3810
        %v3814 = vadd.f32 %v3784, %v3810
        %v3815 = vadd.f32 %v3787, %v3810
        %v3816 = vadd.f32 %v3792, %v3810
        %v3817 = vadd.f32 %v3795, %v3810
        %v3818 = vadd.f32 %v3800, %v3810
        %v3819 = vadd.f32 %v3803, %v3810
        %v3820 = vmul.f32 %v3812, 0.5
        %v3821 = vmul.f32 %v3813, 0.5
        %v3822 = vmul.f32 %v3814, 0.5
        %v3823 = vmul.f32 %v3815, 0.5
        %v3824 = vmul.f32 %v3816, 0.5
        %v3825 = vmul.f32 %v3817, 0.5
        %v3826 = vmul.f32 %v3818, 0.5
        %v3827 = vmul.f32 %v3819, 0.5
        %v3828 = vmul.f32 %v3812, 0.044715
        %v3829 = vmul.f32 %v3813, 0.044715
        %v3830 = vmul.f32 %v3814, 0.044715
        %v3831 = vmul.f32 %v3815, 0.044715
        %v3832 = vmul.f32 %v3816, 0.044715
        %v3833 = vmul.f32 %v3817, 0.044715
        %v3834 = vmul.f32 %v3818, 0.044715
        %v3835 = vmul.f32 %v3819, 0.044715
        %v3836 = vmul.f32 %v3828, %v3812
        %v3837 = vmul.f32 %v3829, %v3813
        %v3838 = vmul.f32 %v3830, %v3814
        %v3839 = vmul.f32 %v3831, %v3815
        %v3840 = vmul.f32 %v3832, %v3816
        %v3841 = vmul.f32 %v3833, %v3817
        %v3842 = vmul.f32 %v3834, %v3818
        %v3843 = vmul.f32 %v3835, %v3819
        %v3844 = vmul.f32 %v3836, %v3812
        %v3845 = vmul.f32 %v3837, %v3813
        %v3846 = vmul.f32 %v3838, %v3814
        %v3847 = vmul.f32 %v3839, %v3815
        %v3848 = vmul.f32 %v3840, %v3816
        %v3849 = vmul.f32 %v3841, %v3817
        %v3850 = vmul.f32 %v3842, %v3818
        %v3851 = vmul.f32 %v3843, %v3819
        %v3852 = vadd.f32 %v3812, %v3844
        %v3853 = vadd.f32 %v3813, %v3845
        %v3854 = vadd.f32 %v3814, %v3846
        %v3855 = vadd.f32 %v3815, %v3847
        %v3856 = vadd.f32 %v3816, %v3848
        %v3857 = vadd.f32 %v3817, %v3849
        %v3858 = vadd.f32 %v3818, %v3850
        %v3859 = vadd.f32 %v3819, %v3851
        %v3860 = vmul.f32 %v3852, 0.7978846
        %v3861 = vmul.f32 %v3853, 0.7978846
        %v3862 = vmul.f32 %v3854, 0.7978846
        %v3863 = vmul.f32 %v3855, 0.7978846
        %v3864 = vmul.f32 %v3856, 0.7978846
        %v3865 = vmul.f32 %v3857, 0.7978846
        %v3866 = vmul.f32 %v3858, 0.7978846
        %v3867 = vmul.f32 %v3859, 0.7978846
        %v3868 = vtanh.pop %v3860
        %v3869 = vtanh.pop %v3861
        %v3870 = vtanh.pop %v3862
        %v3871 = vtanh.pop %v3863
        %v3872 = vtanh.pop %v3864
        %v3873 = vtanh.pop %v3865
        %v3874 = vtanh.pop %v3866
        %v3875 = vtanh.pop %v3867
        %v3876 = vadd.f32 %v3868, 1.0
        %v3877 = vadd.f32 %v3869, 1.0
        %v3878 = vadd.f32 %v3870, 1.0
        %v3879 = vadd.f32 %v3871, 1.0
        %v3880 = vadd.f32 %v3872, 1.0
        %v3881 = vadd.f32 %v3873, 1.0
        %v3882 = vadd.f32 %v3874, 1.0
        %v3883 = vadd.f32 %v3875, 1.0
        %v3884 = vmul.f32 %v3820, %v3876
        %v3885 = vmul.f32 %v3821, %v3877
        %v3886 = vmul.f32 %v3822, %v3878
        %v3887 = vmul.f32 %v3823, %v3879
        %v3888 = vmul.f32 %v3824, %v3880
        %v3889 = vmul.f32 %v3825, %v3881
        %v3890 = vmul.f32 %v3826, %v3882
        %v3891 = vmul.f32 %v3827, %v3883
        %v3892 = vld [vmem:[#allocation26] sm:$0x1]
        %v3893 = vpack.c.bf16 %v3885, %v3884
        %v3894 = vpack.c.bf16 %v3887, %v3886
        %v3895 = vpack.c.bf16 %v3889, %v3888
        %v3896 = vpack.c.bf16 %v3891, %v3890
        %v3901 = vunpack.c.l.b16 %v3893
        %v3902 = vunpack.c.h.b16 %v3893
        %v3903 = vunpack.c.l.b16 %v3894
        %v3904 = vunpack.c.h.b16 %v3894
        %v3905 = vunpack.c.l.b16 %v3895
        %v3906 = vunpack.c.h.b16 %v3895
        %v3907 = vunpack.c.l.b16 %v3896
        %v3908 = vunpack.c.h.b16 %v3896
        %v3909 = vpack.c.b16 %v3901, %v3901
        %v3910 = vpack.c.b16 %v3902, %v3902
        %v3911 = vpack.c.b16 %v3903, %v3903
        %v3912 = vpack.c.b16 %v3904, %v3904
        %v3913 = vpack.c.b16 %v3905, %v3905
        %v3914 = vpack.c.b16 %v3906, %v3906
        %v3915 = vpack.c.b16 %v3907, %v3907
        %v3916 = vpack.c.b16 %v3908, %v3908
        %3925 = vst.msk [vmem:[#allocation4 + $0x4] sm:$0xf] %vm3512, %v3909
        %3926 = vst.msk [vmem:[#allocation4 + $0x8] sm:$0xf] %vm3512, %v3910
        %3927 = vst.msk [vmem:[#allocation4 + $0xc] sm:$0xf] %vm3512, %v3911
        %3928 = vst.msk [vmem:[#allocation4 + $0x10] sm:$0xf] %vm3512, %v3912
        %3929 = vst.msk [vmem:[#allocation4 + $0x14] sm:$0xf] %vm3512, %v3913
        %3930 = vst.msk [vmem:[#allocation4 + $0x18] sm:$0xf] %vm3512, %v3914
        %3931 = vst.msk [vmem:[#allocation4 + $0x1c] sm:$0xf] %vm3512, %v3915
        %3932 = vst.msk [vmem:[#allocation4 + $0x20] sm:$0xf] %vm3512, %v3916
        %v3933 = vld [vmem:[#allocation4] sm:$0x8]
        %v3934 = vld [vmem:[#allocation4 + $0x4] sm:$0xf]
        %v3935 = vld [vmem:[#allocation4 + $0x8] sm:$0xf]
        %v3936 = vld [vmem:[#allocation4 + $0xc] sm:$0xf]
        %v3937 = vld [vmem:[#allocation4 + $0x10] sm:$0xf]
        %v3938 = vld [vmem:[#allocation4 + $0x14] sm:$0xf]
        %v3939 = vld [vmem:[#allocation4 + $0x18] sm:$0xf]
        %v3940 = vld [vmem:[#allocation4 + $0x1c] sm:$0xf]
        %v3941 = vld [vmem:[#allocation4 + $0x20] sm:$0x7]
        %v3942 = vld [vmem:[#allocation4 + $0x4] sm:$0xe]
        %v3943 = vld [vmem:[#allocation4 + $0x20] sm:$0xf]
        %v3944 = vld [vmem:[#allocation4 + $0x24] sm:$0x1]
        %v3945 = vld [vmem:[#allocation25] sm:$0xf]
        %v3946 = vld [vmem:[#allocation25 + $0x4] sm:$0xf]
        %v3947 = vld [vmem:[#allocation25 + $0x8] sm:$0xf]
        %v3948 = vld [vmem:[#allocation25 + $0xc] sm:$0xf]
        %s3949 = scalar_lea.vmem [#allocation25], 16
        %v3950 = vld [vmem:[%s3949] sm:$0xf]
        %v3951 = vld [vmem:[%s3949 + $0x4] sm:$0xf]
        %v3952 = vld [vmem:[%s3949 + $0x8] sm:$0xf]
        %v3953 = vld [vmem:[%s3949 + $0xc] sm:$0xf]
        %v3963 = vunpack.c.l.b16 %v3942
        %v3964 = vunpack.c.l.b16 %v3935
        %v3965 = vunpack.c.l.b16 %v3936
        %v3966 = vunpack.c.l.b16 %v3937
        %v3967 = vunpack.c.l.b16 %v3938
        %v3968 = vunpack.c.l.b16 %v3939
        %v3969 = vunpack.c.l.b16 %v3940
        %v3970 = vunpack.c.l.b16 %v3943
        %v3971 = vunpack.c.l.b16 %v3944
        %v3972 = vpack.c.b16 %v3964, %v3963
        %v3973 = vpack.c.b16 %v3966, %v3965
        %v3974 = vpack.c.b16 %v3968, %v3967
        %v3975 = vpack.c.b16 %v3970, %v3969
        %v3976 = vpack.c.b16 %v3971, %v3971
        %v3977 = vrot.slane %v3972, 1
        %v3978 = vrot.slane %v3973, 1
        %v3979 = vsel %vm3597, %v3977, %v3978
        %v3980 = vrot.slane %v3974, 1
        %v3981 = vsel %vm3597, %v3978, %v3980
        %v3982 = vrot.slane %v3975, 1
        %v3983 = vsel %vm3597, %v3980, %v3982
        %v3984 = vrot.slane %v3976, 1
        %v3985 = vsel %vm3597, %v3982, %v3984
        %v3990 = vunpack.c.l.b16 %v3950
        %v3991 = vunpack.c.l.b16 %v3951
        %v3992 = vunpack.c.l.b16 %v3952
        %v3993 = vunpack.c.l.b16 %v3953
        %v3994 = vpack.c.b16 %v3991, %v3990
        %v3995 = vpack.c.b16 %v3993, %v3992
        %v3999 = vsel %vm3404, %v3979, 0
        %v4002 = vsel %vm3404, %v3981, 0
        %v4005 = vsel %vm3404, %v3983, 0
        %v4008 = vsel %vm3404, %v3985, 0
        %4010 = vmatprep.subr.bf16.mxu0 0
        %4011 = vmatpush1.bf16.msra.mxu0 %v3994
        %4012 = vmatprep.subr.bf16.mxu0 0
        %4013 = vmatpush1.bf16.msra.mxu0 %v3995
        %4014 = vmatprep.subr.bf16.mxu0 0
        %4015 = vmatpush1.bf16.msra.mxu0 0
        %4016 = vmatprep.subr.bf16.mxu0 0
        %4017 = vmatpush1.bf16.msra.mxu0 0
        %4018 = vmatprep.subr.bf16.mxu0 0
        %4019 = vmatpush1.bf16.msra.mxu0 0
        %4020 = vmatprep.subr.bf16.mxu0 0
        %4021 = vmatpush1.bf16.msra.mxu0 0
        %4022 = vmatprep.subr.bf16.mxu0 0
        %4023 = vmatpush1.bf16.msra.mxu0 0
        %4024 = vmatprep.subr.bf16.mxu0 0
        %4025 = vmatpush1.bf16.msra.mxu0 0
        %4026 = vmatprep.subr.bf16.mxu0 0
        %4027 = vmatpush1.bf16.msra.mxu0 0
        %4028 = vmatprep.subr.bf16.mxu0 0
        %4029 = vmatpush1.bf16.msra.mxu0 0
        %4030 = vmatprep.subr.bf16.mxu0 0
        %4031 = vmatpush1.bf16.msra.mxu0 0
        %4032 = vmatprep.subr.bf16.mxu0 0
        %4033 = vmatpush1.bf16.msra.mxu0 0
        %4034 = vmatprep.subr.bf16.mxu0 0
        %4035 = vmatpush1.bf16.msra.mxu0 0
        %4036 = vmatprep.subr.bf16.mxu0 0
        %4037 = vmatpush1.bf16.msra.mxu0 0
        %4038 = vmatprep.subr.bf16.mxu0 0
        %4039 = vmatpush1.bf16.msra.mxu0 0
        %4040 = vmatprep.subr.bf16.mxu0 0
        %4041 = vmatpush1.bf16.msra.mxu0 0
        %4042 = vmatprep.mubr.bf16.mxu0 0
        %4043 = vmatmul.mubr.bf16.gmra.mrb[0].mxu0 %v3999
        %v4044 = vpop.f32.mrb[0].mxu0
        %v4045 = vadd.f32 0.0, %v4044
        %v4046 = vpop.f32.mrb[0].mxu0
        %v4047 = vpop.f32.mrb[0].mxu0
        %v4048 = vadd.f32 0.0, %v4047
        %v4049 = vpop.f32.mrb[0].mxu0
        %4050 = vmatprep.mubr.bf16.mxu0 0
        %4051 = vmatmul.mubr.bf16.gmra.mrb[0].mxu0 %v4002
        %v4052 = vpop.f32.mrb[0].mxu0
        %v4053 = vadd.f32 0.0, %v4052
        %v4054 = vpop.f32.mrb[0].mxu0
        %v4055 = vpop.f32.mrb[0].mxu0
        %v4056 = vadd.f32 0.0, %v4055
        %v4057 = vpop.f32.mrb[0].mxu0
        %4058 = vmatprep.mubr.bf16.mxu0 0
        %4059 = vmatmul.mubr.bf16.gmra.mrb[0].mxu0 %v4005
        %v4060 = vpop.f32.mrb[0].mxu0
        %v4061 = vadd.f32 0.0, %v4060
        %v4062 = vpop.f32.mrb[0].mxu0
        %v4063 = vpop.f32.mrb[0].mxu0
        %v4064 = vadd.f32 0.0, %v4063
        %v4065 = vpop.f32.mrb[0].mxu0
        %4066 = vmatprep.mubr.bf16.mxu0 0
        %4067 = vmatmul.mubr.bf16.gmra.mrb[0].mxu0 %v4008
        %v4068 = vpop.f32.mrb[0].mxu0
        %v4069 = vadd.f32 0.0, %v4068
        %v4070 = vpop.f32.mrb[0].mxu0
        %v4071 = vpop.f32.mrb[0].mxu0
        %v4072 = vadd.f32 0.0, %v4071
        %v4073 = vpop.f32.mrb[0].mxu0
        %4074 = vdwg.mxu0
        %v4078 = vunpack.c.l.b16 %v3933
        %v4079 = vunpack.c.l.b16 %v3934
        %v4080 = vunpack.c.l.b16 %v3941
        %v4081 = vpack.c.b16 %v4079, %v4078
        %v4082 = vpack.c.b16 %v3965, %v3964
        %v4083 = vpack.c.b16 %v3967, %v3966
        %v4084 = vpack.c.b16 %v3969, %v3968
        %v4085 = vpack.c.b16 %v4080, %v4080
        %v4086 = vrot.slane %v4081, 3
        %v4087 = vrot.slane %v4082, 3
        %v4088 = vsel %vm3707, %v4086, %v4087
        %v4089 = vrot.slane %v4083, 3
        %v4090 = vsel %vm3707, %v4087, %v4089
        %v4091 = vrot.slane %v4084, 3
        %v4092 = vsel %vm3707, %v4089, %v4091
        %v4093 = vrot.slane %v4085, 3
        %v4094 = vsel %vm3707, %v4091, %v4093
        %v4099 = vunpack.c.l.b16 %v3945
        %v4100 = vunpack.c.l.b16 %v3946
        %v4101 = vunpack.c.l.b16 %v3947
        %v4102 = vunpack.c.l.b16 %v3948
        %v4103 = vpack.c.b16 %v4100, %v4099
        %v4104 = vpack.c.b16 %v4102, %v4101
        %v4108 = vsel %vm3404, %v4088, 0
        %v4111 = vsel %vm3404, %v4090, 0
        %v4114 = vsel %vm3404, %v4092, 0
        %v4117 = vsel %vm3404, %v4094, 0
        %4119 = vmatprep.subr.bf16.mxu0 0
        %4120 = vmatpush1.bf16.msra.mxu0 %v4103
        %4121 = vmatprep.subr.bf16.mxu0 0
        %4122 = vmatpush1.bf16.msra.mxu0 %v4104
        %4123 = vmatprep.subr.bf16.mxu0 0
        %4124 = vmatpush1.bf16.msra.mxu0 0
        %4125 = vmatprep.subr.bf16.mxu0 0
        %4126 = vmatpush1.bf16.msra.mxu0 0
        %4127 = vmatprep.subr.bf16.mxu0 0
        %4128 = vmatpush1.bf16.msra.mxu0 0
        %4129 = vmatprep.subr.bf16.mxu0 0
        %4130 = vmatpush1.bf16.msra.mxu0 0
        %4131 = vmatprep.subr.bf16.mxu0 0
        %4132 = vmatpush1.bf16.msra.mxu0 0
        %4133 = vmatprep.subr.bf16.mxu0 0
        %4134 = vmatpush1.bf16.msra.mxu0 0
        %4135 = vmatprep.subr.bf16.mxu0 0
        %4136 = vmatpush1.bf16.msra.mxu0 0
        %4137 = vmatprep.subr.bf16.mxu0 0
        %4138 = vmatpush1.bf16.msra.mxu0 0
        %4139 = vmatprep.subr.bf16.mxu0 0
        %4140 = vmatpush1.bf16.msra.mxu0 0
        %4141 = vmatprep.subr.bf16.mxu0 0
        %4142 = vmatpush1.bf16.msra.mxu0 0
        %4143 = vmatprep.subr.bf16.mxu0 0
        %4144 = vmatpush1.bf16.msra.mxu0 0
        %4145 = vmatprep.subr.bf16.mxu0 0
        %4146 = vmatpush1.bf16.msra.mxu0 0
        %4147 = vmatprep.subr.bf16.mxu0 0
        %4148 = vmatpush1.bf16.msra.mxu0 0
        %4149 = vmatprep.subr.bf16.mxu0 0
        %4150 = vmatpush1.bf16.msra.mxu0 0
        %4151 = vmatprep.mubr.bf16.mxu0 0
        %4152 = vmatmul.mubr.bf16.gmra.mrb[0].mxu0 %v4108
        %v4153 = vpop.f32.mrb[0].mxu0
        %v4154 = vadd.f32 %v4045, %v4153
        %v4155 = vpop.f32.mrb[0].mxu0
        %v4156 = vpop.f32.mrb[0].mxu0
        %v4157 = vadd.f32 %v4048, %v4156
        %v4158 = vpop.f32.mrb[0].mxu0
        %4159 = vmatprep.mubr.bf16.mxu0 0
        %4160 = vmatmul.mubr.bf16.gmra.mrb[0].mxu0 %v4111
        %v4161 = vpop.f32.mrb[0].mxu0
        %v4162 = vadd.f32 %v4053, %v4161
        %v4163 = vpop.f32.mrb[0].mxu0
        %v4164 = vpop.f32.mrb[0].mxu0
        %v4165 = vadd.f32 %v4056, %v4164
        %v4166 = vpop.f32.mrb[0].mxu0
        %4167 = vmatprep.mubr.bf16.mxu0 0
        %4168 = vmatmul.mubr.bf16.gmra.mrb[0].mxu0 %v4114
        %v4169 = vpop.f32.mrb[0].mxu0
        %v4170 = vadd.f32 %v4061, %v4169
        %v4171 = vpop.f32.mrb[0].mxu0
        %v4172 = vpop.f32.mrb[0].mxu0
        %v4173 = vadd.f32 %v4064, %v4172
        %v4174 = vpop.f32.mrb[0].mxu0
        %4175 = vmatprep.mubr.bf16.mxu0 0
        %4176 = vmatmul.mubr.bf16.gmra.mrb[0].mxu0 %v4117
        %v4177 = vpop.f32.mrb[0].mxu0
        %v4178 = vadd.f32 %v4069, %v4177
        %v4179 = vpop.f32.mrb[0].mxu0
        %v4180 = vpop.f32.mrb[0].mxu0
        %v4181 = vadd.f32 %v4072, %v4180
        %v4182 = vpop.f32.mrb[0].mxu0
        %4183 = vdwg.mxu0
        %v4185 = vlaneseq
        %v4186 = vshrl.u32 %v4185, 7
        %v4187 = vsub.s32 0, %v4186
        %v4188 = vrot.slane %v3892, %v4187
        %v4190 = vadd.f32 %v4154, %v4188
        %v4191 = vadd.f32 %v4157, %v4188
        %v4192 = vadd.f32 %v4162, %v4188
        %v4193 = vadd.f32 %v4165, %v4188
        %v4194 = vadd.f32 %v4170, %v4188
        %v4195 = vadd.f32 %v4173, %v4188
        %v4196 = vadd.f32 %v4178, %v4188
        %v4197 = vadd.f32 %v4181, %v4188
        %v4198 = vmul.f32 %v4190, 0.5
        %v4199 = vmul.f32 %v4191, 0.5
        %v4200 = vmul.f32 %v4192, 0.5
        %v4201 = vmul.f32 %v4193, 0.5
        %v4202 = vmul.f32 %v4194, 0.5
        %v4203 = vmul.f32 %v4195, 0.5
        %v4204 = vmul.f32 %v4196, 0.5
        %v4205 = vmul.f32 %v4197, 0.5
        %v4206 = vmul.f32 %v4190, 0.044715
        %v4207 = vmul.f32 %v4191, 0.044715
        %v4208 = vmul.f32 %v4192, 0.044715
        %v4209 = vmul.f32 %v4193, 0.044715
        %v4210 = vmul.f32 %v4194, 0.044715
        %v4211 = vmul.f32 %v4195, 0.044715
        %v4212 = vmul.f32 %v4196, 0.044715
        %v4213 = vmul.f32 %v4197, 0.044715
        %v4214 = vmul.f32 %v4206, %v4190
        %v4215 = vmul.f32 %v4207, %v4191
        %v4216 = vmul.f32 %v4208, %v4192
        %v4217 = vmul.f32 %v4209, %v4193
        %v4218 = vmul.f32 %v4210, %v4194
        %v4219 = vmul.f32 %v4211, %v4195
        %v4220 = vmul.f32 %v4212, %v4196
        %v4221 = vmul.f32 %v4213, %v4197
        %v4222 = vmul.f32 %v4214, %v4190
        %v4223 = vmul.f32 %v4215, %v4191
        %v4224 = vmul.f32 %v4216, %v4192
        %v4225 = vmul.f32 %v4217, %v4193
        %v4226 = vmul.f32 %v4218, %v4194
        %v4227 = vmul.f32 %v4219, %v4195
        %v4228 = vmul.f32 %v4220, %v4196
        %v4229 = vmul.f32 %v4221, %v4197
        %v4230 = vadd.f32 %v4190, %v4222
        %v4231 = vadd.f32 %v4191, %v4223
        %v4232 = vadd.f32 %v4192, %v4224
        %v4233 = vadd.f32 %v4193, %v4225
        %v4234 = vadd.f32 %v4194, %v4226
        %v4235 = vadd.f32 %v4195, %v4227
        %v4236 = vadd.f32 %v4196, %v4228
        %v4237 = vadd.f32 %v4197, %v4229
        %v4238 = vmul.f32 %v4230, 0.7978846
        %v4239 = vmul.f32 %v4231, 0.7978846
        %v4240 = vmul.f32 %v4232, 0.7978846
        %v4241 = vmul.f32 %v4233, 0.7978846
        %v4242 = vmul.f32 %v4234, 0.7978846
        %v4243 = vmul.f32 %v4235, 0.7978846
        %v4244 = vmul.f32 %v4236, 0.7978846
        %v4245 = vmul.f32 %v4237, 0.7978846
        %v4246 = vtanh.pop %v4238
        %v4247 = vtanh.pop %v4239
        %v4248 = vtanh.pop %v4240
        %v4249 = vtanh.pop %v4241
        %v4250 = vtanh.pop %v4242
        %v4251 = vtanh.pop %v4243
        %v4252 = vtanh.pop %v4244
        %v4253 = vtanh.pop %v4245
        %v4254 = vadd.f32 %v4246, 1.0
        %v4255 = vadd.f32 %v4247, 1.0
        %v4256 = vadd.f32 %v4248, 1.0
        %v4257 = vadd.f32 %v4249, 1.0
        %v4258 = vadd.f32 %v4250, 1.0
        %v4259 = vadd.f32 %v4251, 1.0
        %v4260 = vadd.f32 %v4252, 1.0
        %v4261 = vadd.f32 %v4253, 1.0
        %v4262 = vmul.f32 %v4198, %v4254
        %v4263 = vmul.f32 %v4199, %v4255
        %v4264 = vmul.f32 %v4200, %v4256
        %v4265 = vmul.f32 %v4201, %v4257
        %v4266 = vmul.f32 %v4202, %v4258
        %v4267 = vmul.f32 %v4203, %v4259
        %v4268 = vmul.f32 %v4204, %v4260
        %v4269 = vmul.f32 %v4205, %v4261
        %v4270 = vsub.f32 0.0, %v4262
        %v4271 = vsub.f32 0.0, %v4263
        %v4272 = vsub.f32 0.0, %v4264
        %v4273 = vsub.f32 0.0, %v4265
        %v4274 = vsub.f32 0.0, %v4266
        %v4275 = vsub.f32 0.0, %v4267
        %v4276 = vsub.f32 0.0, %v4268
        %v4277 = vsub.f32 0.0, %v4269
        %v4278 = vmul.f32 %v4270, 1.442695
        %v4279 = vpow.pop %v4278
        %v4280 = vmul.f32 %v4271, 1.442695
        %v4281 = vpow.pop %v4280
        %v4282 = vmul.f32 %v4272, 1.442695
        %v4283 = vpow.pop %v4282
        %v4284 = vmul.f32 %v4273, 1.442695
        %v4285 = vpow.pop %v4284
        %v4286 = vmul.f32 %v4274, 1.442695
        %v4287 = vpow.pop %v4286
        %v4288 = vmul.f32 %v4275, 1.442695
        %v4289 = vpow.pop %v4288
        %v4290 = vmul.f32 %v4276, 1.442695
        %v4291 = vpow.pop %v4290
        %v4292 = vmul.f32 %v4277, 1.442695
        %v4293 = vpow.pop %v4292
        %v4294 = vadd.f32 %v4279, 1.0
        %v4295 = vadd.f32 %v4281, 1.0
        %v4296 = vadd.f32 %v4283, 1.0
        %v4297 = vadd.f32 %v4285, 1.0
        %v4298 = vadd.f32 %v4287, 1.0
        %v4299 = vadd.f32 %v4289, 1.0
        %v4300 = vadd.f32 %v4291, 1.0
        %v4301 = vadd.f32 %v4293, 1.0
        %v4302 = vrcp.pop %v4294
        %v4303 = vrcp.pop %v4295
        %v4304 = vrcp.pop %v4296
        %v4305 = vrcp.pop %v4297
        %v4306 = vrcp.pop %v4298
        %v4307 = vrcp.pop %v4299
        %v4308 = vrcp.pop %v4300
        %v4309 = vrcp.pop %v4301
        %v4310 = vmul.f32 %v3369, %v4302
        %v4311 = vmul.f32 %v3370, %v4303
        %v4312 = vmul.f32 %v3371, %v4304
        %v4313 = vmul.f32 %v3372, %v4305
        %v4314 = vmul.f32 %v3373, %v4306
        %v4315 = vmul.f32 %v3374, %v4307
        %v4316 = vmul.f32 %v3375, %v4308
        %v4317 = vmul.f32 %v3376, %v4309
        %4326 = vrot.lane.b32.xlu0 %v3369, 32
        %v4327 = vpop.permute.xlu0 %4326
        %4328 = vrot.lane.b32.xlu0 %v3370, 32
        %v4329 = vpop.permute.xlu0 %4328
        %4330 = vrot.lane.b32.xlu0 %v3371, 32
        %v4331 = vpop.permute.xlu0 %4330
        %4332 = vrot.lane.b32.xlu0 %v3372, 32
        %v4333 = vpop.permute.xlu0 %4332
        %4334 = vrot.lane.b32.xlu0 %v3373, 32
        %v4335 = vpop.permute.xlu0 %4334
        %4336 = vrot.lane.b32.xlu0 %v3374, 32
        %v4337 = vpop.permute.xlu0 %4336
        %4338 = vrot.lane.b32.xlu0 %v3375, 32
        %v4339 = vpop.permute.xlu0 %4338
        %4340 = vrot.lane.b32.xlu0 %v3376, 32
        %v4341 = vpop.permute.xlu0 %4340
        %v4350 = vsel %vm3404, %v4310, %v4327
        %v4351 = vsel %vm3404, %v4311, %v4329
        %v4352 = vsel %vm3404, %v4312, %v4331
        %v4353 = vsel %vm3404, %v4313, %v4333
        %v4354 = vsel %vm3404, %v4314, %v4335
        %v4355 = vsel %vm3404, %v4315, %v4337
        %v4356 = vsel %vm3404, %v4316, %v4339
        %v4357 = vsel %vm3404, %v4317, %v4341
        %v4358 = vpack.c.bf16 %v4351, %v4350
        %v4359 = vpack.c.bf16 %v4353, %v4352
        %v4360 = vpack.c.bf16 %v4355, %v4354
        %v4361 = vpack.c.bf16 %v4357, %v4356
        %v4362 = vld [vmem:[%s35] sm:$0xf]
        %v4363 = vld [vmem:[%s35 + $0x4] sm:$0xf]
        %v4364 = vld [vmem:[%s35 + $0x8] sm:$0xf]
        %v4365 = vld [vmem:[%s35 + $0xc] sm:$0xf]
        %v4366 = vld [vmem:[%s35 + $0x10] sm:$0xf]
        %v4367 = vld [vmem:[%s35 + $0x14] sm:$0xf]
        %v4368 = vld [vmem:[%s35 + $0x18] sm:$0xf]
        %v4369 = vld [vmem:[%s35 + $0x1c] sm:$0xf]
        %v4370 = vld [vmem:[#allocation28] sm:$0x1]
        %v4372 = vlaneseq
        %v4373 = vshrl.u32 %v4372, 7
        %v4374 = vsub.s32 0, %v4373
        %v4375 = vrot.slane %v4370, %v4374
        %v4385 = vunpack.c.l.b16 %v4362
        %v4386 = vunpack.c.l.b16 %v4363
        %v4387 = vunpack.c.l.b16 %v4364
        %v4388 = vunpack.c.l.b16 %v4365
        %v4389 = vunpack.c.l.b16 %v4366
        %v4390 = vunpack.c.l.b16 %v4367
        %v4391 = vunpack.c.l.b16 %v4368
        %v4392 = vunpack.c.l.b16 %v4369
        %v4393 = vpack.c.b16 %v4386, %v4385
        %v4394 = vpack.c.b16 %v4388, %v4387
        %v4395 = vpack.c.b16 %v4390, %v4389
        %v4396 = vpack.c.b16 %v4392, %v4391
        %vm4401 = vcmask 523264
        %v4403 = vsel %vm4401, %v4358, 0
        %v4406 = vsel %vm4401, %v4359, 0
        %v4409 = vsel %vm4401, %v4360, 0
        %v4412 = vsel %vm4401, %v4361, 0
        %4414 = vmatprep.subr.bf16.mxu0 0
        %4415 = vmatpush1.bf16.msra.mxu0 %v4393
        %4416 = vmatprep.subr.bf16.mxu0 0
        %4417 = vmatpush1.bf16.msra.mxu0 %v4394
        %4418 = vmatprep.subr.bf16.mxu0 0
        %4419 = vmatpush1.bf16.msra.mxu0 %v4395
        %4420 = vmatprep.subr.bf16.mxu0 0
        %4421 = vmatpush1.bf16.msra.mxu0 %v4396
        %4422 = vmatprep.subr.bf16.mxu0 0
        %4423 = vmatpush1.bf16.msra.mxu0 0
        %4424 = vmatprep.subr.bf16.mxu0 0
        %4425 = vmatpush1.bf16.msra.mxu0 0
        %4426 = vmatprep.subr.bf16.mxu0 0
        %4427 = vmatpush1.bf16.msra.mxu0 0
        %4428 = vmatprep.subr.bf16.mxu0 0
        %4429 = vmatpush1.bf16.msra.mxu0 0
        %4430 = vmatprep.subr.bf16.mxu0 0
        %4431 = vmatpush1.bf16.msra.mxu0 0
        %4432 = vmatprep.subr.bf16.mxu0 0
        %4433 = vmatpush1.bf16.msra.mxu0 0
        %4434 = vmatprep.subr.bf16.mxu0 0
        %4435 = vmatpush1.bf16.msra.mxu0 0
        %4436 = vmatprep.subr.bf16.mxu0 0
        %4437 = vmatpush1.bf16.msra.mxu0 0
        %4438 = vmatprep.subr.bf16.mxu0 0
        %4439 = vmatpush1.bf16.msra.mxu0 0
        %4440 = vmatprep.subr.bf16.mxu0 0
        %4441 = vmatpush1.bf16.msra.mxu0 0
        %4442 = vmatprep.subr.bf16.mxu0 0
        %4443 = vmatpush1.bf16.msra.mxu0 0
        %4444 = vmatprep.subr.bf16.mxu0 0
        %4445 = vmatpush1.bf16.msra.mxu0 0
        %4446 = vmatprep.mubr.bf16.mxu0 0
        %4447 = vmatmul.mubr.bf16.gmra.mrb[0].mxu0 %v4403
        %v4448 = vpop.f32.mrb[0].mxu0
        %v4449 = vadd.f32 %v4375, %v4448
        %v4450 = vpop.f32.mrb[0].mxu0
        %v4451 = vpop.f32.mrb[0].mxu0
        %v4452 = vadd.f32 %v4375, %v4451
        %v4453 = vpop.f32.mrb[0].mxu0
        %4454 = vmatprep.mubr.bf16.mxu0 0
        %4455 = vmatmul.mubr.bf16.gmra.mrb[0].mxu0 %v4406
        %v4456 = vpop.f32.mrb[0].mxu0
        %v4457 = vadd.f32 %v4375, %v4456
        %v4458 = vpop.f32.mrb[0].mxu0
        %v4459 = vpop.f32.mrb[0].mxu0
        %v4460 = vadd.f32 %v4375, %v4459
        %v4461 = vpop.f32.mrb[0].mxu0
        %4462 = vmatprep.mubr.bf16.mxu0 0
        %4463 = vmatmul.mubr.bf16.gmra.mrb[0].mxu0 %v4409
        %v4464 = vpop.f32.mrb[0].mxu0
        %v4465 = vadd.f32 %v4375, %v4464
        %v4466 = vpop.f32.mrb[0].mxu0
        %v4467 = vpop.f32.mrb[0].mxu0
        %v4468 = vadd.f32 %v4375, %v4467
        %v4469 = vpop.f32.mrb[0].mxu0
        %4470 = vmatprep.mubr.bf16.mxu0 0
        %4471 = vmatmul.mubr.bf16.gmra.mrb[0].mxu0 %v4412
        %v4472 = vpop.f32.mrb[0].mxu0
        %v4473 = vadd.f32 %v4375, %v4472
        %v4474 = vpop.f32.mrb[0].mxu0
        %v4475 = vpop.f32.mrb[0].mxu0
        %v4476 = vadd.f32 %v4375, %v4475
        %v4477 = vpop.f32.mrb[0].mxu0
        %4478 = vdwg.mxu0
        %v4479 = vmax.f32 %v4449, 0.0
        %v4480 = vmax.f32 %v4452, 0.0
        %v4481 = vmax.f32 %v4457, 0.0
        %v4482 = vmax.f32 %v4460, 0.0
        %v4483 = vmax.f32 %v4465, 0.0
        %v4484 = vmax.f32 %v4468, 0.0
        %v4485 = vmax.f32 %v4473, 0.0
        %v4486 = vmax.f32 %v4476, 0.0
        %v4487 = vsel %vm2425, %v4479, 0.0
        %v4488 = vsel %vm2425, %v4480, 0.0
        %v4489 = vadd.f32 %v4487, %v4488
        %v4490 = vsel %vm2425, %v4481, 0.0
        %v4491 = vadd.f32 %v4489, %v4490
        %v4492 = vsel %vm2425, %v4482, 0.0
        %v4493 = vadd.f32 %v4491, %v4492
        %v4494 = vsel %vm2425, %v4483, 0.0
        %v4495 = vadd.f32 %v4493, %v4494
        %v4496 = vsel %vm2425, %v4484, 0.0
        %v4497 = vadd.f32 %v4495, %v4496
        %v4498 = vsel %vm2425, %v4485, 0.0
        %v4499 = vadd.f32 %v4497, %v4498
        %v4500 = vsel %vm2425, %v4486, 0.0
        %v4501 = vadd.f32 %v4499, %v4500
        %v4502 = vrot.slane %v4501, 4
        %v4503 = vadd.f32 %v4501, %v4502
        %v4504 = vrot.slane %v4503, 2
        %v4505 = vadd.f32 %v4503, %v4504
        %v4506 = vrot.slane %v4505, 1
        %v4507 = vadd.f32 %v4505, %v4506
        %v4508 = vmul.f32 %v4507, %v2447
        %vm4509 = vcmask 519168
        %4510 = vst.msk [vmem:[#allocation5] sm:$0xf] %vm4509, 0
        %vm4511 = vcmask 517120
        %4512 = vst.msk [vmem:[#allocation5 + $0x24] sm:$0x3] %vm4511, 0
        %v4513 = vld [vmem:[#allocation29] sm:$0x1]
        %v4518 = vunpack.c.l.b16 %v4358
        %v4519 = vunpack.c.h.b16 %v4358
        %v4520 = vunpack.c.l.b16 %v4359
        %v4521 = vunpack.c.h.b16 %v4359
        %v4522 = vunpack.c.l.b16 %v4360
        %v4523 = vunpack.c.h.b16 %v4360
        %v4524 = vunpack.c.l.b16 %v4361
        %v4525 = vunpack.c.h.b16 %v4361
        %v4526 = vpack.c.b16 %v4518, %v4518
        %v4527 = vpack.c.b16 %v4519, %v4519
        %v4528 = vpack.c.b16 %v4520, %v4520
        %v4529 = vpack.c.b16 %v4521, %v4521
        %v4530 = vpack.c.b16 %v4522, %v4522
        %v4531 = vpack.c.b16 %v4523, %v4523
        %v4532 = vpack.c.b16 %v4524, %v4524
        %v4533 = vpack.c.b16 %v4525, %v4525
        %4542 = vst.msk [vmem:[#allocation5 + $0x4] sm:$0xf] %vm4509, %v4526
        %4543 = vst.msk [vmem:[#allocation5 + $0x8] sm:$0xf] %vm4509, %v4527
        %4544 = vst.msk [vmem:[#allocation5 + $0xc] sm:$0xf] %vm4509, %v4528
        %4545 = vst.msk [vmem:[#allocation5 + $0x10] sm:$0xf] %vm4509, %v4529
        %4546 = vst.msk [vmem:[#allocation5 + $0x14] sm:$0xf] %vm4509, %v4530
        %4547 = vst.msk [vmem:[#allocation5 + $0x18] sm:$0xf] %vm4509, %v4531
        %4548 = vst.msk [vmem:[#allocation5 + $0x1c] sm:$0xf] %vm4509, %v4532
        %4549 = vst.msk [vmem:[#allocation5 + $0x20] sm:$0xf] %vm4509, %v4533
        %v4550 = vld [vmem:[#allocation5] sm:$0xc]
        %v4551 = vld [vmem:[#allocation5 + $0x4] sm:$0xf]
        %v4552 = vld [vmem:[#allocation5 + $0x8] sm:$0xf]
        %v4553 = vld [vmem:[#allocation5 + $0xc] sm:$0xf]
        %v4554 = vld [vmem:[#allocation5 + $0x10] sm:$0xf]
        %v4555 = vld [vmem:[#allocation5 + $0x14] sm:$0xf]
        %v4556 = vld [vmem:[#allocation5 + $0x18] sm:$0xf]
        %v4557 = vld [vmem:[#allocation5 + $0x1c] sm:$0xf]
        %v4558 = vld [vmem:[#allocation5 + $0x20] sm:$0x3]
        %v4559 = vld [vmem:[#allocation5 + $0x4] sm:$0xc]
        %v4560 = vld [vmem:[#allocation5 + $0x20] sm:$0xf]
        %v4561 = vld [vmem:[#allocation5 + $0x24] sm:$0x3]
        %v4562 = vld [vmem:[%s39] sm:$0xf]
        %v4563 = vld [vmem:[%s39 + $0x4] sm:$0xf]
        %v4564 = vld [vmem:[%s39 + $0x8] sm:$0xf]
        %v4565 = vld [vmem:[%s39 + $0xc] sm:$0xf]
        %v4566 = vld [vmem:[%s39 + $0x10] sm:$0xf]
        %v4567 = vld [vmem:[%s39 + $0x14] sm:$0xf]
        %v4568 = vld [vmem:[%s39 + $0x18] sm:$0xf]
        %v4569 = vld [vmem:[%s39 + $0x1c] sm:$0xf]
        %s4570 = scalar_lea.vmem %s39, 32
        %v4571 = vld [vmem:[%s4570] sm:$0xf]
        %v4572 = vld [vmem:[%s4570 + $0x4] sm:$0xf]
        %v4573 = vld [vmem:[%s4570 + $0x8] sm:$0xf]
        %v4574 = vld [vmem:[%s4570 + $0xc] sm:$0xf]
        %v4575 = vld [vmem:[%s4570 + $0x10] sm:$0xf]
        %v4576 = vld [vmem:[%s4570 + $0x14] sm:$0xf]
        %v4577 = vld [vmem:[%s4570 + $0x18] sm:$0xf]
        %v4578 = vld [vmem:[%s4570 + $0x1c] sm:$0xf]
        %v4588 = vunpack.c.l.b16 %v4559
        %v4589 = vunpack.c.l.b16 %v4552
        %v4590 = vunpack.c.l.b16 %v4553
        %v4591 = vunpack.c.l.b16 %v4554
        %v4592 = vunpack.c.l.b16 %v4555
        %v4593 = vunpack.c.l.b16 %v4556
        %v4594 = vunpack.c.l.b16 %v4557
        %v4595 = vunpack.c.l.b16 %v4560
        %v4596 = vunpack.c.l.b16 %v4561
        %v4597 = vpack.c.b16 %v4589, %v4588
        %v4598 = vpack.c.b16 %v4591, %v4590
        %v4599 = vpack.c.b16 %v4593, %v4592
        %v4600 = vpack.c.b16 %v4595, %v4594
        %v4601 = vpack.c.b16 %v4596, %v4596
        %vm4602 = vcmask 1045504
        %v4603 = vrot.slane %v4597, 2
        %v4604 = vrot.slane %v4598, 2
        %v4605 = vsel %vm4602, %v4603, %v4604
        %v4606 = vrot.slane %v4599, 2
        %v4607 = vsel %vm4602, %v4604, %v4606
        %v4608 = vrot.slane %v4600, 2
        %v4609 = vsel %vm4602, %v4606, %v4608
        %v4610 = vrot.slane %v4601, 2
        %v4611 = vsel %vm4602, %v4608, %v4610
        %v4620 = vunpack.c.l.b16 %v4571
        %v4621 = vunpack.c.l.b16 %v4572
        %v4622 = vunpack.c.l.b16 %v4573
        %v4623 = vunpack.c.l.b16 %v4574
        %v4624 = vunpack.c.l.b16 %v4575
        %v4625 = vunpack.c.l.b16 %v4576
        %v4626 = vunpack.c.l.b16 %v4577
        %v4627 = vunpack.c.l.b16 %v4578
        %v4628 = vpack.c.b16 %v4621, %v4620
        %v4629 = vpack.c.b16 %v4623, %v4622
        %v4630 = vpack.c.b16 %v4625, %v4624
        %v4631 = vpack.c.b16 %v4627, %v4626
        %v4637 = vsel %vm4401, %v4605, 0
        %v4640 = vsel %vm4401, %v4607, 0
        %v4643 = vsel %vm4401, %v4609, 0
        %v4646 = vsel %vm4401, %v4611, 0
        %4648 = vmatprep.subr.bf16.mxu0 0
        %4649 = vmatpush1.bf16.msra.mxu0 %v4628
        %4650 = vmatprep.subr.bf16.mxu0 0
        %4651 = vmatpush1.bf16.msra.mxu0 %v4629
        %4652 = vmatprep.subr.bf16.mxu0 0
        %4653 = vmatpush1.bf16.msra.mxu0 %v4630
        %4654 = vmatprep.subr.bf16.mxu0 0
        %4655 = vmatpush1.bf16.msra.mxu0 %v4631
        %4656 = vmatprep.subr.bf16.mxu0 0
        %4657 = vmatpush1.bf16.msra.mxu0 0
        %4658 = vmatprep.subr.bf16.mxu0 0
        %4659 = vmatpush1.bf16.msra.mxu0 0
        %4660 = vmatprep.subr.bf16.mxu0 0
        %4661 = vmatpush1.bf16.msra.mxu0 0
        %4662 = vmatprep.subr.bf16.mxu0 0
        %4663 = vmatpush1.bf16.msra.mxu0 0
        %4664 = vmatprep.subr.bf16.mxu0 0
        %4665 = vmatpush1.bf16.msra.mxu0 0
        %4666 = vmatprep.subr.bf16.mxu0 0
        %4667 = vmatpush1.bf16.msra.mxu0 0
        %4668 = vmatprep.subr.bf16.mxu0 0
        %4669 = vmatpush1.bf16.msra.mxu0 0
        %4670 = vmatprep.subr.bf16.mxu0 0
        %4671 = vmatpush1.bf16.msra.mxu0 0
        %4672 = vmatprep.subr.bf16.mxu0 0
        %4673 = vmatpush1.bf16.msra.mxu0 0
        %4674 = vmatprep.subr.bf16.mxu0 0
        %4675 = vmatpush1.bf16.msra.mxu0 0
        %4676 = vmatprep.subr.bf16.mxu0 0
        %4677 = vmatpush1.bf16.msra.mxu0 0
        %4678 = vmatprep.subr.bf16.mxu0 0
        %4679 = vmatpush1.bf16.msra.mxu0 0
        %4680 = vmatprep.mubr.bf16.mxu0 0
        %4681 = vmatmul.mubr.bf16.gmra.mrb[0].mxu0 %v4637
        %v4682 = vpop.f32.mrb[0].mxu0
        %v4683 = vadd.f32 0.0, %v4682
        %v4684 = vpop.f32.mrb[0].mxu0
        %v4685 = vpop.f32.mrb[0].mxu0
        %v4686 = vadd.f32 0.0, %v4685
        %v4687 = vpop.f32.mrb[0].mxu0
        %4688 = vmatprep.mubr.bf16.mxu0 0
        %4689 = vmatmul.mubr.bf16.gmra.mrb[0].mxu0 %v4640
        %v4690 = vpop.f32.mrb[0].mxu0
        %v4691 = vadd.f32 0.0, %v4690
        %v4692 = vpop.f32.mrb[0].mxu0
        %v4693 = vpop.f32.mrb[0].mxu0
        %v4694 = vadd.f32 0.0, %v4693
        %v4695 = vpop.f32.mrb[0].mxu0
        %4696 = vmatprep.mubr.bf16.mxu0 0
        %4697 = vmatmul.mubr.bf16.gmra.mrb[0].mxu0 %v4643
        %v4698 = vpop.f32.mrb[0].mxu0
        %v4699 = vadd.f32 0.0, %v4698
        %v4700 = vpop.f32.mrb[0].mxu0
        %v4701 = vpop.f32.mrb[0].mxu0
        %v4702 = vadd.f32 0.0, %v4701
        %v4703 = vpop.f32.mrb[0].mxu0
        %4704 = vmatprep.mubr.bf16.mxu0 0
        %4705 = vmatmul.mubr.bf16.gmra.mrb[0].mxu0 %v4646
        %v4706 = vpop.f32.mrb[0].mxu0
        %v4707 = vadd.f32 0.0, %v4706
        %v4708 = vpop.f32.mrb[0].mxu0
        %v4709 = vpop.f32.mrb[0].mxu0
        %v4710 = vadd.f32 0.0, %v4709
        %v4711 = vpop.f32.mrb[0].mxu0
        %4712 = vdwg.mxu0
        %v4716 = vunpack.c.l.b16 %v4550
        %v4717 = vunpack.c.l.b16 %v4551
        %v4718 = vunpack.c.l.b16 %v4558
        %v4719 = vpack.c.b16 %v4717, %v4716
        %v4720 = vpack.c.b16 %v4590, %v4589
        %v4721 = vpack.c.b16 %v4592, %v4591
        %v4722 = vpack.c.b16 %v4594, %v4593
        %v4723 = vpack.c.b16 %v4718, %v4718
        %v4724 = vrot.slane %v4719, 2
        %v4725 = vrot.slane %v4720, 2
        %v4726 = vsel %vm4602, %v4724, %v4725
        %v4727 = vrot.slane %v4721, 2
        %v4728 = vsel %vm4602, %v4725, %v4727
        %v4729 = vrot.slane %v4722, 2
        %v4730 = vsel %vm4602, %v4727, %v4729
        %v4731 = vrot.slane %v4723, 2
        %v4732 = vsel %vm4602, %v4729, %v4731
        %v4741 = vunpack.c.l.b16 %v4562
        %v4742 = vunpack.c.l.b16 %v4563
        %v4743 = vunpack.c.l.b16 %v4564
        %v4744 = vunpack.c.l.b16 %v4565
        %v4745 = vunpack.c.l.b16 %v4566
        %v4746 = vunpack.c.l.b16 %v4567
        %v4747 = vunpack.c.l.b16 %v4568
        %v4748 = vunpack.c.l.b16 %v4569
        %v4749 = vpack.c.b16 %v4742, %v4741
        %v4750 = vpack.c.b16 %v4744, %v4743
        %v4751 = vpack.c.b16 %v4746, %v4745
        %v4752 = vpack.c.b16 %v4748, %v4747
        %v4758 = vsel %vm4401, %v4726, 0
        %v4761 = vsel %vm4401, %v4728, 0
        %v4764 = vsel %vm4401, %v4730, 0
        %v4767 = vsel %vm4401, %v4732, 0
        %4769 = vmatprep.subr.bf16.mxu0 0
        %4770 = vmatpush1.bf16.msra.mxu0 %v4749
        %4771 = vmatprep.subr.bf16.mxu0 0
        %4772 = vmatpush1.bf16.msra.mxu0 %v4750
        %4773 = vmatprep.subr.bf16.mxu0 0
        %4774 = vmatpush1.bf16.msra.mxu0 %v4751
        %4775 = vmatprep.subr.bf16.mxu0 0
        %4776 = vmatpush1.bf16.msra.mxu0 %v4752
        %4777 = vmatprep.subr.bf16.mxu0 0
        %4778 = vmatpush1.bf16.msra.mxu0 0
        %4779 = vmatprep.subr.bf16.mxu0 0
        %4780 = vmatpush1.bf16.msra.mxu0 0
        %4781 = vmatprep.subr.bf16.mxu0 0
        %4782 = vmatpush1.bf16.msra.mxu0 0
        %4783 = vmatprep.subr.bf16.mxu0 0
        %4784 = vmatpush1.bf16.msra.mxu0 0
        %4785 = vmatprep.subr.bf16.mxu0 0
        %4786 = vmatpush1.bf16.msra.mxu0 0
        %4787 = vmatprep.subr.bf16.mxu0 0
        %4788 = vmatpush1.bf16.msra.mxu0 0
        %4789 = vmatprep.subr.bf16.mxu0 0
        %4790 = vmatpush1.bf16.msra.mxu0 0
        %4791 = vmatprep.subr.bf16.mxu0 0
        %4792 = vmatpush1.bf16.msra.mxu0 0
        %4793 = vmatprep.subr.bf16.mxu0 0
        %4794 = vmatpush1.bf16.msra.mxu0 0
        %4795 = vmatprep.subr.bf16.mxu0 0
        %4796 = vmatpush1.bf16.msra.mxu0 0
        %4797 = vmatprep.subr.bf16.mxu0 0
        %4798 = vmatpush1.bf16.msra.mxu0 0
        %4799 = vmatprep.subr.bf16.mxu0 0
        %4800 = vmatpush1.bf16.msra.mxu0 0
        %4801 = vmatprep.mubr.bf16.mxu0 0
        %4802 = vmatmul.mubr.bf16.gmra.mrb[0].mxu0 %v4758
        %v4803 = vpop.f32.mrb[0].mxu0
        %v4804 = vadd.f32 %v4683, %v4803
        %v4805 = vpop.f32.mrb[0].mxu0
        %v4806 = vpop.f32.mrb[0].mxu0
        %v4807 = vadd.f32 %v4686, %v4806
        %v4808 = vpop.f32.mrb[0].mxu0
        %4809 = vmatprep.mubr.bf16.mxu0 0
        %4810 = vmatmul.mubr.bf16.gmra.mrb[0].mxu0 %v4761
        %v4811 = vpop.f32.mrb[0].mxu0
        %v4812 = vadd.f32 %v4691, %v4811
        %v4813 = vpop.f32.mrb[0].mxu0
        %v4814 = vpop.f32.mrb[0].mxu0
        %v4815 = vadd.f32 %v4694, %v4814
        %v4816 = vpop.f32.mrb[0].mxu0
        %4817 = vmatprep.mubr.bf16.mxu0 0
        %4818 = vmatmul.mubr.bf16.gmra.mrb[0].mxu0 %v4764
        %v4819 = vpop.f32.mrb[0].mxu0
        %v4820 = vadd.f32 %v4699, %v4819
        %v4821 = vpop.f32.mrb[0].mxu0
        %v4822 = vpop.f32.mrb[0].mxu0
        %v4823 = vadd.f32 %v4702, %v4822
        %v4824 = vpop.f32.mrb[0].mxu0
        %4825 = vmatprep.mubr.bf16.mxu0 0
        %4826 = vmatmul.mubr.bf16.gmra.mrb[0].mxu0 %v4767
        %v4827 = vpop.f32.mrb[0].mxu0
        %v4828 = vadd.f32 %v4707, %v4827
        %v4829 = vpop.f32.mrb[0].mxu0
        %v4830 = vpop.f32.mrb[0].mxu0
        %v4831 = vadd.f32 %v4710, %v4830
        %v4832 = vpop.f32.mrb[0].mxu0
        %4833 = vdwg.mxu0
        %v4835 = vlaneseq
        %v4836 = vshrl.u32 %v4835, 7
        %v4837 = vsub.s32 0, %v4836
        %v4838 = vrot.slane %v4513, %v4837
        %v4840 = vadd.f32 %v4804, %v4838
        %v4841 = vadd.f32 %v4807, %v4838
        %v4842 = vadd.f32 %v4812, %v4838
        %v4843 = vadd.f32 %v4815, %v4838
        %v4844 = vadd.f32 %v4820, %v4838
        %v4845 = vadd.f32 %v4823, %v4838
        %v4846 = vadd.f32 %v4828, %v4838
        %v4847 = vadd.f32 %v4831, %v4838
        %v4848 = vmul.f32 %v4840, 0.5
        %v4849 = vmul.f32 %v4841, 0.5
        %v4850 = vmul.f32 %v4842, 0.5
        %v4851 = vmul.f32 %v4843, 0.5
        %v4852 = vmul.f32 %v4844, 0.5
        %v4853 = vmul.f32 %v4845, 0.5
        %v4854 = vmul.f32 %v4846, 0.5
        %v4855 = vmul.f32 %v4847, 0.5
        %v4856 = vmul.f32 %v4840, 0.044715
        %v4857 = vmul.f32 %v4841, 0.044715
        %v4858 = vmul.f32 %v4842, 0.044715
        %v4859 = vmul.f32 %v4843, 0.044715
        %v4860 = vmul.f32 %v4844, 0.044715
        %v4861 = vmul.f32 %v4845, 0.044715
        %v4862 = vmul.f32 %v4846, 0.044715
        %v4863 = vmul.f32 %v4847, 0.044715
        %v4864 = vmul.f32 %v4856, %v4840
        %v4865 = vmul.f32 %v4857, %v4841
        %v4866 = vmul.f32 %v4858, %v4842
        %v4867 = vmul.f32 %v4859, %v4843
        %v4868 = vmul.f32 %v4860, %v4844
        %v4869 = vmul.f32 %v4861, %v4845
        %v4870 = vmul.f32 %v4862, %v4846
        %v4871 = vmul.f32 %v4863, %v4847
        %v4872 = vmul.f32 %v4864, %v4840
        %v4873 = vmul.f32 %v4865, %v4841
        %v4874 = vmul.f32 %v4866, %v4842
        %v4875 = vmul.f32 %v4867, %v4843
        %v4876 = vmul.f32 %v4868, %v4844
        %v4877 = vmul.f32 %v4869, %v4845
        %v4878 = vmul.f32 %v4870, %v4846
        %v4879 = vmul.f32 %v4871, %v4847
        %v4880 = vadd.f32 %v4840, %v4872
        %v4881 = vadd.f32 %v4841, %v4873
        %v4882 = vadd.f32 %v4842, %v4874
        %v4883 = vadd.f32 %v4843, %v4875
        %v4884 = vadd.f32 %v4844, %v4876
        %v4885 = vadd.f32 %v4845, %v4877
        %v4886 = vadd.f32 %v4846, %v4878
        %v4887 = vadd.f32 %v4847, %v4879
        %v4888 = vmul.f32 %v4880, 0.7978846
        %v4889 = vmul.f32 %v4881, 0.7978846
        %v4890 = vmul.f32 %v4882, 0.7978846
        %v4891 = vmul.f32 %v4883, 0.7978846
        %v4892 = vmul.f32 %v4884, 0.7978846
        %v4893 = vmul.f32 %v4885, 0.7978846
        %v4894 = vmul.f32 %v4886, 0.7978846
        %v4895 = vmul.f32 %v4887, 0.7978846
        %v4896 = vtanh.pop %v4888
        %v4897 = vtanh.pop %v4889
        %v4898 = vtanh.pop %v4890
        %v4899 = vtanh.pop %v4891
        %v4900 = vtanh.pop %v4892
        %v4901 = vtanh.pop %v4893
        %v4902 = vtanh.pop %v4894
        %v4903 = vtanh.pop %v4895
        %v4904 = vadd.f32 %v4896, 1.0
        %v4905 = vadd.f32 %v4897, 1.0
        %v4906 = vadd.f32 %v4898, 1.0
        %v4907 = vadd.f32 %v4899, 1.0
        %v4908 = vadd.f32 %v4900, 1.0
        %v4909 = vadd.f32 %v4901, 1.0
        %v4910 = vadd.f32 %v4902, 1.0
        %v4911 = vadd.f32 %v4903, 1.0
        %v4912 = vmul.f32 %v4848, %v4904
        %v4913 = vmul.f32 %v4849, %v4905
        %v4914 = vmul.f32 %v4850, %v4906
        %v4915 = vmul.f32 %v4851, %v4907
        %v4916 = vmul.f32 %v4852, %v4908
        %v4917 = vmul.f32 %v4853, %v4909
        %v4918 = vmul.f32 %v4854, %v4910
        %v4919 = vmul.f32 %v4855, %v4911
        %v4920 = vld [vmem:[#allocation32] sm:$0x1]
        %v4921 = vpack.c.bf16 %v4913, %v4912
        %v4922 = vpack.c.bf16 %v4915, %v4914
        %v4923 = vpack.c.bf16 %v4917, %v4916
        %v4924 = vpack.c.bf16 %v4919, %v4918
        %v4929 = vunpack.c.l.b16 %v4921
        %v4930 = vunpack.c.h.b16 %v4921
        %v4931 = vunpack.c.l.b16 %v4922
        %v4932 = vunpack.c.h.b16 %v4922
        %v4933 = vunpack.c.l.b16 %v4923
        %v4934 = vunpack.c.h.b16 %v4923
        %v4935 = vunpack.c.l.b16 %v4924
        %v4936 = vunpack.c.h.b16 %v4924
        %v4937 = vpack.c.b16 %v4929, %v4929
        %v4938 = vpack.c.b16 %v4930, %v4930
        %v4939 = vpack.c.b16 %v4931, %v4931
        %v4940 = vpack.c.b16 %v4932, %v4932
        %v4941 = vpack.c.b16 %v4933, %v4933
        %v4942 = vpack.c.b16 %v4934, %v4934
        %v4943 = vpack.c.b16 %v4935, %v4935
        %v4944 = vpack.c.b16 %v4936, %v4936
        %4953 = vst.msk [vmem:[#allocation5 + $0x4] sm:$0xf] %vm4509, %v4937
        %4954 = vst.msk [vmem:[#allocation5 + $0x8] sm:$0xf] %vm4509, %v4938
        %4955 = vst.msk [vmem:[#allocation5 + $0xc] sm:$0xf] %vm4509, %v4939
        %4956 = vst.msk [vmem:[#allocation5 + $0x10] sm:$0xf] %vm4509, %v4940
        %4957 = vst.msk [vmem:[#allocation5 + $0x14] sm:$0xf] %vm4509, %v4941
        %4958 = vst.msk [vmem:[#allocation5 + $0x18] sm:$0xf] %vm4509, %v4942
        %4959 = vst.msk [vmem:[#allocation5 + $0x1c] sm:$0xf] %vm4509, %v4943
        %4960 = vst.msk [vmem:[#allocation5 + $0x20] sm:$0xf] %vm4509, %v4944
        %v4961 = vld [vmem:[#allocation5] sm:$0xc]
        %v4962 = vld [vmem:[#allocation5 + $0x4] sm:$0xf]
        %v4963 = vld [vmem:[#allocation5 + $0x8] sm:$0xf]
        %v4964 = vld [vmem:[#allocation5 + $0xc] sm:$0xf]
        %v4965 = vld [vmem:[#allocation5 + $0x10] sm:$0xf]
        %v4966 = vld [vmem:[#allocation5 + $0x14] sm:$0xf]
        %v4967 = vld [vmem:[#allocation5 + $0x18] sm:$0xf]
        %v4968 = vld [vmem:[#allocation5 + $0x1c] sm:$0xf]
        %v4969 = vld [vmem:[#allocation5 + $0x20] sm:$0x3]
        %v4970 = vld [vmem:[#allocation5 + $0x4] sm:$0xc]
        %v4971 = vld [vmem:[#allocation5 + $0x20] sm:$0xf]
        %v4972 = vld [vmem:[#allocation5 + $0x24] sm:$0x3]
        %v4973 = vld [vmem:[#allocation31] sm:$0xf]
        %v4974 = vld [vmem:[#allocation31 + $0x4] sm:$0xf]
        %v4975 = vld [vmem:[#allocation31 + $0x8] sm:$0xf]
        %v4976 = vld [vmem:[#allocation31 + $0xc] sm:$0xf]
        %v4977 = vld [vmem:[#allocation31 + $0x10] sm:$0xf]
        %v4978 = vld [vmem:[#allocation31 + $0x14] sm:$0xf]
        %v4979 = vld [vmem:[#allocation31 + $0x18] sm:$0xf]
        %v4980 = vld [vmem:[#allocation31 + $0x1c] sm:$0xf]
        %s4981 = scalar_lea.vmem [#allocation31], 32
        %v4982 = vld [vmem:[%s4981] sm:$0xf]
        %v4983 = vld [vmem:[%s4981 + $0x4] sm:$0xf]
        %v4984 = vld [vmem:[%s4981 + $0x8] sm:$0xf]
        %v4985 = vld [vmem:[%s4981 + $0xc] sm:$0xf]
        %v4986 = vld [vmem:[%s4981 + $0x10] sm:$0xf]
        %v4987 = vld [vmem:[%s4981 + $0x14] sm:$0xf]
        %v4988 = vld [vmem:[%s4981 + $0x18] sm:$0xf]
        %v4989 = vld [vmem:[%s4981 + $0x1c] sm:$0xf]
        %v4999 = vunpack.c.l.b16 %v4970
        %v5000 = vunpack.c.l.b16 %v4963
        %v5001 = vunpack.c.l.b16 %v4964
        %v5002 = vunpack.c.l.b16 %v4965
        %v5003 = vunpack.c.l.b16 %v4966
        %v5004 = vunpack.c.l.b16 %v4967
        %v5005 = vunpack.c.l.b16 %v4968
        %v5006 = vunpack.c.l.b16 %v4971
        %v5007 = vunpack.c.l.b16 %v4972
        %v5008 = vpack.c.b16 %v5000, %v4999
        %v5009 = vpack.c.b16 %v5002, %v5001
        %v5010 = vpack.c.b16 %v5004, %v5003
        %v5011 = vpack.c.b16 %v5006, %v5005
        %v5012 = vpack.c.b16 %v5007, %v5007
        %v5013 = vrot.slane %v5008, 2
        %v5014 = vrot.slane %v5009, 2
        %v5015 = vsel %vm4602, %v5013, %v5014
        %v5016 = vrot.slane %v5010, 2
        %v5017 = vsel %vm4602, %v5014, %v5016
        %v5018 = vrot.slane %v5011, 2
        %v5019 = vsel %vm4602, %v5016, %v5018
        %v5020 = vrot.slane %v5012, 2
        %v5021 = vsel %vm4602, %v5018, %v5020
        %v5030 = vunpack.c.l.b16 %v4982
        %v5031 = vunpack.c.l.b16 %v4983
        %v5032 = vunpack.c.l.b16 %v4984
        %v5033 = vunpack.c.l.b16 %v4985
        %v5034 = vunpack.c.l.b16 %v4986
        %v5035 = vunpack.c.l.b16 %v4987
        %v5036 = vunpack.c.l.b16 %v4988
        %v5037 = vunpack.c.l.b16 %v4989
        %v5038 = vpack.c.b16 %v5031, %v5030
        %v5039 = vpack.c.b16 %v5033, %v5032
        %v5040 = vpack.c.b16 %v5035, %v5034
        %v5041 = vpack.c.b16 %v5037, %v5036
        %v5047 = vsel %vm4401, %v5015, 0
        %v5050 = vsel %vm4401, %v5017, 0
        %v5053 = vsel %vm4401, %v5019, 0
        %v5056 = vsel %vm4401, %v5021, 0
        %5058 = vmatprep.subr.bf16.mxu0 0
        %5059 = vmatpush1.bf16.msra.mxu0 %v5038
        %5060 = vmatprep.subr.bf16.mxu0 0
        %5061 = vmatpush1.bf16.msra.mxu0 %v5039
        %5062 = vmatprep.subr.bf16.mxu0 0
        %5063 = vmatpush1.bf16.msra.mxu0 %v5040
        %5064 = vmatprep.subr.bf16.mxu0 0
        %5065 = vmatpush1.bf16.msra.mxu0 %v5041
        %5066 = vmatprep.subr.bf16.mxu0 0
        %5067 = vmatpush1.bf16.msra.mxu0 0
        %5068 = vmatprep.subr.bf16.mxu0 0
        %5069 = vmatpush1.bf16.msra.mxu0 0
        %5070 = vmatprep.subr.bf16.mxu0 0
        %5071 = vmatpush1.bf16.msra.mxu0 0
        %5072 = vmatprep.subr.bf16.mxu0 0
        %5073 = vmatpush1.bf16.msra.mxu0 0
        %5074 = vmatprep.subr.bf16.mxu0 0
        %5075 = vmatpush1.bf16.msra.mxu0 0
        %5076 = vmatprep.subr.bf16.mxu0 0
        %5077 = vmatpush1.bf16.msra.mxu0 0
        %5078 = vmatprep.subr.bf16.mxu0 0
        %5079 = vmatpush1.bf16.msra.mxu0 0
        %5080 = vmatprep.subr.bf16.mxu0 0
        %5081 = vmatpush1.bf16.msra.mxu0 0
        %5082 = vmatprep.subr.bf16.mxu0 0
        %5083 = vmatpush1.bf16.msra.mxu0 0
        %5084 = vmatprep.subr.bf16.mxu0 0
        %5085 = vmatpush1.bf16.msra.mxu0 0
        %5086 = vmatprep.subr.bf16.mxu0 0
        %5087 = vmatpush1.bf16.msra.mxu0 0
        %5088 = vmatprep.subr.bf16.mxu0 0
        %5089 = vmatpush1.bf16.msra.mxu0 0
        %5090 = vmatprep.mubr.bf16.mxu0 0
        %5091 = vmatmul.mubr.bf16.gmra.mrb[0].mxu0 %v5047
        %v5092 = vpop.f32.mrb[0].mxu0
        %v5093 = vadd.f32 0.0, %v5092
        %v5094 = vpop.f32.mrb[0].mxu0
        %v5095 = vpop.f32.mrb[0].mxu0
        %v5096 = vadd.f32 0.0, %v5095
        %v5097 = vpop.f32.mrb[0].mxu0
        %5098 = vmatprep.mubr.bf16.mxu0 0
        %5099 = vmatmul.mubr.bf16.gmra.mrb[0].mxu0 %v5050
        %v5100 = vpop.f32.mrb[0].mxu0
        %v5101 = vadd.f32 0.0, %v5100
        %v5102 = vpop.f32.mrb[0].mxu0
        %v5103 = vpop.f32.mrb[0].mxu0
        %v5104 = vadd.f32 0.0, %v5103
        %v5105 = vpop.f32.mrb[0].mxu0
        %5106 = vmatprep.mubr.bf16.mxu0 0
        %5107 = vmatmul.mubr.bf16.gmra.mrb[0].mxu0 %v5053
        %v5108 = vpop.f32.mrb[0].mxu0
        %v5109 = vadd.f32 0.0, %v5108
        %v5110 = vpop.f32.mrb[0].mxu0
        %v5111 = vpop.f32.mrb[0].mxu0
        %v5112 = vadd.f32 0.0, %v5111
        %v5113 = vpop.f32.mrb[0].mxu0
        %5114 = vmatprep.mubr.bf16.mxu0 0
        %5115 = vmatmul.mubr.bf16.gmra.mrb[0].mxu0 %v5056
        %v5116 = vpop.f32.mrb[0].mxu0
        %v5117 = vadd.f32 0.0, %v5116
        %v5118 = vpop.f32.mrb[0].mxu0
        %v5119 = vpop.f32.mrb[0].mxu0
        %v5120 = vadd.f32 0.0, %v5119
        %v5121 = vpop.f32.mrb[0].mxu0
        %5122 = vdwg.mxu0
        %v5126 = vunpack.c.l.b16 %v4961
        %v5127 = vunpack.c.l.b16 %v4962
        %v5128 = vunpack.c.l.b16 %v4969
        %v5129 = vpack.c.b16 %v5127, %v5126
        %v5130 = vpack.c.b16 %v5001, %v5000
        %v5131 = vpack.c.b16 %v5003, %v5002
        %v5132 = vpack.c.b16 %v5005, %v5004
        %v5133 = vpack.c.b16 %v5128, %v5128
        %v5134 = vrot.slane %v5129, 2
        %v5135 = vrot.slane %v5130, 2
        %v5136 = vsel %vm4602, %v5134, %v5135
        %v5137 = vrot.slane %v5131, 2
        %v5138 = vsel %vm4602, %v5135, %v5137
        %v5139 = vrot.slane %v5132, 2
        %v5140 = vsel %vm4602, %v5137, %v5139
        %v5141 = vrot.slane %v5133, 2
        %v5142 = vsel %vm4602, %v5139, %v5141
        %v5151 = vunpack.c.l.b16 %v4973
        %v5152 = vunpack.c.l.b16 %v4974
        %v5153 = vunpack.c.l.b16 %v4975
        %v5154 = vunpack.c.l.b16 %v4976
        %v5155 = vunpack.c.l.b16 %v4977
        %v5156 = vunpack.c.l.b16 %v4978
        %v5157 = vunpack.c.l.b16 %v4979
        %v5158 = vunpack.c.l.b16 %v4980
        %v5159 = vpack.c.b16 %v5152, %v5151
        %v5160 = vpack.c.b16 %v5154, %v5153
        %v5161 = vpack.c.b16 %v5156, %v5155
        %v5162 = vpack.c.b16 %v5158, %v5157
        %v5168 = vsel %vm4401, %v5136, 0
        %v5171 = vsel %vm4401, %v5138, 0
        %v5174 = vsel %vm4401, %v5140, 0
        %v5177 = vsel %vm4401, %v5142, 0
        %5179 = vmatprep.subr.bf16.mxu0 0
        %5180 = vmatpush1.bf16.msra.mxu0 %v5159
        %5181 = vmatprep.subr.bf16.mxu0 0
        %5182 = vmatpush1.bf16.msra.mxu0 %v5160
        %5183 = vmatprep.subr.bf16.mxu0 0
        %5184 = vmatpush1.bf16.msra.mxu0 %v5161
        %5185 = vmatprep.subr.bf16.mxu0 0
        %5186 = vmatpush1.bf16.msra.mxu0 %v5162
        %5187 = vmatprep.subr.bf16.mxu0 0
        %5188 = vmatpush1.bf16.msra.mxu0 0
        %5189 = vmatprep.subr.bf16.mxu0 0
        %5190 = vmatpush1.bf16.msra.mxu0 0
        %5191 = vmatprep.subr.bf16.mxu0 0
        %5192 = vmatpush1.bf16.msra.mxu0 0
        %5193 = vmatprep.subr.bf16.mxu0 0
        %5194 = vmatpush1.bf16.msra.mxu0 0
        %5195 = vmatprep.subr.bf16.mxu0 0
        %5196 = vmatpush1.bf16.msra.mxu0 0
        %5197 = vmatprep.subr.bf16.mxu0 0
        %5198 = vmatpush1.bf16.msra.mxu0 0
        %5199 = vmatprep.subr.bf16.mxu0 0
        %5200 = vmatpush1.bf16.msra.mxu0 0
        %5201 = vmatprep.subr.bf16.mxu0 0
        %5202 = vmatpush1.bf16.msra.mxu0 0
        %5203 = vmatprep.subr.bf16.mxu0 0
        %5204 = vmatpush1.bf16.msra.mxu0 0
        %5205 = vmatprep.subr.bf16.mxu0 0
        %5206 = vmatpush1.bf16.msra.mxu0 0
        %5207 = vmatprep.subr.bf16.mxu0 0
        %5208 = vmatpush1.bf16.msra.mxu0 0
        %5209 = vmatprep.subr.bf16.mxu0 0
        %5210 = vmatpush1.bf16.msra.mxu0 0
        %5211 = vmatprep.mubr.bf16.mxu0 0
        %5212 = vmatmul.mubr.bf16.gmra.mrb[0].mxu0 %v5168
        %v5213 = vpop.f32.mrb[0].mxu0
        %v5214 = vadd.f32 %v5093, %v5213
        %v5215 = vpop.f32.mrb[0].mxu0
        %v5216 = vpop.f32.mrb[0].mxu0
        %v5217 = vadd.f32 %v5096, %v5216
        %v5218 = vpop.f32.mrb[0].mxu0
        %5219 = vmatprep.mubr.bf16.mxu0 0
        %5220 = vmatmul.mubr.bf16.gmra.mrb[0].mxu0 %v5171
        %v5221 = vpop.f32.mrb[0].mxu0
        %v5222 = vadd.f32 %v5101, %v5221
        %v5223 = vpop.f32.mrb[0].mxu0
        %v5224 = vpop.f32.mrb[0].mxu0
        %v5225 = vadd.f32 %v5104, %v5224
        %v5226 = vpop.f32.mrb[0].mxu0
        %5227 = vmatprep.mubr.bf16.mxu0 0
        %5228 = vmatmul.mubr.bf16.gmra.mrb[0].mxu0 %v5174
        %v5229 = vpop.f32.mrb[0].mxu0
        %v5230 = vadd.f32 %v5109, %v5229
        %v5231 = vpop.f32.mrb[0].mxu0
        %v5232 = vpop.f32.mrb[0].mxu0
        %v5233 = vadd.f32 %v5112, %v5232
        %v5234 = vpop.f32.mrb[0].mxu0
        %5235 = vmatprep.mubr.bf16.mxu0 0
        %5236 = vmatmul.mubr.bf16.gmra.mrb[0].mxu0 %v5177
        %v5237 = vpop.f32.mrb[0].mxu0
        %v5238 = vadd.f32 %v5117, %v5237
        %v5239 = vpop.f32.mrb[0].mxu0
        %v5240 = vpop.f32.mrb[0].mxu0
        %v5241 = vadd.f32 %v5120, %v5240
        %v5242 = vpop.f32.mrb[0].mxu0
        %5243 = vdwg.mxu0
        %v5245 = vlaneseq
        %v5246 = vshrl.u32 %v5245, 7
        %v5247 = vsub.s32 0, %v5246
        %v5248 = vrot.slane %v4920, %v5247
        %v5250 = vadd.f32 %v5214, %v5248
        %v5251 = vadd.f32 %v5217, %v5248
        %v5252 = vadd.f32 %v5222, %v5248
        %v5253 = vadd.f32 %v5225, %v5248
        %v5254 = vadd.f32 %v5230, %v5248
        %v5255 = vadd.f32 %v5233, %v5248
        %v5256 = vadd.f32 %v5238, %v5248
        %v5257 = vadd.f32 %v5241, %v5248
        %v5258 = vmul.f32 %v5250, 0.5
        %v5259 = vmul.f32 %v5251, 0.5
        %v5260 = vmul.f32 %v5252, 0.5
        %v5261 = vmul.f32 %v5253, 0.5
        %v5262 = vmul.f32 %v5254, 0.5
        %v5263 = vmul.f32 %v5255, 0.5
        %v5264 = vmul.f32 %v5256, 0.5
        %v5265 = vmul.f32 %v5257, 0.5
        %v5266 = vmul.f32 %v5250, 0.044715
        %v5267 = vmul.f32 %v5251, 0.044715
        %v5268 = vmul.f32 %v5252, 0.044715
        %v5269 = vmul.f32 %v5253, 0.044715
        %v5270 = vmul.f32 %v5254, 0.044715
        %v5271 = vmul.f32 %v5255, 0.044715
        %v5272 = vmul.f32 %v5256, 0.044715
        %v5273 = vmul.f32 %v5257, 0.044715
        %v5274 = vmul.f32 %v5266, %v5250
        %v5275 = vmul.f32 %v5267, %v5251
        %v5276 = vmul.f32 %v5268, %v5252
        %v5277 = vmul.f32 %v5269, %v5253
        %v5278 = vmul.f32 %v5270, %v5254
        %v5279 = vmul.f32 %v5271, %v5255
        %v5280 = vmul.f32 %v5272, %v5256
        %v5281 = vmul.f32 %v5273, %v5257
        %v5282 = vmul.f32 %v5274, %v5250
        %v5283 = vmul.f32 %v5275, %v5251
        %v5284 = vmul.f32 %v5276, %v5252
        %v5285 = vmul.f32 %v5277, %v5253
        %v5286 = vmul.f32 %v5278, %v5254
        %v5287 = vmul.f32 %v5279, %v5255
        %v5288 = vmul.f32 %v5280, %v5256
        %v5289 = vmul.f32 %v5281, %v5257
        %v5290 = vadd.f32 %v5250, %v5282
        %v5291 = vadd.f32 %v5251, %v5283
        %v5292 = vadd.f32 %v5252, %v5284
        %v5293 = vadd.f32 %v5253, %v5285
        %v5294 = vadd.f32 %v5254, %v5286
        %v5295 = vadd.f32 %v5255, %v5287
        %v5296 = vadd.f32 %v5256, %v5288
        %v5297 = vadd.f32 %v5257, %v5289
        %v5298 = vmul.f32 %v5290, 0.7978846
        %v5299 = vmul.f32 %v5291, 0.7978846
        %v5300 = vmul.f32 %v5292, 0.7978846
        %v5301 = vmul.f32 %v5293, 0.7978846
        %v5302 = vmul.f32 %v5294, 0.7978846
        %v5303 = vmul.f32 %v5295, 0.7978846
        %v5304 = vmul.f32 %v5296, 0.7978846
        %v5305 = vmul.f32 %v5297, 0.7978846
        %v5306 = vtanh.pop %v5298
        %v5307 = vtanh.pop %v5299
        %v5308 = vtanh.pop %v5300
        %v5309 = vtanh.pop %v5301
        %v5310 = vtanh.pop %v5302
        %v5311 = vtanh.pop %v5303
        %v5312 = vtanh.pop %v5304
        %v5313 = vtanh.pop %v5305
        %v5314 = vadd.f32 %v5306, 1.0
        %v5315 = vadd.f32 %v5307, 1.0
        %v5316 = vadd.f32 %v5308, 1.0
        %v5317 = vadd.f32 %v5309, 1.0
        %v5318 = vadd.f32 %v5310, 1.0
        %v5319 = vadd.f32 %v5311, 1.0
        %v5320 = vadd.f32 %v5312, 1.0
        %v5321 = vadd.f32 %v5313, 1.0
        %v5322 = vmul.f32 %v5258, %v5314
        %v5323 = vmul.f32 %v5259, %v5315
        %v5324 = vmul.f32 %v5260, %v5316
        %v5325 = vmul.f32 %v5261, %v5317
        %v5326 = vmul.f32 %v5262, %v5318
        %v5327 = vmul.f32 %v5263, %v5319
        %v5328 = vmul.f32 %v5264, %v5320
        %v5329 = vmul.f32 %v5265, %v5321
        %v5330 = vsub.f32 0.0, %v5322
        %v5331 = vsub.f32 0.0, %v5323
        %v5332 = vsub.f32 0.0, %v5324
        %v5333 = vsub.f32 0.0, %v5325
        %v5334 = vsub.f32 0.0, %v5326
        %v5335 = vsub.f32 0.0, %v5327
        %v5336 = vsub.f32 0.0, %v5328
        %v5337 = vsub.f32 0.0, %v5329
        %v5338 = vmul.f32 %v5330, 1.442695
        %v5339 = vpow.pop %v5338
        %v5340 = vmul.f32 %v5331, 1.442695
        %v5341 = vpow.pop %v5340
        %v5342 = vmul.f32 %v5332, 1.442695
        %v5343 = vpow.pop %v5342
        %v5344 = vmul.f32 %v5333, 1.442695
        %v5345 = vpow.pop %v5344
        %v5346 = vmul.f32 %v5334, 1.442695
        %v5347 = vpow.pop %v5346
        %v5348 = vmul.f32 %v5335, 1.442695
        %v5349 = vpow.pop %v5348
        %v5350 = vmul.f32 %v5336, 1.442695
        %v5351 = vpow.pop %v5350
        %v5352 = vmul.f32 %v5337, 1.442695
        %v5353 = vpow.pop %v5352
        %v5354 = vadd.f32 %v5339, 1.0
        %v5355 = vadd.f32 %v5341, 1.0
        %v5356 = vadd.f32 %v5343, 1.0
        %v5357 = vadd.f32 %v5345, 1.0
        %v5358 = vadd.f32 %v5347, 1.0
        %v5359 = vadd.f32 %v5349, 1.0
        %v5360 = vadd.f32 %v5351, 1.0
        %v5361 = vadd.f32 %v5353, 1.0
        %v5362 = vrcp.pop %v5354
        %v5363 = vrcp.pop %v5355
        %v5364 = vrcp.pop %v5356
        %v5365 = vrcp.pop %v5357
        %v5366 = vrcp.pop %v5358
        %v5367 = vrcp.pop %v5359
        %v5368 = vrcp.pop %v5360
        %v5369 = vrcp.pop %v5361
        %v5370 = vmul.f32 %v4350, %v5362
        %v5371 = vmul.f32 %v4351, %v5363
        %v5372 = vmul.f32 %v4352, %v5364
        %v5373 = vmul.f32 %v4353, %v5365
        %v5374 = vmul.f32 %v4354, %v5366
        %v5375 = vmul.f32 %v4355, %v5367
        %v5376 = vmul.f32 %v4356, %v5368
        %v5377 = vmul.f32 %v4357, %v5369
        %5386 = vrot.lane.b32.xlu0 %v4350, 64
        %v5387 = vpop.permute.xlu0 %5386
        %5388 = vrot.lane.b32.xlu0 %v4351, 64
        %v5389 = vpop.permute.xlu0 %5388
        %5390 = vrot.lane.b32.xlu0 %v4352, 64
        %v5391 = vpop.permute.xlu0 %5390
        %5392 = vrot.lane.b32.xlu0 %v4353, 64
        %v5393 = vpop.permute.xlu0 %5392
        %5394 = vrot.lane.b32.xlu0 %v4354, 64
        %v5395 = vpop.permute.xlu0 %5394
        %5396 = vrot.lane.b32.xlu0 %v4355, 64
        %v5397 = vpop.permute.xlu0 %5396
        %5398 = vrot.lane.b32.xlu0 %v4356, 64
        %v5399 = vpop.permute.xlu0 %5398
        %5400 = vrot.lane.b32.xlu0 %v4357, 64
        %v5401 = vpop.permute.xlu0 %5400
        %v5410 = vsel %vm4401, %v5370, %v5387
        %v5411 = vsel %vm4401, %v5371, %v5389
        %v5412 = vsel %vm4401, %v5372, %v5391
        %v5413 = vsel %vm4401, %v5373, %v5393
        %v5414 = vsel %vm4401, %v5374, %v5395
        %v5415 = vsel %vm4401, %v5375, %v5397
        %v5416 = vsel %vm4401, %v5376, %v5399
        %v5417 = vsel %vm4401, %v5377, %v5401
        %v5418 = vpack.c.bf16 %v5411, %v5410
        %v5419 = vpack.c.bf16 %v5413, %v5412
        %v5420 = vpack.c.bf16 %v5415, %v5414
        %v5421 = vpack.c.bf16 %v5417, %v5416
        %v5422 = vld [vmem:[%s47] sm:$0xf]
        %v5423 = vld [vmem:[%s47 + $0x4] sm:$0xf]
        %v5424 = vld [vmem:[%s47 + $0x8] sm:$0xf]
        %v5425 = vld [vmem:[%s47 + $0xc] sm:$0xf]
        %v5426 = vld [vmem:[%s47 + $0x10] sm:$0xf]
        %v5427 = vld [vmem:[%s47 + $0x14] sm:$0xf]
        %v5428 = vld [vmem:[%s47 + $0x18] sm:$0xf]
        %v5429 = vld [vmem:[%s47 + $0x1c] sm:$0xf]
        %v5430 = vld [vmem:[%s47 + $0x20] sm:$0xf]
        %v5431 = vld [vmem:[%s47 + $0x24] sm:$0xf]
        %v5432 = vld [vmem:[%s47 + $0x28] sm:$0xf]
        %v5433 = vld [vmem:[%s47 + $0x2c] sm:$0xf]
        %v5434 = vld [vmem:[%s47 + $0x30] sm:$0xf]
        %v5435 = vld [vmem:[%s47 + $0x34] sm:$0xf]
        %v5436 = vld [vmem:[%s47 + $0x38] sm:$0xf]
        %v5437 = vld [vmem:[%s47 + $0x3c] sm:$0xf]
        %v5438 = vld [vmem:[#allocation34] sm:$0x1]
        %v5440 = vlaneseq
        %v5441 = vshrl.u32 %v5440, 7
        %v5442 = vsub.s32 0, %v5441
        %v5443 = vrot.slane %v5438, %v5442
        %v5461 = vunpack.c.l.b16 %v5422
        %v5462 = vunpack.c.l.b16 %v5423
        %v5463 = vunpack.c.l.b16 %v5424
        %v5464 = vunpack.c.l.b16 %v5425
        %v5465 = vunpack.c.l.b16 %v5426
        %v5466 = vunpack.c.l.b16 %v5427
        %v5467 = vunpack.c.l.b16 %v5428
        %v5468 = vunpack.c.l.b16 %v5429
        %v5469 = vunpack.c.l.b16 %v5430
        %v5470 = vunpack.c.l.b16 %v5431
        %v5471 = vunpack.c.l.b16 %v5432
        %v5472 = vunpack.c.l.b16 %v5433
        %v5473 = vunpack.c.l.b16 %v5434
        %v5474 = vunpack.c.l.b16 %v5435
        %v5475 = vunpack.c.l.b16 %v5436
        %v5476 = vunpack.c.l.b16 %v5437
        %v5477 = vpack.c.b16 %v5462, %v5461
        %v5478 = vpack.c.b16 %v5464, %v5463
        %v5479 = vpack.c.b16 %v5466, %v5465
        %v5480 = vpack.c.b16 %v5468, %v5467
        %v5481 = vpack.c.b16 %v5470, %v5469
        %v5482 = vpack.c.b16 %v5472, %v5471
        %v5483 = vpack.c.b16 %v5474, %v5473
        %v5484 = vpack.c.b16 %v5476, %v5475
        %5493 = vmatprep.subr.bf16.mxu0 0
        %5494 = vmatpush1.bf16.msra.mxu0 %v5477
        %5495 = vmatprep.subr.bf16.mxu0 0
        %5496 = vmatpush1.bf16.msra.mxu0 %v5478
        %5497 = vmatprep.subr.bf16.mxu0 0
        %5498 = vmatpush1.bf16.msra.mxu0 %v5479
        %5499 = vmatprep.subr.bf16.mxu0 0
        %5500 = vmatpush1.bf16.msra.mxu0 %v5480
        %5501 = vmatprep.subr.bf16.mxu0 0
        %5502 = vmatpush1.bf16.msra.mxu0 %v5481
        %5503 = vmatprep.subr.bf16.mxu0 0
        %5504 = vmatpush1.bf16.msra.mxu0 %v5482
        %5505 = vmatprep.subr.bf16.mxu0 0
        %5506 = vmatpush1.bf16.msra.mxu0 %v5483
        %5507 = vmatprep.subr.bf16.mxu0 0
        %5508 = vmatpush1.bf16.msra.mxu0 %v5484
        %5509 = vmatprep.subr.bf16.mxu0 0
        %5510 = vmatpush1.bf16.msra.mxu0 0
        %5511 = vmatprep.subr.bf16.mxu0 0
        %5512 = vmatpush1.bf16.msra.mxu0 0
        %5513 = vmatprep.subr.bf16.mxu0 0
        %5514 = vmatpush1.bf16.msra.mxu0 0
        %5515 = vmatprep.subr.bf16.mxu0 0
        %5516 = vmatpush1.bf16.msra.mxu0 0
        %5517 = vmatprep.subr.bf16.mxu0 0
        %5518 = vmatpush1.bf16.msra.mxu0 0
        %5519 = vmatprep.subr.bf16.mxu0 0
        %5520 = vmatpush1.bf16.msra.mxu0 0
        %5521 = vmatprep.subr.bf16.mxu0 0
        %5522 = vmatpush1.bf16.msra.mxu0 0
        %5523 = vmatprep.subr.bf16.mxu0 0
        %5524 = vmatpush1.bf16.msra.mxu0 0
        %5525 = vmatprep.mubr.bf16.mxu0 0
        %5526 = vmatmul.mubr.bf16.gmra.mrb[0].mxu0 %v5418
        %v5527 = vpop.f32.mrb[0].mxu0
        %v5528 = vadd.f32 %v5443, %v5527
        %v5529 = vpop.f32.mrb[0].mxu0
        %v5530 = vpop.f32.mrb[0].mxu0
        %v5531 = vadd.f32 %v5443, %v5530
        %v5532 = vpop.f32.mrb[0].mxu0
        %5533 = vmatprep.mubr.bf16.mxu0 0
        %5534 = vmatmul.mubr.bf16.gmra.mrb[0].mxu0 %v5419
        %v5535 = vpop.f32.mrb[0].mxu0
        %v5536 = vadd.f32 %v5443, %v5535
        %v5537 = vpop.f32.mrb[0].mxu0
        %v5538 = vpop.f32.mrb[0].mxu0
        %v5539 = vadd.f32 %v5443, %v5538
        %v5540 = vpop.f32.mrb[0].mxu0
        %5541 = vmatprep.mubr.bf16.mxu0 0
        %5542 = vmatmul.mubr.bf16.gmra.mrb[0].mxu0 %v5420
        %v5543 = vpop.f32.mrb[0].mxu0
        %v5544 = vadd.f32 %v5443, %v5543
        %v5545 = vpop.f32.mrb[0].mxu0
        %v5546 = vpop.f32.mrb[0].mxu0
        %v5547 = vadd.f32 %v5443, %v5546
        %v5548 = vpop.f32.mrb[0].mxu0
        %5549 = vmatprep.mubr.bf16.mxu0 0
        %5550 = vmatmul.mubr.bf16.gmra.mrb[0].mxu0 %v5421
        %v5551 = vpop.f32.mrb[0].mxu0
        %v5552 = vadd.f32 %v5443, %v5551
        %v5553 = vpop.f32.mrb[0].mxu0
        %v5554 = vpop.f32.mrb[0].mxu0
        %v5555 = vadd.f32 %v5443, %v5554
        %v5556 = vpop.f32.mrb[0].mxu0
        %5557 = vdwg.mxu0
        %v5558 = vmax.f32 %v5528, 0.0
        %v5559 = vmax.f32 %v5531, 0.0
        %v5560 = vmax.f32 %v5536, 0.0
        %v5561 = vmax.f32 %v5539, 0.0
        %v5562 = vmax.f32 %v5544, 0.0
        %v5563 = vmax.f32 %v5547, 0.0
        %v5564 = vmax.f32 %v5552, 0.0
        %v5565 = vmax.f32 %v5555, 0.0
        %v5566 = vsel %vm2425, %v5558, 0.0
        %v5567 = vsel %vm2425, %v5559, 0.0
        %v5568 = vadd.f32 %v5566, %v5567
        %v5569 = vsel %vm2425, %v5560, 0.0
        %v5570 = vadd.f32 %v5568, %v5569
        %v5571 = vsel %vm2425, %v5561, 0.0
        %v5572 = vadd.f32 %v5570, %v5571
        %v5573 = vsel %vm2425, %v5562, 0.0
        %v5574 = vadd.f32 %v5572, %v5573
        %v5575 = vsel %vm2425, %v5563, 0.0
        %v5576 = vadd.f32 %v5574, %v5575
        %v5577 = vsel %vm2425, %v5564, 0.0
        %v5578 = vadd.f32 %v5576, %v5577
        %v5579 = vsel %vm2425, %v5565, 0.0
        %v5580 = vadd.f32 %v5578, %v5579
        %v5581 = vrot.slane %v5580, 4
        %v5582 = vadd.f32 %v5580, %v5581
        %v5583 = vrot.slane %v5582, 2
        %v5584 = vadd.f32 %v5582, %v5583
        %v5585 = vrot.slane %v5584, 1
        %v5586 = vadd.f32 %v5584, %v5585
        %v5587 = vmul.f32 %v5586, %v2447
        %5588 = vst [vmem:[#allocation6] sm:$0xf] 0
        %5589 = vst [vmem:[#allocation6 + $0x20] sm:$0xf0] 0
        %v5590 = vld [vmem:[#allocation35] sm:$0x1]
        %vm5595 = vcmask 1043456
        %v5596 = vrot.slane %v5418, 4
        %v5597 = vrot.slane %v5419, 4
        %v5598 = vsel %vm5595, %v5596, %v5597
        %v5599 = vrot.slane %v5420, 4
        %v5600 = vsel %vm5595, %v5597, %v5599
        %v5601 = vrot.slane %v5421, 4
        %v5602 = vsel %vm5595, %v5599, %v5601
        %5608 = vst [vmem:[#allocation6] sm:$0xf0] %v5596
        %5609 = vst [vmem:[#allocation6 + $0x8] sm:$0xff] %v5598
        %5610 = vst [vmem:[#allocation6 + $0x10] sm:$0xff] %v5600
        %5611 = vst [vmem:[#allocation6 + $0x18] sm:$0xff] %v5602
        %5612 = vst [vmem:[#allocation6 + $0x20] sm:$0xf] %v5601
        %v5613 = vld [vmem:[#allocation6] sm:$0xff]
        %v5614 = vld [vmem:[#allocation6 + $0x8] sm:$0xff]
        %v5615 = vld [vmem:[#allocation6 + $0x10] sm:$0xff]
        %v5616 = vld [vmem:[#allocation6 + $0x18] sm:$0xff]
        %v5617 = vld [vmem:[#allocation6 + $0x8] sm:$0xff]
        %v5618 = vld [vmem:[#allocation6 + $0x10] sm:$0xff]
        %v5619 = vld [vmem:[#allocation6 + $0x18] sm:$0xff]
        %v5620 = vld [vmem:[#allocation6 + $0x20] sm:$0xff]
        %v5621 = vld [vmem:[%s51] sm:$0xf]
        %v5622 = vld [vmem:[%s51 + $0x4] sm:$0xf]
        %v5623 = vld [vmem:[%s51 + $0x8] sm:$0xf]
        %v5624 = vld [vmem:[%s51 + $0xc] sm:$0xf]
        %v5625 = vld [vmem:[%s51 + $0x10] sm:$0xf]
        %v5626 = vld [vmem:[%s51 + $0x14] sm:$0xf]
        %v5627 = vld [vmem:[%s51 + $0x18] sm:$0xf]
        %v5628 = vld [vmem:[%s51 + $0x1c] sm:$0xf]
        %v5629 = vld [vmem:[%s51 + $0x20] sm:$0xf]
        %v5630 = vld [vmem:[%s51 + $0x24] sm:$0xf]
        %v5631 = vld [vmem:[%s51 + $0x28] sm:$0xf]
        %v5632 = vld [vmem:[%s51 + $0x2c] sm:$0xf]
        %v5633 = vld [vmem:[%s51 + $0x30] sm:$0xf]
        %v5634 = vld [vmem:[%s51 + $0x34] sm:$0xf]
        %v5635 = vld [vmem:[%s51 + $0x38] sm:$0xf]
        %v5636 = vld [vmem:[%s51 + $0x3c] sm:$0xf]
        %s5637 = scalar_lea.vmem %s51, 64
        %v5638 = vld [vmem:[%s5637] sm:$0xf]
        %v5639 = vld [vmem:[%s5637 + $0x4] sm:$0xf]
        %v5640 = vld [vmem:[%s5637 + $0x8] sm:$0xf]
        %v5641 = vld [vmem:[%s5637 + $0xc] sm:$0xf]
        %v5642 = vld [vmem:[%s5637 + $0x10] sm:$0xf]
        %v5643 = vld [vmem:[%s5637 + $0x14] sm:$0xf]
        %v5644 = vld [vmem:[%s5637 + $0x18] sm:$0xf]
        %v5645 = vld [vmem:[%s5637 + $0x1c] sm:$0xf]
        %v5646 = vld [vmem:[%s5637 + $0x20] sm:$0xf]
        %v5647 = vld [vmem:[%s5637 + $0x24] sm:$0xf]
        %v5648 = vld [vmem:[%s5637 + $0x28] sm:$0xf]
        %v5649 = vld [vmem:[%s5637 + $0x2c] sm:$0xf]
        %v5650 = vld [vmem:[%s5637 + $0x30] sm:$0xf]
        %v5651 = vld [vmem:[%s5637 + $0x34] sm:$0xf]
        %v5652 = vld [vmem:[%s5637 + $0x38] sm:$0xf]
        %v5653 = vld [vmem:[%s5637 + $0x3c] sm:$0xf]
        %v5670 = vunpack.c.l.b16 %v5638
        %v5671 = vunpack.c.l.b16 %v5639
        %v5672 = vunpack.c.l.b16 %v5640
        %v5673 = vunpack.c.l.b16 %v5641
        %v5674 = vunpack.c.l.b16 %v5642
        %v5675 = vunpack.c.l.b16 %v5643
        %v5676 = vunpack.c.l.b16 %v5644
        %v5677 = vunpack.c.l.b16 %v5645
        %v5678 = vunpack.c.l.b16 %v5646
        %v5679 = vunpack.c.l.b16 %v5647
        %v5680 = vunpack.c.l.b16 %v5648
        %v5681 = vunpack.c.l.b16 %v5649
        %v5682 = vunpack.c.l.b16 %v5650
        %v5683 = vunpack.c.l.b16 %v5651
        %v5684 = vunpack.c.l.b16 %v5652
        %v5685 = vunpack.c.l.b16 %v5653
        %v5686 = vpack.c.b16 %v5671, %v5670
        %v5687 = vpack.c.b16 %v5673, %v5672
        %v5688 = vpack.c.b16 %v5675, %v5674
        %v5689 = vpack.c.b16 %v5677, %v5676
        %v5690 = vpack.c.b16 %v5679, %v5678
        %v5691 = vpack.c.b16 %v5681, %v5680
        %v5692 = vpack.c.b16 %v5683, %v5682
        %v5693 = vpack.c.b16 %v5685, %v5684
        %5702 = vmatprep.subr.bf16.mxu0 0
        %5703 = vmatpush1.bf16.msra.mxu0 %v5686
        %5704 = vmatprep.subr.bf16.mxu0 0
        %5705 = vmatpush1.bf16.msra.mxu0 %v5687
        %5706 = vmatprep.subr.bf16.mxu0 0
        %5707 = vmatpush1.bf16.msra.mxu0 %v5688
        %5708 = vmatprep.subr.bf16.mxu0 0
        %5709 = vmatpush1.bf16.msra.mxu0 %v5689
        %5710 = vmatprep.subr.bf16.mxu0 0
        %5711 = vmatpush1.bf16.msra.mxu0 %v5690
        %5712 = vmatprep.subr.bf16.mxu0 0
        %5713 = vmatpush1.bf16.msra.mxu0 %v5691
        %5714 = vmatprep.subr.bf16.mxu0 0
        %5715 = vmatpush1.bf16.msra.mxu0 %v5692
        %5716 = vmatprep.subr.bf16.mxu0 0
        %5717 = vmatpush1.bf16.msra.mxu0 %v5693
        %5718 = vmatprep.subr.bf16.mxu0 0
        %5719 = vmatpush1.bf16.msra.mxu0 0
        %5720 = vmatprep.subr.bf16.mxu0 0
        %5721 = vmatpush1.bf16.msra.mxu0 0
        %5722 = vmatprep.subr.bf16.mxu0 0
        %5723 = vmatpush1.bf16.msra.mxu0 0
        %5724 = vmatprep.subr.bf16.mxu0 0
        %5725 = vmatpush1.bf16.msra.mxu0 0
        %5726 = vmatprep.subr.bf16.mxu0 0
        %5727 = vmatpush1.bf16.msra.mxu0 0
        %5728 = vmatprep.subr.bf16.mxu0 0
        %5729 = vmatpush1.bf16.msra.mxu0 0
        %5730 = vmatprep.subr.bf16.mxu0 0
        %5731 = vmatpush1.bf16.msra.mxu0 0
        %5732 = vmatprep.subr.bf16.mxu0 0
        %5733 = vmatpush1.bf16.msra.mxu0 0
        %5734 = vmatprep.mubr.bf16.mxu0 0
        %5735 = vmatmul.mubr.bf16.gmra.mrb[0].mxu0 %v5617
        %v5736 = vpop.f32.mrb[0].mxu0
        %v5737 = vadd.f32 0.0, %v5736
        %v5738 = vpop.f32.mrb[0].mxu0
        %v5739 = vpop.f32.mrb[0].mxu0
        %v5740 = vadd.f32 0.0, %v5739
        %v5741 = vpop.f32.mrb[0].mxu0
        %5742 = vmatprep.mubr.bf16.mxu0 0
        %5743 = vmatmul.mubr.bf16.gmra.mrb[0].mxu0 %v5618
        %v5744 = vpop.f32.mrb[0].mxu0
        %v5745 = vadd.f32 0.0, %v5744
        %v5746 = vpop.f32.mrb[0].mxu0
        %v5747 = vpop.f32.mrb[0].mxu0
        %v5748 = vadd.f32 0.0, %v5747
        %v5749 = vpop.f32.mrb[0].mxu0
        %5750 = vmatprep.mubr.bf16.mxu0 0
        %5751 = vmatmul.mubr.bf16.gmra.mrb[0].mxu0 %v5619
        %v5752 = vpop.f32.mrb[0].mxu0
        %v5753 = vadd.f32 0.0, %v5752
        %v5754 = vpop.f32.mrb[0].mxu0
        %v5755 = vpop.f32.mrb[0].mxu0
        %v5756 = vadd.f32 0.0, %v5755
        %v5757 = vpop.f32.mrb[0].mxu0
        %5758 = vmatprep.mubr.bf16.mxu0 0
        %5759 = vmatmul.mubr.bf16.gmra.mrb[0].mxu0 %v5620
        %v5760 = vpop.f32.mrb[0].mxu0
        %v5761 = vadd.f32 0.0, %v5760
        %v5762 = vpop.f32.mrb[0].mxu0
        %v5763 = vpop.f32.mrb[0].mxu0
        %v5764 = vadd.f32 0.0, %v5763
        %v5765 = vpop.f32.mrb[0].mxu0
        %5766 = vdwg.mxu0
        %v5783 = vunpack.c.l.b16 %v5621
        %v5784 = vunpack.c.l.b16 %v5622
        %v5785 = vunpack.c.l.b16 %v5623
        %v5786 = vunpack.c.l.b16 %v5624
        %v5787 = vunpack.c.l.b16 %v5625
        %v5788 = vunpack.c.l.b16 %v5626
        %v5789 = vunpack.c.l.b16 %v5627
        %v5790 = vunpack.c.l.b16 %v5628
        %v5791 = vunpack.c.l.b16 %v5629
        %v5792 = vunpack.c.l.b16 %v5630
        %v5793 = vunpack.c.l.b16 %v5631
        %v5794 = vunpack.c.l.b16 %v5632
        %v5795 = vunpack.c.l.b16 %v5633
        %v5796 = vunpack.c.l.b16 %v5634
        %v5797 = vunpack.c.l.b16 %v5635
        %v5798 = vunpack.c.l.b16 %v5636
        %v5799 = vpack.c.b16 %v5784, %v5783
        %v5800 = vpack.c.b16 %v5786, %v5785
        %v5801 = vpack.c.b16 %v5788, %v5787
        %v5802 = vpack.c.b16 %v5790, %v5789
        %v5803 = vpack.c.b16 %v5792, %v5791
        %v5804 = vpack.c.b16 %v5794, %v5793
        %v5805 = vpack.c.b16 %v5796, %v5795
        %v5806 = vpack.c.b16 %v5798, %v5797
        %5815 = vmatprep.subr.bf16.mxu0 0
        %5816 = vmatpush1.bf16.msra.mxu0 %v5799
        %5817 = vmatprep.subr.bf16.mxu0 0
        %5818 = vmatpush1.bf16.msra.mxu0 %v5800
        %5819 = vmatprep.subr.bf16.mxu0 0
        %5820 = vmatpush1.bf16.msra.mxu0 %v5801
        %5821 = vmatprep.subr.bf16.mxu0 0
        %5822 = vmatpush1.bf16.msra.mxu0 %v5802
        %5823 = vmatprep.subr.bf16.mxu0 0
        %5824 = vmatpush1.bf16.msra.mxu0 %v5803
        %5825 = vmatprep.subr.bf16.mxu0 0
        %5826 = vmatpush1.bf16.msra.mxu0 %v5804
        %5827 = vmatprep.subr.bf16.mxu0 0
        %5828 = vmatpush1.bf16.msra.mxu0 %v5805
        %5829 = vmatprep.subr.bf16.mxu0 0
        %5830 = vmatpush1.bf16.msra.mxu0 %v5806
        %5831 = vmatprep.subr.bf16.mxu0 0
        %5832 = vmatpush1.bf16.msra.mxu0 0
        %5833 = vmatprep.subr.bf16.mxu0 0
        %5834 = vmatpush1.bf16.msra.mxu0 0
        %5835 = vmatprep.subr.bf16.mxu0 0
        %5836 = vmatpush1.bf16.msra.mxu0 0
        %5837 = vmatprep.subr.bf16.mxu0 0
        %5838 = vmatpush1.bf16.msra.mxu0 0
        %5839 = vmatprep.subr.bf16.mxu0 0
        %5840 = vmatpush1.bf16.msra.mxu0 0
        %5841 = vmatprep.subr.bf16.mxu0 0
        %5842 = vmatpush1.bf16.msra.mxu0 0
        %5843 = vmatprep.subr.bf16.mxu0 0
        %5844 = vmatpush1.bf16.msra.mxu0 0
        %5845 = vmatprep.subr.bf16.mxu0 0
        %5846 = vmatpush1.bf16.msra.mxu0 0
        %5847 = vmatprep.mubr.bf16.mxu0 0
        %5848 = vmatmul.mubr.bf16.gmra.mrb[0].mxu0 %v5613
        %v5849 = vpop.f32.mrb[0].mxu0
        %v5850 = vadd.f32 %v5737, %v5849
        %v5851 = vpop.f32.mrb[0].mxu0
        %v5852 = vpop.f32.mrb[0].mxu0
        %v5853 = vadd.f32 %v5740, %v5852
        %v5854 = vpop.f32.mrb[0].mxu0
        %5855 = vmatprep.mubr.bf16.mxu0 0
        %5856 = vmatmul.mubr.bf16.gmra.mrb[0].mxu0 %v5614
        %v5857 = vpop.f32.mrb[0].mxu0
        %v5858 = vadd.f32 %v5745, %v5857
        %v5859 = vpop.f32.mrb[0].mxu0
        %v5860 = vpop.f32.mrb[0].mxu0
        %v5861 = vadd.f32 %v5748, %v5860
        %v5862 = vpop.f32.mrb[0].mxu0
        %5863 = vmatprep.mubr.bf16.mxu0 0
        %5864 = vmatmul.mubr.bf16.gmra.mrb[0].mxu0 %v5615
        %v5865 = vpop.f32.mrb[0].mxu0
        %v5866 = vadd.f32 %v5753, %v5865
        %v5867 = vpop.f32.mrb[0].mxu0
        %v5868 = vpop.f32.mrb[0].mxu0
        %v5869 = vadd.f32 %v5756, %v5868
        %v5870 = vpop.f32.mrb[0].mxu0
        %5871 = vmatprep.mubr.bf16.mxu0 0
        %5872 = vmatmul.mubr.bf16.gmra.mrb[0].mxu0 %v5616
        %v5873 = vpop.f32.mrb[0].mxu0
        %v5874 = vadd.f32 %v5761, %v5873
        %v5875 = vpop.f32.mrb[0].mxu0
        %v5876 = vpop.f32.mrb[0].mxu0
        %v5877 = vadd.f32 %v5764, %v5876
        %v5878 = vpop.f32.mrb[0].mxu0
        %5879 = vdwg.mxu0
        %v5881 = vlaneseq
        %v5882 = vshrl.u32 %v5881, 7
        %v5883 = vsub.s32 0, %v5882
        %v5884 = vrot.slane %v5590, %v5883
        %v5886 = vadd.f32 %v5850, %v5884
        %v5887 = vadd.f32 %v5853, %v5884
        %v5888 = vadd.f32 %v5858, %v5884
        %v5889 = vadd.f32 %v5861, %v5884
        %v5890 = vadd.f32 %v5866, %v5884
        %v5891 = vadd.f32 %v5869, %v5884
        %v5892 = vadd.f32 %v5874, %v5884
        %v5893 = vadd.f32 %v5877, %v5884
        %v5894 = vmul.f32 %v5886, 0.5
        %v5895 = vmul.f32 %v5887, 0.5
        %v5896 = vmul.f32 %v5888, 0.5
        %v5897 = vmul.f32 %v5889, 0.5
        %v5898 = vmul.f32 %v5890, 0.5
        %v5899 = vmul.f32 %v5891, 0.5
        %v5900 = vmul.f32 %v5892, 0.5
        %v5901 = vmul.f32 %v5893, 0.5
        %v5902 = vmul.f32 %v5886, 0.044715
        %v5903 = vmul.f32 %v5887, 0.044715
        %v5904 = vmul.f32 %v5888, 0.044715
        %v5905 = vmul.f32 %v5889, 0.044715
        %v5906 = vmul.f32 %v5890, 0.044715
        %v5907 = vmul.f32 %v5891, 0.044715
        %v5908 = vmul.f32 %v5892, 0.044715
        %v5909 = vmul.f32 %v5893, 0.044715
        %v5910 = vmul.f32 %v5902, %v5886
        %v5911 = vmul.f32 %v5903, %v5887
        %v5912 = vmul.f32 %v5904, %v5888
        %v5913 = vmul.f32 %v5905, %v5889
        %v5914 = vmul.f32 %v5906, %v5890
        %v5915 = vmul.f32 %v5907, %v5891
        %v5916 = vmul.f32 %v5908, %v5892
        %v5917 = vmul.f32 %v5909, %v5893
        %v5918 = vmul.f32 %v5910, %v5886
        %v5919 = vmul.f32 %v5911, %v5887
        %v5920 = vmul.f32 %v5912, %v5888
        %v5921 = vmul.f32 %v5913, %v5889
        %v5922 = vmul.f32 %v5914, %v5890
        %v5923 = vmul.f32 %v5915, %v5891
        %v5924 = vmul.f32 %v5916, %v5892
        %v5925 = vmul.f32 %v5917, %v5893
        %v5926 = vadd.f32 %v5886, %v5918
        %v5927 = vadd.f32 %v5887, %v5919
        %v5928 = vadd.f32 %v5888, %v5920
        %v5929 = vadd.f32 %v5889, %v5921
        %v5930 = vadd.f32 %v5890, %v5922
        %v5931 = vadd.f32 %v5891, %v5923
        %v5932 = vadd.f32 %v5892, %v5924
        %v5933 = vadd.f32 %v5893, %v5925
        %v5934 = vmul.f32 %v5926, 0.7978846
        %v5935 = vmul.f32 %v5927, 0.7978846
        %v5936 = vmul.f32 %v5928, 0.7978846
        %v5937 = vmul.f32 %v5929, 0.7978846
        %v5938 = vmul.f32 %v5930, 0.7978846
        %v5939 = vmul.f32 %v5931, 0.7978846
        %v5940 = vmul.f32 %v5932, 0.7978846
        %v5941 = vmul.f32 %v5933, 0.7978846
        %v5942 = vtanh.pop %v5934
        %v5943 = vtanh.pop %v5935
        %v5944 = vtanh.pop %v5936
        %v5945 = vtanh.pop %v5937
        %v5946 = vtanh.pop %v5938
        %v5947 = vtanh.pop %v5939
        %v5948 = vtanh.pop %v5940
        %v5949 = vtanh.pop %v5941
        %v5950 = vadd.f32 %v5942, 1.0
        %v5951 = vadd.f32 %v5943, 1.0
        %v5952 = vadd.f32 %v5944, 1.0
        %v5953 = vadd.f32 %v5945, 1.0
        %v5954 = vadd.f32 %v5946, 1.0
        %v5955 = vadd.f32 %v5947, 1.0
        %v5956 = vadd.f32 %v5948, 1.0
        %v5957 = vadd.f32 %v5949, 1.0
        %v5958 = vmul.f32 %v5894, %v5950
        %v5959 = vmul.f32 %v5895, %v5951
        %v5960 = vmul.f32 %v5896, %v5952
        %v5961 = vmul.f32 %v5897, %v5953
        %v5962 = vmul.f32 %v5898, %v5954
        %v5963 = vmul.f32 %v5899, %v5955
        %v5964 = vmul.f32 %v5900, %v5956
        %v5965 = vmul.f32 %v5901, %v5957
        %v5966 = vld [vmem:[#allocation37] sm:$0x1]
        %v5967 = vpack.c.bf16 %v5959, %v5958
        %v5968 = vpack.c.bf16 %v5961, %v5960
        %v5969 = vpack.c.bf16 %v5963, %v5962
        %v5970 = vpack.c.bf16 %v5965, %v5964
        %v5975 = vrot.slane %v5967, 4
        %v5976 = vrot.slane %v5968, 4
        %v5977 = vsel %vm5595, %v5975, %v5976
        %v5978 = vrot.slane %v5969, 4
        %v5979 = vsel %vm5595, %v5976, %v5978
        %v5980 = vrot.slane %v5970, 4
        %v5981 = vsel %vm5595, %v5978, %v5980
        %5987 = vst [vmem:[#allocation6] sm:$0xf0] %v5975
        %5988 = vst [vmem:[#allocation6 + $0x8] sm:$0xff] %v5977
        %5989 = vst [vmem:[#allocation6 + $0x10] sm:$0xff] %v5979
        %5990 = vst [vmem:[#allocation6 + $0x18] sm:$0xff] %v5981
        %5991 = vst [vmem:[#allocation6 + $0x20] sm:$0xf] %v5980
        %v5992 = vld [vmem:[#allocation6] sm:$0xff]
        %v5993 = vld [vmem:[#allocation6 + $0x8] sm:$0xff]
        %v5994 = vld [vmem:[#allocation6 + $0x10] sm:$0xff]
        %v5995 = vld [vmem:[#allocation6 + $0x18] sm:$0xff]
        %v5996 = vld [vmem:[#allocation6 + $0x8] sm:$0xff]
        %v5997 = vld [vmem:[#allocation6 + $0x10] sm:$0xff]
        %v5998 = vld [vmem:[#allocation6 + $0x18] sm:$0xff]
        %v5999 = vld [vmem:[#allocation6 + $0x20] sm:$0xff]
        %v6000 = vld [vmem:[%s55] sm:$0xf]
        %v6001 = vld [vmem:[%s55 + $0x4] sm:$0xf]
        %v6002 = vld [vmem:[%s55 + $0x8] sm:$0xf]
        %v6003 = vld [vmem:[%s55 + $0xc] sm:$0xf]
        %v6004 = vld [vmem:[%s55 + $0x10] sm:$0xf]
        %v6005 = vld [vmem:[%s55 + $0x14] sm:$0xf]
        %v6006 = vld [vmem:[%s55 + $0x18] sm:$0xf]
        %v6007 = vld [vmem:[%s55 + $0x1c] sm:$0xf]
        %v6008 = vld [vmem:[%s55 + $0x20] sm:$0xf]
        %v6009 = vld [vmem:[%s55 + $0x24] sm:$0xf]
        %v6010 = vld [vmem:[%s55 + $0x28] sm:$0xf]
        %v6011 = vld [vmem:[%s55 + $0x2c] sm:$0xf]
        %v6012 = vld [vmem:[%s55 + $0x30] sm:$0xf]
        %v6013 = vld [vmem:[%s55 + $0x34] sm:$0xf]
        %v6014 = vld [vmem:[%s55 + $0x38] sm:$0xf]
        %v6015 = vld [vmem:[%s55 + $0x3c] sm:$0xf]
        %s6016 = scalar_lea.vmem %s55, 64
        %v6017 = vld [vmem:[%s6016] sm:$0xf]
        %v6018 = vld [vmem:[%s6016 + $0x4] sm:$0xf]
        %v6019 = vld [vmem:[%s6016 + $0x8] sm:$0xf]
        %v6020 = vld [vmem:[%s6016 + $0xc] sm:$0xf]
        %v6021 = vld [vmem:[%s6016 + $0x10] sm:$0xf]
        %v6022 = vld [vmem:[%s6016 + $0x14] sm:$0xf]
        %v6023 = vld [vmem:[%s6016 + $0x18] sm:$0xf]
        %v6024 = vld [vmem:[%s6016 + $0x1c] sm:$0xf]
        %v6025 = vld [vmem:[%s6016 + $0x20] sm:$0xf]
        %v6026 = vld [vmem:[%s6016 + $0x24] sm:$0xf]
        %v6027 = vld [vmem:[%s6016 + $0x28] sm:$0xf]
        %v6028 = vld [vmem:[%s6016 + $0x2c] sm:$0xf]
        %v6029 = vld [vmem:[%s6016 + $0x30] sm:$0xf]
        %v6030 = vld [vmem:[%s6016 + $0x34] sm:$0xf]
        %v6031 = vld [vmem:[%s6016 + $0x38] sm:$0xf]
        %v6032 = vld [vmem:[%s6016 + $0x3c] sm:$0xf]
        %v6049 = vunpack.c.l.b16 %v6017
        %v6050 = vunpack.c.l.b16 %v6018
        %v6051 = vunpack.c.l.b16 %v6019
        %v6052 = vunpack.c.l.b16 %v6020
        %v6053 = vunpack.c.l.b16 %v6021
        %v6054 = vunpack.c.l.b16 %v6022
        %v6055 = vunpack.c.l.b16 %v6023
        %v6056 = vunpack.c.l.b16 %v6024
        %v6057 = vunpack.c.l.b16 %v6025
        %v6058 = vunpack.c.l.b16 %v6026
        %v6059 = vunpack.c.l.b16 %v6027
        %v6060 = vunpack.c.l.b16 %v6028
        %v6061 = vunpack.c.l.b16 %v6029
        %v6062 = vunpack.c.l.b16 %v6030
        %v6063 = vunpack.c.l.b16 %v6031
        %v6064 = vunpack.c.l.b16 %v6032
        %v6065 = vpack.c.b16 %v6050, %v6049
        %v6066 = vpack.c.b16 %v6052, %v6051
        %v6067 = vpack.c.b16 %v6054, %v6053
        %v6068 = vpack.c.b16 %v6056, %v6055
        %v6069 = vpack.c.b16 %v6058, %v6057
        %v6070 = vpack.c.b16 %v6060, %v6059
        %v6071 = vpack.c.b16 %v6062, %v6061
        %v6072 = vpack.c.b16 %v6064, %v6063
        %6081 = vmatprep.subr.bf16.mxu0 0
        %6082 = vmatpush1.bf16.msra.mxu0 %v6065
        %6083 = vmatprep.subr.bf16.mxu0 0
        %6084 = vmatpush1.bf16.msra.mxu0 %v6066
        %6085 = vmatprep.subr.bf16.mxu0 0
        %6086 = vmatpush1.bf16.msra.mxu0 %v6067
        %6087 = vmatprep.subr.bf16.mxu0 0
        %6088 = vmatpush1.bf16.msra.mxu0 %v6068
        %6089 = vmatprep.subr.bf16.mxu0 0
        %6090 = vmatpush1.bf16.msra.mxu0 %v6069
        %6091 = vmatprep.subr.bf16.mxu0 0
        %6092 = vmatpush1.bf16.msra.mxu0 %v6070
        %6093 = vmatprep.subr.bf16.mxu0 0
        %6094 = vmatpush1.bf16.msra.mxu0 %v6071
        %6095 = vmatprep.subr.bf16.mxu0 0
        %6096 = vmatpush1.bf16.msra.mxu0 %v6072
        %6097 = vmatprep.subr.bf16.mxu0 0
        %6098 = vmatpush1.bf16.msra.mxu0 0
        %6099 = vmatprep.subr.bf16.mxu0 0
        %6100 = vmatpush1.bf16.msra.mxu0 0
        %6101 = vmatprep.subr.bf16.mxu0 0
        %6102 = vmatpush1.bf16.msra.mxu0 0
        %6103 = vmatprep.subr.bf16.mxu0 0
        %6104 = vmatpush1.bf16.msra.mxu0 0
        %6105 = vmatprep.subr.bf16.mxu0 0
        %6106 = vmatpush1.bf16.msra.mxu0 0
        %6107 = vmatprep.subr.bf16.mxu0 0
        %6108 = vmatpush1.bf16.msra.mxu0 0
        %6109 = vmatprep.subr.bf16.mxu0 0
        %6110 = vmatpush1.bf16.msra.mxu0 0
        %6111 = vmatprep.subr.bf16.mxu0 0
        %6112 = vmatpush1.bf16.msra.mxu0 0
        %6113 = vmatprep.mubr.bf16.mxu0 0
        %6114 = vmatmul.mubr.bf16.gmra.mrb[0].mxu0 %v5996
        %v6115 = vpop.f32.mrb[0].mxu0
        %v6116 = vadd.f32 0.0, %v6115
        %v6117 = vpop.f32.mrb[0].mxu0
        %v6118 = vpop.f32.mrb[0].mxu0
        %v6119 = vadd.f32 0.0, %v6118
        %v6120 = vpop.f32.mrb[0].mxu0
        %6121 = vmatprep.mubr.bf16.mxu0 0
        %6122 = vmatmul.mubr.bf16.gmra.mrb[0].mxu0 %v5997
        %v6123 = vpop.f32.mrb[0].mxu0
        %v6124 = vadd.f32 0.0, %v6123
        %v6125 = vpop.f32.mrb[0].mxu0
        %v6126 = vpop.f32.mrb[0].mxu0
        %v6127 = vadd.f32 0.0, %v6126
        %v6128 = vpop.f32.mrb[0].mxu0
        %6129 = vmatprep.mubr.bf16.mxu0 0
        %6130 = vmatmul.mubr.bf16.gmra.mrb[0].mxu0 %v5998
        %v6131 = vpop.f32.mrb[0].mxu0
        %v6132 = vadd.f32 0.0, %v6131
        %v6133 = vpop.f32.mrb[0].mxu0
        %v6134 = vpop.f32.mrb[0].mxu0
        %v6135 = vadd.f32 0.0, %v6134
        %v6136 = vpop.f32.mrb[0].mxu0
        %6137 = vmatprep.mubr.bf16.mxu0 0
        %6138 = vmatmul.mubr.bf16.gmra.mrb[0].mxu0 %v5999
        %v6139 = vpop.f32.mrb[0].mxu0
        %v6140 = vadd.f32 0.0, %v6139
        %v6141 = vpop.f32.mrb[0].mxu0
        %v6142 = vpop.f32.mrb[0].mxu0
        %v6143 = vadd.f32 0.0, %v6142
        %v6144 = vpop.f32.mrb[0].mxu0
        %6145 = vdwg.mxu0
        %v6162 = vunpack.c.l.b16 %v6000
        %v6163 = vunpack.c.l.b16 %v6001
        %v6164 = vunpack.c.l.b16 %v6002
        %v6165 = vunpack.c.l.b16 %v6003
        %v6166 = vunpack.c.l.b16 %v6004
        %v6167 = vunpack.c.l.b16 %v6005
        %v6168 = vunpack.c.l.b16 %v6006
        %v6169 = vunpack.c.l.b16 %v6007
        %v6170 = vunpack.c.l.b16 %v6008
        %v6171 = vunpack.c.l.b16 %v6009
        %v6172 = vunpack.c.l.b16 %v6010
        %v6173 = vunpack.c.l.b16 %v6011
        %v6174 = vunpack.c.l.b16 %v6012
        %v6175 = vunpack.c.l.b16 %v6013
        %v6176 = vunpack.c.l.b16 %v6014
        %v6177 = vunpack.c.l.b16 %v6015
        %v6178 = vpack.c.b16 %v6163, %v6162
        %v6179 = vpack.c.b16 %v6165, %v6164
        %v6180 = vpack.c.b16 %v6167, %v6166
        %v6181 = vpack.c.b16 %v6169, %v6168
        %v6182 = vpack.c.b16 %v6171, %v6170
        %v6183 = vpack.c.b16 %v6173, %v6172
        %v6184 = vpack.c.b16 %v6175, %v6174
        %v6185 = vpack.c.b16 %v6177, %v6176
        %6194 = vmatprep.subr.bf16.mxu0 0
        %6195 = vmatpush1.bf16.msra.mxu0 %v6178
        %6196 = vmatprep.subr.bf16.mxu0 0
        %6197 = vmatpush1.bf16.msra.mxu0 %v6179
        %6198 = vmatprep.subr.bf16.mxu0 0
        %6199 = vmatpush1.bf16.msra.mxu0 %v6180
        %6200 = vmatprep.subr.bf16.mxu0 0
        %6201 = vmatpush1.bf16.msra.mxu0 %v6181
        %6202 = vmatprep.subr.bf16.mxu0 0
        %6203 = vmatpush1.bf16.msra.mxu0 %v6182
        %6204 = vmatprep.subr.bf16.mxu0 0
        %6205 = vmatpush1.bf16.msra.mxu0 %v6183
        %6206 = vmatprep.subr.bf16.mxu0 0
        %6207 = vmatpush1.bf16.msra.mxu0 %v6184
        %6208 = vmatprep.subr.bf16.mxu0 0
        %6209 = vmatpush1.bf16.msra.mxu0 %v6185
        %6210 = vmatprep.subr.bf16.mxu0 0
        %6211 = vmatpush1.bf16.msra.mxu0 0
        %6212 = vmatprep.subr.bf16.mxu0 0
        %6213 = vmatpush1.bf16.msra.mxu0 0
        %6214 = vmatprep.subr.bf16.mxu0 0
        %6215 = vmatpush1.bf16.msra.mxu0 0
        %6216 = vmatprep.subr.bf16.mxu0 0
        %6217 = vmatpush1.bf16.msra.mxu0 0
        %6218 = vmatprep.subr.bf16.mxu0 0
        %6219 = vmatpush1.bf16.msra.mxu0 0
        %6220 = vmatprep.subr.bf16.mxu0 0
        %6221 = vmatpush1.bf16.msra.mxu0 0
        %6222 = vmatprep.subr.bf16.mxu0 0
        %6223 = vmatpush1.bf16.msra.mxu0 0
        %6224 = vmatprep.subr.bf16.mxu0 0
        %6225 = vmatpush1.bf16.msra.mxu0 0
        %6226 = vmatprep.mubr.bf16.mxu0 0
        %6227 = vmatmul.mubr.bf16.gmra.mrb[0].mxu0 %v5992
        %v6228 = vpop.f32.mrb[0].mxu0
        %v6229 = vadd.f32 %v6116, %v6228
        %v6230 = vpop.f32.mrb[0].mxu0
        %v6231 = vpop.f32.mrb[0].mxu0
        %v6232 = vadd.f32 %v6119, %v6231
        %v6233 = vpop.f32.mrb[0].mxu0
        %6234 = vmatprep.mubr.bf16.mxu0 0
        %6235 = vmatmul.mubr.bf16.gmra.mrb[0].mxu0 %v5993
        %v6236 = vpop.f32.mrb[0].mxu0
        %v6237 = vadd.f32 %v6124, %v6236
        %v6238 = vpop.f32.mrb[0].mxu0
        %v6239 = vpop.f32.mrb[0].mxu0
        %v6240 = vadd.f32 %v6127, %v6239
        %v6241 = vpop.f32.mrb[0].mxu0
        %6242 = vmatprep.mubr.bf16.mxu0 0
        %6243 = vmatmul.mubr.bf16.gmra.mrb[0].mxu0 %v5994
        %v6244 = vpop.f32.mrb[0].mxu0
        %v6245 = vadd.f32 %v6132, %v6244
        %v6246 = vpop.f32.mrb[0].mxu0
        %v6247 = vpop.f32.mrb[0].mxu0
        %v6248 = vadd.f32 %v6135, %v6247
        %v6249 = vpop.f32.mrb[0].mxu0
        %6250 = vmatprep.mubr.bf16.mxu0 0
        %6251 = vmatmul.mubr.bf16.gmra.mrb[0].mxu0 %v5995
        %v6252 = vpop.f32.mrb[0].mxu0
        %v6253 = vadd.f32 %v6140, %v6252
        %v6254 = vpop.f32.mrb[0].mxu0
        %v6255 = vpop.f32.mrb[0].mxu0
        %v6256 = vadd.f32 %v6143, %v6255
        %v6257 = vpop.f32.mrb[0].mxu0
        %6258 = vdwg.mxu0
        %v6260 = vlaneseq
        %v6261 = vshrl.u32 %v6260, 7
        %v6262 = vsub.s32 0, %v6261
        %v6263 = vrot.slane %v5966, %v6262
        %v6265 = vadd.f32 %v6229, %v6263
        %v6266 = vadd.f32 %v6232, %v6263
        %v6267 = vadd.f32 %v6237, %v6263
        %v6268 = vadd.f32 %v6240, %v6263
        %v6269 = vadd.f32 %v6245, %v6263
        %v6270 = vadd.f32 %v6248, %v6263
        %v6271 = vadd.f32 %v6253, %v6263
        %v6272 = vadd.f32 %v6256, %v6263
        %v6273 = vmul.f32 %v6265, 0.5
        %v6274 = vmul.f32 %v6266, 0.5
        %v6275 = vmul.f32 %v6267, 0.5
        %v6276 = vmul.f32 %v6268, 0.5
        %v6277 = vmul.f32 %v6269, 0.5
        %v6278 = vmul.f32 %v6270, 0.5
        %v6279 = vmul.f32 %v6271, 0.5
        %v6280 = vmul.f32 %v6272, 0.5
        %v6281 = vmul.f32 %v6265, 0.044715
        %v6282 = vmul.f32 %v6266, 0.044715
        %v6283 = vmul.f32 %v6267, 0.044715
        %v6284 = vmul.f32 %v6268, 0.044715
        %v6285 = vmul.f32 %v6269, 0.044715
        %v6286 = vmul.f32 %v6270, 0.044715
        %v6287 = vmul.f32 %v6271, 0.044715
        %v6288 = vmul.f32 %v6272, 0.044715
        %v6289 = vmul.f32 %v6281, %v6265
        %v6290 = vmul.f32 %v6282, %v6266
        %v6291 = vmul.f32 %v6283, %v6267
        %v6292 = vmul.f32 %v6284, %v6268
        %v6293 = vmul.f32 %v6285, %v6269
        %v6294 = vmul.f32 %v6286, %v6270
        %v6295 = vmul.f32 %v6287, %v6271
        %v6296 = vmul.f32 %v6288, %v6272
        %v6297 = vmul.f32 %v6289, %v6265
        %v6298 = vmul.f32 %v6290, %v6266
        %v6299 = vmul.f32 %v6291, %v6267
        %v6300 = vmul.f32 %v6292, %v6268
        %v6301 = vmul.f32 %v6293, %v6269
        %v6302 = vmul.f32 %v6294, %v6270
        %v6303 = vmul.f32 %v6295, %v6271
        %v6304 = vmul.f32 %v6296, %v6272
        %v6305 = vadd.f32 %v6265, %v6297
        %v6306 = vadd.f32 %v6266, %v6298
        %v6307 = vadd.f32 %v6267, %v6299
        %v6308 = vadd.f32 %v6268, %v6300
        %v6309 = vadd.f32 %v6269, %v6301
        %v6310 = vadd.f32 %v6270, %v6302
        %v6311 = vadd.f32 %v6271, %v6303
        %v6312 = vadd.f32 %v6272, %v6304
        %v6313 = vmul.f32 %v6305, 0.7978846
        %v6314 = vmul.f32 %v6306, 0.7978846
        %v6315 = vmul.f32 %v6307, 0.7978846
        %v6316 = vmul.f32 %v6308, 0.7978846
        %v6317 = vmul.f32 %v6309, 0.7978846
        %v6318 = vmul.f32 %v6310, 0.7978846
        %v6319 = vmul.f32 %v6311, 0.7978846
        %v6320 = vmul.f32 %v6312, 0.7978846
        %v6321 = vtanh.pop %v6313
        %v6322 = vtanh.pop %v6314
        %v6323 = vtanh.pop %v6315
        %v6324 = vtanh.pop %v6316
        %v6325 = vtanh.pop %v6317
        %v6326 = vtanh.pop %v6318
        %v6327 = vtanh.pop %v6319
        %v6328 = vtanh.pop %v6320
        %v6329 = vadd.f32 %v6321, 1.0
        %v6330 = vadd.f32 %v6322, 1.0
        %v6331 = vadd.f32 %v6323, 1.0
        %v6332 = vadd.f32 %v6324, 1.0
        %v6333 = vadd.f32 %v6325, 1.0
        %v6334 = vadd.f32 %v6326, 1.0
        %v6335 = vadd.f32 %v6327, 1.0
        %v6336 = vadd.f32 %v6328, 1.0
        %v6337 = vmul.f32 %v6273, %v6329
        %v6338 = vmul.f32 %v6274, %v6330
        %v6339 = vmul.f32 %v6275, %v6331
        %v6340 = vmul.f32 %v6276, %v6332
        %v6341 = vmul.f32 %v6277, %v6333
        %v6342 = vmul.f32 %v6278, %v6334
        %v6343 = vmul.f32 %v6279, %v6335
        %v6344 = vmul.f32 %v6280, %v6336
        %v6345 = vsub.f32 0.0, %v6337
        %v6346 = vsub.f32 0.0, %v6338
        %v6347 = vsub.f32 0.0, %v6339
        %v6348 = vsub.f32 0.0, %v6340
        %v6349 = vsub.f32 0.0, %v6341
        %v6350 = vsub.f32 0.0, %v6342
        %v6351 = vsub.f32 0.0, %v6343
        %v6352 = vsub.f32 0.0, %v6344
        %v6353 = vmul.f32 %v6345, 1.442695
        %v6354 = vpow.pop %v6353
        %v6355 = vmul.f32 %v6346, 1.442695
        %v6356 = vpow.pop %v6355
        %v6357 = vmul.f32 %v6347, 1.442695
        %v6358 = vpow.pop %v6357
        %v6359 = vmul.f32 %v6348, 1.442695
        %v6360 = vpow.pop %v6359
        %v6361 = vmul.f32 %v6349, 1.442695
        %v6362 = vpow.pop %v6361
        %v6363 = vmul.f32 %v6350, 1.442695
        %v6364 = vpow.pop %v6363
        %v6365 = vmul.f32 %v6351, 1.442695
        %v6366 = vpow.pop %v6365
        %v6367 = vmul.f32 %v6352, 1.442695
        %v6368 = vpow.pop %v6367
        %v6369 = vadd.f32 %v6354, 1.0
        %v6370 = vadd.f32 %v6356, 1.0
        %v6371 = vadd.f32 %v6358, 1.0
        %v6372 = vadd.f32 %v6360, 1.0
        %v6373 = vadd.f32 %v6362, 1.0
        %v6374 = vadd.f32 %v6364, 1.0
        %v6375 = vadd.f32 %v6366, 1.0
        %v6376 = vadd.f32 %v6368, 1.0
        %v6377 = vrcp.pop %v6369
        %v6378 = vrcp.pop %v6370
        %v6379 = vrcp.pop %v6371
        %v6380 = vrcp.pop %v6372
        %v6381 = vrcp.pop %v6373
        %v6382 = vrcp.pop %v6374
        %v6383 = vrcp.pop %v6375
        %v6384 = vrcp.pop %v6376
        %v6385 = vmul.f32 %v5410, %v6377
        %v6386 = vmul.f32 %v5411, %v6378
        %v6387 = vmul.f32 %v5412, %v6379
        %v6388 = vmul.f32 %v5413, %v6380
        %v6389 = vmul.f32 %v5414, %v6381
        %v6390 = vmul.f32 %v5415, %v6382
        %v6391 = vmul.f32 %v5416, %v6383
        %v6392 = vmul.f32 %v5417, %v6384
        %v6393 = vpack.c.bf16 %v6386, %v6385
        %v6394 = vpack.c.bf16 %v6388, %v6387
        %v6395 = vpack.c.bf16 %v6390, %v6389
        %v6396 = vpack.c.bf16 %v6392, %v6391
        %v6397 = vld [vmem:[%s59] sm:$0xf]
        %v6398 = vld [vmem:[%s59 + $0x4] sm:$0xf]
        %v6399 = vld [vmem:[%s59 + $0x8] sm:$0xf]
        %v6400 = vld [vmem:[%s59 + $0xc] sm:$0xf]
        %v6401 = vld [vmem:[%s59 + $0x10] sm:$0xf]
        %v6402 = vld [vmem:[%s59 + $0x14] sm:$0xf]
        %v6403 = vld [vmem:[%s59 + $0x18] sm:$0xf]
        %v6404 = vld [vmem:[%s59 + $0x1c] sm:$0xf]
        %v6405 = vld [vmem:[%s59 + $0x20] sm:$0xf]
        %v6406 = vld [vmem:[%s59 + $0x24] sm:$0xf]
        %v6407 = vld [vmem:[%s59 + $0x28] sm:$0xf]
        %v6408 = vld [vmem:[%s59 + $0x2c] sm:$0xf]
        %v6409 = vld [vmem:[%s59 + $0x30] sm:$0xf]
        %v6410 = vld [vmem:[%s59 + $0x34] sm:$0xf]
        %v6411 = vld [vmem:[%s59 + $0x38] sm:$0xf]
        %v6412 = vld [vmem:[%s59 + $0x3c] sm:$0xf]
        %v6413 = vld [vmem:[%s59 + $0x40] sm:$0xf]
        %v6414 = vld [vmem:[%s59 + $0x44] sm:$0xf]
        %v6415 = vld [vmem:[%s59 + $0x48] sm:$0xf]
        %v6416 = vld [vmem:[%s59 + $0x4c] sm:$0xf]
        %v6417 = vld [vmem:[%s59 + $0x50] sm:$0xf]
        %v6418 = vld [vmem:[%s59 + $0x54] sm:$0xf]
        %v6419 = vld [vmem:[%s59 + $0x58] sm:$0xf]
        %v6420 = vld [vmem:[%s59 + $0x5c] sm:$0xf]
        %v6421 = vld [vmem:[%s59 + $0x60] sm:$0xf]
        %v6422 = vld [vmem:[%s59 + $0x64] sm:$0xf]
        %v6423 = vld [vmem:[%s59 + $0x68] sm:$0xf]
        %v6424 = vld [vmem:[%s59 + $0x6c] sm:$0xf]
        %v6425 = vld [vmem:[%s59 + $0x70] sm:$0xf]
        %v6426 = vld [vmem:[%s59 + $0x74] sm:$0xf]
        %v6427 = vld [vmem:[%s59 + $0x78] sm:$0xf]
        %v6428 = vld [vmem:[%s59 + $0x7c] sm:$0xf]
        %v6429 = vld [vmem:[#allocation38] sm:$0x1]
        %v6431 = vlaneseq
        %v6432 = vshrl.u32 %v6431, 7
        %v6433 = vsub.s32 0, %v6432
        %v6434 = vrot.slane %v6429, %v6433
        %v6468 = vunpack.c.l.b16 %v6397
        %v6469 = vunpack.c.l.b16 %v6398
        %v6470 = vunpack.c.l.b16 %v6399
        %v6471 = vunpack.c.l.b16 %v6400
        %v6472 = vunpack.c.l.b16 %v6401
        %v6473 = vunpack.c.l.b16 %v6402
        %v6474 = vunpack.c.l.b16 %v6403
        %v6475 = vunpack.c.l.b16 %v6404
        %v6476 = vunpack.c.l.b16 %v6405
        %v6477 = vunpack.c.l.b16 %v6406
        %v6478 = vunpack.c.l.b16 %v6407
        %v6479 = vunpack.c.l.b16 %v6408
        %v6480 = vunpack.c.l.b16 %v6409
        %v6481 = vunpack.c.l.b16 %v6410
        %v6482 = vunpack.c.l.b16 %v6411
        %v6483 = vunpack.c.l.b16 %v6412
        %v6484 = vunpack.c.l.b16 %v6413
        %v6485 = vunpack.c.l.b16 %v6414
        %v6486 = vunpack.c.l.b16 %v6415
        %v6487 = vunpack.c.l.b16 %v6416
        %v6488 = vunpack.c.l.b16 %v6417
        %v6489 = vunpack.c.l.b16 %v6418
        %v6490 = vunpack.c.l.b16 %v6419
        %v6491 = vunpack.c.l.b16 %v6420
        %v6492 = vunpack.c.l.b16 %v6421
        %v6493 = vunpack.c.l.b16 %v6422
        %v6494 = vunpack.c.l.b16 %v6423
        %v6495 = vunpack.c.l.b16 %v6424
        %v6496 = vunpack.c.l.b16 %v6425
        %v6497 = vunpack.c.l.b16 %v6426
        %v6498 = vunpack.c.l.b16 %v6427
        %v6499 = vunpack.c.l.b16 %v6428
        %v6500 = vpack.c.b16 %v6469, %v6468
        %v6501 = vpack.c.b16 %v6471, %v6470
        %v6502 = vpack.c.b16 %v6473, %v6472
        %v6503 = vpack.c.b16 %v6475, %v6474
        %v6504 = vpack.c.b16 %v6477, %v6476
        %v6505 = vpack.c.b16 %v6479, %v6478
        %v6506 = vpack.c.b16 %v6481, %v6480
        %v6507 = vpack.c.b16 %v6483, %v6482
        %v6508 = vpack.c.b16 %v6485, %v6484
        %v6509 = vpack.c.b16 %v6487, %v6486
        %v6510 = vpack.c.b16 %v6489, %v6488
        %v6511 = vpack.c.b16 %v6491, %v6490
        %v6512 = vpack.c.b16 %v6493, %v6492
        %v6513 = vpack.c.b16 %v6495, %v6494
        %v6514 = vpack.c.b16 %v6497, %v6496
        %v6515 = vpack.c.b16 %v6499, %v6498
        %6532 = vmatprep.subr.bf16.mxu0 0
        %6533 = vmatpush1.bf16.msra.mxu0 %v6500
        %6534 = vmatprep.subr.bf16.mxu0 0
        %6535 = vmatpush1.bf16.msra.mxu0 %v6501
        %6536 = vmatprep.subr.bf16.mxu0 0
        %6537 = vmatpush1.bf16.msra.mxu0 %v6502
        %6538 = vmatprep.subr.bf16.mxu0 0
        %6539 = vmatpush1.bf16.msra.mxu0 %v6503
        %6540 = vmatprep.subr.bf16.mxu0 0
        %6541 = vmatpush1.bf16.msra.mxu0 %v6504
        %6542 = vmatprep.subr.bf16.mxu0 0
        %6543 = vmatpush1.bf16.msra.mxu0 %v6505
        %6544 = vmatprep.subr.bf16.mxu0 0
        %6545 = vmatpush1.bf16.msra.mxu0 %v6506
        %6546 = vmatprep.subr.bf16.mxu0 0
        %6547 = vmatpush1.bf16.msra.mxu0 %v6507
        %6548 = vmatprep.subr.bf16.mxu0 0
        %6549 = vmatpush1.bf16.msra.mxu0 %v6508
        %6550 = vmatprep.subr.bf16.mxu0 0
        %6551 = vmatpush1.bf16.msra.mxu0 %v6509
        %6552 = vmatprep.subr.bf16.mxu0 0
        %6553 = vmatpush1.bf16.msra.mxu0 %v6510
        %6554 = vmatprep.subr.bf16.mxu0 0
        %6555 = vmatpush1.bf16.msra.mxu0 %v6511
        %6556 = vmatprep.subr.bf16.mxu0 0
        %6557 = vmatpush1.bf16.msra.mxu0 %v6512
        %6558 = vmatprep.subr.bf16.mxu0 0
        %6559 = vmatpush1.bf16.msra.mxu0 %v6513
        %6560 = vmatprep.subr.bf16.mxu0 0
        %6561 = vmatpush1.bf16.msra.mxu0 %v6514
        %6562 = vmatprep.subr.bf16.mxu0 0
        %6563 = vmatpush1.bf16.msra.mxu0 %v6515
        %6564 = vmatprep.mubr.bf16.mxu0 %v5418
        %6565 = vmatmul.mubr.bf16.gmra.mrb[0].mxu0 %v6393
        %v6566 = vpop.f32.mrb[0].mxu0
        %v6567 = vadd.f32 %v6434, %v6566
        %v6568 = vpop.f32.mrb[0].mxu0
        %v6569 = vpop.f32.mrb[0].mxu0
        %v6570 = vadd.f32 %v6434, %v6569
        %v6571 = vpop.f32.mrb[0].mxu0
        %6572 = vmatprep.mubr.bf16.mxu0 %v5419
        %6573 = vmatmul.mubr.bf16.gmra.mrb[0].mxu0 %v6394
        %v6574 = vpop.f32.mrb[0].mxu0
        %v6575 = vadd.f32 %v6434, %v6574
        %v6576 = vpop.f32.mrb[0].mxu0
        %v6577 = vpop.f32.mrb[0].mxu0
        %v6578 = vadd.f32 %v6434, %v6577
        %v6579 = vpop.f32.mrb[0].mxu0
        %6580 = vmatprep.mubr.bf16.mxu0 %v5420
        %6581 = vmatmul.mubr.bf16.gmra.mrb[0].mxu0 %v6395
        %v6582 = vpop.f32.mrb[0].mxu0
        %v6583 = vadd.f32 %v6434, %v6582
        %v6584 = vpop.f32.mrb[0].mxu0
        %v6585 = vpop.f32.mrb[0].mxu0
        %v6586 = vadd.f32 %v6434, %v6585
        %v6587 = vpop.f32.mrb[0].mxu0
        %6588 = vmatprep.mubr.bf16.mxu0 %v5421
        %6589 = vmatmul.mubr.bf16.gmra.mrb[0].mxu0 %v6396
        %v6590 = vpop.f32.mrb[0].mxu0
        %v6591 = vadd.f32 %v6434, %v6590
        %v6592 = vpop.f32.mrb[0].mxu0
        %v6593 = vpop.f32.mrb[0].mxu0
        %v6594 = vadd.f32 %v6434, %v6593
        %v6595 = vpop.f32.mrb[0].mxu0
        %6596 = vdwg.mxu0
        %v6597 = vmax.f32 %v6567, 0.0
        %v6598 = vmax.f32 %v6570, 0.0
        %v6599 = vmax.f32 %v6575, 0.0
        %v6600 = vmax.f32 %v6578, 0.0
        %v6601 = vmax.f32 %v6583, 0.0
        %v6602 = vmax.f32 %v6586, 0.0
        %v6603 = vmax.f32 %v6591, 0.0
        %v6604 = vmax.f32 %v6594, 0.0
        %v6605 = vsel %vm2425, %v6597, 0.0
        %v6606 = vsel %vm2425, %v6598, 0.0
        %v6607 = vadd.f32 %v6605, %v6606
        %v6608 = vsel %vm2425, %v6599, 0.0
        %v6609 = vadd.f32 %v6607, %v6608
        %v6610 = vsel %vm2425, %v6600, 0.0
        %v6611 = vadd.f32 %v6609, %v6610
        %v6612 = vsel %vm2425, %v6601, 0.0
        %v6613 = vadd.f32 %v6611, %v6612
        %v6614 = vsel %vm2425, %v6602, 0.0
        %v6615 = vadd.f32 %v6613, %v6614
        %v6616 = vsel %vm2425, %v6603, 0.0
        %v6617 = vadd.f32 %v6615, %v6616
        %v6618 = vsel %vm2425, %v6604, 0.0
        %v6619 = vadd.f32 %v6617, %v6618
        %v6620 = vrot.slane %v6619, 4
        %v6621 = vadd.f32 %v6619, %v6620
        %v6622 = vrot.slane %v6621, 2
        %v6623 = vadd.f32 %v6621, %v6622
        %v6624 = vrot.slane %v6623, 1
        %v6625 = vadd.f32 %v6623, %v6624
        %v6626 = vmul.f32 %v6625, %v2447
        %6627 = vst [vmem:[#allocation7] sm:$0xff] 0
        %6628 = vst [vmem:[#allocation7 + $0x8] sm:$0xff] 0
        %6629 = vst [vmem:[#allocation7 + $0x50] sm:$0xff] 0
        %6630 = vst [vmem:[#allocation7 + $0x58] sm:$0xff] 0
        %v6631 = vld [vmem:[#allocation40] sm:$0x3]
        %6632 = vst [vmem:[#allocation7 + $0x10] sm:$0xff] %v6393
        %6633 = vst [vmem:[#allocation7 + $0x18] sm:$0xff] %v5418
        %6634 = vst [vmem:[#allocation7 + $0x20] sm:$0xff] %v6394
        %6635 = vst [vmem:[#allocation7 + $0x28] sm:$0xff] %v5419
        %6636 = vst [vmem:[#allocation7 + $0x30] sm:$0xff] %v6395
        %6637 = vst [vmem:[#allocation7 + $0x38] sm:$0xff] %v5420
        %6638 = vst [vmem:[#allocation7 + $0x40] sm:$0xff] %v6396
        %6639 = vst [vmem:[#allocation7 + $0x48] sm:$0xff] %v5421
        %v6640 = vld [vmem:[#allocation7] sm:$0xff]
        %v6641 = vld [vmem:[#allocation7 + $0x8] sm:$0xff]
        %v6642 = vld [vmem:[#allocation7 + $0x10] sm:$0xff]
        %v6643 = vld [vmem:[#allocation7 + $0x18] sm:$0xff]
        %v6644 = vld [vmem:[#allocation7 + $0x20] sm:$0xff]
        %v6645 = vld [vmem:[#allocation7 + $0x28] sm:$0xff]
        %v6646 = vld [vmem:[#allocation7 + $0x30] sm:$0xff]
        %v6647 = vld [vmem:[#allocation7 + $0x38] sm:$0xff]
        %v6648 = vld [vmem:[#allocation7 + $0x20] sm:$0xff]
        %v6649 = vld [vmem:[#allocation7 + $0x28] sm:$0xff]
        %v6650 = vld [vmem:[#allocation7 + $0x30] sm:$0xff]
        %v6651 = vld [vmem:[#allocation7 + $0x38] sm:$0xff]
        %v6652 = vld [vmem:[#allocation7 + $0x40] sm:$0xff]
        %v6653 = vld [vmem:[#allocation7 + $0x48] sm:$0xff]
        %v6654 = vld [vmem:[#allocation7 + $0x50] sm:$0xff]
        %v6655 = vld [vmem:[#allocation7 + $0x58] sm:$0xff]
        %v6656 = vld [vmem:[%s63] sm:$0xff]
        %v6657 = vld [vmem:[%s63 + $0x8] sm:$0xff]
        %v6658 = vld [vmem:[%s63 + $0x10] sm:$0xff]
        %v6659 = vld [vmem:[%s63 + $0x18] sm:$0xff]
        %v6660 = vld [vmem:[%s63 + $0x20] sm:$0xff]
        %v6661 = vld [vmem:[%s63 + $0x28] sm:$0xff]
        %v6662 = vld [vmem:[%s63 + $0x30] sm:$0xff]
        %v6663 = vld [vmem:[%s63 + $0x38] sm:$0xff]
        %v6664 = vld [vmem:[%s63 + $0x40] sm:$0xff]
        %v6665 = vld [vmem:[%s63 + $0x48] sm:$0xff]
        %v6666 = vld [vmem:[%s63 + $0x50] sm:$0xff]
        %v6667 = vld [vmem:[%s63 + $0x58] sm:$0xff]
        %v6668 = vld [vmem:[%s63 + $0x60] sm:$0xff]
        %v6669 = vld [vmem:[%s63 + $0x68] sm:$0xff]
        %v6670 = vld [vmem:[%s63 + $0x70] sm:$0xff]
        %v6671 = vld [vmem:[%s63 + $0x78] sm:$0xff]
        %v6672 = vld [vmem:[%s63 + $0x80] sm:$0xff]
        %v6673 = vld [vmem:[%s63 + $0x88] sm:$0xff]
        %v6674 = vld [vmem:[%s63 + $0x90] sm:$0xff]
        %v6675 = vld [vmem:[%s63 + $0x98] sm:$0xff]
        %v6676 = vld [vmem:[%s63 + $0xa0] sm:$0xff]
        %v6677 = vld [vmem:[%s63 + $0xa8] sm:$0xff]
        %v6678 = vld [vmem:[%s63 + $0xb0] sm:$0xff]
        %v6679 = vld [vmem:[%s63 + $0xb8] sm:$0xff]
        %v6680 = vld [vmem:[%s63 + $0xc0] sm:$0xff]
        %v6681 = vld [vmem:[%s63 + $0xc8] sm:$0xff]
        %v6682 = vld [vmem:[%s63 + $0xd0] sm:$0xff]
        %v6683 = vld [vmem:[%s63 + $0xd8] sm:$0xff]
        %v6684 = vld [vmem:[%s63 + $0xe0] sm:$0xff]
        %v6685 = vld [vmem:[%s63 + $0xe8] sm:$0xff]
        %v6686 = vld [vmem:[%s63 + $0xf0] sm:$0xff]
        %v6687 = vld [vmem:[%s63 + $0xf8] sm:$0xff]
        %s6688 = scalar_lea.vmem %s63, 256
        %v6689 = vld [vmem:[%s6688] sm:$0xff]
        %v6690 = vld [vmem:[%s6688 + $0x8] sm:$0xff]
        %v6691 = vld [vmem:[%s6688 + $0x10] sm:$0xff]
        %v6692 = vld [vmem:[%s6688 + $0x18] sm:$0xff]
        %v6693 = vld [vmem:[%s6688 + $0x20] sm:$0xff]
        %v6694 = vld [vmem:[%s6688 + $0x28] sm:$0xff]
        %v6695 = vld [vmem:[%s6688 + $0x30] sm:$0xff]
        %v6696 = vld [vmem:[%s6688 + $0x38] sm:$0xff]
        %v6697 = vld [vmem:[%s6688 + $0x40] sm:$0xff]
        %v6698 = vld [vmem:[%s6688 + $0x48] sm:$0xff]
        %v6699 = vld [vmem:[%s6688 + $0x50] sm:$0xff]
        %v6700 = vld [vmem:[%s6688 + $0x58] sm:$0xff]
        %v6701 = vld [vmem:[%s6688 + $0x60] sm:$0xff]
        %v6702 = vld [vmem:[%s6688 + $0x68] sm:$0xff]
        %v6703 = vld [vmem:[%s6688 + $0x70] sm:$0xff]
        %v6704 = vld [vmem:[%s6688 + $0x78] sm:$0xff]
        %v6705 = vld [vmem:[%s6688 + $0x80] sm:$0xff]
        %v6706 = vld [vmem:[%s6688 + $0x88] sm:$0xff]
        %v6707 = vld [vmem:[%s6688 + $0x90] sm:$0xff]
        %v6708 = vld [vmem:[%s6688 + $0x98] sm:$0xff]
        %v6709 = vld [vmem:[%s6688 + $0xa0] sm:$0xff]
        %v6710 = vld [vmem:[%s6688 + $0xa8] sm:$0xff]
        %v6711 = vld [vmem:[%s6688 + $0xb0] sm:$0xff]
        %v6712 = vld [vmem:[%s6688 + $0xb8] sm:$0xff]
        %v6713 = vld [vmem:[%s6688 + $0xc0] sm:$0xff]
        %v6714 = vld [vmem:[%s6688 + $0xc8] sm:$0xff]
        %v6715 = vld [vmem:[%s6688 + $0xd0] sm:$0xff]
        %v6716 = vld [vmem:[%s6688 + $0xd8] sm:$0xff]
        %v6717 = vld [vmem:[%s6688 + $0xe0] sm:$0xff]
        %v6718 = vld [vmem:[%s6688 + $0xe8] sm:$0xff]
        %v6719 = vld [vmem:[%s6688 + $0xf0] sm:$0xff]
        %v6720 = vld [vmem:[%s6688 + $0xf8] sm:$0xff]
        %v6753 = vunpack.c.l.b16 %v6689
        %v6754 = vunpack.c.h.b16 %v6689
        %v6755 = vunpack.c.l.b16 %v6690
        %v6756 = vunpack.c.h.b16 %v6690
        %v6757 = vunpack.c.l.b16 %v6691
        %v6758 = vunpack.c.h.b16 %v6691
        %v6759 = vunpack.c.l.b16 %v6692
        %v6760 = vunpack.c.h.b16 %v6692
        %v6761 = vunpack.c.l.b16 %v6693
        %v6762 = vunpack.c.h.b16 %v6693
        %v6763 = vunpack.c.l.b16 %v6694
        %v6764 = vunpack.c.h.b16 %v6694
        %v6765 = vunpack.c.l.b16 %v6695
        %v6766 = vunpack.c.h.b16 %v6695
        %v6767 = vunpack.c.l.b16 %v6696
        %v6768 = vunpack.c.h.b16 %v6696
        %v6769 = vunpack.c.l.b16 %v6697
        %v6770 = vunpack.c.h.b16 %v6697
        %v6771 = vunpack.c.l.b16 %v6698
        %v6772 = vunpack.c.h.b16 %v6698
        %v6773 = vunpack.c.l.b16 %v6699
        %v6774 = vunpack.c.h.b16 %v6699
        %v6775 = vunpack.c.l.b16 %v6700
        %v6776 = vunpack.c.h.b16 %v6700
        %v6777 = vunpack.c.l.b16 %v6701
        %v6778 = vunpack.c.h.b16 %v6701
        %v6779 = vunpack.c.l.b16 %v6702
        %v6780 = vunpack.c.h.b16 %v6702
        %v6781 = vunpack.c.l.b16 %v6703
        %v6782 = vunpack.c.h.b16 %v6703
        %v6783 = vunpack.c.l.b16 %v6704
        %v6784 = vunpack.c.h.b16 %v6704
        %v6785 = vunpack.c.l.b16 %v6705
        %v6786 = vunpack.c.h.b16 %v6705
        %v6787 = vunpack.c.l.b16 %v6706
        %v6788 = vunpack.c.h.b16 %v6706
        %v6789 = vunpack.c.l.b16 %v6707
        %v6790 = vunpack.c.h.b16 %v6707
        %v6791 = vunpack.c.l.b16 %v6708
        %v6792 = vunpack.c.h.b16 %v6708
        %v6793 = vunpack.c.l.b16 %v6709
        %v6794 = vunpack.c.h.b16 %v6709
        %v6795 = vunpack.c.l.b16 %v6710
        %v6796 = vunpack.c.h.b16 %v6710
        %v6797 = vunpack.c.l.b16 %v6711
        %v6798 = vunpack.c.h.b16 %v6711
        %v6799 = vunpack.c.l.b16 %v6712
        %v6800 = vunpack.c.h.b16 %v6712
        %v6801 = vunpack.c.l.b16 %v6713
        %v6802 = vunpack.c.h.b16 %v6713
        %v6803 = vunpack.c.l.b16 %v6714
        %v6804 = vunpack.c.h.b16 %v6714
        %v6805 = vunpack.c.l.b16 %v6715
        %v6806 = vunpack.c.h.b16 %v6715
        %v6807 = vunpack.c.l.b16 %v6716
        %v6808 = vunpack.c.h.b16 %v6716
        %v6809 = vunpack.c.l.b16 %v6717
        %v6810 = vunpack.c.h.b16 %v6717
        %v6811 = vunpack.c.l.b16 %v6718
        %v6812 = vunpack.c.h.b16 %v6718
        %v6813 = vunpack.c.l.b16 %v6719
        %v6814 = vunpack.c.h.b16 %v6719
        %v6815 = vunpack.c.l.b16 %v6720
        %v6816 = vunpack.c.h.b16 %v6720
        %v6817 = vpack.c.b16 %v6755, %v6753
        %v6818 = vpack.c.b16 %v6756, %v6754
        %v6819 = vpack.c.b16 %v6759, %v6757
        %v6820 = vpack.c.b16 %v6760, %v6758
        %v6821 = vpack.c.b16 %v6763, %v6761
        %v6822 = vpack.c.b16 %v6764, %v6762
        %v6823 = vpack.c.b16 %v6767, %v6765
        %v6824 = vpack.c.b16 %v6768, %v6766
        %v6825 = vpack.c.b16 %v6771, %v6769
        %v6826 = vpack.c.b16 %v6772, %v6770
        %v6827 = vpack.c.b16 %v6775, %v6773
        %v6828 = vpack.c.b16 %v6776, %v6774
        %v6829 = vpack.c.b16 %v6779, %v6777
        %v6830 = vpack.c.b16 %v6780, %v6778
        %v6831 = vpack.c.b16 %v6783, %v6781
        %v6832 = vpack.c.b16 %v6784, %v6782
        %v6833 = vpack.c.b16 %v6787, %v6785
        %v6834 = vpack.c.b16 %v6788, %v6786
        %v6835 = vpack.c.b16 %v6791, %v6789
        %v6836 = vpack.c.b16 %v6792, %v6790
        %v6837 = vpack.c.b16 %v6795, %v6793
        %v6838 = vpack.c.b16 %v6796, %v6794
        %v6839 = vpack.c.b16 %v6799, %v6797
        %v6840 = vpack.c.b16 %v6800, %v6798
        %v6841 = vpack.c.b16 %v6803, %v6801
        %v6842 = vpack.c.b16 %v6804, %v6802
        %v6843 = vpack.c.b16 %v6807, %v6805
        %v6844 = vpack.c.b16 %v6808, %v6806
        %v6845 = vpack.c.b16 %v6811, %v6809
        %v6846 = vpack.c.b16 %v6812, %v6810
        %v6847 = vpack.c.b16 %v6815, %v6813
        %v6848 = vpack.c.b16 %v6816, %v6814
        %6881 = vmatprep.subr.bf16.mxu0 %v6818
        %6882 = vmatpush1.bf16.msra.mxu0 %v6817
        %6883 = vmatprep.subr.bf16.mxu0 %v6820
        %6884 = vmatpush1.bf16.msra.mxu0 %v6819
        %6885 = vmatprep.subr.bf16.mxu0 %v6822
        %6886 = vmatpush1.bf16.msra.mxu0 %v6821
        %6887 = vmatprep.subr.bf16.mxu0 %v6824
        %6888 = vmatpush1.bf16.msra.mxu0 %v6823
        %6889 = vmatprep.subr.bf16.mxu0 %v6826
        %6890 = vmatpush1.bf16.msra.mxu0 %v6825
        %6891 = vmatprep.subr.bf16.mxu0 %v6828
        %6892 = vmatpush1.bf16.msra.mxu0 %v6827
        %6893 = vmatprep.subr.bf16.mxu0 %v6830
        %6894 = vmatpush1.bf16.msra.mxu0 %v6829
        %6895 = vmatprep.subr.bf16.mxu0 %v6832
        %6896 = vmatpush1.bf16.msra.mxu0 %v6831
        %6897 = vmatprep.subr.bf16.mxu0 %v6834
        %6898 = vmatpush1.bf16.msra.mxu0 %v6833
        %6899 = vmatprep.subr.bf16.mxu0 %v6836
        %6900 = vmatpush1.bf16.msra.mxu0 %v6835
        %6901 = vmatprep.subr.bf16.mxu0 %v6838
        %6902 = vmatpush1.bf16.msra.mxu0 %v6837
        %6903 = vmatprep.subr.bf16.mxu0 %v6840
        %6904 = vmatpush1.bf16.msra.mxu0 %v6839
        %6905 = vmatprep.subr.bf16.mxu0 %v6842
        %6906 = vmatpush1.bf16.msra.mxu0 %v6841
        %6907 = vmatprep.subr.bf16.mxu0 %v6844
        %6908 = vmatpush1.bf16.msra.mxu0 %v6843
        %6909 = vmatprep.subr.bf16.mxu0 %v6846
        %6910 = vmatpush1.bf16.msra.mxu0 %v6845
        %6911 = vmatprep.subr.bf16.mxu0 %v6848
        %6912 = vmatpush1.bf16.msra.mxu0 %v6847
        %6913 = vmatprep.mubr.bf16.mxu0 %v6649
        %6914 = vmatmul.mubr.bf16.gmra.mrb[0].mxu0 %v6648
        %v6915 = vpop.f32.mrb[0].mxu0
        %v6916 = vadd.f32 0.0, %v6915
        %v6917 = vpop.f32.mrb[0].mxu0
        %v6918 = vadd.f32 0.0, %v6917
        %v6919 = vpop.f32.mrb[0].mxu0
        %v6920 = vadd.f32 0.0, %v6919
        %v6921 = vpop.f32.mrb[0].mxu0
        %v6922 = vadd.f32 0.0, %v6921
        %6923 = vmatprep.mubr.bf16.mxu0 %v6651
        %6924 = vmatmul.mubr.bf16.gmra.mrb[0].mxu0 %v6650
        %v6925 = vpop.f32.mrb[0].mxu0
        %v6926 = vadd.f32 0.0, %v6925
        %v6927 = vpop.f32.mrb[0].mxu0
        %v6928 = vadd.f32 0.0, %v6927
        %v6929 = vpop.f32.mrb[0].mxu0
        %v6930 = vadd.f32 0.0, %v6929
        %v6931 = vpop.f32.mrb[0].mxu0
        %v6932 = vadd.f32 0.0, %v6931
        %6933 = vmatprep.mubr.bf16.mxu0 %v6653
        %6934 = vmatmul.mubr.bf16.gmra.mrb[0].mxu0 %v6652
        %v6935 = vpop.f32.mrb[0].mxu0
        %v6936 = vadd.f32 0.0, %v6935
        %v6937 = vpop.f32.mrb[0].mxu0
        %v6938 = vadd.f32 0.0, %v6937
        %v6939 = vpop.f32.mrb[0].mxu0
        %v6940 = vadd.f32 0.0, %v6939
        %v6941 = vpop.f32.mrb[0].mxu0
        %v6942 = vadd.f32 0.0, %v6941
        %6943 = vmatprep.mubr.bf16.mxu0 %v6655
        %6944 = vmatmul.mubr.bf16.gmra.mrb[0].mxu0 %v6654
        %v6945 = vpop.f32.mrb[0].mxu0
        %v6946 = vadd.f32 0.0, %v6945
        %v6947 = vpop.f32.mrb[0].mxu0
        %v6948 = vadd.f32 0.0, %v6947
        %v6949 = vpop.f32.mrb[0].mxu0
        %v6950 = vadd.f32 0.0, %v6949
        %v6951 = vpop.f32.mrb[0].mxu0
        %v6952 = vadd.f32 0.0, %v6951
        %6953 = vdwg.mxu0
        %v6986 = vunpack.c.l.b16 %v6656
        %v6987 = vunpack.c.h.b16 %v6656
        %v6988 = vunpack.c.l.b16 %v6657
        %v6989 = vunpack.c.h.b16 %v6657
        %v6990 = vunpack.c.l.b16 %v6658
        %v6991 = vunpack.c.h.b16 %v6658
        %v6992 = vunpack.c.l.b16 %v6659
        %v6993 = vunpack.c.h.b16 %v6659
        %v6994 = vunpack.c.l.b16 %v6660
        %v6995 = vunpack.c.h.b16 %v6660
        %v6996 = vunpack.c.l.b16 %v6661
        %v6997 = vunpack.c.h.b16 %v6661
        %v6998 = vunpack.c.l.b16 %v6662
        %v6999 = vunpack.c.h.b16 %v6662
        %v7000 = vunpack.c.l.b16 %v6663
        %v7001 = vunpack.c.h.b16 %v6663
        %v7002 = vunpack.c.l.b16 %v6664
        %v7003 = vunpack.c.h.b16 %v6664
        %v7004 = vunpack.c.l.b16 %v6665
        %v7005 = vunpack.c.h.b16 %v6665
        %v7006 = vunpack.c.l.b16 %v6666
        %v7007 = vunpack.c.h.b16 %v6666
        %v7008 = vunpack.c.l.b16 %v6667
        %v7009 = vunpack.c.h.b16 %v6667
        %v7010 = vunpack.c.l.b16 %v6668
        %v7011 = vunpack.c.h.b16 %v6668
        %v7012 = vunpack.c.l.b16 %v6669
        %v7013 = vunpack.c.h.b16 %v6669
        %v7014 = vunpack.c.l.b16 %v6670
        %v7015 = vunpack.c.h.b16 %v6670
        %v7016 = vunpack.c.l.b16 %v6671
        %v7017 = vunpack.c.h.b16 %v6671
        %v7018 = vunpack.c.l.b16 %v6672
        %v7019 = vunpack.c.h.b16 %v6672
        %v7020 = vunpack.c.l.b16 %v6673
        %v7021 = vunpack.c.h.b16 %v6673
        %v7022 = vunpack.c.l.b16 %v6674
        %v7023 = vunpack.c.h.b16 %v6674
        %v7024 = vunpack.c.l.b16 %v6675
        %v7025 = vunpack.c.h.b16 %v6675
        %v7026 = vunpack.c.l.b16 %v6676
        %v7027 = vunpack.c.h.b16 %v6676
        %v7028 = vunpack.c.l.b16 %v6677
        %v7029 = vunpack.c.h.b16 %v6677
        %v7030 = vunpack.c.l.b16 %v6678
        %v7031 = vunpack.c.h.b16 %v6678
        %v7032 = vunpack.c.l.b16 %v6679
        %v7033 = vunpack.c.h.b16 %v6679
        %v7034 = vunpack.c.l.b16 %v6680
        %v7035 = vunpack.c.h.b16 %v6680
        %v7036 = vunpack.c.l.b16 %v6681
        %v7037 = vunpack.c.h.b16 %v6681
        %v7038 = vunpack.c.l.b16 %v6682
        %v7039 = vunpack.c.h.b16 %v6682
        %v7040 = vunpack.c.l.b16 %v6683
        %v7041 = vunpack.c.h.b16 %v6683
        %v7042 = vunpack.c.l.b16 %v6684
        %v7043 = vunpack.c.h.b16 %v6684
        %v7044 = vunpack.c.l.b16 %v6685
        %v7045 = vunpack.c.h.b16 %v6685
        %v7046 = vunpack.c.l.b16 %v6686
        %v7047 = vunpack.c.h.b16 %v6686
        %v7048 = vunpack.c.l.b16 %v6687
        %v7049 = vunpack.c.h.b16 %v6687
        %v7050 = vpack.c.b16 %v6988, %v6986
        %v7051 = vpack.c.b16 %v6989, %v6987
        %v7052 = vpack.c.b16 %v6992, %v6990
        %v7053 = vpack.c.b16 %v6993, %v6991
        %v7054 = vpack.c.b16 %v6996, %v6994
        %v7055 = vpack.c.b16 %v6997, %v6995
        %v7056 = vpack.c.b16 %v7000, %v6998
        %v7057 = vpack.c.b16 %v7001, %v6999
        %v7058 = vpack.c.b16 %v7004, %v7002
        %v7059 = vpack.c.b16 %v7005, %v7003
        %v7060 = vpack.c.b16 %v7008, %v7006
        %v7061 = vpack.c.b16 %v7009, %v7007
        %v7062 = vpack.c.b16 %v7012, %v7010
        %v7063 = vpack.c.b16 %v7013, %v7011
        %v7064 = vpack.c.b16 %v7016, %v7014
        %v7065 = vpack.c.b16 %v7017, %v7015
        %v7066 = vpack.c.b16 %v7020, %v7018
        %v7067 = vpack.c.b16 %v7021, %v7019
        %v7068 = vpack.c.b16 %v7024, %v7022
        %v7069 = vpack.c.b16 %v7025, %v7023
        %v7070 = vpack.c.b16 %v7028, %v7026
        %v7071 = vpack.c.b16 %v7029, %v7027
        %v7072 = vpack.c.b16 %v7032, %v7030
        %v7073 = vpack.c.b16 %v7033, %v7031
        %v7074 = vpack.c.b16 %v7036, %v7034
        %v7075 = vpack.c.b16 %v7037, %v7035
        %v7076 = vpack.c.b16 %v7040, %v7038
        %v7077 = vpack.c.b16 %v7041, %v7039
        %v7078 = vpack.c.b16 %v7044, %v7042
        %v7079 = vpack.c.b16 %v7045, %v7043
        %v7080 = vpack.c.b16 %v7048, %v7046
        %v7081 = vpack.c.b16 %v7049, %v7047
        %7114 = vmatprep.subr.bf16.mxu0 %v7051
        %7115 = vmatpush1.bf16.msra.mxu0 %v7050
        %7116 = vmatprep.subr.bf16.mxu0 %v7053
        %7117 = vmatpush1.bf16.msra.mxu0 %v7052
        %7118 = vmatprep.subr.bf16.mxu0 %v7055
        %7119 = vmatpush1.bf16.msra.mxu0 %v7054
        %7120 = vmatprep.subr.bf16.mxu0 %v7057
        %7121 = vmatpush1.bf16.msra.mxu0 %v7056
        %7122 = vmatprep.subr.bf16.mxu0 %v7059
        %7123 = vmatpush1.bf16.msra.mxu0 %v7058
        %7124 = vmatprep.subr.bf16.mxu0 %v7061
        %7125 = vmatpush1.bf16.msra.mxu0 %v7060
        %7126 = vmatprep.subr.bf16.mxu0 %v7063
        %7127 = vmatpush1.bf16.msra.mxu0 %v7062
        %7128 = vmatprep.subr.bf16.mxu0 %v7065
        %7129 = vmatpush1.bf16.msra.mxu0 %v7064
        %7130 = vmatprep.subr.bf16.mxu0 %v7067
        %7131 = vmatpush1.bf16.msra.mxu0 %v7066
        %7132 = vmatprep.subr.bf16.mxu0 %v7069
        %7133 = vmatpush1.bf16.msra.mxu0 %v7068
        %7134 = vmatprep.subr.bf16.mxu0 %v7071
        %7135 = vmatpush1.bf16.msra.mxu0 %v7070
        %7136 = vmatprep.subr.bf16.mxu0 %v7073
        %7137 = vmatpush1.bf16.msra.mxu0 %v7072
        %7138 = vmatprep.subr.bf16.mxu0 %v7075
        %7139 = vmatpush1.bf16.msra.mxu0 %v7074
        %7140 = vmatprep.subr.bf16.mxu0 %v7077
        %7141 = vmatpush1.bf16.msra.mxu0 %v7076
        %7142 = vmatprep.subr.bf16.mxu0 %v7079
        %7143 = vmatpush1.bf16.msra.mxu0 %v7078
        %7144 = vmatprep.subr.bf16.mxu0 %v7081
        %7145 = vmatpush1.bf16.msra.mxu0 %v7080
        %7146 = vmatprep.mubr.bf16.mxu0 %v6641
        %7147 = vmatmul.mubr.bf16.gmra.mrb[0].mxu0 %v6640
        %v7148 = vpop.f32.mrb[0].mxu0
        %v7149 = vadd.f32 %v6916, %v7148
        %v7150 = vpop.f32.mrb[0].mxu0
        %v7151 = vadd.f32 %v6918, %v7150
        %v7152 = vpop.f32.mrb[0].mxu0
        %v7153 = vadd.f32 %v6920, %v7152
        %v7154 = vpop.f32.mrb[0].mxu0
        %v7155 = vadd.f32 %v6922, %v7154
        %7156 = vmatprep.mubr.bf16.mxu0 %v6643
        %7157 = vmatmul.mubr.bf16.gmra.mrb[0].mxu0 %v6642
        %v7158 = vpop.f32.mrb[0].mxu0
        %v7159 = vadd.f32 %v6926, %v7158
        %v7160 = vpop.f32.mrb[0].mxu0
        %v7161 = vadd.f32 %v6928, %v7160
        %v7162 = vpop.f32.mrb[0].mxu0
        %v7163 = vadd.f32 %v6930, %v7162
        %v7164 = vpop.f32.mrb[0].mxu0
        %v7165 = vadd.f32 %v6932, %v7164
        %7166 = vmatprep.mubr.bf16.mxu0 %v6645
        %7167 = vmatmul.mubr.bf16.gmra.mrb[0].mxu0 %v6644
        %v7168 = vpop.f32.mrb[0].mxu0
        %v7169 = vadd.f32 %v6936, %v7168
        %v7170 = vpop.f32.mrb[0].mxu0
        %v7171 = vadd.f32 %v6938, %v7170
        %v7172 = vpop.f32.mrb[0].mxu0
        %v7173 = vadd.f32 %v6940, %v7172
        %v7174 = vpop.f32.mrb[0].mxu0
        %v7175 = vadd.f32 %v6942, %v7174
        %7176 = vmatprep.mubr.bf16.mxu0 %v6647
        %7177 = vmatmul.mubr.bf16.gmra.mrb[0].mxu0 %v6646
        %v7178 = vpop.f32.mrb[0].mxu0
        %v7179 = vadd.f32 %v6946, %v7178
        %v7180 = vpop.f32.mrb[0].mxu0
        %v7181 = vadd.f32 %v6948, %v7180
        %v7182 = vpop.f32.mrb[0].mxu0
        %v7183 = vadd.f32 %v6950, %v7182
        %v7184 = vpop.f32.mrb[0].mxu0
        %v7185 = vadd.f32 %v6952, %v7184
        %7186 = vdwg.mxu0
        %v7188 = vlaneseq
        %v7189 = vshrl.u32 %v7188, 7
        %v7190 = vsub.s32 0, %v7189
        %v7191 = vrot.slane %v6631, %v7190
        %v7192 = vlaneseq
        %v7193 = vshrl.u32 %v7192, 7
        %v7194 = vsub.s32 1, %v7193
        %v7195 = vrot.slane %v6631, %v7194
        %v7198 = vadd.f32 %v7149, %v7191
        %v7199 = vadd.f32 %v7151, %v7195
        %v7200 = vadd.f32 %v7153, %v7191
        %v7201 = vadd.f32 %v7155, %v7195
        %v7202 = vadd.f32 %v7159, %v7191
        %v7203 = vadd.f32 %v7161, %v7195
        %v7204 = vadd.f32 %v7163, %v7191
        %v7205 = vadd.f32 %v7165, %v7195
        %v7206 = vadd.f32 %v7169, %v7191
        %v7207 = vadd.f32 %v7171, %v7195
        %v7208 = vadd.f32 %v7173, %v7191
        %v7209 = vadd.f32 %v7175, %v7195
        %v7210 = vadd.f32 %v7179, %v7191
        %v7211 = vadd.f32 %v7181, %v7195
        %v7212 = vadd.f32 %v7183, %v7191
        %v7213 = vadd.f32 %v7185, %v7195
        %v7214 = vmul.f32 %v7198, 0.5
        %v7215 = vmul.f32 %v7199, 0.5
        %v7216 = vmul.f32 %v7200, 0.5
        %v7217 = vmul.f32 %v7201, 0.5
        %v7218 = vmul.f32 %v7202, 0.5
        %v7219 = vmul.f32 %v7203, 0.5
        %v7220 = vmul.f32 %v7204, 0.5
        %v7221 = vmul.f32 %v7205, 0.5
        %v7222 = vmul.f32 %v7206, 0.5
        %v7223 = vmul.f32 %v7207, 0.5
        %v7224 = vmul.f32 %v7208, 0.5
        %v7225 = vmul.f32 %v7209, 0.5
        %v7226 = vmul.f32 %v7210, 0.5
        %v7227 = vmul.f32 %v7211, 0.5
        %v7228 = vmul.f32 %v7212, 0.5
        %v7229 = vmul.f32 %v7213, 0.5
        %v7230 = vmul.f32 %v7198, 0.044715
        %v7231 = vmul.f32 %v7199, 0.044715
        %v7232 = vmul.f32 %v7200, 0.044715
        %v7233 = vmul.f32 %v7201, 0.044715
        %v7234 = vmul.f32 %v7202, 0.044715
        %v7235 = vmul.f32 %v7203, 0.044715
        %v7236 = vmul.f32 %v7204, 0.044715
        %v7237 = vmul.f32 %v7205, 0.044715
        %v7238 = vmul.f32 %v7206, 0.044715
        %v7239 = vmul.f32 %v7207, 0.044715
        %v7240 = vmul.f32 %v7208, 0.044715
        %v7241 = vmul.f32 %v7209, 0.044715
        %v7242 = vmul.f32 %v7210, 0.044715
        %v7243 = vmul.f32 %v7211, 0.044715
        %v7244 = vmul.f32 %v7212, 0.044715
        %v7245 = vmul.f32 %v7213, 0.044715
        %v7246 = vmul.f32 %v7230, %v7198
        %v7247 = vmul.f32 %v7231, %v7199
        %v7248 = vmul.f32 %v7232, %v7200
        %v7249 = vmul.f32 %v7233, %v7201
        %v7250 = vmul.f32 %v7234, %v7202
        %v7251 = vmul.f32 %v7235, %v7203
        %v7252 = vmul.f32 %v7236, %v7204
        %v7253 = vmul.f32 %v7237, %v7205
        %v7254 = vmul.f32 %v7238, %v7206
        %v7255 = vmul.f32 %v7239, %v7207
        %v7256 = vmul.f32 %v7240, %v7208
        %v7257 = vmul.f32 %v7241, %v7209
        %v7258 = vmul.f32 %v7242, %v7210
        %v7259 = vmul.f32 %v7243, %v7211
        %v7260 = vmul.f32 %v7244, %v7212
        %v7261 = vmul.f32 %v7245, %v7213
        %v7262 = vmul.f32 %v7246, %v7198
        %v7263 = vmul.f32 %v7247, %v7199
        %v7264 = vmul.f32 %v7248, %v7200
        %v7265 = vmul.f32 %v7249, %v7201
        %v7266 = vmul.f32 %v7250, %v7202
        %v7267 = vmul.f32 %v7251, %v7203
        %v7268 = vmul.f32 %v7252, %v7204
        %v7269 = vmul.f32 %v7253, %v7205
        %v7270 = vmul.f32 %v7254, %v7206
        %v7271 = vmul.f32 %v7255, %v7207
        %v7272 = vmul.f32 %v7256, %v7208
        %v7273 = vmul.f32 %v7257, %v7209
        %v7274 = vmul.f32 %v7258, %v7210
        %v7275 = vmul.f32 %v7259, %v7211
        %v7276 = vmul.f32 %v7260, %v7212
        %v7277 = vmul.f32 %v7261, %v7213
        %v7278 = vadd.f32 %v7198, %v7262
        %v7279 = vadd.f32 %v7199, %v7263
        %v7280 = vadd.f32 %v7200, %v7264
        %v7281 = vadd.f32 %v7201, %v7265
        %v7282 = vadd.f32 %v7202, %v7266
        %v7283 = vadd.f32 %v7203, %v7267
        %v7284 = vadd.f32 %v7204, %v7268
        %v7285 = vadd.f32 %v7205, %v7269
        %v7286 = vadd.f32 %v7206, %v7270
        %v7287 = vadd.f32 %v7207, %v7271
        %v7288 = vadd.f32 %v7208, %v7272
        %v7289 = vadd.f32 %v7209, %v7273
        %v7290 = vadd.f32 %v7210, %v7274
        %v7291 = vadd.f32 %v7211, %v7275
        %v7292 = vadd.f32 %v7212, %v7276
        %v7293 = vadd.f32 %v7213, %v7277
        %v7294 = vmul.f32 %v7278, 0.7978846
        %v7295 = vmul.f32 %v7279, 0.7978846
        %v7296 = vmul.f32 %v7280, 0.7978846
        %v7297 = vmul.f32 %v7281, 0.7978846
        %v7298 = vmul.f32 %v7282, 0.7978846
        %v7299 = vmul.f32 %v7283, 0.7978846
        %v7300 = vmul.f32 %v7284, 0.7978846
        %v7301 = vmul.f32 %v7285, 0.7978846
        %v7302 = vmul.f32 %v7286, 0.7978846
        %v7303 = vmul.f32 %v7287, 0.7978846
        %v7304 = vmul.f32 %v7288, 0.7978846
        %v7305 = vmul.f32 %v7289, 0.7978846
        %v7306 = vmul.f32 %v7290, 0.7978846
        %v7307 = vmul.f32 %v7291, 0.7978846
        %v7308 = vmul.f32 %v7292, 0.7978846
        %v7309 = vmul.f32 %v7293, 0.7978846
        %v7310 = vtanh.pop %v7294
        %v7311 = vtanh.pop %v7295
        %v7312 = vtanh.pop %v7296
        %v7313 = vtanh.pop %v7297
        %v7314 = vtanh.pop %v7298
        %v7315 = vtanh.pop %v7299
        %v7316 = vtanh.pop %v7300
        %v7317 = vtanh.pop %v7301
        %v7318 = vtanh.pop %v7302
        %v7319 = vtanh.pop %v7303
        %v7320 = vtanh.pop %v7304
        %v7321 = vtanh.pop %v7305
        %v7322 = vtanh.pop %v7306
        %v7323 = vtanh.pop %v7307
        %v7324 = vtanh.pop %v7308
        %v7325 = vtanh.pop %v7309
        %v7326 = vadd.f32 %v7310, 1.0
        %v7327 = vadd.f32 %v7311, 1.0
        %v7328 = vadd.f32 %v7312, 1.0
        %v7329 = vadd.f32 %v7313, 1.0
        %v7330 = vadd.f32 %v7314, 1.0
        %v7331 = vadd.f32 %v7315, 1.0
        %v7332 = vadd.f32 %v7316, 1.0
        %v7333 = vadd.f32 %v7317, 1.0
        %v7334 = vadd.f32 %v7318, 1.0
        %v7335 = vadd.f32 %v7319, 1.0
        %v7336 = vadd.f32 %v7320, 1.0
        %v7337 = vadd.f32 %v7321, 1.0
        %v7338 = vadd.f32 %v7322, 1.0
        %v7339 = vadd.f32 %v7323, 1.0
        %v7340 = vadd.f32 %v7324, 1.0
        %v7341 = vadd.f32 %v7325, 1.0
        %v7342 = vmul.f32 %v7214, %v7326
        %v7343 = vmul.f32 %v7215, %v7327
        %v7344 = vmul.f32 %v7216, %v7328
        %v7345 = vmul.f32 %v7217, %v7329
        %v7346 = vmul.f32 %v7218, %v7330
        %v7347 = vmul.f32 %v7219, %v7331
        %v7348 = vmul.f32 %v7220, %v7332
        %v7349 = vmul.f32 %v7221, %v7333
        %v7350 = vmul.f32 %v7222, %v7334
        %v7351 = vmul.f32 %v7223, %v7335
        %v7352 = vmul.f32 %v7224, %v7336
        %v7353 = vmul.f32 %v7225, %v7337
        %v7354 = vmul.f32 %v7226, %v7338
        %v7355 = vmul.f32 %v7227, %v7339
        %v7356 = vmul.f32 %v7228, %v7340
        %v7357 = vmul.f32 %v7229, %v7341
        %v7358 = vld [vmem:[#allocation43] sm:$0x3]
        %v7359 = vpack.c.bf16 %v7344, %v7342
        %v7360 = vpack.c.bf16 %v7345, %v7343
        %v7361 = vpack.c.bf16 %v7348, %v7346
        %v7362 = vpack.c.bf16 %v7349, %v7347
        %v7363 = vpack.c.bf16 %v7352, %v7350
        %v7364 = vpack.c.bf16 %v7353, %v7351
        %v7365 = vpack.c.bf16 %v7356, %v7354
        %v7366 = vpack.c.bf16 %v7357, %v7355
        %7367 = vst [vmem:[#allocation7 + $0x10] sm:$0xff] %v7359
        %7368 = vst [vmem:[#allocation7 + $0x18] sm:$0xff] %v7360
        %7369 = vst [vmem:[#allocation7 + $0x20] sm:$0xff] %v7361
        %7370 = vst [vmem:[#allocation7 + $0x28] sm:$0xff] %v7362
        %7371 = vst [vmem:[#allocation7 + $0x30] sm:$0xff] %v7363
        %7372 = vst [vmem:[#allocation7 + $0x38] sm:$0xff] %v7364
        %7373 = vst [vmem:[#allocation7 + $0x40] sm:$0xff] %v7365
        %7374 = vst [vmem:[#allocation7 + $0x48] sm:$0xff] %v7366
        %v7375 = vld [vmem:[#allocation7] sm:$0xff]
        %v7376 = vld [vmem:[#allocation7 + $0x8] sm:$0xff]
        %v7377 = vld [vmem:[#allocation7 + $0x10] sm:$0xff]
        %v7378 = vld [vmem:[#allocation7 + $0x18] sm:$0xff]
        %v7379 = vld [vmem:[#allocation7 + $0x20] sm:$0xff]
        %v7380 = vld [vmem:[#allocation7 + $0x28] sm:$0xff]
        %v7381 = vld [vmem:[#allocation7 + $0x30] sm:$0xff]
        %v7382 = vld [vmem:[#allocation7 + $0x38] sm:$0xff]
        %v7383 = vld [vmem:[#allocation7 + $0x20] sm:$0xff]
        %v7384 = vld [vmem:[#allocation7 + $0x28] sm:$0xff]
        %v7385 = vld [vmem:[#allocation7 + $0x30] sm:$0xff]
        %v7386 = vld [vmem:[#allocation7 + $0x38] sm:$0xff]
        %v7387 = vld [vmem:[#allocation7 + $0x40] sm:$0xff]
        %v7388 = vld [vmem:[#allocation7 + $0x48] sm:$0xff]
        %v7389 = vld [vmem:[#allocation7 + $0x50] sm:$0xff]
        %v7390 = vld [vmem:[#allocation7 + $0x58] sm:$0xff]
        %v7391 = vld [vmem:[#allocation41] sm:$0xff]
        %v7392 = vld [vmem:[#allocation41 + $0x8] sm:$0xff]
        %v7393 = vld [vmem:[#allocation41 + $0x10] sm:$0xff]
        %v7394 = vld [vmem:[#allocation41 + $0x18] sm:$0xff]
        %v7395 = vld [vmem:[#allocation41 + $0x20] sm:$0xff]
        %v7396 = vld [vmem:[#allocation41 + $0x28] sm:$0xff]
        %v7397 = vld [vmem:[#allocation41 + $0x30] sm:$0xff]
        %v7398 = vld [vmem:[#allocation41 + $0x38] sm:$0xff]
        %v7399 = vld [vmem:[#allocation41 + $0x40] sm:$0xff]
        %v7400 = vld [vmem:[#allocation41 + $0x48] sm:$0xff]
        %v7401 = vld [vmem:[#allocation41 + $0x50] sm:$0xff]
        %v7402 = vld [vmem:[#allocation41 + $0x58] sm:$0xff]
        %v7403 = vld [vmem:[#allocation41 + $0x60] sm:$0xff]
        %v7404 = vld [vmem:[#allocation41 + $0x68] sm:$0xff]
        %v7405 = vld [vmem:[#allocation41 + $0x70] sm:$0xff]
        %v7406 = vld [vmem:[#allocation41 + $0x78] sm:$0xff]
        %v7407 = vld [vmem:[#allocation41 + $0x80] sm:$0xff]
        %v7408 = vld [vmem:[#allocation41 + $0x88] sm:$0xff]
        %v7409 = vld [vmem:[#allocation41 + $0x90] sm:$0xff]
        %v7410 = vld [vmem:[#allocation41 + $0x98] sm:$0xff]
        %v7411 = vld [vmem:[#allocation41 + $0xa0] sm:$0xff]
        %v7412 = vld [vmem:[#allocation41 + $0xa8] sm:$0xff]
        %v7413 = vld [vmem:[#allocation41 + $0xb0] sm:$0xff]
        %v7414 = vld [vmem:[#allocation41 + $0xb8] sm:$0xff]
        %v7415 = vld [vmem:[#allocation41 + $0xc0] sm:$0xff]
        %v7416 = vld [vmem:[#allocation41 + $0xc8] sm:$0xff]
        %v7417 = vld [vmem:[#allocation41 + $0xd0] sm:$0xff]
        %v7418 = vld [vmem:[#allocation41 + $0xd8] sm:$0xff]
        %v7419 = vld [vmem:[#allocation41 + $0xe0] sm:$0xff]
        %v7420 = vld [vmem:[#allocation41 + $0xe8] sm:$0xff]
        %v7421 = vld [vmem:[#allocation41 + $0xf0] sm:$0xff]
        %v7422 = vld [vmem:[#allocation41 + $0xf8] sm:$0xff]
        %s7423 = scalar_lea.vmem [#allocation41], 256
        %v7424 = vld [vmem:[%s7423] sm:$0xff]
        %v7425 = vld [vmem:[%s7423 + $0x8] sm:$0xff]
        %v7426 = vld [vmem:[%s7423 + $0x10] sm:$0xff]
        %v7427 = vld [vmem:[%s7423 + $0x18] sm:$0xff]
        %v7428 = vld [vmem:[%s7423 + $0x20] sm:$0xff]
        %v7429 = vld [vmem:[%s7423 + $0x28] sm:$0xff]
        %v7430 = vld [vmem:[%s7423 + $0x30] sm:$0xff]
        %v7431 = vld [vmem:[%s7423 + $0x38] sm:$0xff]
        %v7432 = vld [vmem:[%s7423 + $0x40] sm:$0xff]
        %v7433 = vld [vmem:[%s7423 + $0x48] sm:$0xff]
        %v7434 = vld [vmem:[%s7423 + $0x50] sm:$0xff]
        %v7435 = vld [vmem:[%s7423 + $0x58] sm:$0xff]
        %v7436 = vld [vmem:[%s7423 + $0x60] sm:$0xff]
        %v7437 = vld [vmem:[%s7423 + $0x68] sm:$0xff]
        %v7438 = vld [vmem:[%s7423 + $0x70] sm:$0xff]
        %v7439 = vld [vmem:[%s7423 + $0x78] sm:$0xff]
        %v7440 = vld [vmem:[%s7423 + $0x80] sm:$0xff]
        %v7441 = vld [vmem:[%s7423 + $0x88] sm:$0xff]
        %v7442 = vld [vmem:[%s7423 + $0x90] sm:$0xff]
        %v7443 = vld [vmem:[%s7423 + $0x98] sm:$0xff]
        %v7444 = vld [vmem:[%s7423 + $0xa0] sm:$0xff]
        %v7445 = vld [vmem:[%s7423 + $0xa8] sm:$0xff]
        %v7446 = vld [vmem:[%s7423 + $0xb0] sm:$0xff]
        %v7447 = vld [vmem:[%s7423 + $0xb8] sm:$0xff]
        %v7448 = vld [vmem:[%s7423 + $0xc0] sm:$0xff]
        %v7449 = vld [vmem:[%s7423 + $0xc8] sm:$0xff]
        %v7450 = vld [vmem:[%s7423 + $0xd0] sm:$0xff]
        %v7451 = vld [vmem:[%s7423 + $0xd8] sm:$0xff]
        %v7452 = vld [vmem:[%s7423 + $0xe0] sm:$0xff]
        %v7453 = vld [vmem:[%s7423 + $0xe8] sm:$0xff]
        %v7454 = vld [vmem:[%s7423 + $0xf0] sm:$0xff]
        %v7455 = vld [vmem:[%s7423 + $0xf8] sm:$0xff]
        %v7488 = vunpack.c.l.b16 %v7424
        %v7489 = vunpack.c.h.b16 %v7424
        %v7490 = vunpack.c.l.b16 %v7425
        %v7491 = vunpack.c.h.b16 %v7425
        %v7492 = vunpack.c.l.b16 %v7426
        %v7493 = vunpack.c.h.b16 %v7426
        %v7494 = vunpack.c.l.b16 %v7427
        %v7495 = vunpack.c.h.b16 %v7427
        %v7496 = vunpack.c.l.b16 %v7428
        %v7497 = vunpack.c.h.b16 %v7428
        %v7498 = vunpack.c.l.b16 %v7429
        %v7499 = vunpack.c.h.b16 %v7429
        %v7500 = vunpack.c.l.b16 %v7430
        %v7501 = vunpack.c.h.b16 %v7430
        %v7502 = vunpack.c.l.b16 %v7431
        %v7503 = vunpack.c.h.b16 %v7431
        %v7504 = vunpack.c.l.b16 %v7432
        %v7505 = vunpack.c.h.b16 %v7432
        %v7506 = vunpack.c.l.b16 %v7433
        %v7507 = vunpack.c.h.b16 %v7433
        %v7508 = vunpack.c.l.b16 %v7434
        %v7509 = vunpack.c.h.b16 %v7434
        %v7510 = vunpack.c.l.b16 %v7435
        %v7511 = vunpack.c.h.b16 %v7435
        %v7512 = vunpack.c.l.b16 %v7436
        %v7513 = vunpack.c.h.b16 %v7436
        %v7514 = vunpack.c.l.b16 %v7437
        %v7515 = vunpack.c.h.b16 %v7437
        %v7516 = vunpack.c.l.b16 %v7438
        %v7517 = vunpack.c.h.b16 %v7438
        %v7518 = vunpack.c.l.b16 %v7439
        %v7519 = vunpack.c.h.b16 %v7439
        %v7520 = vunpack.c.l.b16 %v7440
        %v7521 = vunpack.c.h.b16 %v7440
        %v7522 = vunpack.c.l.b16 %v7441
        %v7523 = vunpack.c.h.b16 %v7441
        %v7524 = vunpack.c.l.b16 %v7442
        %v7525 = vunpack.c.h.b16 %v7442
        %v7526 = vunpack.c.l.b16 %v7443
        %v7527 = vunpack.c.h.b16 %v7443
        %v7528 = vunpack.c.l.b16 %v7444
        %v7529 = vunpack.c.h.b16 %v7444
        %v7530 = vunpack.c.l.b16 %v7445
        %v7531 = vunpack.c.h.b16 %v7445
        %v7532 = vunpack.c.l.b16 %v7446
        %v7533 = vunpack.c.h.b16 %v7446
        %v7534 = vunpack.c.l.b16 %v7447
        %v7535 = vunpack.c.h.b16 %v7447
        %v7536 = vunpack.c.l.b16 %v7448
        %v7537 = vunpack.c.h.b16 %v7448
        %v7538 = vunpack.c.l.b16 %v7449
        %v7539 = vunpack.c.h.b16 %v7449
        %v7540 = vunpack.c.l.b16 %v7450
        %v7541 = vunpack.c.h.b16 %v7450
        %v7542 = vunpack.c.l.b16 %v7451
        %v7543 = vunpack.c.h.b16 %v7451
        %v7544 = vunpack.c.l.b16 %v7452
        %v7545 = vunpack.c.h.b16 %v7452
        %v7546 = vunpack.c.l.b16 %v7453
        %v7547 = vunpack.c.h.b16 %v7453
        %v7548 = vunpack.c.l.b16 %v7454
        %v7549 = vunpack.c.h.b16 %v7454
        %v7550 = vunpack.c.l.b16 %v7455
        %v7551 = vunpack.c.h.b16 %v7455
        %v7552 = vpack.c.b16 %v7490, %v7488
        %v7553 = vpack.c.b16 %v7491, %v7489
        %v7554 = vpack.c.b16 %v7494, %v7492
        %v7555 = vpack.c.b16 %v7495, %v7493
        %v7556 = vpack.c.b16 %v7498, %v7496
        %v7557 = vpack.c.b16 %v7499, %v7497
        %v7558 = vpack.c.b16 %v7502, %v7500
        %v7559 = vpack.c.b16 %v7503, %v7501
        %v7560 = vpack.c.b16 %v7506, %v7504
        %v7561 = vpack.c.b16 %v7507, %v7505
        %v7562 = vpack.c.b16 %v7510, %v7508
        %v7563 = vpack.c.b16 %v7511, %v7509
        %v7564 = vpack.c.b16 %v7514, %v7512
        %v7565 = vpack.c.b16 %v7515, %v7513
        %v7566 = vpack.c.b16 %v7518, %v7516
        %v7567 = vpack.c.b16 %v7519, %v7517
        %v7568 = vpack.c.b16 %v7522, %v7520
        %v7569 = vpack.c.b16 %v7523, %v7521
        %v7570 = vpack.c.b16 %v7526, %v7524
        %v7571 = vpack.c.b16 %v7527, %v7525
        %v7572 = vpack.c.b16 %v7530, %v7528
        %v7573 = vpack.c.b16 %v7531, %v7529
        %v7574 = vpack.c.b16 %v7534, %v7532
        %v7575 = vpack.c.b16 %v7535, %v7533
        %v7576 = vpack.c.b16 %v7538, %v7536
        %v7577 = vpack.c.b16 %v7539, %v7537
        %v7578 = vpack.c.b16 %v7542, %v7540
        %v7579 = vpack.c.b16 %v7543, %v7541
        %v7580 = vpack.c.b16 %v7546, %v7544
        %v7581 = vpack.c.b16 %v7547, %v7545
        %v7582 = vpack.c.b16 %v7550, %v7548
        %v7583 = vpack.c.b16 %v7551, %v7549
        %7616 = vmatprep.subr.bf16.mxu0 %v7553
        %7617 = vmatpush1.bf16.msra.mxu0 %v7552
        %7618 = vmatprep.subr.bf16.mxu0 %v7555
        %7619 = vmatpush1.bf16.msra.mxu0 %v7554
        %7620 = vmatprep.subr.bf16.mxu0 %v7557
        %7621 = vmatpush1.bf16.msra.mxu0 %v7556
        %7622 = vmatprep.subr.bf16.mxu0 %v7559
        %7623 = vmatpush1.bf16.msra.mxu0 %v7558
        %7624 = vmatprep.subr.bf16.mxu0 %v7561
        %7625 = vmatpush1.bf16.msra.mxu0 %v7560
        %7626 = vmatprep.subr.bf16.mxu0 %v7563
        %7627 = vmatpush1.bf16.msra.mxu0 %v7562
        %7628 = vmatprep.subr.bf16.mxu0 %v7565
        %7629 = vmatpush1.bf16.msra.mxu0 %v7564
        %7630 = vmatprep.subr.bf16.mxu0 %v7567
        %7631 = vmatpush1.bf16.msra.mxu0 %v7566
        %7632 = vmatprep.subr.bf16.mxu0 %v7569
        %7633 = vmatpush1.bf16.msra.mxu0 %v7568
        %7634 = vmatprep.subr.bf16.mxu0 %v7571
        %7635 = vmatpush1.bf16.msra.mxu0 %v7570
        %7636 = vmatprep.subr.bf16.mxu0 %v7573
        %7637 = vmatpush1.bf16.msra.mxu0 %v7572
        %7638 = vmatprep.subr.bf16.mxu0 %v7575
        %7639 = vmatpush1.bf16.msra.mxu0 %v7574
        %7640 = vmatprep.subr.bf16.mxu0 %v7577
        %7641 = vmatpush1.bf16.msra.mxu0 %v7576
        %7642 = vmatprep.subr.bf16.mxu0 %v7579
        %7643 = vmatpush1.bf16.msra.mxu0 %v7578
        %7644 = vmatprep.subr.bf16.mxu0 %v7581
        %7645 = vmatpush1.bf16.msra.mxu0 %v7580
        %7646 = vmatprep.subr.bf16.mxu0 %v7583
        %7647 = vmatpush1.bf16.msra.mxu0 %v7582
        %7648 = vmatprep.mubr.bf16.mxu0 %v7384
        %7649 = vmatmul.mubr.bf16.gmra.mrb[0].mxu0 %v7383
        %v7650 = vpop.f32.mrb[0].mxu0
        %v7651 = vadd.f32 0.0, %v7650
        %v7652 = vpop.f32.mrb[0].mxu0
        %v7653 = vadd.f32 0.0, %v7652
        %v7654 = vpop.f32.mrb[0].mxu0
        %v7655 = vadd.f32 0.0, %v7654
        %v7656 = vpop.f32.mrb[0].mxu0
        %v7657 = vadd.f32 0.0, %v7656
        %7658 = vmatprep.mubr.bf16.mxu0 %v7386
        %7659 = vmatmul.mubr.bf16.gmra.mrb[0].mxu0 %v7385
        %v7660 = vpop.f32.mrb[0].mxu0
        %v7661 = vadd.f32 0.0, %v7660
        %v7662 = vpop.f32.mrb[0].mxu0
        %v7663 = vadd.f32 0.0, %v7662
        %v7664 = vpop.f32.mrb[0].mxu0
        %v7665 = vadd.f32 0.0, %v7664
        %v7666 = vpop.f32.mrb[0].mxu0
        %v7667 = vadd.f32 0.0, %v7666
        %7668 = vmatprep.mubr.bf16.mxu0 %v7388
        %7669 = vmatmul.mubr.bf16.gmra.mrb[0].mxu0 %v7387
        %v7670 = vpop.f32.mrb[0].mxu0
        %v7671 = vadd.f32 0.0, %v7670
        %v7672 = vpop.f32.mrb[0].mxu0
        %v7673 = vadd.f32 0.0, %v7672
        %v7674 = vpop.f32.mrb[0].mxu0
        %v7675 = vadd.f32 0.0, %v7674
        %v7676 = vpop.f32.mrb[0].mxu0
        %v7677 = vadd.f32 0.0, %v7676
        %7678 = vmatprep.mubr.bf16.mxu0 %v7390
        %7679 = vmatmul.mubr.bf16.gmra.mrb[0].mxu0 %v7389
        %v7680 = vpop.f32.mrb[0].mxu0
        %v7681 = vadd.f32 0.0, %v7680
        %v7682 = vpop.f32.mrb[0].mxu0
        %v7683 = vadd.f32 0.0, %v7682
        %v7684 = vpop.f32.mrb[0].mxu0
        %v7685 = vadd.f32 0.0, %v7684
        %v7686 = vpop.f32.mrb[0].mxu0
        %v7687 = vadd.f32 0.0, %v7686
        %7688 = vdwg.mxu0
        %v7721 = vunpack.c.l.b16 %v7391
        %v7722 = vunpack.c.h.b16 %v7391
        %v7723 = vunpack.c.l.b16 %v7392
        %v7724 = vunpack.c.h.b16 %v7392
        %v7725 = vunpack.c.l.b16 %v7393
        %v7726 = vunpack.c.h.b16 %v7393
        %v7727 = vunpack.c.l.b16 %v7394
        %v7728 = vunpack.c.h.b16 %v7394
        %v7729 = vunpack.c.l.b16 %v7395
        %v7730 = vunpack.c.h.b16 %v7395
        %v7731 = vunpack.c.l.b16 %v7396
        %v7732 = vunpack.c.h.b16 %v7396
        %v7733 = vunpack.c.l.b16 %v7397
        %v7734 = vunpack.c.h.b16 %v7397
        %v7735 = vunpack.c.l.b16 %v7398
        %v7736 = vunpack.c.h.b16 %v7398
        %v7737 = vunpack.c.l.b16 %v7399
        %v7738 = vunpack.c.h.b16 %v7399
        %v7739 = vunpack.c.l.b16 %v7400
        %v7740 = vunpack.c.h.b16 %v7400
        %v7741 = vunpack.c.l.b16 %v7401
        %v7742 = vunpack.c.h.b16 %v7401
        %v7743 = vunpack.c.l.b16 %v7402
        %v7744 = vunpack.c.h.b16 %v7402
        %v7745 = vunpack.c.l.b16 %v7403
        %v7746 = vunpack.c.h.b16 %v7403
        %v7747 = vunpack.c.l.b16 %v7404
        %v7748 = vunpack.c.h.b16 %v7404
        %v7749 = vunpack.c.l.b16 %v7405
        %v7750 = vunpack.c.h.b16 %v7405
        %v7751 = vunpack.c.l.b16 %v7406
        %v7752 = vunpack.c.h.b16 %v7406
        %v7753 = vunpack.c.l.b16 %v7407
        %v7754 = vunpack.c.h.b16 %v7407
        %v7755 = vunpack.c.l.b16 %v7408
        %v7756 = vunpack.c.h.b16 %v7408
        %v7757 = vunpack.c.l.b16 %v7409
        %v7758 = vunpack.c.h.b16 %v7409
        %v7759 = vunpack.c.l.b16 %v7410
        %v7760 = vunpack.c.h.b16 %v7410
        %v7761 = vunpack.c.l.b16 %v7411
        %v7762 = vunpack.c.h.b16 %v7411
        %v7763 = vunpack.c.l.b16 %v7412
        %v7764 = vunpack.c.h.b16 %v7412
        %v7765 = vunpack.c.l.b16 %v7413
        %v7766 = vunpack.c.h.b16 %v7413
        %v7767 = vunpack.c.l.b16 %v7414
        %v7768 = vunpack.c.h.b16 %v7414
        %v7769 = vunpack.c.l.b16 %v7415
        %v7770 = vunpack.c.h.b16 %v7415
        %v7771 = vunpack.c.l.b16 %v7416
        %v7772 = vunpack.c.h.b16 %v7416
        %v7773 = vunpack.c.l.b16 %v7417
        %v7774 = vunpack.c.h.b16 %v7417
        %v7775 = vunpack.c.l.b16 %v7418
        %v7776 = vunpack.c.h.b16 %v7418
        %v7777 = vunpack.c.l.b16 %v7419
        %v7778 = vunpack.c.h.b16 %v7419
        %v7779 = vunpack.c.l.b16 %v7420
        %v7780 = vunpack.c.h.b16 %v7420
        %v7781 = vunpack.c.l.b16 %v7421
        %v7782 = vunpack.c.h.b16 %v7421
        %v7783 = vunpack.c.l.b16 %v7422
        %v7784 = vunpack.c.h.b16 %v7422
        %v7785 = vpack.c.b16 %v7723, %v7721
        %v7786 = vpack.c.b16 %v7724, %v7722
        %v7787 = vpack.c.b16 %v7727, %v7725
        %v7788 = vpack.c.b16 %v7728, %v7726
        %v7789 = vpack.c.b16 %v7731, %v7729
        %v7790 = vpack.c.b16 %v7732, %v7730
        %v7791 = vpack.c.b16 %v7735, %v7733
        %v7792 = vpack.c.b16 %v7736, %v7734
        %v7793 = vpack.c.b16 %v7739, %v7737
        %v7794 = vpack.c.b16 %v7740, %v7738
        %v7795 = vpack.c.b16 %v7743, %v7741
        %v7796 = vpack.c.b16 %v7744, %v7742
        %v7797 = vpack.c.b16 %v7747, %v7745
        %v7798 = vpack.c.b16 %v7748, %v7746
        %v7799 = vpack.c.b16 %v7751, %v7749
        %v7800 = vpack.c.b16 %v7752, %v7750
        %v7801 = vpack.c.b16 %v7755, %v7753
        %v7802 = vpack.c.b16 %v7756, %v7754
        %v7803 = vpack.c.b16 %v7759, %v7757
        %v7804 = vpack.c.b16 %v7760, %v7758
        %v7805 = vpack.c.b16 %v7763, %v7761
        %v7806 = vpack.c.b16 %v7764, %v7762
        %v7807 = vpack.c.b16 %v7767, %v7765
        %v7808 = vpack.c.b16 %v7768, %v7766
        %v7809 = vpack.c.b16 %v7771, %v7769
        %v7810 = vpack.c.b16 %v7772, %v7770
        %v7811 = vpack.c.b16 %v7775, %v7773
        %v7812 = vpack.c.b16 %v7776, %v7774
        %v7813 = vpack.c.b16 %v7779, %v7777
        %v7814 = vpack.c.b16 %v7780, %v7778
        %v7815 = vpack.c.b16 %v7783, %v7781
        %v7816 = vpack.c.b16 %v7784, %v7782
        %7849 = vmatprep.subr.bf16.mxu0 %v7786
        %7850 = vmatpush1.bf16.msra.mxu0 %v7785
        %7851 = vmatprep.subr.bf16.mxu0 %v7788
        %7852 = vmatpush1.bf16.msra.mxu0 %v7787
        %7853 = vmatprep.subr.bf16.mxu0 %v7790
        %7854 = vmatpush1.bf16.msra.mxu0 %v7789
        %7855 = vmatprep.subr.bf16.mxu0 %v7792
        %7856 = vmatpush1.bf16.msra.mxu0 %v7791
        %7857 = vmatprep.subr.bf16.mxu0 %v7794
        %7858 = vmatpush1.bf16.msra.mxu0 %v7793
        %7859 = vmatprep.subr.bf16.mxu0 %v7796
        %7860 = vmatpush1.bf16.msra.mxu0 %v7795
        %7861 = vmatprep.subr.bf16.mxu0 %v7798
        %7862 = vmatpush1.bf16.msra.mxu0 %v7797
        %7863 = vmatprep.subr.bf16.mxu0 %v7800
        %7864 = vmatpush1.bf16.msra.mxu0 %v7799
        %7865 = vmatprep.subr.bf16.mxu0 %v7802
        %7866 = vmatpush1.bf16.msra.mxu0 %v7801
        %7867 = vmatprep.subr.bf16.mxu0 %v7804
        %7868 = vmatpush1.bf16.msra.mxu0 %v7803
        %7869 = vmatprep.subr.bf16.mxu0 %v7806
        %7870 = vmatpush1.bf16.msra.mxu0 %v7805
        %7871 = vmatprep.subr.bf16.mxu0 %v7808
        %7872 = vmatpush1.bf16.msra.mxu0 %v7807
        %7873 = vmatprep.subr.bf16.mxu0 %v7810
        %7874 = vmatpush1.bf16.msra.mxu0 %v7809
        %7875 = vmatprep.subr.bf16.mxu0 %v7812
        %7876 = vmatpush1.bf16.msra.mxu0 %v7811
        %7877 = vmatprep.subr.bf16.mxu0 %v7814
        %7878 = vmatpush1.bf16.msra.mxu0 %v7813
        %7879 = vmatprep.subr.bf16.mxu0 %v7816
        %7880 = vmatpush1.bf16.msra.mxu0 %v7815
        %7881 = vmatprep.mubr.bf16.mxu0 %v7376
        %7882 = vmatmul.mubr.bf16.gmra.mrb[0].mxu0 %v7375
        %v7883 = vpop.f32.mrb[0].mxu0
        %v7884 = vadd.f32 %v7651, %v7883
        %v7885 = vpop.f32.mrb[0].mxu0
        %v7886 = vadd.f32 %v7653, %v7885
        %v7887 = vpop.f32.mrb[0].mxu0
        %v7888 = vadd.f32 %v7655, %v7887
        %v7889 = vpop.f32.mrb[0].mxu0
        %v7890 = vadd.f32 %v7657, %v7889
        %7891 = vmatprep.mubr.bf16.mxu0 %v7378
        %7892 = vmatmul.mubr.bf16.gmra.mrb[0].mxu0 %v7377
        %v7893 = vpop.f32.mrb[0].mxu0
        %v7894 = vadd.f32 %v7661, %v7893
        %v7895 = vpop.f32.mrb[0].mxu0
        %v7896 = vadd.f32 %v7663, %v7895
        %v7897 = vpop.f32.mrb[0].mxu0
        %v7898 = vadd.f32 %v7665, %v7897
        %v7899 = vpop.f32.mrb[0].mxu0
        %v7900 = vadd.f32 %v7667, %v7899
        %7901 = vmatprep.mubr.bf16.mxu0 %v7380
        %7902 = vmatmul.mubr.bf16.gmra.mrb[0].mxu0 %v7379
        %v7903 = vpop.f32.mrb[0].mxu0
        %v7904 = vadd.f32 %v7671, %v7903
        %v7905 = vpop.f32.mrb[0].mxu0
        %v7906 = vadd.f32 %v7673, %v7905
        %v7907 = vpop.f32.mrb[0].mxu0
        %v7908 = vadd.f32 %v7675, %v7907
        %v7909 = vpop.f32.mrb[0].mxu0
        %v7910 = vadd.f32 %v7677, %v7909
        %7911 = vmatprep.mubr.bf16.mxu0 %v7382
        %7912 = vmatmul.mubr.bf16.gmra.mrb[0].mxu0 %v7381
        %v7913 = vpop.f32.mrb[0].mxu0
        %v7914 = vadd.f32 %v7681, %v7913
        %v7915 = vpop.f32.mrb[0].mxu0
        %v7916 = vadd.f32 %v7683, %v7915
        %v7917 = vpop.f32.mrb[0].mxu0
        %v7918 = vadd.f32 %v7685, %v7917
        %v7919 = vpop.f32.mrb[0].mxu0
        %v7920 = vadd.f32 %v7687, %v7919
        %7921 = vdwg.mxu0
        %v7923 = vlaneseq
        %v7924 = vshrl.u32 %v7923, 7
        %v7925 = vsub.s32 0, %v7924
        %v7926 = vrot.slane %v7358, %v7925
        %v7927 = vlaneseq
        %v7928 = vshrl.u32 %v7927, 7
        %v7929 = vsub.s32 1, %v7928
        %v7930 = vrot.slane %v7358, %v7929
        %v7933 = vadd.f32 %v7884, %v7926
        %v7934 = vadd.f32 %v7886, %v7930
        %v7935 = vadd.f32 %v7888, %v7926
        %v7936 = vadd.f32 %v7890, %v7930
        %v7937 = vadd.f32 %v7894, %v7926
        %v7938 = vadd.f32 %v7896, %v7930
        %v7939 = vadd.f32 %v7898, %v7926
        %v7940 = vadd.f32 %v7900, %v7930
        %v7941 = vadd.f32 %v7904, %v7926
        %v7942 = vadd.f32 %v7906, %v7930
        %v7943 = vadd.f32 %v7908, %v7926
        %v7944 = vadd.f32 %v7910, %v7930
        %v7945 = vadd.f32 %v7914, %v7926
        %v7946 = vadd.f32 %v7916, %v7930
        %v7947 = vadd.f32 %v7918, %v7926
        %v7948 = vadd.f32 %v7920, %v7930
        %v7949 = vmul.f32 %v7933, 0.5
        %v7950 = vmul.f32 %v7934, 0.5
        %v7951 = vmul.f32 %v7935, 0.5
        %v7952 = vmul.f32 %v7936, 0.5
        %v7953 = vmul.f32 %v7937, 0.5
        %v7954 = vmul.f32 %v7938, 0.5
        %v7955 = vmul.f32 %v7939, 0.5
        %v7956 = vmul.f32 %v7940, 0.5
        %v7957 = vmul.f32 %v7941, 0.5
        %v7958 = vmul.f32 %v7942, 0.5
        %v7959 = vmul.f32 %v7943, 0.5
        %v7960 = vmul.f32 %v7944, 0.5
        %v7961 = vmul.f32 %v7945, 0.5
        %v7962 = vmul.f32 %v7946, 0.5
        %v7963 = vmul.f32 %v7947, 0.5
        %v7964 = vmul.f32 %v7948, 0.5
        %v7965 = vmul.f32 %v7933, 0.044715
        %v7966 = vmul.f32 %v7934, 0.044715
        %v7967 = vmul.f32 %v7935, 0.044715
        %v7968 = vmul.f32 %v7936, 0.044715
        %v7969 = vmul.f32 %v7937, 0.044715
        %v7970 = vmul.f32 %v7938, 0.044715
        %v7971 = vmul.f32 %v7939, 0.044715
        %v7972 = vmul.f32 %v7940, 0.044715
        %v7973 = vmul.f32 %v7941, 0.044715
        %v7974 = vmul.f32 %v7942, 0.044715
        %v7975 = vmul.f32 %v7943, 0.044715
        %v7976 = vmul.f32 %v7944, 0.044715
        %v7977 = vmul.f32 %v7945, 0.044715
        %v7978 = vmul.f32 %v7946, 0.044715
        %v7979 = vmul.f32 %v7947, 0.044715
        %v7980 = vmul.f32 %v7948, 0.044715
        %v7981 = vmul.f32 %v7965, %v7933
        %v7982 = vmul.f32 %v7966, %v7934
        %v7983 = vmul.f32 %v7967, %v7935
        %v7984 = vmul.f32 %v7968, %v7936
        %v7985 = vmul.f32 %v7969, %v7937
        %v7986 = vmul.f32 %v7970, %v7938
        %v7987 = vmul.f32 %v7971, %v7939
        %v7988 = vmul.f32 %v7972, %v7940
        %v7989 = vmul.f32 %v7973, %v7941
        %v7990 = vmul.f32 %v7974, %v7942
        %v7991 = vmul.f32 %v7975, %v7943
        %v7992 = vmul.f32 %v7976, %v7944
        %v7993 = vmul.f32 %v7977, %v7945
        %v7994 = vmul.f32 %v7978, %v7946
        %v7995 = vmul.f32 %v7979, %v7947
        %v7996 = vmul.f32 %v7980, %v7948
        %v7997 = vmul.f32 %v7981, %v7933
        %v7998 = vmul.f32 %v7982, %v7934
        %v7999 = vmul.f32 %v7983, %v7935
        %v8000 = vmul.f32 %v7984, %v7936
        %v8001 = vmul.f32 %v7985, %v7937
        %v8002 = vmul.f32 %v7986, %v7938
        %v8003 = vmul.f32 %v7987, %v7939
        %v8004 = vmul.f32 %v7988, %v7940
        %v8005 = vmul.f32 %v7989, %v7941
        %v8006 = vmul.f32 %v7990, %v7942
        %v8007 = vmul.f32 %v7991, %v7943
        %v8008 = vmul.f32 %v7992, %v7944
        %v8009 = vmul.f32 %v7993, %v7945
        %v8010 = vmul.f32 %v7994, %v7946
        %v8011 = vmul.f32 %v7995, %v7947
        %v8012 = vmul.f32 %v7996, %v7948
        %v8013 = vadd.f32 %v7933, %v7997
        %v8014 = vadd.f32 %v7934, %v7998
        %v8015 = vadd.f32 %v7935, %v7999
        %v8016 = vadd.f32 %v7936, %v8000
        %v8017 = vadd.f32 %v7937, %v8001
        %v8018 = vadd.f32 %v7938, %v8002
        %v8019 = vadd.f32 %v7939, %v8003
        %v8020 = vadd.f32 %v7940, %v8004
        %v8021 = vadd.f32 %v7941, %v8005
        %v8022 = vadd.f32 %v7942, %v8006
        %v8023 = vadd.f32 %v7943, %v8007
        %v8024 = vadd.f32 %v7944, %v8008
        %v8025 = vadd.f32 %v7945, %v8009
        %v8026 = vadd.f32 %v7946, %v8010
        %v8027 = vadd.f32 %v7947, %v8011
        %v8028 = vadd.f32 %v7948, %v8012
        %v8029 = vmul.f32 %v8013, 0.7978846
        %v8030 = vmul.f32 %v8014, 0.7978846
        %v8031 = vmul.f32 %v8015, 0.7978846
        %v8032 = vmul.f32 %v8016, 0.7978846
        %v8033 = vmul.f32 %v8017, 0.7978846
        %v8034 = vmul.f32 %v8018, 0.7978846
        %v8035 = vmul.f32 %v8019, 0.7978846
        %v8036 = vmul.f32 %v8020, 0.7978846
        %v8037 = vmul.f32 %v8021, 0.7978846
        %v8038 = vmul.f32 %v8022, 0.7978846
        %v8039 = vmul.f32 %v8023, 0.7978846
        %v8040 = vmul.f32 %v8024, 0.7978846
        %v8041 = vmul.f32 %v8025, 0.7978846
        %v8042 = vmul.f32 %v8026, 0.7978846
        %v8043 = vmul.f32 %v8027, 0.7978846
        %v8044 = vmul.f32 %v8028, 0.7978846
        %v8045 = vtanh.pop %v8029
        %v8046 = vtanh.pop %v8030
        %v8047 = vtanh.pop %v8031
        %v8048 = vtanh.pop %v8032
        %v8049 = vtanh.pop %v8033
        %v8050 = vtanh.pop %v8034
        %v8051 = vtanh.pop %v8035
        %v8052 = vtanh.pop %v8036
        %v8053 = vtanh.pop %v8037
        %v8054 = vtanh.pop %v8038
        %v8055 = vtanh.pop %v8039
        %v8056 = vtanh.pop %v8040
        %v8057 = vtanh.pop %v8041
        %v8058 = vtanh.pop %v8042
        %v8059 = vtanh.pop %v8043
        %v8060 = vtanh.pop %v8044
        %v8061 = vadd.f32 %v8045, 1.0
        %v8062 = vadd.f32 %v8046, 1.0
        %v8063 = vadd.f32 %v8047, 1.0
        %v8064 = vadd.f32 %v8048, 1.0
        %v8065 = vadd.f32 %v8049, 1.0
        %v8066 = vadd.f32 %v8050, 1.0
        %v8067 = vadd.f32 %v8051, 1.0
        %v8068 = vadd.f32 %v8052, 1.0
        %v8069 = vadd.f32 %v8053, 1.0
        %v8070 = vadd.f32 %v8054, 1.0
        %v8071 = vadd.f32 %v8055, 1.0
        %v8072 = vadd.f32 %v8056, 1.0
        %v8073 = vadd.f32 %v8057, 1.0
        %v8074 = vadd.f32 %v8058, 1.0
        %v8075 = vadd.f32 %v8059, 1.0
        %v8076 = vadd.f32 %v8060, 1.0
        %v8077 = vmul.f32 %v7949, %v8061
        %v8078 = vmul.f32 %v7950, %v8062
        %v8079 = vmul.f32 %v7951, %v8063
        %v8080 = vmul.f32 %v7952, %v8064
        %v8081 = vmul.f32 %v7953, %v8065
        %v8082 = vmul.f32 %v7954, %v8066
        %v8083 = vmul.f32 %v7955, %v8067
        %v8084 = vmul.f32 %v7956, %v8068
        %v8085 = vmul.f32 %v7957, %v8069
        %v8086 = vmul.f32 %v7958, %v8070
        %v8087 = vmul.f32 %v7959, %v8071
        %v8088 = vmul.f32 %v7960, %v8072
        %v8089 = vmul.f32 %v7961, %v8073
        %v8090 = vmul.f32 %v7962, %v8074
        %v8091 = vmul.f32 %v7963, %v8075
        %v8092 = vmul.f32 %v7964, %v8076
        %v8093 = vsub.f32 0.0, %v8077
        %v8094 = vsub.f32 0.0, %v8078
        %v8095 = vsub.f32 0.0, %v8079
        %v8096 = vsub.f32 0.0, %v8080
        %v8097 = vsub.f32 0.0, %v8081
        %v8098 = vsub.f32 0.0, %v8082
        %v8099 = vsub.f32 0.0, %v8083
        %v8100 = vsub.f32 0.0, %v8084
        %v8101 = vsub.f32 0.0, %v8085
        %v8102 = vsub.f32 0.0, %v8086
        %v8103 = vsub.f32 0.0, %v8087
        %v8104 = vsub.f32 0.0, %v8088
        %v8105 = vsub.f32 0.0, %v8089
        %v8106 = vsub.f32 0.0, %v8090
        %v8107 = vsub.f32 0.0, %v8091
        %v8108 = vsub.f32 0.0, %v8092
        %v8109 = vmul.f32 %v8093, 1.442695
        %v8110 = vpow.pop %v8109
        %v8111 = vmul.f32 %v8094, 1.442695
        %v8112 = vpow.pop %v8111
        %v8113 = vmul.f32 %v8095, 1.442695
        %v8114 = vpow.pop %v8113
        %v8115 = vmul.f32 %v8096, 1.442695
        %v8116 = vpow.pop %v8115
        %v8117 = vmul.f32 %v8097, 1.442695
        %v8118 = vpow.pop %v8117
        %v8119 = vmul.f32 %v8098, 1.442695
        %v8120 = vpow.pop %v8119
        %v8121 = vmul.f32 %v8099, 1.442695
        %v8122 = vpow.pop %v8121
        %v8123 = vmul.f32 %v8100, 1.442695
        %v8124 = vpow.pop %v8123
        %v8125 = vmul.f32 %v8101, 1.442695
        %v8126 = vpow.pop %v8125
        %v8127 = vmul.f32 %v8102, 1.442695
        %v8128 = vpow.pop %v8127
        %v8129 = vmul.f32 %v8103, 1.442695
        %v8130 = vpow.pop %v8129
        %v8131 = vmul.f32 %v8104, 1.442695
        %v8132 = vpow.pop %v8131
        %v8133 = vmul.f32 %v8105, 1.442695
        %v8134 = vpow.pop %v8133
        %v8135 = vmul.f32 %v8106, 1.442695
        %v8136 = vpow.pop %v8135
        %v8137 = vmul.f32 %v8107, 1.442695
        %v8138 = vpow.pop %v8137
        %v8139 = vmul.f32 %v8108, 1.442695
        %v8140 = vpow.pop %v8139
        %v8141 = vadd.f32 %v8110, 1.0
        %v8142 = vadd.f32 %v8112, 1.0
        %v8143 = vadd.f32 %v8114, 1.0
        %v8144 = vadd.f32 %v8116, 1.0
        %v8145 = vadd.f32 %v8118, 1.0
        %v8146 = vadd.f32 %v8120, 1.0
        %v8147 = vadd.f32 %v8122, 1.0
        %v8148 = vadd.f32 %v8124, 1.0
        %v8149 = vadd.f32 %v8126, 1.0
        %v8150 = vadd.f32 %v8128, 1.0
        %v8151 = vadd.f32 %v8130, 1.0
        %v8152 = vadd.f32 %v8132, 1.0
        %v8153 = vadd.f32 %v8134, 1.0
        %v8154 = vadd.f32 %v8136, 1.0
        %v8155 = vadd.f32 %v8138, 1.0
        %v8156 = vadd.f32 %v8140, 1.0
        %v8157 = vrcp.pop %v8141
        %v8158 = vrcp.pop %v8142
        %v8159 = vrcp.pop %v8143
        %v8160 = vrcp.pop %v8144
        %v8161 = vrcp.pop %v8145
        %v8162 = vrcp.pop %v8146
        %v8163 = vrcp.pop %v8147
        %v8164 = vrcp.pop %v8148
        %v8165 = vrcp.pop %v8149
        %v8166 = vrcp.pop %v8150
        %v8167 = vrcp.pop %v8151
        %v8168 = vrcp.pop %v8152
        %v8169 = vrcp.pop %v8153
        %v8170 = vrcp.pop %v8154
        %v8171 = vrcp.pop %v8155
        %v8172 = vrcp.pop %v8156
        %v8173 = vmul.f32 %v6385, %v8157
        %v8174 = vmul.f32 %v5410, %v8158
        %v8175 = vmul.f32 %v6386, %v8159
        %v8176 = vmul.f32 %v5411, %v8160
        %v8177 = vmul.f32 %v6387, %v8161
        %v8178 = vmul.f32 %v5412, %v8162
        %v8179 = vmul.f32 %v6388, %v8163
        %v8180 = vmul.f32 %v5413, %v8164
        %v8181 = vmul.f32 %v6389, %v8165
        %v8182 = vmul.f32 %v5414, %v8166
        %v8183 = vmul.f32 %v6390, %v8167
        %v8184 = vmul.f32 %v5415, %v8168
        %v8185 = vmul.f32 %v6391, %v8169
        %v8186 = vmul.f32 %v5416, %v8170
        %v8187 = vmul.f32 %v6392, %v8171
        %v8188 = vmul.f32 %v5417, %v8172
        %v8189 = vpack.c.bf16 %v8175, %v8173
        %v8190 = vpack.c.bf16 %v8176, %v8174
        %v8191 = vpack.c.bf16 %v8179, %v8177
        %v8192 = vpack.c.bf16 %v8180, %v8178
        %v8193 = vpack.c.bf16 %v8183, %v8181
        %v8194 = vpack.c.bf16 %v8184, %v8182
        %v8195 = vpack.c.bf16 %v8187, %v8185
        %v8196 = vpack.c.bf16 %v8188, %v8186
        %v8197 = vld [vmem:[%s71] sm:$0xf]
        %v8198 = vld [vmem:[%s71 + $0x4] sm:$0xf]
        %v8199 = vld [vmem:[%s71 + $0x8] sm:$0xf]
        %v8200 = vld [vmem:[%s71 + $0xc] sm:$0xf]
        %v8201 = vld [vmem:[%s71 + $0x10] sm:$0xf]
        %v8202 = vld [vmem:[%s71 + $0x14] sm:$0xf]
        %v8203 = vld [vmem:[%s71 + $0x18] sm:$0xf]
        %v8204 = vld [vmem:[%s71 + $0x1c] sm:$0xf]
        %v8205 = vld [vmem:[%s71 + $0x20] sm:$0xf]
        %v8206 = vld [vmem:[%s71 + $0x24] sm:$0xf]
        %v8207 = vld [vmem:[%s71 + $0x28] sm:$0xf]
        %v8208 = vld [vmem:[%s71 + $0x2c] sm:$0xf]
        %v8209 = vld [vmem:[%s71 + $0x30] sm:$0xf]
        %v8210 = vld [vmem:[%s71 + $0x34] sm:$0xf]
        %v8211 = vld [vmem:[%s71 + $0x38] sm:$0xf]
        %v8212 = vld [vmem:[%s71 + $0x3c] sm:$0xf]
        %v8213 = vld [vmem:[%s71 + $0x40] sm:$0xf]
        %v8214 = vld [vmem:[%s71 + $0x44] sm:$0xf]
        %v8215 = vld [vmem:[%s71 + $0x48] sm:$0xf]
        %v8216 = vld [vmem:[%s71 + $0x4c] sm:$0xf]
        %v8217 = vld [vmem:[%s71 + $0x50] sm:$0xf]
        %v8218 = vld [vmem:[%s71 + $0x54] sm:$0xf]
        %v8219 = vld [vmem:[%s71 + $0x58] sm:$0xf]
        %v8220 = vld [vmem:[%s71 + $0x5c] sm:$0xf]
        %v8221 = vld [vmem:[%s71 + $0x60] sm:$0xf]
        %v8222 = vld [vmem:[%s71 + $0x64] sm:$0xf]
        %v8223 = vld [vmem:[%s71 + $0x68] sm:$0xf]
        %v8224 = vld [vmem:[%s71 + $0x6c] sm:$0xf]
        %v8225 = vld [vmem:[%s71 + $0x70] sm:$0xf]
        %v8226 = vld [vmem:[%s71 + $0x74] sm:$0xf]
        %v8227 = vld [vmem:[%s71 + $0x78] sm:$0xf]
        %v8228 = vld [vmem:[%s71 + $0x7c] sm:$0xf]
        %v8229 = vld [vmem:[%s71 + $0x80] sm:$0xf]
        %v8230 = vld [vmem:[%s71 + $0x84] sm:$0xf]
        %v8231 = vld [vmem:[%s71 + $0x88] sm:$0xf]
        %v8232 = vld [vmem:[%s71 + $0x8c] sm:$0xf]
        %v8233 = vld [vmem:[%s71 + $0x90] sm:$0xf]
        %v8234 = vld [vmem:[%s71 + $0x94] sm:$0xf]
        %v8235 = vld [vmem:[%s71 + $0x98] sm:$0xf]
        %v8236 = vld [vmem:[%s71 + $0x9c] sm:$0xf]
        %v8237 = vld [vmem:[%s71 + $0xa0] sm:$0xf]
        %v8238 = vld [vmem:[%s71 + $0xa4] sm:$0xf]
        %v8239 = vld [vmem:[%s71 + $0xa8] sm:$0xf]
        %v8240 = vld [vmem:[%s71 + $0xac] sm:$0xf]
        %v8241 = vld [vmem:[%s71 + $0xb0] sm:$0xf]
        %v8242 = vld [vmem:[%s71 + $0xb4] sm:$0xf]
        %v8243 = vld [vmem:[%s71 + $0xb8] sm:$0xf]
        %v8244 = vld [vmem:[%s71 + $0xbc] sm:$0xf]
        %v8245 = vld [vmem:[%s71 + $0xc0] sm:$0xf]
        %v8246 = vld [vmem:[%s71 + $0xc4] sm:$0xf]
        %v8247 = vld [vmem:[%s71 + $0xc8] sm:$0xf]
        %v8248 = vld [vmem:[%s71 + $0xcc] sm:$0xf]
        %v8249 = vld [vmem:[%s71 + $0xd0] sm:$0xf]
        %v8250 = vld [vmem:[%s71 + $0xd4] sm:$0xf]
        %v8251 = vld [vmem:[%s71 + $0xd8] sm:$0xf]
        %v8252 = vld [vmem:[%s71 + $0xdc] sm:$0xf]
        %v8253 = vld [vmem:[%s71 + $0xe0] sm:$0xf]
        %v8254 = vld [vmem:[%s71 + $0xe4] sm:$0xf]
        %v8255 = vld [vmem:[%s71 + $0xe8] sm:$0xf]
        %v8256 = vld [vmem:[%s71 + $0xec] sm:$0xf]
        %v8257 = vld [vmem:[%s71 + $0xf0] sm:$0xf]
        %v8258 = vld [vmem:[%s71 + $0xf4] sm:$0xf]
        %v8259 = vld [vmem:[%s71 + $0xf8] sm:$0xf]
        %v8260 = vld [vmem:[%s71 + $0xfc] sm:$0xf]
        %v8261 = vld [vmem:[#allocation44] sm:$0x1]
        %v8263 = vlaneseq
        %v8264 = vshrl.u32 %v8263, 7
        %v8265 = vsub.s32 0, %v8264
        %v8266 = vrot.slane %v8261, %v8265
        %v8332 = vunpack.c.l.b16 %v8197
        %v8333 = vunpack.c.l.b16 %v8198
        %v8334 = vunpack.c.l.b16 %v8199
        %v8335 = vunpack.c.l.b16 %v8200
        %v8336 = vunpack.c.l.b16 %v8201
        %v8337 = vunpack.c.l.b16 %v8202
        %v8338 = vunpack.c.l.b16 %v8203
        %v8339 = vunpack.c.l.b16 %v8204
        %v8340 = vunpack.c.l.b16 %v8205
        %v8341 = vunpack.c.l.b16 %v8206
        %v8342 = vunpack.c.l.b16 %v8207
        %v8343 = vunpack.c.l.b16 %v8208
        %v8344 = vunpack.c.l.b16 %v8209
        %v8345 = vunpack.c.l.b16 %v8210
        %v8346 = vunpack.c.l.b16 %v8211
        %v8347 = vunpack.c.l.b16 %v8212
        %v8348 = vunpack.c.l.b16 %v8213
        %v8349 = vunpack.c.l.b16 %v8214
        %v8350 = vunpack.c.l.b16 %v8215
        %v8351 = vunpack.c.l.b16 %v8216
        %v8352 = vunpack.c.l.b16 %v8217
        %v8353 = vunpack.c.l.b16 %v8218
        %v8354 = vunpack.c.l.b16 %v8219
        %v8355 = vunpack.c.l.b16 %v8220
        %v8356 = vunpack.c.l.b16 %v8221
        %v8357 = vunpack.c.l.b16 %v8222
        %v8358 = vunpack.c.l.b16 %v8223
        %v8359 = vunpack.c.l.b16 %v8224
        %v8360 = vunpack.c.l.b16 %v8225
        %v8361 = vunpack.c.l.b16 %v8226
        %v8362 = vunpack.c.l.b16 %v8227
        %v8363 = vunpack.c.l.b16 %v8228
        %v8364 = vunpack.c.l.b16 %v8229
        %v8365 = vunpack.c.l.b16 %v8230
        %v8366 = vunpack.c.l.b16 %v8231
        %v8367 = vunpack.c.l.b16 %v8232
        %v8368 = vunpack.c.l.b16 %v8233
        %v8369 = vunpack.c.l.b16 %v8234
        %v8370 = vunpack.c.l.b16 %v8235
        %v8371 = vunpack.c.l.b16 %v8236
        %v8372 = vunpack.c.l.b16 %v8237
        %v8373 = vunpack.c.l.b16 %v8238
        %v8374 = vunpack.c.l.b16 %v8239
        %v8375 = vunpack.c.l.b16 %v8240
        %v8376 = vunpack.c.l.b16 %v8241
        %v8377 = vunpack.c.l.b16 %v8242
        %v8378 = vunpack.c.l.b16 %v8243
        %v8379 = vunpack.c.l.b16 %v8244
        %v8380 = vunpack.c.l.b16 %v8245
        %v8381 = vunpack.c.l.b16 %v8246
        %v8382 = vunpack.c.l.b16 %v8247
        %v8383 = vunpack.c.l.b16 %v8248
        %v8384 = vunpack.c.l.b16 %v8249
        %v8385 = vunpack.c.l.b16 %v8250
        %v8386 = vunpack.c.l.b16 %v8251
        %v8387 = vunpack.c.l.b16 %v8252
        %v8388 = vunpack.c.l.b16 %v8253
        %v8389 = vunpack.c.l.b16 %v8254
        %v8390 = vunpack.c.l.b16 %v8255
        %v8391 = vunpack.c.l.b16 %v8256
        %v8392 = vunpack.c.l.b16 %v8257
        %v8393 = vunpack.c.l.b16 %v8258
        %v8394 = vunpack.c.l.b16 %v8259
        %v8395 = vunpack.c.l.b16 %v8260
        %v8396 = vpack.c.b16 %v8333, %v8332
        %v8397 = vpack.c.b16 %v8335, %v8334
        %v8398 = vpack.c.b16 %v8337, %v8336
        %v8399 = vpack.c.b16 %v8339, %v8338
        %v8400 = vpack.c.b16 %v8341, %v8340
        %v8401 = vpack.c.b16 %v8343, %v8342
        %v8402 = vpack.c.b16 %v8345, %v8344
        %v8403 = vpack.c.b16 %v8347, %v8346
        %v8404 = vpack.c.b16 %v8349, %v8348
        %v8405 = vpack.c.b16 %v8351, %v8350
        %v8406 = vpack.c.b16 %v8353, %v8352
        %v8407 = vpack.c.b16 %v8355, %v8354
        %v8408 = vpack.c.b16 %v8357, %v8356
        %v8409 = vpack.c.b16 %v8359, %v8358
        %v8410 = vpack.c.b16 %v8361, %v8360
        %v8411 = vpack.c.b16 %v8363, %v8362
        %v8412 = vpack.c.b16 %v8365, %v8364
        %v8413 = vpack.c.b16 %v8367, %v8366
        %v8414 = vpack.c.b16 %v8369, %v8368
        %v8415 = vpack.c.b16 %v8371, %v8370
        %v8416 = vpack.c.b16 %v8373, %v8372
        %v8417 = vpack.c.b16 %v8375, %v8374
        %v8418 = vpack.c.b16 %v8377, %v8376
        %v8419 = vpack.c.b16 %v8379, %v8378
        %v8420 = vpack.c.b16 %v8381, %v8380
        %v8421 = vpack.c.b16 %v8383, %v8382
        %v8422 = vpack.c.b16 %v8385, %v8384
        %v8423 = vpack.c.b16 %v8387, %v8386
        %v8424 = vpack.c.b16 %v8389, %v8388
        %v8425 = vpack.c.b16 %v8391, %v8390
        %v8426 = vpack.c.b16 %v8393, %v8392
        %v8427 = vpack.c.b16 %v8395, %v8394
        %8460 = vmatprep.subr.bf16.mxu0 0
        %8461 = vmatpush1.bf16.msra.mxu0 %v8396
        %8462 = vmatprep.subr.bf16.mxu0 0
        %8463 = vmatpush1.bf16.msra.mxu0 %v8397
        %8464 = vmatprep.subr.bf16.mxu0 0
        %8465 = vmatpush1.bf16.msra.mxu0 %v8398
        %8466 = vmatprep.subr.bf16.mxu0 0
        %8467 = vmatpush1.bf16.msra.mxu0 %v8399
        %8468 = vmatprep.subr.bf16.mxu0 0
        %8469 = vmatpush1.bf16.msra.mxu0 %v8400
        %8470 = vmatprep.subr.bf16.mxu0 0
        %8471 = vmatpush1.bf16.msra.mxu0 %v8401
        %8472 = vmatprep.subr.bf16.mxu0 0
        %8473 = vmatpush1.bf16.msra.mxu0 %v8402
        %8474 = vmatprep.subr.bf16.mxu0 0
        %8475 = vmatpush1.bf16.msra.mxu0 %v8403
        %8476 = vmatprep.subr.bf16.mxu0 0
        %8477 = vmatpush1.bf16.msra.mxu0 %v8404
        %8478 = vmatprep.subr.bf16.mxu0 0
        %8479 = vmatpush1.bf16.msra.mxu0 %v8405
        %8480 = vmatprep.subr.bf16.mxu0 0
        %8481 = vmatpush1.bf16.msra.mxu0 %v8406
        %8482 = vmatprep.subr.bf16.mxu0 0
        %8483 = vmatpush1.bf16.msra.mxu0 %v8407
        %8484 = vmatprep.subr.bf16.mxu0 0
        %8485 = vmatpush1.bf16.msra.mxu0 %v8408
        %8486 = vmatprep.subr.bf16.mxu0 0
        %8487 = vmatpush1.bf16.msra.mxu0 %v8409
        %8488 = vmatprep.subr.bf16.mxu0 0
        %8489 = vmatpush1.bf16.msra.mxu0 %v8410
        %8490 = vmatprep.subr.bf16.mxu0 0
        %8491 = vmatpush1.bf16.msra.mxu0 %v8411
        %8492 = vmatprep.mubr.bf16.mxu0 %v8190
        %8493 = vmatmul.mubr.bf16.gmra.mrb[0].mxu0 %v8189
        %v8494 = vpop.f32.mrb[0].mxu0
        %v8495 = vadd.f32 %v8266, %v8494
        %v8496 = vpop.f32.mrb[0].mxu0
        %v8497 = vpop.f32.mrb[0].mxu0
        %v8498 = vadd.f32 %v8266, %v8497
        %v8499 = vpop.f32.mrb[0].mxu0
        %8500 = vmatprep.mubr.bf16.mxu0 %v8192
        %8501 = vmatmul.mubr.bf16.gmra.mrb[0].mxu0 %v8191
        %v8502 = vpop.f32.mrb[0].mxu0
        %v8503 = vadd.f32 %v8266, %v8502
        %v8504 = vpop.f32.mrb[0].mxu0
        %v8505 = vpop.f32.mrb[0].mxu0
        %v8506 = vadd.f32 %v8266, %v8505
        %v8507 = vpop.f32.mrb[0].mxu0
        %8508 = vmatprep.mubr.bf16.mxu0 %v8194
        %8509 = vmatmul.mubr.bf16.gmra.mrb[0].mxu0 %v8193
        %v8510 = vpop.f32.mrb[0].mxu0
        %v8511 = vadd.f32 %v8266, %v8510
        %v8512 = vpop.f32.mrb[0].mxu0
        %v8513 = vpop.f32.mrb[0].mxu0
        %v8514 = vadd.f32 %v8266, %v8513
        %v8515 = vpop.f32.mrb[0].mxu0
        %8516 = vmatprep.mubr.bf16.mxu0 %v8196
        %8517 = vmatmul.mubr.bf16.gmra.mrb[0].mxu0 %v8195
        %v8518 = vpop.f32.mrb[0].mxu0
        %v8519 = vadd.f32 %v8266, %v8518
        %v8520 = vpop.f32.mrb[0].mxu0
        %v8521 = vpop.f32.mrb[0].mxu0
        %v8522 = vadd.f32 %v8266, %v8521
        %v8523 = vpop.f32.mrb[0].mxu0
        %8524 = vdwg.mxu0
        %8525 = vmatprep.subr.bf16.mxu0 0
        %8526 = vmatpush1.bf16.msra.mxu0 %v8412
        %8527 = vmatprep.subr.bf16.mxu0 0
        %8528 = vmatpush1.bf16.msra.mxu0 %v8413
        %8529 = vmatprep.subr.bf16.mxu0 0
        %8530 = vmatpush1.bf16.msra.mxu0 %v8414
        %8531 = vmatprep.subr.bf16.mxu0 0
        %8532 = vmatpush1.bf16.msra.mxu0 %v8415
        %8533 = vmatprep.subr.bf16.mxu0 0
        %8534 = vmatpush1.bf16.msra.mxu0 %v8416
        %8535 = vmatprep.subr.bf16.mxu0 0
        %8536 = vmatpush1.bf16.msra.mxu0 %v8417
        %8537 = vmatprep.subr.bf16.mxu0 0
        %8538 = vmatpush1.bf16.msra.mxu0 %v8418
        %8539 = vmatprep.subr.bf16.mxu0 0
        %8540 = vmatpush1.bf16.msra.mxu0 %v8419
        %8541 = vmatprep.subr.bf16.mxu0 0
        %8542 = vmatpush1.bf16.msra.mxu0 %v8420
        %8543 = vmatprep.subr.bf16.mxu0 0
        %8544 = vmatpush1.bf16.msra.mxu0 %v8421
        %8545 = vmatprep.subr.bf16.mxu0 0
        %8546 = vmatpush1.bf16.msra.mxu0 %v8422
        %8547 = vmatprep.subr.bf16.mxu0 0
        %8548 = vmatpush1.bf16.msra.mxu0 %v8423
        %8549 = vmatprep.subr.bf16.mxu0 0
        %8550 = vmatpush1.bf16.msra.mxu0 %v8424
        %8551 = vmatprep.subr.bf16.mxu0 0
        %8552 = vmatpush1.bf16.msra.mxu0 %v8425
        %8553 = vmatprep.subr.bf16.mxu0 0
        %8554 = vmatpush1.bf16.msra.mxu0 %v8426
        %8555 = vmatprep.subr.bf16.mxu0 0
        %8556 = vmatpush1.bf16.msra.mxu0 %v8427
        %8557 = vmatprep.mubr.bf16.mxu0 %v5418
        %8558 = vmatmul.mubr.bf16.gmra.mrb[0].mxu0 %v6393
        %v8559 = vpop.f32.mrb[0].mxu0
        %v8560 = vadd.f32 %v8495, %v8559
        %v8561 = vpop.f32.mrb[0].mxu0
        %v8562 = vpop.f32.mrb[0].mxu0
        %v8563 = vadd.f32 %v8498, %v8562
        %v8564 = vpop.f32.mrb[0].mxu0
        %8565 = vmatprep.mubr.bf16.mxu0 %v5419
        %8566 = vmatmul.mubr.bf16.gmra.mrb[0].mxu0 %v6394
        %v8567 = vpop.f32.mrb[0].mxu0
        %v8568 = vadd.f32 %v8503, %v8567
        %v8569 = vpop.f32.mrb[0].mxu0
        %v8570 = vpop.f32.mrb[0].mxu0
        %v8571 = vadd.f32 %v8506, %v8570
        %v8572 = vpop.f32.mrb[0].mxu0
        %8573 = vmatprep.mubr.bf16.mxu0 %v5420
        %8574 = vmatmul.mubr.bf16.gmra.mrb[0].mxu0 %v6395
        %v8575 = vpop.f32.mrb[0].mxu0
        %v8576 = vadd.f32 %v8511, %v8575
        %v8577 = vpop.f32.mrb[0].mxu0
        %v8578 = vpop.f32.mrb[0].mxu0
        %v8579 = vadd.f32 %v8514, %v8578
        %v8580 = vpop.f32.mrb[0].mxu0
        %8581 = vmatprep.mubr.bf16.mxu0 %v5421
        %8582 = vmatmul.mubr.bf16.gmra.mrb[0].mxu0 %v6396
        %v8583 = vpop.f32.mrb[0].mxu0
        %v8584 = vadd.f32 %v8519, %v8583
        %v8585 = vpop.f32.mrb[0].mxu0
        %v8586 = vpop.f32.mrb[0].mxu0
        %v8587 = vadd.f32 %v8522, %v8586
        %v8588 = vpop.f32.mrb[0].mxu0
        %8589 = vdwg.mxu0
        %v8590 = vmax.f32 %v8560, 0.0
        %v8591 = vmax.f32 %v8563, 0.0
        %v8592 = vmax.f32 %v8568, 0.0
        %v8593 = vmax.f32 %v8571, 0.0
        %v8594 = vmax.f32 %v8576, 0.0
        %v8595 = vmax.f32 %v8579, 0.0
        %v8596 = vmax.f32 %v8584, 0.0
        %v8597 = vmax.f32 %v8587, 0.0
        %v8598 = vsel %vm2425, %v8590, 0.0
        %v8599 = vsel %vm2425, %v8591, 0.0
        %v8600 = vadd.f32 %v8598, %v8599
        %v8601 = vsel %vm2425, %v8592, 0.0
        %v8602 = vadd.f32 %v8600, %v8601
        %v8603 = vsel %vm2425, %v8593, 0.0
        %v8604 = vadd.f32 %v8602, %v8603
        %v8605 = vsel %vm2425, %v8594, 0.0
        %v8606 = vadd.f32 %v8604, %v8605
        %v8607 = vsel %vm2425, %v8595, 0.0
        %v8608 = vadd.f32 %v8606, %v8607
        %v8609 = vsel %vm2425, %v8596, 0.0
        %v8610 = vadd.f32 %v8608, %v8609
        %v8611 = vsel %vm2425, %v8597, 0.0
        %v8612 = vadd.f32 %v8610, %v8611
        %v8613 = vrot.slane %v8612, 4
        %v8614 = vadd.f32 %v8612, %v8613
        %v8615 = vrot.slane %v8614, 2
        %v8616 = vadd.f32 %v8614, %v8615
        %v8617 = vrot.slane %v8616, 1
        %v8618 = vadd.f32 %v8616, %v8617
        %v8619 = vmul.f32 %v8618, %v2447
        %8621 = vrot.lane.b32.xlu0 %v3511, 4
        %v8622 = vpop.permute.xlu0 %8621
        %8625 = vrot.lane.b32.xlu0 %v4508, 8
        %v8626 = vpop.permute.xlu0 %8625
        %8629 = vrot.lane.b32.xlu0 %v5587, 12
        %v8630 = vpop.permute.xlu0 %8629
        %8633 = vrot.lane.b32.xlu0 %v6626, 16
        %v8634 = vpop.permute.xlu0 %8633
        %8637 = vrot.lane.b32.xlu0 %v8619, 20
        %v8638 = vpop.permute.xlu0 %8637
        %v8640 = vsel %vm2425, %v2448, %v8622
        %v8641 = vsel %vm1634, %v8640, %v8626
        %vm8642 = vcmask 97280
        %v8643 = vsel %vm8642, %v8641, %v8630
        %v8644 = vsel %vm2339, %v8643, %v8634
        %vm8645 = vcmask 162816
        %v8646 = vsel %vm8645, %v8644, %v8638
        %v8647 = vld [vmem:[%s75] sm:$0xff]
        %v8648 = vld [vmem:[%s75 + $0x8] sm:$0xff]
        %v8649 = vld [vmem:[%s75 + $0x10] sm:$0xff]
        %v8650 = vld [vmem:[#allocation46] sm:$0x1]
        %vm8651 = vcmask 195584
        %v8653 = vsel %vm8651, %v8646, 0
        %8655 = vmatprep.subr.mxu0 0.0
        %8656 = vmatpush1.msra.mxu0 %v8647
        %8657 = vmatprep.subr.mxu0 0.0
        %8658 = vmatpush1.msra.mxu0 %v8648
        %8659 = vmatprep.subr.mxu0 0.0
        %8660 = vmatpush1.msra.mxu0 %v8649
        %8661 = vmatprep.subr.mxu0 0.0
        %8662 = vmatpush1.msra.mxu0 0.0
        %8663 = vmatprep.subr.mxu0 0.0
        %8664 = vmatpush1.msra.mxu0 0.0
        %8665 = vmatprep.subr.mxu0 0.0
        %8666 = vmatpush1.msra.mxu0 0.0
        %8667 = vmatprep.subr.mxu0 0.0
        %8668 = vmatpush1.msra.mxu0 0.0
        %8669 = vmatprep.subr.mxu0 0.0
        %8670 = vmatpush1.msra.mxu0 0.0
        %8671 = vmatprep.subr.mxu0 0.0
        %8672 = vmatpush1.msra.mxu0 0.0
        %8673 = vmatprep.subr.mxu0 0.0
        %8674 = vmatpush1.msra.mxu0 0.0
        %8675 = vmatprep.subr.mxu0 0.0
        %8676 = vmatpush1.msra.mxu0 0.0
        %8677 = vmatprep.subr.mxu0 0.0
        %8678 = vmatpush1.msra.mxu0 0.0
        %8679 = vmatprep.subr.mxu0 0.0
        %8680 = vmatpush1.msra.mxu0 0.0
        %8681 = vmatprep.subr.mxu0 0.0
        %8682 = vmatpush1.msra.mxu0 0.0
        %8683 = vmatprep.subr.mxu0 0.0
        %8684 = vmatpush1.msra.mxu0 0.0
        %8685 = vmatprep.subr.mxu0 0.0
        %8686 = vmatpush1.msra.mxu0 0.0
        %8687 = vmatprep.subr.mxu0 0.0
        %8688 = vmatpush1.msra.mxu0 0.0
        %8689 = vmatprep.subr.mxu0 0.0
        %8690 = vmatpush1.msra.mxu0 0.0
        %8691 = vmatprep.subr.mxu0 0.0
        %8692 = vmatpush1.msra.mxu0 0.0
        %8693 = vmatprep.subr.mxu0 0.0
        %8694 = vmatpush1.msra.mxu0 0.0
        %8695 = vmatprep.subr.mxu0 0.0
        %8696 = vmatpush1.msra.mxu0 0.0
        %8697 = vmatprep.subr.mxu0 0.0
        %8698 = vmatpush1.msra.mxu0 0.0
        %8699 = vmatprep.subr.mxu0 0.0
        %8700 = vmatpush1.msra.mxu0 0.0
        %8701 = vmatprep.subr.mxu0 0.0
        %8702 = vmatpush1.msra.mxu0 0.0
        %8703 = vmatprep.subr.mxu0 0.0
        %8704 = vmatpush1.msra.mxu0 0.0
        %8705 = vmatprep.subr.mxu0 0.0
        %8706 = vmatpush1.msra.mxu0 0.0
        %8707 = vmatprep.subr.mxu0 0.0
        %8708 = vmatpush1.msra.mxu0 0.0
        %8709 = vmatprep.subr.mxu0 0.0
        %8710 = vmatpush1.msra.mxu0 0.0
        %8711 = vmatprep.subr.mxu0 0.0
        %8712 = vmatpush1.msra.mxu0 0.0
        %8713 = vmatprep.subr.mxu0 0.0
        %8714 = vmatpush1.msra.mxu0 0.0
        %8715 = vmatprep.subr.mxu0 0.0
        %8716 = vmatpush1.msra.mxu0 0.0
        %8717 = vmatprep.subr.mxu0 0.0
        %8718 = vmatpush1.msra.mxu0 0.0
        %8719 = vmatprep.mubr.f32.mxu0 0.0
        %8720 = vmatmul.mubr.f32.gmra.mrb[0].mxu0 %v8653
        %v8721 = vpop.f32.mrb[0].mxu0
        %v8722 = vadd.f32 %v8650, %v8721
        %v8723 = vpop.f32.mrb[0].mxu0
        %8724 = vdwg.mxu0
        %vm8725 = vcmask 16384
        %8726 = vst.msk [vmem:[%s1499] sm:$0x1] %vm8725, %v8722
        %s8727 = sand.u32 %s938, 1
        %s8728 = scalar_lea.sflag [#allocation10], %s8727
        %s8729 = sand.u32 %s938, 1
        %s8730 = scalar_lea.vmem [#allocation47], %s8729
        // Predicated region
        $region277: #{tbdm_forward.1} parent=175 // pred_check
          %p8731 = pneg %p948
        $region278: #{tbdm_forward.1} parent=175 // pred_check_branch
          %8733 = sbr.rel (%p8731) target = $region280
        $region279: #{tbdm_forward.1} parent=175 // pred_region
          %s8735 = ssub.s32 16, 16
          %8736 = vsyncadd %s8728, %s8735
          %s8737 = smul.addr %s106, 16
          %s8738 = scalar_lea.hbm %s79, %s8737
          %s8740 = sshll.u32 %s8730, 4
          %s8741 = int_to_ptr.vmem [resolvable:$true] %s8740
          %8743 = dma.vmem_to_hbm [thread:$0]  %s8741, 16, %s8738, %s8728
        $region280: #{tbdm_forward.1} parent=175 // pred_fallthru
          _
      $region176: #{tbdm_forward.1} parent=5 // pred_fallthru
        _
      %p8744 = scmp.le.s32.totalorder 2, %s101
      // Predicated region
      $region281: #{tbdm_forward.1} parent=5 // pred_check
        %p8745 = pneg %p8744
      $region282: #{tbdm_forward.1} parent=5 // pred_check_branch
        %8747 = sbr.rel (%p8745) target = $region284
      $region283: #{tbdm_forward.1} parent=5 // pred_region
        %s8748 = ssub.s32 %s101, 2
        // Predicated region
        $region285: #{tbdm_forward.1} parent=283 // pred_check
          %p8749 = pneg %p954
        $region286: #{tbdm_forward.1} parent=283 // pred_check_branch
          %8751 = sbr.rel (%p8749) target = $region288
        $region287: #{tbdm_forward.1} parent=283 // pred_region
          %s8752 = sand.u32 %s939, 1
          %s8753 = scalar_lea.sflag [#allocation10], %s8752
          %s8754 = sand.u32 %s939, 1
          %s8755 = scalar_lea.vmem [#allocation47], %s8754
          %8756 = dma.done %s8753, 16
        $region288: #{tbdm_forward.1} parent=283 // pred_fallthru
          _
      $region284: #{tbdm_forward.1} parent=5 // pred_fallthru
        _
    $region6: #{tbdm_forward.1} parent=1 // loop_footer
      %s105 = sadd.s32 1, %s101
    $region7: #{tbdm_forward.1} parent=1 // loop_footer_branch
      %100 = sbr.rel target = $region3
    $region8: #{tbdm_forward.1} parent=1 // loop_exit
      _
    %8757 = vsyncpa [#allocation9], 1
    %s8758 = scalar_lea.sflag [#allocation9], 1
    %8759 = vsyncpa %s8758, 1
    %8760 = vsyncpa [#allocation12], 1
    %8761 = vsyncpa [#allocation15], 1
    %8762 = vsyncpa [#allocation18], 1
    %8763 = vsyncpa [#allocation21], 1
    %8764 = vsyncpa [#allocation24], 1
    %8765 = vsyncpa [#allocation27], 1
    %8766 = vsyncpa [#allocation30], 1
    %8767 = vsyncpa [#allocation33], 1
    %8768 = vsyncpa [#allocation36], 1
    %8769 = vsyncpa [#allocation39], 1
    %8770 = vsyncpa [#allocation42], 1
    %8771 = vsyncpa [#allocation45], 1
    %8772 = vsyncpa [#allocation10], 1
    %s8773 = scalar_lea.sflag [#allocation10], 1
    %8774 = vsyncpa %s8773, 1

</llo_original>
